<compile_context>
chip_gen: v7x
topology: tpu7x:2x2x1
jax: 0.10.0
libtpu: 0.0.40
codegen_flags: <defaults>
</compile_context>

<pallas_src>
import functools
import math

import numpy as np

import jax
import jax.numpy as jnp
from jax.experimental import pallas as pl
from jax.experimental.pallas import tpu as pltpu

SELU_ALPHA = 1.6732632423543772
SELU_SCALE = 1.0507009873554805


# --------------------------------------------------------------------------- #
# Small in-kernel helpers (all element-wise math stays in f32)
# --------------------------------------------------------------------------- #
def _relu(y):
    return jnp.maximum(y, 0.0)


def _selu(y):
    # exp only sees the non-positive branch -> no overflow in the unselected lane
    return SELU_SCALE * jnp.where(y > 0.0, y, SELU_ALPHA * (jnp.exp(jnp.minimum(y, 0.0)) - 1.0))


# --------------------------------------------------------------------------- #
# The single fused Pallas kernel (one grid step == one batch element)
# --------------------------------------------------------------------------- #
def _backbone_kernel(p1_ref, tid_ref, jnt_ref,
                     c1w, c1b, sel2, c2w, c2b,
                     nw, nb, mwe, posb,
                     ppw, ppb,
                     cew, ceb,
                     hw1, hb1, hw2, hb2,
                     tkw, tkb, jw, jb,
                     aqw, aqb, dqw, dqb,
                     wqkv, bqkv, ow, ob,
                     tp1w, tp1b, tp2w, tp2b,
                     ctw, ctb,
                     attn_ref, out_ref,
                     cortex_scr, *, num_heads):
    f32 = jnp.float32

    def mm(x, w_ref):
        w = w_ref[...]
        return jnp.dot(x.astype(w.dtype), w, preferred_element_type=f32)

    # ---- visual encoder: conv1 (im2col patches arrive from the wrapper) ------------------- #
    c1 = _relu(mm(p1_ref[0], c1w) + c1b[...])                       # (HW1, ngf)

    # ---- conv2: in-kernel im2col via a precomputed 0/1 gather matrix ----------------------- #
    n_patch = posb.shape[0]                                         # conv2 output tokens (HW)
    n_taps = c2w.shape[0]                                           # 9
    gat = jnp.dot(sel2[...], c1.astype(sel2.dtype),
                  preferred_element_type=f32)                       # (9*HW, ngf): tap-major rows
    acc2 = jnp.zeros((n_patch, c2w.shape[2]), f32)
    for t in range(n_taps):
        tap = gat[t * n_patch:(t + 1) * n_patch, :]                 # 8-aligned sublane slice
        acc2 = acc2 + jnp.dot(tap.astype(c2w.dtype), c2w[t],
                              preferred_element_type=f32)
    c2 = _relu(acc2 + c2b[...])                                     # (HW, ngf*cm)

    # ---- narrower -> pos-merge (pos + bias folded into posb) -> prepro --------------------- #
    narrow = _relu(mm(c2, nw) + nb[...])                            # (HW, emb)
    merged = _relu(mm(narrow, mwe) + posb[...])                     # (HW, emb)
    pre = _selu(mm(merged, ppw) + ppb[...])                         # (HW, emb)

    # ---- img_embedding_converter (K-blocked, no flatten reshape) + fused heads ------------- #
    accc = ceb[...].astype(f32)                                     # (1, emb)
    for si in range(n_patch):
        accc = accc + jnp.dot(merged[si:si + 1, :].astype(cew.dtype), cew[si],
                              preferred_element_type=f32)
    conv = _relu(accc)                                              # (1, emb)
    hid = _selu(mm(conv, hw1) + hb1[...])                           # (1, 3*64)
    head_out = mm(hid, hw2) + hb2[...]                              # (1, 8+2+6) block-diag

    # ---- task / joint encoders + action / displacement query mergers ----------------------- #
    t_emb = _relu(mm(tid_ref[0], tkw) + tkb[...])                   # (1, emb)
    j_emb = _relu(mm(jnt_ref[0], jw) + jb[...])                     # (1, emb)
    a_q = _relu(mm(t_emb, aqw) + aqb[...])                          # query param folded in bias
    d_q = _relu(mm(t_emb, dqw) + dqb[...])

    # ---- assemble cortex = [task, action_q, disp_q, joint, img tokens] in VMEM ------------- #
    cortex_scr[0:1, :] = t_emb
    cortex_scr[1:2, :] = a_q
    cortex_scr[2:3, :] = d_q
    cortex_scr[3:4, :] = j_emb
    cortex_scr[4:4 + n_patch, :] = pre
    cortex = cortex_scr[...]                                        # (S, emb)

    # ---- multi-head self-attention (fused QKV, scale folded into Q weights) ---------------- #
    emb = ow.shape[0]
    hd = emb // num_heads
    qkv = mm(cortex, wqkv) + bqkv[...]                              # (S, 3*emb)
    qs = jnp.stack([qkv[:, h * hd:(h + 1) * hd] for h in range(num_heads)], axis=0)
    ks = jnp.stack([qkv[:, emb + h * hd:emb + (h + 1) * hd] for h in range(num_heads)], axis=0)
    vs = jnp.stack([qkv[:, 2 * emb + h * hd:2 * emb + (h + 1) * hd] for h in range(num_heads)],
                   axis=0)                                          # (H, S, hd)

    logits = jnp.einsum("hqd,hkd->hqk", qs, ks, preferred_element_type=f32)   # (H, S, S)
    logits = logits - jnp.max(logits, axis=-1, keepdims=True)
    ex = jnp.exp(logits)
    probs = ex / jnp.sum(ex, axis=-1, keepdims=True)                # exact softmax
    attn_ref[0] = probs

    vals = jnp.einsum("hqk,hkd->hqd", probs, vs, preferred_element_type=f32)  # (H, S, hd)
    ctx = jnp.concatenate([vals[h] for h in range(num_heads)], axis=-1)       # (S, emb)
    state = mm(ctx, ow) + ob[...]                                   # single K=emb o_proj matmul

    # ---- target-position head (token 0) + controller (token 1) ----------------------------- #
    tph = _selu(mm(state[0:1, :], tp1w) + tp1b[...])
    tpos = mm(tph, tp2w) + tp2b[...]                                # (1, 2)
    act = mm(state[1:2, :], ctw) + ctb[...]                         # (1, num_joints*2)

    # packed lane-dense small-output row: [joints | end_pos | object | target_pos | action]
    out_ref[0] = jnp.concatenate([head_out, tpos, act], axis=-1)


# --------------------------------------------------------------------------- #
# conv1 im2col (cheap one-time XLA glue on the raw input)
# --------------------------------------------------------------------------- #
def _im2col(x_nhwc, kh, kw, stride, pad):
    B, H, W, C = x_nhwc.shape
    xp = jnp.pad(x_nhwc, ((0, 0), (pad, pad), (pad, pad), (0, 0)))
    Ho = (H + 2 * pad - kh) // stride + 1
    Wo = (W + 2 * pad - kw) // stride + 1
    cols = []
    for i in range(kh):
        for j in range(kw):
            cols.append(xp[:, i:i + Ho * stride:stride, j:j + Wo * stride:stride, :])
    patches = jnp.concatenate(cols, axis=-1).reshape(B, Ho * Wo, kh * kw * C)
    return patches, Ho, Wo


# --------------------------------------------------------------------------- #
# Parameter construction (deterministic, synthetic)
# --------------------------------------------------------------------------- #
def _dense(key, nin, nout):
    kw, kb = jax.random.split(key)
    w = jax.random.normal(kw, (nin, nout), jnp.float32) * (1.0 / math.sqrt(nin))
    b = jax.random.normal(kb, (nout,), jnp.float32) * 0.01
    return w, b


def init_params(key, *, img_ch=3, ngf=16, cm=4, emb=128, num_joints=4,
                num_tasks=5, img_size=16):
    Hout = img_size // 4
    # honor the hard-coded img_embedding_converter input-dim formula
    assert Hout * Hout * emb == 64 * 2 * img_size * img_size // 16
    keys = jax.random.split(key, 40)
    p = {}
    # TODO(synk): ImgEncoder source not provided; stand-in = two stride-2 conv+ReLU blocks.
    p["conv1_w"] = jax.random.normal(keys[0], (3, 3, img_ch, ngf), jnp.float32) * 0.1
    p["conv1_b"] = jnp.zeros((ngf,), jnp.float32)
    p["conv2_w"] = jax.random.normal(keys[1], (3, 3, ngf, ngf * cm), jnp.float32) * 0.1
    p["conv2_b"] = jnp.zeros((ngf * cm,), jnp.float32)

    p["narrow_w"], p["narrow_b"] = _dense(keys[2], ngf * cm, emb)
    p["merge_w"], p["merge_b"] = _dense(keys[3], emb + 2, emb)
    p["prepro_w"], p["prepro_b"] = _dense(keys[4], emb, emb)

    p["q_w"], p["q_b"] = _dense(keys[5], emb, emb)
    p["k_w"], p["k_b"] = _dense(keys[6], emb, emb)
    p["v_w"], p["v_b"] = _dense(keys[7], emb, emb)
    p["o_w"], p["o_b"] = _dense(keys[8], emb, emb)

    # TODO(synk): TaskIDEncoder / JointEncoder source not provided; stand-in = Linear+ReLU.
    p["task_w"], p["task_b"] = _dense(keys[9], num_tasks, emb)
    p["joint_w"], p["joint_b"] = _dense(keys[10], num_joints * 2, emb)

    p["action_query"] = jax.random.uniform(keys[11], (emb,), jnp.float32)
    p["displacement_query"] = jax.random.uniform(keys[12], (emb,), jnp.float32)
    p["act_merge_w"], p["act_merge_b"] = _dense(keys[13], 2 * emb, emb)
    p["disp_merge_w"], p["disp_merge_b"] = _dense(keys[14], 2 * emb, emb)

    # TODO(synk): Controller source not provided; stand-in = single Linear(emb -> num_joints*2).
    p["ctrl_w"], p["ctrl_b"] = _dense(keys[15], emb, num_joints * 2)

    p["tp1_w"], p["tp1_b"] = _dense(keys[16], emb, 128)
    p["tp2_w"], p["tp2_b"] = _dense(keys[17], 128, 2)

    p["conv_emb_w"], p["conv_emb_b"] = _dense(keys[18], Hout * Hout * emb, emb)

    p["jp1_w"], p["jp1_b"] = _dense(keys[19], emb, 64)
    p["jp2_w"], p["jp2_b"] = _dense(keys[20], 64, num_joints * 2)
    p["ep1_w"], p["ep1_b"] = _dense(keys[21], emb, 64)
    p["ep2_w"], p["ep2_b"] = _dense(keys[22], 64, 2)
    p["od1_w"], p["od1_b"] = _dense(keys[23], emb, 64)
    p["od2_w"], p["od2_b"] = _dense(keys[24], 64, 6)
    return p


# --------------------------------------------------------------------------- #
# One-time parameter re-packing so the forward pass is a single fused kernel
# --------------------------------------------------------------------------- #
def fuse_params(p, *, num_heads=8, img_size=16, matmul_dtype=jnp.bfloat16):
    emb = p["q_w"].shape[0]
    hd = emb // num_heads
    dt = matmul_dtype
    H1 = W1 = img_size // 2            # conv1 output spatial
    H2 = W2 = img_size // 4            # conv2 output spatial
    HW = H2 * W2

    f = {}
    # conv1 (im2col matmul form)
    f["c1_w"] = p["conv1_w"].reshape(-1, p["conv1_w"].shape[-1]).astype(dt)          # (27, ngf)
    f["c1_b"] = p["conv1_b"].reshape(1, -1).astype(jnp.float32)

    # conv2: 0/1 gather matrix (im2col as one matmul) + per-tap weights
    sel = np.zeros((9 * HW, H1 * W1), np.float32)
    for t in range(9):
        ki, kj = divmod(t, 3)
        for op in range(H2):
            for oq in range(W2):
                r, c = 2 * op + ki - 1, 2 * oq + kj - 1
                if 0 <= r < H1 and 0 <= c < W1:
                    sel[t * HW + op * W2 + oq, r * W1 + c] = 1.0
    f["sel2"] = jnp.asarray(sel, dtype=dt)                                            # (9*HW, HW1)
    f["c2_w"] = p["conv2_w"].reshape(9, p["conv2_w"].shape[2],
                                     p["conv2_w"].shape[3]).astype(dt)                # (9, ngf, C2)
    f["c2_b"] = p["conv2_b"].reshape(1, -1).astype(jnp.float32)

    f["narrow_w"] = p["narrow_w"].astype(dt)
    f["narrow_b"] = p["narrow_b"].reshape(1, -1).astype(jnp.float32)

    # pos-merge: split merge_w, fold the constant positional contribution + bias into (HW, emb)
    f["merge_w_e"] = p["merge_w"][:emb, :].astype(dt)
    pw = jnp.tile(jnp.arange(-W2 // 2, W2 - W2 // 2, dtype=jnp.float32), H2)
    ph = jnp.repeat(jnp.arange(H2 - 1 - H2 // 2, -1 - H2 // 2, -1, dtype=jnp.float32), W2)
    pos = jnp.stack([pw, ph], axis=-1)                                                # (HW, 2)
    f["pos_bias"] = (pos @ p["merge_w"][emb:emb + 2, :]
                     + p["merge_b"][None, :]).astype(jnp.float32)                     # (HW, emb)

    f["prepro_w"] = p["prepro_w"].astype(dt)
    f["prepro_b"] = p["prepro_b"].reshape(1, -1).astype(jnp.float32)

    # converter reshaped into HW K-blocks of (emb, emb)
    f["conv_emb_w"] = p["conv_emb_w"].reshape(HW, emb, emb).astype(dt)
    f["conv_emb_b"] = p["conv_emb_b"].reshape(1, -1).astype(jnp.float32)

    # fused prediction heads: concatenated first layer, block-diagonal second layer
    f["head_w1"] = jnp.concatenate([p["jp1_w"], p["ep1_w"], p["od1_w"]], axis=1).astype(dt)
    f["head_b1"] = jnp.concatenate([p["jp1_b"], p["ep1_b"], p["od1_b"]]).reshape(1, -1)
    h1, h2, h3 = p["jp2_w"].shape[0], p["ep2_w"].shape[0], p["od2_w"].shape[0]
    o1, o2, o3 = p["jp2_w"].shape[1], p["ep2_w"].shape[1], p["od2_w"].shape[1]
    w2 = jnp.zeros((h1 + h2 + h3, o1 + o2 + o3), jnp.float32)
    w2 = w2.at[:h1, :o1].set(p["jp2_w"])
    w2 = w2.at[h1:h1 + h2, o1:o1 + o2].set(p["ep2_w"])
    w2 = w2.at[h1 + h2:, o1 + o2:].set(p["od2_w"])
    f["head_w2"] = w2.astype(dt)
    f["head_b2"] = jnp.concatenate([p["jp2_b"], p["ep2_b"], p["od2_b"]]).reshape(1, -1)

    # encoders + query mergers (constant query parameters folded into bias rows)
    f["task_w"] = p["task_w"].astype(dt)
    f["task_b"] = p["task_b"].reshape(1, -1).astype(jnp.float32)
    f["joint_w"] = p["joint_w"].astype(dt)
    f["joint_b"] = p["joint_b"].reshape(1, -1).astype(jnp.float32)
    f["act_w"] = p["act_merge_w"][:emb, :].astype(dt)
    f["act_b"] = (p["action_query"][None, :] @ p["act_merge_w"][emb:, :]
                  + p["act_merge_b"][None, :]).astype(jnp.float32)
    f["disp_w"] = p["disp_merge_w"][:emb, :].astype(dt)
    f["disp_b"] = (p["displacement_query"][None, :] @ p["disp_merge_w"][emb:, :]
                   + p["disp_merge_b"][None, :]).astype(jnp.float32)

    # attention: fused QKV with 1/sqrt(hd) folded into the Q columns (and Q bias)
    scale = 1.0 / math.sqrt(hd)
    f["wqkv"] = jnp.concatenate([p["q_w"] * scale, p["k_w"], p["v_w"]], axis=1).astype(dt)
    f["bqkv"] = jnp.concatenate([p["q_b"] * scale, p["k_b"], p["v_b"]]).reshape(1, -1)
    f["o_w"] = p["o_w"].astype(dt)
    f["o_b"] = p["o_b"].reshape(1, -1).astype(jnp.float32)

    f["tp1_w"] = p["tp1_w"].astype(dt)
    f["tp1_b"] = p["tp1_b"].reshape(1, -1).astype(jnp.float32)
    f["tp2_w"] = p["tp2_w"].astype(dt)
    f["tp2_b"] = p["tp2_b"].reshape(1, -1).astype(jnp.float32)
    f["ctrl_w"] = p["ctrl_w"].astype(dt)
    f["ctrl_b"] = p["ctrl_b"].reshape(1, -1).astype(jnp.float32)
    return f


_WEIGHT_NAMES = ["c1_w", "c1_b", "sel2", "c2_w", "c2_b",
                 "narrow_w", "narrow_b", "merge_w_e", "pos_bias",
                 "prepro_w", "prepro_b",
                 "conv_emb_w", "conv_emb_b",
                 "head_w1", "head_b1", "head_w2", "head_b2",
                 "task_w", "task_b", "joint_w", "joint_b",
                 "act_w", "act_b", "disp_w", "disp_b",
                 "wqkv", "bqkv", "o_w", "o_b",
                 "tp1_w", "tp1_b", "tp2_w", "tp2_b",
                 "ctrl_w", "ctrl_b"]


# --------------------------------------------------------------------------- #
# Backbone forward: one fused pallas_call, grid=(B,), "parallel"
# --------------------------------------------------------------------------- #
def backbone_forward(fp, img, joints, target_id, *, num_heads=8):
    B = img.shape[0]
    emb = fp["o_w"].shape[0]
    n_patch = fp["pos_bias"].shape[0]
    S = 4 + n_patch

    # NCHW -> NHWC, conv1 im2col (one-time XLA glue on the raw input; everything downstream
    # stays inside the single fused Pallas kernel).
    x = jnp.transpose(img, (0, 2, 3, 1)).astype(jnp.float32)
    p1, _, _ = _im2col(x, 3, 3, stride=2, pad=1)                    # (B, HW1, 9*C)

    tid = target_id.reshape(B, 1, -1).astype(jnp.float32)
    jnt = joints.reshape(B, 1, -1).astype(jnp.float32)

    weights = [fp[k] for k in _WEIGHT_NAMES]
    n_small = fp["head_w2"].shape[1] + fp["tp2_w"].shape[1] + fp["ctrl_w"].shape[1]

    def _per_batch(a):
        nd = a.ndim
        return pl.BlockSpec((1,) + a.shape[1:], lambda b, nd=nd: (b,) + (0,) * (nd - 1))

    def _const(a):
        nd = a.ndim
        return pl.BlockSpec(a.shape, lambda b, nd=nd: (0,) * nd)

    in_specs = [_per_batch(p1), _per_batch(tid), _per_batch(jnt)] + [_const(w) for w in weights]

    attn_map, packed = pl.pallas_call(
        functools.partial(_backbone_kernel, num_heads=num_heads),
        grid=(B,),
        in_specs=in_specs,
        out_specs=[
            pl.BlockSpec((1, num_heads, S, S), lambda b: (b, 0, 0, 0)),
            pl.BlockSpec((1, 1, n_small), lambda b: (b, 0, 0)),
        ],
        out_shape=[
            jax.ShapeDtypeStruct((B, num_heads, S, S), jnp.float32),
            jax.ShapeDtypeStruct((B, 1, n_small), jnp.float32),
        ],
        scratch_shapes=[pltpu.VMEM((S, emb), jnp.float32)],
        compiler_params=pltpu.CompilerParams(dimension_semantics=("parallel",)),
    )(p1, tid, jnt, *weights)

    small = packed[:, 0, :]
    o1 = joints.shape[-1]          # num_joints * 2
    o2 = 2                         # end-position head width (fixed by the module)
    o3 = 6                         # object-detector head width (fixed by the module)
    to = fp["tp2_w"].shape[1]      # target-position head width
    joints_pred = small[:, :o1]
    end_position_pred = small[:, o1:o1 + o2]
    object_list_pred = small[:, o1 + o2:o1 + o2 + o3]
    target_position_pred = small[:, o1 + o2 + o3:o1 + o2 + o3 + to]
    action_pred = small[:, o1 + o2 + o3 + to:]

    return (action_pred, joints_pred, end_position_pred, object_list_pred,
            target_position_pred, attn_map)


# --------------------------------------------------------------------------- #
# Demo
# --------------------------------------------------------------------------- #
if __name__ == "__main__":
    B, IMG_CH, IMG_SIZE = 2, 3, 16
    NUM_JOINTS, NUM_TASKS, EMB = 4, 5, 128
    NUM_HEADS = 8

    key = jax.random.PRNGKey(0)
    k_par, k_img, k_joint = jax.random.split(key, 3)

    params = init_params(k_par, img_ch=IMG_CH, ngf=16, cm=4, emb=EMB,
                         num_joints=NUM_JOINTS, num_tasks=NUM_TASKS, img_size=IMG_SIZE)
    fp = fuse_params(params, num_heads=NUM_HEADS, img_size=IMG_SIZE,
                     matmul_dtype=jnp.bfloat16)

    img = jax.random.normal(k_img, (B, IMG_CH, IMG_SIZE, IMG_SIZE), jnp.float32)  # NCHW input
    joints = jax.random.normal(k_joint, (B, NUM_JOINTS * 2), jnp.float32)
    target_id = jax.nn.one_hot(jnp.array([0, 1]), NUM_TASKS, dtype=jnp.float32)

    fwd = jax.jit(functools.partial(backbone_forward, num_heads=NUM_HEADS))
    outs = jax.block_until_ready(fwd(fp, img, joints, target_id))

    action_pred, joints_pred, end_pos_pred, obj_pred, tgt_pos_pred, attn_map = outs
    S = 4 + (IMG_SIZE // 4) ** 2
    assert action_pred.shape == (B, NUM_JOINTS * 2)
    assert joints_pred.shape == (B, NUM_JOINTS * 2)
    assert end_pos_pred.shape == (B, 2)
    assert obj_pred.shape == (B, 6)
    assert tgt_pos_pred.shape == (B, 2)
    assert attn_map.shape == (B, NUM_HEADS, S, S)
    assert all(bool(jnp.all(jnp.isfinite(o))) for o in outs)
    print("KERNEL_OK")
</pallas_src>

<mosaic_0001>
module attributes {stable_mosaic.version = 11 : i64} {
  func.func @_backbone_kernel(%arg0: i32, %arg1: memref<1x64x27xf32, #tpu.memory_space<vmem>>, %arg2: memref<1x1x5xf32, #tpu.memory_space<vmem>>, %arg3: memref<1x1x8xf32, #tpu.memory_space<vmem>>, %arg4: memref<27x16xbf16, #tpu.memory_space<vmem>>, %arg5: memref<1x16xf32, #tpu.memory_space<vmem>>, %arg6: memref<144x64xbf16, #tpu.memory_space<vmem>>, %arg7: memref<9x16x64xbf16, #tpu.memory_space<vmem>>, %arg8: memref<1x64xf32, #tpu.memory_space<vmem>>, %arg9: memref<64x128xbf16, #tpu.memory_space<vmem>>, %arg10: memref<1x128xf32, #tpu.memory_space<vmem>>, %arg11: memref<128x128xbf16, #tpu.memory_space<vmem>>, %arg12: memref<16x128xf32, #tpu.memory_space<vmem>>, %arg13: memref<128x128xbf16, #tpu.memory_space<vmem>>, %arg14: memref<1x128xf32, #tpu.memory_space<vmem>>, %arg15: memref<16x128x128xbf16, #tpu.memory_space<vmem>>, %arg16: memref<1x128xf32, #tpu.memory_space<vmem>>, %arg17: memref<128x192xbf16, #tpu.memory_space<vmem>>, %arg18: memref<1x192xf32, #tpu.memory_space<vmem>>, %arg19: memref<192x16xbf16, #tpu.memory_space<vmem>>, %arg20: memref<1x16xf32, #tpu.memory_space<vmem>>, %arg21: memref<5x128xbf16, #tpu.memory_space<vmem>>, %arg22: memref<1x128xf32, #tpu.memory_space<vmem>>, %arg23: memref<8x128xbf16, #tpu.memory_space<vmem>>, %arg24: memref<1x128xf32, #tpu.memory_space<vmem>>, %arg25: memref<128x128xbf16, #tpu.memory_space<vmem>>, %arg26: memref<1x128xf32, #tpu.memory_space<vmem>>, %arg27: memref<128x128xbf16, #tpu.memory_space<vmem>>, %arg28: memref<1x128xf32, #tpu.memory_space<vmem>>, %arg29: memref<128x384xbf16, #tpu.memory_space<vmem>>, %arg30: memref<1x384xf32, #tpu.memory_space<vmem>>, %arg31: memref<128x128xbf16, #tpu.memory_space<vmem>>, %arg32: memref<1x128xf32, #tpu.memory_space<vmem>>, %arg33: memref<128x128xbf16, #tpu.memory_space<vmem>>, %arg34: memref<1x128xf32, #tpu.memory_space<vmem>>, %arg35: memref<128x2xbf16, #tpu.memory_space<vmem>>, %arg36: memref<1x2xf32, #tpu.memory_space<vmem>>, %arg37: memref<128x8xbf16, #tpu.memory_space<vmem>>, %arg38: memref<1x8xf32, #tpu.memory_space<vmem>>, %arg39: memref<1x8x20x20xf32, #tpu.memory_space<vmem>>, %arg40: memref<1x1x26xf32, #tpu.memory_space<vmem>>, %arg41: memref<20x128xf32, #tpu.memory_space<vmem>>) attributes {dimension_semantics = [#tpu.dimension_semantics<parallel>], iteration_bounds = array<i64: 2>, scalar_prefetch = 0 : i64, scratch_operands = 1 : i64, tpu.core_type = #tpu.core_type<tc>, window_params = [{transform_indices = @transform_0, window_bounds = array<i64: 1, 64, 27>}, {transform_indices = @transform_1, window_bounds = array<i64: 1, 1, 5>}, {transform_indices = @transform_2, window_bounds = array<i64: 1, 1, 8>}, {pipeline_mode = #tpu.pipeline_mode<synchronous>, transform_indices = @transform_3, window_bounds = array<i64: 27, 16>}, {pipeline_mode = #tpu.pipeline_mode<synchronous>, transform_indices = @transform_4, window_bounds = array<i64: 1, 16>}, {pipeline_mode = #tpu.pipeline_mode<synchronous>, transform_indices = @transform_5, window_bounds = array<i64: 144, 64>}, {pipeline_mode = #tpu.pipeline_mode<synchronous>, transform_indices = @transform_6, window_bounds = array<i64: 9, 16, 64>}, {pipeline_mode = #tpu.pipeline_mode<synchronous>, transform_indices = @transform_7, window_bounds = array<i64: 1, 64>}, {pipeline_mode = #tpu.pipeline_mode<synchronous>, transform_indices = @transform_8, window_bounds = array<i64: 64, 128>}, {pipeline_mode = #tpu.pipeline_mode<synchronous>, transform_indices = @transform_9, window_bounds = array<i64: 1, 128>}, {pipeline_mode = #tpu.pipeline_mode<synchronous>, transform_indices = @transform_10, window_bounds = array<i64: 128, 128>}, {pipeline_mode = #tpu.pipeline_mode<synchronous>, transform_indices = @transform_11, window_bounds = array<i64: 16, 128>}, {pipeline_mode = #tpu.pipeline_mode<synchronous>, transform_indices = @transform_12, window_bounds = array<i64: 128, 128>}, {pipeline_mode = #tpu.pipeline_mode<synchronous>, transform_indices = @transform_13, window_bounds = array<i64: 1, 128>}, {pipeline_mode = #tpu.pipeline_mode<synchronous>, transform_indices = @transform_14, window_bounds = array<i64: 16, 128, 128>}, {pipeline_mode = #tpu.pipeline_mode<synchronous>, transform_indices = @transform_15, window_bounds = array<i64: 1, 128>}, {pipeline_mode = #tpu.pipeline_mode<synchronous>, transform_indices = @transform_16, window_bounds = array<i64: 128, 192>}, {pipeline_mode = #tpu.pipeline_mode<synchronous>, transform_indices = @transform_17, window_bounds = array<i64: 1, 192>}, {pipeline_mode = #tpu.pipeline_mode<synchronous>, transform_indices = @transform_18, window_bounds = array<i64: 192, 16>}, {pipeline_mode = #tpu.pipeline_mode<synchronous>, transform_indices = @transform_19, window_bounds = array<i64: 1, 16>}, {pipeline_mode = #tpu.pipeline_mode<synchronous>, transform_indices = @transform_20, window_bounds = array<i64: 5, 128>}, {pipeline_mode = #tpu.pipeline_mode<synchronous>, transform_indices = @transform_21, window_bounds = array<i64: 1, 128>}, {pipeline_mode = #tpu.pipeline_mode<synchronous>, transform_indices = @transform_22, window_bounds = array<i64: 8, 128>}, {pipeline_mode = #tpu.pipeline_mode<synchronous>, transform_indices = @transform_23, window_bounds = array<i64: 1, 128>}, {pipeline_mode = #tpu.pipeline_mode<synchronous>, transform_indices = @transform_24, window_bounds = array<i64: 128, 128>}, {pipeline_mode = #tpu.pipeline_mode<synchronous>, transform_indices = @transform_25, window_bounds = array<i64: 1, 128>}, {pipeline_mode = #tpu.pipeline_mode<synchronous>, transform_indices = @transform_26, window_bounds = array<i64: 128, 128>}, {pipeline_mode = #tpu.pipeline_mode<synchronous>, transform_indices = @transform_27, window_bounds = array<i64: 1, 128>}, {pipeline_mode = #tpu.pipeline_mode<synchronous>, transform_indices = @transform_28, window_bounds = array<i64: 128, 384>}, {pipeline_mode = #tpu.pipeline_mode<synchronous>, transform_indices = @transform_29, window_bounds = array<i64: 1, 384>}, {pipeline_mode = #tpu.pipeline_mode<synchronous>, transform_indices = @transform_30, window_bounds = array<i64: 128, 128>}, {pipeline_mode = #tpu.pipeline_mode<synchronous>, transform_indices = @transform_31, window_bounds = array<i64: 1, 128>}, {pipeline_mode = #tpu.pipeline_mode<synchronous>, transform_indices = @transform_32, window_bounds = array<i64: 128, 128>}, {pipeline_mode = #tpu.pipeline_mode<synchronous>, transform_indices = @transform_33, window_bounds = array<i64: 1, 128>}, {pipeline_mode = #tpu.pipeline_mode<synchronous>, transform_indices = @transform_34, window_bounds = array<i64: 128, 2>}, {pipeline_mode = #tpu.pipeline_mode<synchronous>, transform_indices = @transform_35, window_bounds = array<i64: 1, 2>}, {pipeline_mode = #tpu.pipeline_mode<synchronous>, transform_indices = @transform_36, window_bounds = array<i64: 128, 8>}, {pipeline_mode = #tpu.pipeline_mode<synchronous>, transform_indices = @transform_37, window_bounds = array<i64: 1, 8>}, {transform_indices = @transform_38, window_bounds = array<i64: 1, 8, 20, 20>}, {transform_indices = @transform_39, window_bounds = array<i64: 1, 1, 26>}]} {
    %c0 = arith.constant 0 : index
    %c0_0 = arith.constant 0 : index
    %c0_1 = arith.constant 0 : index
    %0 = vector.load %arg1[%c0, %c0_0, %c0_1] : memref<1x64x27xf32, #tpu.memory_space<vmem>>, vector<1x64x27xf32>
    %1 = vector.shape_cast %0 : vector<1x64x27xf32> to vector<64x27xf32>
    %c0_2 = arith.constant 0 : index
    %c0_3 = arith.constant 0 : index
    %2 = vector.load %arg4[%c0_2, %c0_3] : memref<27x16xbf16, #tpu.memory_space<vmem>>, vector<27x16xbf16>
    %3 = arith.truncf %1 : vector<64x27xf32> to vector<64x27xbf16>
    %cst = arith.constant dense<0.000000e+00> : vector<64x16xf32>
    %4 = tpu.matmul %3, %2, %cst {dimension_numbers = #tpu.dot_dimension_numbers<[1], [0], [0], [1], [0, 0, 1, 1], [], []>} : vector<64x27xbf16>, vector<27x16xbf16>, vector<64x16xf32> -> vector<64x16xf32>
    %c0_4 = arith.constant 0 : index
    %c0_5 = arith.constant 0 : index
    %5 = vector.load %arg5[%c0_4, %c0_5] : memref<1x16xf32, #tpu.memory_space<vmem>>, vector<1x16xf32>
    %6 = vector.broadcast %5 : vector<1x16xf32> to vector<64x16xf32>
    %7 = arith.addf %4, %6 : vector<64x16xf32>
    %cst_6 = arith.constant 0.000000e+00 : f32
    %8 = vector.broadcast %cst_6 : f32 to vector<64x16xf32>
    %9 = arith.maximumf %7, %8 : vector<64x16xf32>
    %c0_7 = arith.constant 0 : index
    %c0_8 = arith.constant 0 : index
    %10 = vector.load %arg6[%c0_7, %c0_8] : memref<144x64xbf16, #tpu.memory_space<vmem>>, vector<144x64xbf16>
    %11 = arith.truncf %9 : vector<64x16xf32> to vector<64x16xbf16>
    %cst_9 = arith.constant dense<0.000000e+00> : vector<144x16xf32>
    %12 = tpu.matmul %10, %11, %cst_9 {dimension_numbers = #tpu.dot_dimension_numbers<[1], [0], [0], [1], [0, 0, 1, 1], [], []>} : vector<144x64xbf16>, vector<64x16xbf16>, vector<144x16xf32> -> vector<144x16xf32>
    %cst_10 = arith.constant 0.000000e+00 : f32
    %13 = vector.broadcast %cst_10 : f32 to vector<16x64xf32>
    %14 = vector.extract_strided_slice %12 {offsets = [0, 0], sizes = [16, 16], strides = [1, 1]} : vector<144x16xf32> to vector<16x16xf32>
    %15 = arith.truncf %14 : vector<16x16xf32> to vector<16x16xbf16>
    %c0_11 = arith.constant 0 : index
    %c0_12 = arith.constant 0 : index
    %c0_13 = arith.constant 0 : index
    %16 = vector.load %arg7[%c0_11, %c0_12, %c0_13] : memref<9x16x64xbf16, #tpu.memory_space<vmem>>, vector<1x16x64xbf16>
    %17 = vector.shape_cast %16 : vector<1x16x64xbf16> to vector<16x64xbf16>
    %cst_14 = arith.constant dense<0.000000e+00> : vector<16x64xf32>
    %18 = tpu.matmul %15, %17, %cst_14 {dimension_numbers = #tpu.dot_dimension_numbers<[1], [0], [0], [1], [0, 0, 1, 1], [], []>} : vector<16x16xbf16>, vector<16x64xbf16>, vector<16x64xf32> -> vector<16x64xf32>
    %19 = arith.addf %13, %18 : vector<16x64xf32>
    %20 = vector.extract_strided_slice %12 {offsets = [16, 0], sizes = [16, 16], strides = [1, 1]} : vector<144x16xf32> to vector<16x16xf32>
    %21 = arith.truncf %20 : vector<16x16xf32> to vector<16x16xbf16>
    %c1 = arith.constant 1 : index
    %c0_15 = arith.constant 0 : index
    %c0_16 = arith.constant 0 : index
    %22 = vector.load %arg7[%c1, %c0_15, %c0_16] : memref<9x16x64xbf16, #tpu.memory_space<vmem>>, vector<1x16x64xbf16>
    %23 = vector.shape_cast %22 : vector<1x16x64xbf16> to vector<16x64xbf16>
    %cst_17 = arith.constant dense<0.000000e+00> : vector<16x64xf32>
    %24 = tpu.matmul %21, %23, %cst_17 {dimension_numbers = #tpu.dot_dimension_numbers<[1], [0], [0], [1], [0, 0, 1, 1], [], []>} : vector<16x16xbf16>, vector<16x64xbf16>, vector<16x64xf32> -> vector<16x64xf32>
    %25 = arith.addf %19, %24 : vector<16x64xf32>
    %26 = vector.extract_strided_slice %12 {offsets = [32, 0], sizes = [16, 16], strides = [1, 1]} : vector<144x16xf32> to vector<16x16xf32>
    %27 = arith.truncf %26 : vector<16x16xf32> to vector<16x16xbf16>
    %c2 = arith.constant 2 : index
    %c0_18 = arith.constant 0 : index
    %c0_19 = arith.constant 0 : index
    %28 = vector.load %arg7[%c2, %c0_18, %c0_19] : memref<9x16x64xbf16, #tpu.memory_space<vmem>>, vector<1x16x64xbf16>
    %29 = vector.shape_cast %28 : vector<1x16x64xbf16> to vector<16x64xbf16>
    %cst_20 = arith.constant dense<0.000000e+00> : vector<16x64xf32>
    %30 = tpu.matmul %27, %29, %cst_20 {dimension_numbers = #tpu.dot_dimension_numbers<[1], [0], [0], [1], [0, 0, 1, 1], [], []>} : vector<16x16xbf16>, vector<16x64xbf16>, vector<16x64xf32> -> vector<16x64xf32>
    %31 = arith.addf %25, %30 : vector<16x64xf32>
    %32 = vector.extract_strided_slice %12 {offsets = [48, 0], sizes = [16, 16], strides = [1, 1]} : vector<144x16xf32> to vector<16x16xf32>
    %33 = arith.truncf %32 : vector<16x16xf32> to vector<16x16xbf16>
    %c3 = arith.constant 3 : index
    %c0_21 = arith.constant 0 : index
    %c0_22 = arith.constant 0 : index
    %34 = vector.load %arg7[%c3, %c0_21, %c0_22] : memref<9x16x64xbf16, #tpu.memory_space<vmem>>, vector<1x16x64xbf16>
    %35 = vector.shape_cast %34 : vector<1x16x64xbf16> to vector<16x64xbf16>
    %cst_23 = arith.constant dense<0.000000e+00> : vector<16x64xf32>
    %36 = tpu.matmul %33, %35, %cst_23 {dimension_numbers = #tpu.dot_dimension_numbers<[1], [0], [0], [1], [0, 0, 1, 1], [], []>} : vector<16x16xbf16>, vector<16x64xbf16>, vector<16x64xf32> -> vector<16x64xf32>
    %37 = arith.addf %31, %36 : vector<16x64xf32>
    %38 = vector.extract_strided_slice %12 {offsets = [64, 0], sizes = [16, 16], strides = [1, 1]} : vector<144x16xf32> to vector<16x16xf32>
    %39 = arith.truncf %38 : vector<16x16xf32> to vector<16x16xbf16>
    %c4 = arith.constant 4 : index
    %c0_24 = arith.constant 0 : index
    %c0_25 = arith.constant 0 : index
    %40 = vector.load %arg7[%c4, %c0_24, %c0_25] : memref<9x16x64xbf16, #tpu.memory_space<vmem>>, vector<1x16x64xbf16>
    %41 = vector.shape_cast %40 : vector<1x16x64xbf16> to vector<16x64xbf16>
    %cst_26 = arith.constant dense<0.000000e+00> : vector<16x64xf32>
    %42 = tpu.matmul %39, %41, %cst_26 {dimension_numbers = #tpu.dot_dimension_numbers<[1], [0], [0], [1], [0, 0, 1, 1], [], []>} : vector<16x16xbf16>, vector<16x64xbf16>, vector<16x64xf32> -> vector<16x64xf32>
    %43 = arith.addf %37, %42 : vector<16x64xf32>
    %44 = vector.extract_strided_slice %12 {offsets = [80, 0], sizes = [16, 16], strides = [1, 1]} : vector<144x16xf32> to vector<16x16xf32>
    %45 = arith.truncf %44 : vector<16x16xf32> to vector<16x16xbf16>
    %c5 = arith.constant 5 : index
    %c0_27 = arith.constant 0 : index
    %c0_28 = arith.constant 0 : index
    %46 = vector.load %arg7[%c5, %c0_27, %c0_28] : memref<9x16x64xbf16, #tpu.memory_space<vmem>>, vector<1x16x64xbf16>
    %47 = vector.shape_cast %46 : vector<1x16x64xbf16> to vector<16x64xbf16>
    %cst_29 = arith.constant dense<0.000000e+00> : vector<16x64xf32>
    %48 = tpu.matmul %45, %47, %cst_29 {dimension_numbers = #tpu.dot_dimension_numbers<[1], [0], [0], [1], [0, 0, 1, 1], [], []>} : vector<16x16xbf16>, vector<16x64xbf16>, vector<16x64xf32> -> vector<16x64xf32>
    %49 = arith.addf %43, %48 : vector<16x64xf32>
    %50 = vector.extract_strided_slice %12 {offsets = [96, 0], sizes = [16, 16], strides = [1, 1]} : vector<144x16xf32> to vector<16x16xf32>
    %51 = arith.truncf %50 : vector<16x16xf32> to vector<16x16xbf16>
    %c6 = arith.constant 6 : index
    %c0_30 = arith.constant 0 : index
    %c0_31 = arith.constant 0 : index
    %52 = vector.load %arg7[%c6, %c0_30, %c0_31] : memref<9x16x64xbf16, #tpu.memory_space<vmem>>, vector<1x16x64xbf16>
    %53 = vector.shape_cast %52 : vector<1x16x64xbf16> to vector<16x64xbf16>
    %cst_32 = arith.constant dense<0.000000e+00> : vector<16x64xf32>
    %54 = tpu.matmul %51, %53, %cst_32 {dimension_numbers = #tpu.dot_dimension_numbers<[1], [0], [0], [1], [0, 0, 1, 1], [], []>} : vector<16x16xbf16>, vector<16x64xbf16>, vector<16x64xf32> -> vector<16x64xf32>
    %55 = arith.addf %49, %54 : vector<16x64xf32>
    %56 = vector.extract_strided_slice %12 {offsets = [112, 0], sizes = [16, 16], strides = [1, 1]} : vector<144x16xf32> to vector<16x16xf32>
    %57 = arith.truncf %56 : vector<16x16xf32> to vector<16x16xbf16>
    %c7 = arith.constant 7 : index
    %c0_33 = arith.constant 0 : index
    %c0_34 = arith.constant 0 : index
    %58 = vector.load %arg7[%c7, %c0_33, %c0_34] : memref<9x16x64xbf16, #tpu.memory_space<vmem>>, vector<1x16x64xbf16>
    %59 = vector.shape_cast %58 : vector<1x16x64xbf16> to vector<16x64xbf16>
    %cst_35 = arith.constant dense<0.000000e+00> : vector<16x64xf32>
    %60 = tpu.matmul %57, %59, %cst_35 {dimension_numbers = #tpu.dot_dimension_numbers<[1], [0], [0], [1], [0, 0, 1, 1], [], []>} : vector<16x16xbf16>, vector<16x64xbf16>, vector<16x64xf32> -> vector<16x64xf32>
    %61 = arith.addf %55, %60 : vector<16x64xf32>
    %62 = vector.extract_strided_slice %12 {offsets = [128, 0], sizes = [16, 16], strides = [1, 1]} : vector<144x16xf32> to vector<16x16xf32>
    %63 = arith.truncf %62 : vector<16x16xf32> to vector<16x16xbf16>
    %c8 = arith.constant 8 : index
    %c0_36 = arith.constant 0 : index
    %c0_37 = arith.constant 0 : index
    %64 = vector.load %arg7[%c8, %c0_36, %c0_37] : memref<9x16x64xbf16, #tpu.memory_space<vmem>>, vector<1x16x64xbf16>
    %65 = vector.shape_cast %64 : vector<1x16x64xbf16> to vector<16x64xbf16>
    %cst_38 = arith.constant dense<0.000000e+00> : vector<16x64xf32>
    %66 = tpu.matmul %63, %65, %cst_38 {dimension_numbers = #tpu.dot_dimension_numbers<[1], [0], [0], [1], [0, 0, 1, 1], [], []>} : vector<16x16xbf16>, vector<16x64xbf16>, vector<16x64xf32> -> vector<16x64xf32>
    %67 = arith.addf %61, %66 : vector<16x64xf32>
    %c0_39 = arith.constant 0 : index
    %c0_40 = arith.constant 0 : index
    %68 = vector.load %arg8[%c0_39, %c0_40] : memref<1x64xf32, #tpu.memory_space<vmem>>, vector<1x64xf32>
    %69 = vector.broadcast %68 : vector<1x64xf32> to vector<16x64xf32>
    %70 = arith.addf %67, %69 : vector<16x64xf32>
    %cst_41 = arith.constant 0.000000e+00 : f32
    %71 = vector.broadcast %cst_41 : f32 to vector<16x64xf32>
    %72 = arith.maximumf %70, %71 : vector<16x64xf32>
    %c0_42 = arith.constant 0 : index
    %c0_43 = arith.constant 0 : index
    %73 = vector.load %arg9[%c0_42, %c0_43] : memref<64x128xbf16, #tpu.memory_space<vmem>>, vector<64x128xbf16>
    %74 = arith.truncf %72 : vector<16x64xf32> to vector<16x64xbf16>
    %cst_44 = arith.constant dense<0.000000e+00> : vector<16x128xf32>
    %75 = tpu.matmul %74, %73, %cst_44 {dimension_numbers = #tpu.dot_dimension_numbers<[1], [0], [0], [1], [0, 0, 1, 1], [], []>} : vector<16x64xbf16>, vector<64x128xbf16>, vector<16x128xf32> -> vector<16x128xf32>
    %c0_45 = arith.constant 0 : index
    %c0_46 = arith.constant 0 : index
    %76 = vector.load %arg10[%c0_45, %c0_46] : memref<1x128xf32, #tpu.memory_space<vmem>>, vector<1x128xf32>
    %77 = vector.broadcast %76 : vector<1x128xf32> to vector<16x128xf32>
    %78 = arith.addf %75, %77 : vector<16x128xf32>
    %cst_47 = arith.constant 0.000000e+00 : f32
    %79 = vector.broadcast %cst_47 : f32 to vector<16x128xf32>
    %80 = arith.maximumf %78, %79 : vector<16x128xf32>
    %c0_48 = arith.constant 0 : index
    %c0_49 = arith.constant 0 : index
    %81 = vector.load %arg11[%c0_48, %c0_49] : memref<128x128xbf16, #tpu.memory_space<vmem>>, vector<128x128xbf16>
    %82 = arith.truncf %80 : vector<16x128xf32> to vector<16x128xbf16>
    %cst_50 = arith.constant dense<0.000000e+00> : vector<16x128xf32>
    %83 = tpu.matmul %82, %81, %cst_50 {dimension_numbers = #tpu.dot_dimension_numbers<[1], [0], [0], [1], [0, 0, 1, 1], [], []>} : vector<16x128xbf16>, vector<128x128xbf16>, vector<16x128xf32> -> vector<16x128xf32>
    %c0_51 = arith.constant 0 : index
    %c0_52 = arith.constant 0 : index
    %84 = vector.load %arg12[%c0_51, %c0_52] : memref<16x128xf32, #tpu.memory_space<vmem>>, vector<16x128xf32>
    %85 = arith.addf %83, %84 : vector<16x128xf32>
    %cst_53 = arith.constant 0.000000e+00 : f32
    %86 = vector.broadcast %cst_53 : f32 to vector<16x128xf32>
    %87 = arith.maximumf %85, %86 : vector<16x128xf32>
    %c0_54 = arith.constant 0 : index
    %c0_55 = arith.constant 0 : index
    %88 = vector.load %arg13[%c0_54, %c0_55] : memref<128x128xbf16, #tpu.memory_space<vmem>>, vector<128x128xbf16>
    %89 = arith.truncf %87 : vector<16x128xf32> to vector<16x128xbf16>
    %cst_56 = arith.constant dense<0.000000e+00> : vector<16x128xf32>
    %90 = tpu.matmul %89, %88, %cst_56 {dimension_numbers = #tpu.dot_dimension_numbers<[1], [0], [0], [1], [0, 0, 1, 1], [], []>} : vector<16x128xbf16>, vector<128x128xbf16>, vector<16x128xf32> -> vector<16x128xf32>
    %c0_57 = arith.constant 0 : index
    %c0_58 = arith.constant 0 : index
    %91 = vector.load %arg14[%c0_57, %c0_58] : memref<1x128xf32, #tpu.memory_space<vmem>>, vector<1x128xf32>
    %92 = vector.broadcast %91 : vector<1x128xf32> to vector<16x128xf32>
    %93 = arith.addf %90, %92 : vector<16x128xf32>
    %cst_59 = arith.constant 0.000000e+00 : f32
    %94 = vector.broadcast %cst_59 : f32 to vector<16x128xf32>
    %95 = arith.cmpf ogt, %93, %94 : vector<16x128xf32>
    %cst_60 = arith.constant 0.000000e+00 : f32
    %96 = vector.broadcast %cst_60 : f32 to vector<16x128xf32>
    %97 = arith.minimumf %93, %96 : vector<16x128xf32>
    %98 = math.exp %97 : vector<16x128xf32>
    %cst_61 = arith.constant 1.000000e+00 : f32
    %99 = vector.broadcast %cst_61 : f32 to vector<16x128xf32>
    %100 = arith.subf %98, %99 : vector<16x128xf32>
    %cst_62 = arith.constant 1.67326319 : f32
    %101 = vector.broadcast %cst_62 : f32 to vector<16x128xf32>
    %102 = arith.mulf %101, %100 : vector<16x128xf32>
    %103 = arith.select %95, %93, %102 : vector<16x128xi1>, vector<16x128xf32>
    %cst_63 = arith.constant 1.05070102 : f32
    %104 = vector.broadcast %cst_63 : f32 to vector<16x128xf32>
    %105 = arith.mulf %104, %103 : vector<16x128xf32>
    %c0_64 = arith.constant 0 : index
    %c0_65 = arith.constant 0 : index
    %106 = vector.load %arg16[%c0_64, %c0_65] : memref<1x128xf32, #tpu.memory_space<vmem>>, vector<1x128xf32>
    %107 = vector.extract_strided_slice %87 {offsets = [0, 0], sizes = [1, 128], strides = [1, 1]} : vector<16x128xf32> to vector<1x128xf32>
    %108 = arith.truncf %107 : vector<1x128xf32> to vector<1x128xbf16>
    %c0_66 = arith.constant 0 : index
    %c0_67 = arith.constant 0 : index
    %c0_68 = arith.constant 0 : index
    %109 = vector.load %arg15[%c0_66, %c0_67, %c0_68] : memref<16x128x128xbf16, #tpu.memory_space<vmem>>, vector<1x128x128xbf16>
    %110 = vector.shape_cast %109 : vector<1x128x128xbf16> to vector<128x128xbf16>
    %cst_69 = arith.constant dense<0.000000e+00> : vector<1x128xf32>
    %111 = tpu.matmul %108, %110, %cst_69 {dimension_numbers = #tpu.dot_dimension_numbers<[1], [0], [0], [1], [0, 0, 1, 1], [], []>} : vector<1x128xbf16>, vector<128x128xbf16>, vector<1x128xf32> -> vector<1x128xf32>
    %112 = arith.addf %106, %111 : vector<1x128xf32>
    %113 = vector.extract_strided_slice %87 {offsets = [1, 0], sizes = [1, 128], strides = [1, 1]} : vector<16x128xf32> to vector<1x128xf32>
    %114 = arith.truncf %113 : vector<1x128xf32> to vector<1x128xbf16>
    %c1_70 = arith.constant 1 : index
    %c0_71 = arith.constant 0 : index
    %c0_72 = arith.constant 0 : index
    %115 = vector.load %arg15[%c1_70, %c0_71, %c0_72] : memref<16x128x128xbf16, #tpu.memory_space<vmem>>, vector<1x128x128xbf16>
    %116 = vector.shape_cast %115 : vector<1x128x128xbf16> to vector<128x128xbf16>
    %cst_73 = arith.constant dense<0.000000e+00> : vector<1x128xf32>
    %117 = tpu.matmul %114, %116, %cst_73 {dimension_numbers = #tpu.dot_dimension_numbers<[1], [0], [0], [1], [0, 0, 1, 1], [], []>} : vector<1x128xbf16>, vector<128x128xbf16>, vector<1x128xf32> -> vector<1x128xf32>
    %118 = arith.addf %112, %117 : vector<1x128xf32>
    %119 = vector.extract_strided_slice %87 {offsets = [2, 0], sizes = [1, 128], strides = [1, 1]} : vector<16x128xf32> to vector<1x128xf32>
    %120 = arith.truncf %119 : vector<1x128xf32> to vector<1x128xbf16>
    %c2_74 = arith.constant 2 : index
    %c0_75 = arith.constant 0 : index
    %c0_76 = arith.constant 0 : index
    %121 = vector.load %arg15[%c2_74, %c0_75, %c0_76] : memref<16x128x128xbf16, #tpu.memory_space<vmem>>, vector<1x128x128xbf16>
    %122 = vector.shape_cast %121 : vector<1x128x128xbf16> to vector<128x128xbf16>
    %cst_77 = arith.constant dense<0.000000e+00> : vector<1x128xf32>
    %123 = tpu.matmul %120, %122, %cst_77 {dimension_numbers = #tpu.dot_dimension_numbers<[1], [0], [0], [1], [0, 0, 1, 1], [], []>} : vector<1x128xbf16>, vector<128x128xbf16>, vector<1x128xf32> -> vector<1x128xf32>
    %124 = arith.addf %118, %123 : vector<1x128xf32>
    %125 = vector.extract_strided_slice %87 {offsets = [3, 0], sizes = [1, 128], strides = [1, 1]} : vector<16x128xf32> to vector<1x128xf32>
    %126 = arith.truncf %125 : vector<1x128xf32> to vector<1x128xbf16>
    %c3_78 = arith.constant 3 : index
    %c0_79 = arith.constant 0 : index
    %c0_80 = arith.constant 0 : index
    %127 = vector.load %arg15[%c3_78, %c0_79, %c0_80] : memref<16x128x128xbf16, #tpu.memory_space<vmem>>, vector<1x128x128xbf16>
    %128 = vector.shape_cast %127 : vector<1x128x128xbf16> to vector<128x128xbf16>
    %cst_81 = arith.constant dense<0.000000e+00> : vector<1x128xf32>
    %129 = tpu.matmul %126, %128, %cst_81 {dimension_numbers = #tpu.dot_dimension_numbers<[1], [0], [0], [1], [0, 0, 1, 1], [], []>} : vector<1x128xbf16>, vector<128x128xbf16>, vector<1x128xf32> -> vector<1x128xf32>
    %130 = arith.addf %124, %129 : vector<1x128xf32>
    %131 = vector.extract_strided_slice %87 {offsets = [4, 0], sizes = [1, 128], strides = [1, 1]} : vector<16x128xf32> to vector<1x128xf32>
    %132 = arith.truncf %131 : vector<1x128xf32> to vector<1x128xbf16>
    %c4_82 = arith.constant 4 : index
    %c0_83 = arith.constant 0 : index
    %c0_84 = arith.constant 0 : index
    %133 = vector.load %arg15[%c4_82, %c0_83, %c0_84] : memref<16x128x128xbf16, #tpu.memory_space<vmem>>, vector<1x128x128xbf16>
    %134 = vector.shape_cast %133 : vector<1x128x128xbf16> to vector<128x128xbf16>
    %cst_85 = arith.constant dense<0.000000e+00> : vector<1x128xf32>
    %135 = tpu.matmul %132, %134, %cst_85 {dimension_numbers = #tpu.dot_dimension_numbers<[1], [0], [0], [1], [0, 0, 1, 1], [], []>} : vector<1x128xbf16>, vector<128x128xbf16>, vector<1x128xf32> -> vector<1x128xf32>
    %136 = arith.addf %130, %135 : vector<1x128xf32>
    %137 = vector.extract_strided_slice %87 {offsets = [5, 0], sizes = [1, 128], strides = [1, 1]} : vector<16x128xf32> to vector<1x128xf32>
    %138 = arith.truncf %137 : vector<1x128xf32> to vector<1x128xbf16>
    %c5_86 = arith.constant 5 : index
    %c0_87 = arith.constant 0 : index
    %c0_88 = arith.constant 0 : index
    %139 = vector.load %arg15[%c5_86, %c0_87, %c0_88] : memref<16x128x128xbf16, #tpu.memory_space<vmem>>, vector<1x128x128xbf16>
    %140 = vector.shape_cast %139 : vector<1x128x128xbf16> to vector<128x128xbf16>
    %cst_89 = arith.constant dense<0.000000e+00> : vector<1x128xf32>
    %141 = tpu.matmul %138, %140, %cst_89 {dimension_numbers = #tpu.dot_dimension_numbers<[1], [0], [0], [1], [0, 0, 1, 1], [], []>} : vector<1x128xbf16>, vector<128x128xbf16>, vector<1x128xf32> -> vector<1x128xf32>
    %142 = arith.addf %136, %141 : vector<1x128xf32>
    %143 = vector.extract_strided_slice %87 {offsets = [6, 0], sizes = [1, 128], strides = [1, 1]} : vector<16x128xf32> to vector<1x128xf32>
    %144 = arith.truncf %143 : vector<1x128xf32> to vector<1x128xbf16>
    %c6_90 = arith.constant 6 : index
    %c0_91 = arith.constant 0 : index
    %c0_92 = arith.constant 0 : index
    %145 = vector.load %arg15[%c6_90, %c0_91, %c0_92] : memref<16x128x128xbf16, #tpu.memory_space<vmem>>, vector<1x128x128xbf16>
    %146 = vector.shape_cast %145 : vector<1x128x128xbf16> to vector<128x128xbf16>
    %cst_93 = arith.constant dense<0.000000e+00> : vector<1x128xf32>
    %147 = tpu.matmul %144, %146, %cst_93 {dimension_numbers = #tpu.dot_dimension_numbers<[1], [0], [0], [1], [0, 0, 1, 1], [], []>} : vector<1x128xbf16>, vector<128x128xbf16>, vector<1x128xf32> -> vector<1x128xf32>
    %148 = arith.addf %142, %147 : vector<1x128xf32>
    %149 = vector.extract_strided_slice %87 {offsets = [7, 0], sizes = [1, 128], strides = [1, 1]} : vector<16x128xf32> to vector<1x128xf32>
    %150 = arith.truncf %149 : vector<1x128xf32> to vector<1x128xbf16>
    %c7_94 = arith.constant 7 : index
    %c0_95 = arith.constant 0 : index
    %c0_96 = arith.constant 0 : index
    %151 = vector.load %arg15[%c7_94, %c0_95, %c0_96] : memref<16x128x128xbf16, #tpu.memory_space<vmem>>, vector<1x128x128xbf16>
    %152 = vector.shape_cast %151 : vector<1x128x128xbf16> to vector<128x128xbf16>
    %cst_97 = arith.constant dense<0.000000e+00> : vector<1x128xf32>
    %153 = tpu.matmul %150, %152, %cst_97 {dimension_numbers = #tpu.dot_dimension_numbers<[1], [0], [0], [1], [0, 0, 1, 1], [], []>} : vector<1x128xbf16>, vector<128x128xbf16>, vector<1x128xf32> -> vector<1x128xf32>
    %154 = arith.addf %148, %153 : vector<1x128xf32>
    %155 = vector.extract_strided_slice %87 {offsets = [8, 0], sizes = [1, 128], strides = [1, 1]} : vector<16x128xf32> to vector<1x128xf32>
    %156 = arith.truncf %155 : vector<1x128xf32> to vector<1x128xbf16>
    %c8_98 = arith.constant 8 : index
    %c0_99 = arith.constant 0 : index
    %c0_100 = arith.constant 0 : index
    %157 = vector.load %arg15[%c8_98, %c0_99, %c0_100] : memref<16x128x128xbf16, #tpu.memory_space<vmem>>, vector<1x128x128xbf16>
    %158 = vector.shape_cast %157 : vector<1x128x128xbf16> to vector<128x128xbf16>
    %cst_101 = arith.constant dense<0.000000e+00> : vector<1x128xf32>
    %159 = tpu.matmul %156, %158, %cst_101 {dimension_numbers = #tpu.dot_dimension_numbers<[1], [0], [0], [1], [0, 0, 1, 1], [], []>} : vector<1x128xbf16>, vector<128x128xbf16>, vector<1x128xf32> -> vector<1x128xf32>
    %160 = arith.addf %154, %159 : vector<1x128xf32>
    %161 = vector.extract_strided_slice %87 {offsets = [9, 0], sizes = [1, 128], strides = [1, 1]} : vector<16x128xf32> to vector<1x128xf32>
    %162 = arith.truncf %161 : vector<1x128xf32> to vector<1x128xbf16>
    %c9 = arith.constant 9 : index
    %c0_102 = arith.constant 0 : index
    %c0_103 = arith.constant 0 : index
    %163 = vector.load %arg15[%c9, %c0_102, %c0_103] : memref<16x128x128xbf16, #tpu.memory_space<vmem>>, vector<1x128x128xbf16>
    %164 = vector.shape_cast %163 : vector<1x128x128xbf16> to vector<128x128xbf16>
    %cst_104 = arith.constant dense<0.000000e+00> : vector<1x128xf32>
    %165 = tpu.matmul %162, %164, %cst_104 {dimension_numbers = #tpu.dot_dimension_numbers<[1], [0], [0], [1], [0, 0, 1, 1], [], []>} : vector<1x128xbf16>, vector<128x128xbf16>, vector<1x128xf32> -> vector<1x128xf32>
    %166 = arith.addf %160, %165 : vector<1x128xf32>
    %167 = vector.extract_strided_slice %87 {offsets = [10, 0], sizes = [1, 128], strides = [1, 1]} : vector<16x128xf32> to vector<1x128xf32>
    %168 = arith.truncf %167 : vector<1x128xf32> to vector<1x128xbf16>
    %c10 = arith.constant 10 : index
    %c0_105 = arith.constant 0 : index
    %c0_106 = arith.constant 0 : index
    %169 = vector.load %arg15[%c10, %c0_105, %c0_106] : memref<16x128x128xbf16, #tpu.memory_space<vmem>>, vector<1x128x128xbf16>
    %170 = vector.shape_cast %169 : vector<1x128x128xbf16> to vector<128x128xbf16>
    %cst_107 = arith.constant dense<0.000000e+00> : vector<1x128xf32>
    %171 = tpu.matmul %168, %170, %cst_107 {dimension_numbers = #tpu.dot_dimension_numbers<[1], [0], [0], [1], [0, 0, 1, 1], [], []>} : vector<1x128xbf16>, vector<128x128xbf16>, vector<1x128xf32> -> vector<1x128xf32>
    %172 = arith.addf %166, %171 : vector<1x128xf32>
    %173 = vector.extract_strided_slice %87 {offsets = [11, 0], sizes = [1, 128], strides = [1, 1]} : vector<16x128xf32> to vector<1x128xf32>
    %174 = arith.truncf %173 : vector<1x128xf32> to vector<1x128xbf16>
    %c11 = arith.constant 11 : index
    %c0_108 = arith.constant 0 : index
    %c0_109 = arith.constant 0 : index
    %175 = vector.load %arg15[%c11, %c0_108, %c0_109] : memref<16x128x128xbf16, #tpu.memory_space<vmem>>, vector<1x128x128xbf16>
    %176 = vector.shape_cast %175 : vector<1x128x128xbf16> to vector<128x128xbf16>
    %cst_110 = arith.constant dense<0.000000e+00> : vector<1x128xf32>
    %177 = tpu.matmul %174, %176, %cst_110 {dimension_numbers = #tpu.dot_dimension_numbers<[1], [0], [0], [1], [0, 0, 1, 1], [], []>} : vector<1x128xbf16>, vector<128x128xbf16>, vector<1x128xf32> -> vector<1x128xf32>
    %178 = arith.addf %172, %177 : vector<1x128xf32>
    %179 = vector.extract_strided_slice %87 {offsets = [12, 0], sizes = [1, 128], strides = [1, 1]} : vector<16x128xf32> to vector<1x128xf32>
    %180 = arith.truncf %179 : vector<1x128xf32> to vector<1x128xbf16>
    %c12 = arith.constant 12 : index
    %c0_111 = arith.constant 0 : index
    %c0_112 = arith.constant 0 : index
    %181 = vector.load %arg15[%c12, %c0_111, %c0_112] : memref<16x128x128xbf16, #tpu.memory_space<vmem>>, vector<1x128x128xbf16>
    %182 = vector.shape_cast %181 : vector<1x128x128xbf16> to vector<128x128xbf16>
    %cst_113 = arith.constant dense<0.000000e+00> : vector<1x128xf32>
    %183 = tpu.matmul %180, %182, %cst_113 {dimension_numbers = #tpu.dot_dimension_numbers<[1], [0], [0], [1], [0, 0, 1, 1], [], []>} : vector<1x128xbf16>, vector<128x128xbf16>, vector<1x128xf32> -> vector<1x128xf32>
    %184 = arith.addf %178, %183 : vector<1x128xf32>
    %185 = vector.extract_strided_slice %87 {offsets = [13, 0], sizes = [1, 128], strides = [1, 1]} : vector<16x128xf32> to vector<1x128xf32>
    %186 = arith.truncf %185 : vector<1x128xf32> to vector<1x128xbf16>
    %c13 = arith.constant 13 : index
    %c0_114 = arith.constant 0 : index
    %c0_115 = arith.constant 0 : index
    %187 = vector.load %arg15[%c13, %c0_114, %c0_115] : memref<16x128x128xbf16, #tpu.memory_space<vmem>>, vector<1x128x128xbf16>
    %188 = vector.shape_cast %187 : vector<1x128x128xbf16> to vector<128x128xbf16>
    %cst_116 = arith.constant dense<0.000000e+00> : vector<1x128xf32>
    %189 = tpu.matmul %186, %188, %cst_116 {dimension_numbers = #tpu.dot_dimension_numbers<[1], [0], [0], [1], [0, 0, 1, 1], [], []>} : vector<1x128xbf16>, vector<128x128xbf16>, vector<1x128xf32> -> vector<1x128xf32>
    %190 = arith.addf %184, %189 : vector<1x128xf32>
    %191 = vector.extract_strided_slice %87 {offsets = [14, 0], sizes = [1, 128], strides = [1, 1]} : vector<16x128xf32> to vector<1x128xf32>
    %192 = arith.truncf %191 : vector<1x128xf32> to vector<1x128xbf16>
    %c14 = arith.constant 14 : index
    %c0_117 = arith.constant 0 : index
    %c0_118 = arith.constant 0 : index
    %193 = vector.load %arg15[%c14, %c0_117, %c0_118] : memref<16x128x128xbf16, #tpu.memory_space<vmem>>, vector<1x128x128xbf16>
    %194 = vector.shape_cast %193 : vector<1x128x128xbf16> to vector<128x128xbf16>
    %cst_119 = arith.constant dense<0.000000e+00> : vector<1x128xf32>
    %195 = tpu.matmul %192, %194, %cst_119 {dimension_numbers = #tpu.dot_dimension_numbers<[1], [0], [0], [1], [0, 0, 1, 1], [], []>} : vector<1x128xbf16>, vector<128x128xbf16>, vector<1x128xf32> -> vector<1x128xf32>
    %196 = arith.addf %190, %195 : vector<1x128xf32>
    %197 = vector.extract_strided_slice %87 {offsets = [15, 0], sizes = [1, 128], strides = [1, 1]} : vector<16x128xf32> to vector<1x128xf32>
    %198 = arith.truncf %197 : vector<1x128xf32> to vector<1x128xbf16>
    %c15 = arith.constant 15 : index
    %c0_120 = arith.constant 0 : index
    %c0_121 = arith.constant 0 : index
    %199 = vector.load %arg15[%c15, %c0_120, %c0_121] : memref<16x128x128xbf16, #tpu.memory_space<vmem>>, vector<1x128x128xbf16>
    %200 = vector.shape_cast %199 : vector<1x128x128xbf16> to vector<128x128xbf16>
    %cst_122 = arith.constant dense<0.000000e+00> : vector<1x128xf32>
    %201 = tpu.matmul %198, %200, %cst_122 {dimension_numbers = #tpu.dot_dimension_numbers<[1], [0], [0], [1], [0, 0, 1, 1], [], []>} : vector<1x128xbf16>, vector<128x128xbf16>, vector<1x128xf32> -> vector<1x128xf32>
    %202 = arith.addf %196, %201 : vector<1x128xf32>
    %cst_123 = arith.constant 0.000000e+00 : f32
    %203 = vector.broadcast %cst_123 : f32 to vector<1x128xf32>
    %204 = arith.maximumf %202, %203 : vector<1x128xf32>
    %c0_124 = arith.constant 0 : index
    %c0_125 = arith.constant 0 : index
    %205 = vector.load %arg17[%c0_124, %c0_125] : memref<128x192xbf16, #tpu.memory_space<vmem>>, vector<128x192xbf16>
    %206 = arith.truncf %204 : vector<1x128xf32> to vector<1x128xbf16>
    %cst_126 = arith.constant dense<0.000000e+00> : vector<1x192xf32>
    %207 = tpu.matmul %206, %205, %cst_126 {dimension_numbers = #tpu.dot_dimension_numbers<[1], [0], [0], [1], [0, 0, 1, 1], [], []>} : vector<1x128xbf16>, vector<128x192xbf16>, vector<1x192xf32> -> vector<1x192xf32>
    %c0_127 = arith.constant 0 : index
    %c0_128 = arith.constant 0 : index
    %208 = vector.load %arg18[%c0_127, %c0_128] : memref<1x192xf32, #tpu.memory_space<vmem>>, vector<1x192xf32>
    %209 = arith.addf %207, %208 : vector<1x192xf32>
    %cst_129 = arith.constant 0.000000e+00 : f32
    %210 = vector.broadcast %cst_129 : f32 to vector<1x192xf32>
    %211 = arith.cmpf ogt, %209, %210 : vector<1x192xf32>
    %cst_130 = arith.constant 0.000000e+00 : f32
    %212 = vector.broadcast %cst_130 : f32 to vector<1x192xf32>
    %213 = arith.minimumf %209, %212 : vector<1x192xf32>
    %214 = math.exp %213 : vector<1x192xf32>
    %cst_131 = arith.constant 1.000000e+00 : f32
    %215 = vector.broadcast %cst_131 : f32 to vector<1x192xf32>
    %216 = arith.subf %214, %215 : vector<1x192xf32>
    %cst_132 = arith.constant 1.67326319 : f32
    %217 = vector.broadcast %cst_132 : f32 to vector<1x192xf32>
    %218 = arith.mulf %217, %216 : vector<1x192xf32>
    %219 = arith.select %211, %209, %218 : vector<1x192xi1>, vector<1x192xf32>
    %cst_133 = arith.constant 1.05070102 : f32
    %220 = vector.broadcast %cst_133 : f32 to vector<1x192xf32>
    %221 = arith.mulf %220, %219 : vector<1x192xf32>
    %c0_134 = arith.constant 0 : index
    %c0_135 = arith.constant 0 : index
    %222 = vector.load %arg19[%c0_134, %c0_135] : memref<192x16xbf16, #tpu.memory_space<vmem>>, vector<192x16xbf16>
    %223 = arith.truncf %221 : vector<1x192xf32> to vector<1x192xbf16>
    %cst_136 = arith.constant dense<0.000000e+00> : vector<1x16xf32>
    %224 = tpu.matmul %223, %222, %cst_136 {dimension_numbers = #tpu.dot_dimension_numbers<[1], [0], [0], [1], [0, 0, 1, 1], [], []>} : vector<1x192xbf16>, vector<192x16xbf16>, vector<1x16xf32> -> vector<1x16xf32>
    %c0_137 = arith.constant 0 : index
    %c0_138 = arith.constant 0 : index
    %225 = vector.load %arg20[%c0_137, %c0_138] : memref<1x16xf32, #tpu.memory_space<vmem>>, vector<1x16xf32>
    %226 = arith.addf %224, %225 : vector<1x16xf32>
    %c0_139 = arith.constant 0 : index
    %c0_140 = arith.constant 0 : index
    %c0_141 = arith.constant 0 : index
    %227 = vector.load %arg2[%c0_139, %c0_140, %c0_141] : memref<1x1x5xf32, #tpu.memory_space<vmem>>, vector<1x1x5xf32>
    %228 = vector.shape_cast %227 : vector<1x1x5xf32> to vector<1x5xf32>
    %c0_142 = arith.constant 0 : index
    %c0_143 = arith.constant 0 : index
    %229 = vector.load %arg21[%c0_142, %c0_143] : memref<5x128xbf16, #tpu.memory_space<vmem>>, vector<5x128xbf16>
    %230 = arith.truncf %228 : vector<1x5xf32> to vector<1x5xbf16>
    %cst_144 = arith.constant dense<0.000000e+00> : vector<1x128xf32>
    %231 = tpu.matmul %230, %229, %cst_144 {dimension_numbers = #tpu.dot_dimension_numbers<[1], [0], [0], [1], [0, 0, 1, 1], [], []>} : vector<1x5xbf16>, vector<5x128xbf16>, vector<1x128xf32> -> vector<1x128xf32>
    %c0_145 = arith.constant 0 : index
    %c0_146 = arith.constant 0 : index
    %232 = vector.load %arg22[%c0_145, %c0_146] : memref<1x128xf32, #tpu.memory_space<vmem>>, vector<1x128xf32>
    %233 = arith.addf %231, %232 : vector<1x128xf32>
    %cst_147 = arith.constant 0.000000e+00 : f32
    %234 = vector.broadcast %cst_147 : f32 to vector<1x128xf32>
    %235 = arith.maximumf %233, %234 : vector<1x128xf32>
    %c0_148 = arith.constant 0 : index
    %c0_149 = arith.constant 0 : index
    %c0_150 = arith.constant 0 : index
    %236 = vector.load %arg3[%c0_148, %c0_149, %c0_150] : memref<1x1x8xf32, #tpu.memory_space<vmem>>, vector<1x1x8xf32>
    %237 = vector.shape_cast %236 : vector<1x1x8xf32> to vector<1x8xf32>
    %c0_151 = arith.constant 0 : index
    %c0_152 = arith.constant 0 : index
    %238 = vector.load %arg23[%c0_151, %c0_152] : memref<8x128xbf16, #tpu.memory_space<vmem>>, vector<8x128xbf16>
    %239 = arith.truncf %237 : vector<1x8xf32> to vector<1x8xbf16>
    %cst_153 = arith.constant dense<0.000000e+00> : vector<1x128xf32>
    %240 = tpu.matmul %239, %238, %cst_153 {dimension_numbers = #tpu.dot_dimension_numbers<[1], [0], [0], [1], [0, 0, 1, 1], [], []>} : vector<1x8xbf16>, vector<8x128xbf16>, vector<1x128xf32> -> vector<1x128xf32>
    %c0_154 = arith.constant 0 : index
    %c0_155 = arith.constant 0 : index
    %241 = vector.load %arg24[%c0_154, %c0_155] : memref<1x128xf32, #tpu.memory_space<vmem>>, vector<1x128xf32>
    %242 = arith.addf %240, %241 : vector<1x128xf32>
    %cst_156 = arith.constant 0.000000e+00 : f32
    %243 = vector.broadcast %cst_156 : f32 to vector<1x128xf32>
    %244 = arith.maximumf %242, %243 : vector<1x128xf32>
    %c0_157 = arith.constant 0 : index
    %c0_158 = arith.constant 0 : index
    %245 = vector.load %arg25[%c0_157, %c0_158] : memref<128x128xbf16, #tpu.memory_space<vmem>>, vector<128x128xbf16>
    %246 = arith.truncf %235 : vector<1x128xf32> to vector<1x128xbf16>
    %cst_159 = arith.constant dense<0.000000e+00> : vector<1x128xf32>
    %247 = tpu.matmul %246, %245, %cst_159 {dimension_numbers = #tpu.dot_dimension_numbers<[1], [0], [0], [1], [0, 0, 1, 1], [], []>} : vector<1x128xbf16>, vector<128x128xbf16>, vector<1x128xf32> -> vector<1x128xf32>
    %c0_160 = arith.constant 0 : index
    %c0_161 = arith.constant 0 : index
    %248 = vector.load %arg26[%c0_160, %c0_161] : memref<1x128xf32, #tpu.memory_space<vmem>>, vector<1x128xf32>
    %249 = arith.addf %247, %248 : vector<1x128xf32>
    %cst_162 = arith.constant 0.000000e+00 : f32
    %250 = vector.broadcast %cst_162 : f32 to vector<1x128xf32>
    %251 = arith.maximumf %249, %250 : vector<1x128xf32>
    %c0_163 = arith.constant 0 : index
    %c0_164 = arith.constant 0 : index
    %252 = vector.load %arg27[%c0_163, %c0_164] : memref<128x128xbf16, #tpu.memory_space<vmem>>, vector<128x128xbf16>
    %253 = arith.truncf %235 : vector<1x128xf32> to vector<1x128xbf16>
    %cst_165 = arith.constant dense<0.000000e+00> : vector<1x128xf32>
    %254 = tpu.matmul %253, %252, %cst_165 {dimension_numbers = #tpu.dot_dimension_numbers<[1], [0], [0], [1], [0, 0, 1, 1], [], []>} : vector<1x128xbf16>, vector<128x128xbf16>, vector<1x128xf32> -> vector<1x128xf32>
    %c0_166 = arith.constant 0 : index
    %c0_167 = arith.constant 0 : index
    %255 = vector.load %arg28[%c0_166, %c0_167] : memref<1x128xf32, #tpu.memory_space<vmem>>, vector<1x128xf32>
    %256 = arith.addf %254, %255 : vector<1x128xf32>
    %cst_168 = arith.constant 0.000000e+00 : f32
    %257 = vector.broadcast %cst_168 : f32 to vector<1x128xf32>
    %258 = arith.maximumf %256, %257 : vector<1x128xf32>
    %c0_169 = arith.constant 0 : index
    %c0_170 = arith.constant 0 : index
    %259 = vector.load %arg41[%c0_169, %c0_170] : memref<20x128xf32, #tpu.memory_space<vmem>>, vector<1x128xf32>
    tpu.vector_store %arg41[%c0_169, %c0_170], %235 {strides = array<i32>} : memref<20x128xf32, #tpu.memory_space<vmem>>, vector<1x128xf32>,
    %c1_171 = arith.constant 1 : index
    %c0_172 = arith.constant 0 : index
    %260 = vector.load %arg41[%c1_171, %c0_172] : memref<20x128xf32, #tpu.memory_space<vmem>>, vector<1x128xf32>
    tpu.vector_store %arg41[%c1_171, %c0_172], %251 {strides = array<i32>} : memref<20x128xf32, #tpu.memory_space<vmem>>, vector<1x128xf32>,
    %c2_173 = arith.constant 2 : index
    %c0_174 = arith.constant 0 : index
    %261 = vector.load %arg41[%c2_173, %c0_174] : memref<20x128xf32, #tpu.memory_space<vmem>>, vector<1x128xf32>
    tpu.vector_store %arg41[%c2_173, %c0_174], %258 {strides = array<i32>} : memref<20x128xf32, #tpu.memory_space<vmem>>, vector<1x128xf32>,
    %c3_175 = arith.constant 3 : index
    %c0_176 = arith.constant 0 : index
    %262 = vector.load %arg41[%c3_175, %c0_176] : memref<20x128xf32, #tpu.memory_space<vmem>>, vector<1x128xf32>
    tpu.vector_store %arg41[%c3_175, %c0_176], %244 {strides = array<i32>} : memref<20x128xf32, #tpu.memory_space<vmem>>, vector<1x128xf32>,
    %c4_177 = arith.constant 4 : index
    %c0_178 = arith.constant 0 : index
    %263 = vector.load %arg41[%c4_177, %c0_178] : memref<20x128xf32, #tpu.memory_space<vmem>>, vector<16x128xf32>
    tpu.vector_store %arg41[%c4_177, %c0_178], %105 {strides = array<i32>} : memref<20x128xf32, #tpu.memory_space<vmem>>, vector<16x128xf32>,
    %c0_179 = arith.constant 0 : index
    %c0_180 = arith.constant 0 : index
    %264 = vector.load %arg41[%c0_179, %c0_180] : memref<20x128xf32, #tpu.memory_space<vmem>>, vector<20x128xf32>
    %c0_181 = arith.constant 0 : index
    %c0_182 = arith.constant 0 : index
    %265 = vector.load %arg29[%c0_181, %c0_182] : memref<128x384xbf16, #tpu.memory_space<vmem>>, vector<128x384xbf16>
    %266 = arith.truncf %264 : vector<20x128xf32> to vector<20x128xbf16>
    %cst_183 = arith.constant dense<0.000000e+00> : vector<20x384xf32>
    %267 = tpu.matmul %266, %265, %cst_183 {dimension_numbers = #tpu.dot_dimension_numbers<[1], [0], [0], [1], [0, 0, 1, 1], [], []>} : vector<20x128xbf16>, vector<128x384xbf16>, vector<20x384xf32> -> vector<20x384xf32>
    %c0_184 = arith.constant 0 : index
    %c0_185 = arith.constant 0 : index
    %268 = vector.load %arg30[%c0_184, %c0_185] : memref<1x384xf32, #tpu.memory_space<vmem>>, vector<1x384xf32>
    %269 = vector.broadcast %268 : vector<1x384xf32> to vector<20x384xf32>
    %270 = arith.addf %267, %269 : vector<20x384xf32>
    %271 = vector.extract_strided_slice %270 {offsets = [0, 0], sizes = [20, 16], strides = [1, 1]} : vector<20x384xf32> to vector<20x16xf32>
    %272 = vector.extract_strided_slice %270 {offsets = [0, 16], sizes = [20, 16], strides = [1, 1]} : vector<20x384xf32> to vector<20x16xf32>
    %273 = vector.extract_strided_slice %270 {offsets = [0, 32], sizes = [20, 16], strides = [1, 1]} : vector<20x384xf32> to vector<20x16xf32>
    %274 = vector.extract_strided_slice %270 {offsets = [0, 48], sizes = [20, 16], strides = [1, 1]} : vector<20x384xf32> to vector<20x16xf32>
    %275 = vector.extract_strided_slice %270 {offsets = [0, 64], sizes = [20, 16], strides = [1, 1]} : vector<20x384xf32> to vector<20x16xf32>
    %276 = vector.extract_strided_slice %270 {offsets = [0, 80], sizes = [20, 16], strides = [1, 1]} : vector<20x384xf32> to vector<20x16xf32>
    %277 = vector.extract_strided_slice %270 {offsets = [0, 96], sizes = [20, 16], strides = [1, 1]} : vector<20x384xf32> to vector<20x16xf32>
    %278 = vector.extract_strided_slice %270 {offsets = [0, 112], sizes = [20, 16], strides = [1, 1]} : vector<20x384xf32> to vector<20x16xf32>
    %279 = vector.shape_cast %271 : vector<20x16xf32> to vector<1x20x16xf32>
    %280 = vector.shape_cast %272 : vector<20x16xf32> to vector<1x20x16xf32>
    %281 = vector.shape_cast %273 : vector<20x16xf32> to vector<1x20x16xf32>
    %282 = vector.shape_cast %274 : vector<20x16xf32> to vector<1x20x16xf32>
    %283 = vector.shape_cast %275 : vector<20x16xf32> to vector<1x20x16xf32>
    %284 = vector.shape_cast %276 : vector<20x16xf32> to vector<1x20x16xf32>
    %285 = vector.shape_cast %277 : vector<20x16xf32> to vector<1x20x16xf32>
    %286 = vector.shape_cast %278 : vector<20x16xf32> to vector<1x20x16xf32>
    %287 = tpu.concatenate %279, %280, %281, %282, %283, %284, %285, %286 in 0 : vector<1x20x16xf32>, vector<1x20x16xf32>, vector<1x20x16xf32>, vector<1x20x16xf32>, vector<1x20x16xf32>, vector<1x20x16xf32>, vector<1x20x16xf32>, vector<1x20x16xf32> -> vector<8x20x16xf32>
    %288 = vector.extract_strided_slice %270 {offsets = [0, 128], sizes = [20, 16], strides = [1, 1]} : vector<20x384xf32> to vector<20x16xf32>
    %289 = vector.extract_strided_slice %270 {offsets = [0, 144], sizes = [20, 16], strides = [1, 1]} : vector<20x384xf32> to vector<20x16xf32>
    %290 = vector.extract_strided_slice %270 {offsets = [0, 160], sizes = [20, 16], strides = [1, 1]} : vector<20x384xf32> to vector<20x16xf32>
    %291 = vector.extract_strided_slice %270 {offsets = [0, 176], sizes = [20, 16], strides = [1, 1]} : vector<20x384xf32> to vector<20x16xf32>
    %292 = vector.extract_strided_slice %270 {offsets = [0, 192], sizes = [20, 16], strides = [1, 1]} : vector<20x384xf32> to vector<20x16xf32>
    %293 = vector.extract_strided_slice %270 {offsets = [0, 208], sizes = [20, 16], strides = [1, 1]} : vector<20x384xf32> to vector<20x16xf32>
    %294 = vector.extract_strided_slice %270 {offsets = [0, 224], sizes = [20, 16], strides = [1, 1]} : vector<20x384xf32> to vector<20x16xf32>
    %295 = vector.extract_strided_slice %270 {offsets = [0, 240], sizes = [20, 16], strides = [1, 1]} : vector<20x384xf32> to vector<20x16xf32>
    %296 = vector.shape_cast %288 : vector<20x16xf32> to vector<1x20x16xf32>
    %297 = vector.shape_cast %289 : vector<20x16xf32> to vector<1x20x16xf32>
    %298 = vector.shape_cast %290 : vector<20x16xf32> to vector<1x20x16xf32>
    %299 = vector.shape_cast %291 : vector<20x16xf32> to vector<1x20x16xf32>
    %300 = vector.shape_cast %292 : vector<20x16xf32> to vector<1x20x16xf32>
    %301 = vector.shape_cast %293 : vector<20x16xf32> to vector<1x20x16xf32>
    %302 = vector.shape_cast %294 : vector<20x16xf32> to vector<1x20x16xf32>
    %303 = vector.shape_cast %295 : vector<20x16xf32> to vector<1x20x16xf32>
    %304 = tpu.concatenate %296, %297, %298, %299, %300, %301, %302, %303 in 0 : vector<1x20x16xf32>, vector<1x20x16xf32>, vector<1x20x16xf32>, vector<1x20x16xf32>, vector<1x20x16xf32>, vector<1x20x16xf32>, vector<1x20x16xf32>, vector<1x20x16xf32> -> vector<8x20x16xf32>
    %305 = vector.extract_strided_slice %270 {offsets = [0, 256], sizes = [20, 16], strides = [1, 1]} : vector<20x384xf32> to vector<20x16xf32>
    %306 = vector.extract_strided_slice %270 {offsets = [0, 272], sizes = [20, 16], strides = [1, 1]} : vector<20x384xf32> to vector<20x16xf32>
    %307 = vector.extract_strided_slice %270 {offsets = [0, 288], sizes = [20, 16], strides = [1, 1]} : vector<20x384xf32> to vector<20x16xf32>
    %308 = vector.extract_strided_slice %270 {offsets = [0, 304], sizes = [20, 16], strides = [1, 1]} : vector<20x384xf32> to vector<20x16xf32>
    %309 = vector.extract_strided_slice %270 {offsets = [0, 320], sizes = [20, 16], strides = [1, 1]} : vector<20x384xf32> to vector<20x16xf32>
    %310 = vector.extract_strided_slice %270 {offsets = [0, 336], sizes = [20, 16], strides = [1, 1]} : vector<20x384xf32> to vector<20x16xf32>
    %311 = vector.extract_strided_slice %270 {offsets = [0, 352], sizes = [20, 16], strides = [1, 1]} : vector<20x384xf32> to vector<20x16xf32>
    %312 = vector.extract_strided_slice %270 {offsets = [0, 368], sizes = [20, 16], strides = [1, 1]} : vector<20x384xf32> to vector<20x16xf32>
    %313 = vector.shape_cast %305 : vector<20x16xf32> to vector<1x20x16xf32>
    %314 = vector.shape_cast %306 : vector<20x16xf32> to vector<1x20x16xf32>
    %315 = vector.shape_cast %307 : vector<20x16xf32> to vector<1x20x16xf32>
    %316 = vector.shape_cast %308 : vector<20x16xf32> to vector<1x20x16xf32>
    %317 = vector.shape_cast %309 : vector<20x16xf32> to vector<1x20x16xf32>
    %318 = vector.shape_cast %310 : vector<20x16xf32> to vector<1x20x16xf32>
    %319 = vector.shape_cast %311 : vector<20x16xf32> to vector<1x20x16xf32>
    %320 = vector.shape_cast %312 : vector<20x16xf32> to vector<1x20x16xf32>
    %321 = tpu.concatenate %313, %314, %315, %316, %317, %318, %319, %320 in 0 : vector<1x20x16xf32>, vector<1x20x16xf32>, vector<1x20x16xf32>, vector<1x20x16xf32>, vector<1x20x16xf32>, vector<1x20x16xf32>, vector<1x20x16xf32>, vector<1x20x16xf32> -> vector<8x20x16xf32>
    "tpu.trace_start"() <{level = 10 : i32, message = "hqd,hkd->hqk"}> : () -> ()
    %cst_186 = arith.constant dense<0.000000e+00> : vector<8x20x20xf32>
    %322 = tpu.matmul %287, %304, %cst_186 {dimension_numbers = #tpu.dot_dimension_numbers<[2], [2], [1], [1], [0, 0, 0, 1, 1, 1], [0], [0]>} : vector<8x20x16xf32>, vector<8x20x16xf32>, vector<8x20x20xf32> -> vector<8x20x20xf32>
    "tpu.trace_stop"() : () -> ()
    %cst_187 = arith.constant dense<0xFF800000> : vector<8x20xf32>
    %323 = vector.multi_reduction <maximumf>, %322, %cst_187 [2] : vector<8x20x20xf32> to vector<8x20xf32>
    %324 = vector.shape_cast %323 : vector<8x20xf32> to vector<8x20x1xf32>
    %325 = vector.broadcast %324 : vector<8x20x1xf32> to vector<8x20x20xf32>
    %326 = arith.subf %322, %325 : vector<8x20x20xf32>
    %327 = math.exp %326 : vector<8x20x20xf32>
    %cst_188 = arith.constant dense<0.000000e+00> : vector<8x20xf32>
    %328 = vector.multi_reduction <add>, %327, %cst_188 [2] : vector<8x20x20xf32> to vector<8x20xf32>
    %329 = vector.shape_cast %328 : vector<8x20xf32> to vector<8x20x1xf32>
    %330 = vector.broadcast %329 : vector<8x20x1xf32> to vector<8x20x20xf32>
    %331 = arith.divf %327, %330 : vector<8x20x20xf32>
    %c0_189 = arith.constant 0 : index
    %c0_190 = arith.constant 0 : index
    %c0_191 = arith.constant 0 : index
    %c0_192 = arith.constant 0 : index
    %332 = vector.load %arg39[%c0_189, %c0_190, %c0_191, %c0_192] : memref<1x8x20x20xf32, #tpu.memory_space<vmem>>, vector<1x8x20x20xf32>
    %333 = vector.shape_cast %332 : vector<1x8x20x20xf32> to vector<8x20x20xf32>
    %334 = vector.shape_cast %331 : vector<8x20x20xf32> to vector<1x8x20x20xf32>
    tpu.vector_store %arg39[%c0_189, %c0_190, %c0_191, %c0_192], %334 {strides = array<i32>} : memref<1x8x20x20xf32, #tpu.memory_space<vmem>>, vector<1x8x20x20xf32>,
    "tpu.trace_start"() <{level = 10 : i32, message = "hqk,hkd->hqd"}> : () -> ()
    %cst_193 = arith.constant dense<0.000000e+00> : vector<8x20x16xf32>
    %335 = tpu.matmul %331, %321, %cst_193 {dimension_numbers = #tpu.dot_dimension_numbers<[2], [1], [1], [2], [0, 0, 0, 1, 1, 2], [0], [0]>} : vector<8x20x20xf32>, vector<8x20x16xf32>, vector<8x20x16xf32> -> vector<8x20x16xf32>
    "tpu.trace_stop"() : () -> ()
    %336 = vector.extract_strided_slice %335 {offsets = [0, 0, 0], sizes = [1, 20, 16], strides = [1, 1, 1]} : vector<8x20x16xf32> to vector<1x20x16xf32>
    %337 = vector.shape_cast %336 : vector<1x20x16xf32> to vector<20x16xf32>
    %338 = vector.extract_strided_slice %335 {offsets = [1, 0, 0], sizes = [1, 20, 16], strides = [1, 1, 1]} : vector<8x20x16xf32> to vector<1x20x16xf32>
    %339 = vector.shape_cast %338 : vector<1x20x16xf32> to vector<20x16xf32>
    %340 = vector.extract_strided_slice %335 {offsets = [2, 0, 0], sizes = [1, 20, 16], strides = [1, 1, 1]} : vector<8x20x16xf32> to vector<1x20x16xf32>
    %341 = vector.shape_cast %340 : vector<1x20x16xf32> to vector<20x16xf32>
    %342 = vector.extract_strided_slice %335 {offsets = [3, 0, 0], sizes = [1, 20, 16], strides = [1, 1, 1]} : vector<8x20x16xf32> to vector<1x20x16xf32>
    %343 = vector.shape_cast %342 : vector<1x20x16xf32> to vector<20x16xf32>
    %344 = vector.extract_strided_slice %335 {offsets = [4, 0, 0], sizes = [1, 20, 16], strides = [1, 1, 1]} : vector<8x20x16xf32> to vector<1x20x16xf32>
    %345 = vector.shape_cast %344 : vector<1x20x16xf32> to vector<20x16xf32>
    %346 = vector.extract_strided_slice %335 {offsets = [5, 0, 0], sizes = [1, 20, 16], strides = [1, 1, 1]} : vector<8x20x16xf32> to vector<1x20x16xf32>
    %347 = vector.shape_cast %346 : vector<1x20x16xf32> to vector<20x16xf32>
    %348 = vector.extract_strided_slice %335 {offsets = [6, 0, 0], sizes = [1, 20, 16], strides = [1, 1, 1]} : vector<8x20x16xf32> to vector<1x20x16xf32>
    %349 = vector.shape_cast %348 : vector<1x20x16xf32> to vector<20x16xf32>
    %350 = vector.extract_strided_slice %335 {offsets = [7, 0, 0], sizes = [1, 20, 16], strides = [1, 1, 1]} : vector<8x20x16xf32> to vector<1x20x16xf32>
    %351 = vector.shape_cast %350 : vector<1x20x16xf32> to vector<20x16xf32>
    %352 = tpu.concatenate %337, %339, %341, %343, %345, %347, %349, %351 in 1 : vector<20x16xf32>, vector<20x16xf32>, vector<20x16xf32>, vector<20x16xf32>, vector<20x16xf32>, vector<20x16xf32>, vector<20x16xf32>, vector<20x16xf32> -> vector<20x128xf32>
    %c0_194 = arith.constant 0 : index
    %c0_195 = arith.constant 0 : index
    %353 = vector.load %arg31[%c0_194, %c0_195] : memref<128x128xbf16, #tpu.memory_space<vmem>>, vector<128x128xbf16>
    %354 = arith.truncf %352 : vector<20x128xf32> to vector<20x128xbf16>
    %cst_196 = arith.constant dense<0.000000e+00> : vector<20x128xf32>
    %355 = tpu.matmul %354, %353, %cst_196 {dimension_numbers = #tpu.dot_dimension_numbers<[1], [0], [0], [1], [0, 0, 1, 1], [], []>} : vector<20x128xbf16>, vector<128x128xbf16>, vector<20x128xf32> -> vector<20x128xf32>
    %c0_197 = arith.constant 0 : index
    %c0_198 = arith.constant 0 : index
    %356 = vector.load %arg32[%c0_197, %c0_198] : memref<1x128xf32, #tpu.memory_space<vmem>>, vector<1x128xf32>
    %357 = vector.broadcast %356 : vector<1x128xf32> to vector<20x128xf32>
    %358 = arith.addf %355, %357 : vector<20x128xf32>
    %359 = vector.extract_strided_slice %358 {offsets = [0, 0], sizes = [1, 128], strides = [1, 1]} : vector<20x128xf32> to vector<1x128xf32>
    %c0_199 = arith.constant 0 : index
    %c0_200 = arith.constant 0 : index
    %360 = vector.load %arg33[%c0_199, %c0_200] : memref<128x128xbf16, #tpu.memory_space<vmem>>, vector<128x128xbf16>
    %361 = arith.truncf %359 : vector<1x128xf32> to vector<1x128xbf16>
    %cst_201 = arith.constant dense<0.000000e+00> : vector<1x128xf32>
    %362 = tpu.matmul %361, %360, %cst_201 {dimension_numbers = #tpu.dot_dimension_numbers<[1], [0], [0], [1], [0, 0, 1, 1], [], []>} : vector<1x128xbf16>, vector<128x128xbf16>, vector<1x128xf32> -> vector<1x128xf32>
    %c0_202 = arith.constant 0 : index
    %c0_203 = arith.constant 0 : index
    %363 = vector.load %arg34[%c0_202, %c0_203] : memref<1x128xf32, #tpu.memory_space<vmem>>, vector<1x128xf32>
    %364 = arith.addf %362, %363 : vector<1x128xf32>
    %cst_204 = arith.constant 0.000000e+00 : f32
    %365 = vector.broadcast %cst_204 : f32 to vector<1x128xf32>
    %366 = arith.cmpf ogt, %364, %365 : vector<1x128xf32>
    %cst_205 = arith.constant 0.000000e+00 : f32
    %367 = vector.broadcast %cst_205 : f32 to vector<1x128xf32>
    %368 = arith.minimumf %364, %367 : vector<1x128xf32>
    %369 = math.exp %368 : vector<1x128xf32>
    %cst_206 = arith.constant 1.000000e+00 : f32
    %370 = vector.broadcast %cst_206 : f32 to vector<1x128xf32>
    %371 = arith.subf %369, %370 : vector<1x128xf32>
    %cst_207 = arith.constant 1.67326319 : f32
    %372 = vector.broadcast %cst_207 : f32 to vector<1x128xf32>
    %373 = arith.mulf %372, %371 : vector<1x128xf32>
    %374 = arith.select %366, %364, %373 : vector<1x128xi1>, vector<1x128xf32>
    %cst_208 = arith.constant 1.05070102 : f32
    %375 = vector.broadcast %cst_208 : f32 to vector<1x128xf32>
    %376 = arith.mulf %375, %374 : vector<1x128xf32>
    %c0_209 = arith.constant 0 : index
    %c0_210 = arith.constant 0 : index
    %377 = vector.load %arg35[%c0_209, %c0_210] : memref<128x2xbf16, #tpu.memory_space<vmem>>, vector<128x2xbf16>
    %378 = arith.truncf %376 : vector<1x128xf32> to vector<1x128xbf16>
    %cst_211 = arith.constant dense<0.000000e+00> : vector<1x2xf32>
    %379 = tpu.matmul %378, %377, %cst_211 {dimension_numbers = #tpu.dot_dimension_numbers<[1], [0], [0], [1], [0, 0, 1, 1], [], []>} : vector<1x128xbf16>, vector<128x2xbf16>, vector<1x2xf32> -> vector<1x2xf32>
    %c0_212 = arith.constant 0 : index
    %c0_213 = arith.constant 0 : index
    %380 = vector.load %arg36[%c0_212, %c0_213] : memref<1x2xf32, #tpu.memory_space<vmem>>, vector<1x2xf32>
    %381 = arith.addf %379, %380 : vector<1x2xf32>
    %382 = vector.extract_strided_slice %358 {offsets = [1, 0], sizes = [1, 128], strides = [1, 1]} : vector<20x128xf32> to vector<1x128xf32>
    %c0_214 = arith.constant 0 : index
    %c0_215 = arith.constant 0 : index
    %383 = vector.load %arg37[%c0_214, %c0_215] : memref<128x8xbf16, #tpu.memory_space<vmem>>, vector<128x8xbf16>
    %384 = arith.truncf %382 : vector<1x128xf32> to vector<1x128xbf16>
    %cst_216 = arith.constant dense<0.000000e+00> : vector<1x8xf32>
    %385 = tpu.matmul %384, %383, %cst_216 {dimension_numbers = #tpu.dot_dimension_numbers<[1], [0], [0], [1], [0, 0, 1, 1], [], []>} : vector<1x128xbf16>, vector<128x8xbf16>, vector<1x8xf32> -> vector<1x8xf32>
    %c0_217 = arith.constant 0 : index
    %c0_218 = arith.constant 0 : index
    %386 = vector.load %arg38[%c0_217, %c0_218] : memref<1x8xf32, #tpu.memory_space<vmem>>, vector<1x8xf32>
    %387 = arith.addf %385, %386 : vector<1x8xf32>
    %388 = tpu.concatenate %226, %381, %387 in 1 : vector<1x16xf32>, vector<1x2xf32>, vector<1x8xf32> -> vector<1x26xf32>
    %c0_219 = arith.constant 0 : index
    %c0_220 = arith.constant 0 : index
    %c0_221 = arith.constant 0 : index
    %389 = vector.load %arg40[%c0_219, %c0_220, %c0_221] : memref<1x1x26xf32, #tpu.memory_space<vmem>>, vector<1x1x26xf32>
    %390 = vector.shape_cast %389 : vector<1x1x26xf32> to vector<1x26xf32>
    %391 = vector.shape_cast %388 : vector<1x26xf32> to vector<1x1x26xf32>
    tpu.vector_store %arg40[%c0_219, %c0_220, %c0_221], %391 {strides = array<i32>} : memref<1x1x26xf32, #tpu.memory_space<vmem>>, vector<1x1x26xf32>,
    return
  }
  func.func @transform_0(%arg0: i32) -> (i32, i32, i32) {
    %c0_i32 = arith.constant 0 : i32
    %c0_i32_0 = arith.constant 0 : i32
    %c0_i32_1 = arith.constant 0 : i32
    return %arg0, %c0_i32, %c0_i32_0 : i32, i32, i32
  }
  func.func @transform_1(%arg0: i32) -> (i32, i32, i32) {
    %c0_i32 = arith.constant 0 : i32
    %c0_i32_0 = arith.constant 0 : i32
    %c0_i32_1 = arith.constant 0 : i32
    return %arg0, %c0_i32, %c0_i32_0 : i32, i32, i32
  }
  func.func @transform_2(%arg0: i32) -> (i32, i32, i32) {
    %c0_i32 = arith.constant 0 : i32
    %c0_i32_0 = arith.constant 0 : i32
    %c0_i32_1 = arith.constant 0 : i32
    return %arg0, %c0_i32, %c0_i32_0 : i32, i32, i32
  }
  func.func @transform_3(%arg0: i32) -> (i32, i32) {
    %c0_i32 = arith.constant 0 : i32
    %c0_i32_0 = arith.constant 0 : i32
    %c0_i32_1 = arith.constant 0 : i32
    return %c0_i32, %c0_i32_0 : i32, i32
  }
  func.func @transform_4(%arg0: i32) -> (i32, i32) {
    %c0_i32 = arith.constant 0 : i32
    %c0_i32_0 = arith.constant 0 : i32
    %c0_i32_1 = arith.constant 0 : i32
    return %c0_i32, %c0_i32_0 : i32, i32
  }
  func.func @transform_5(%arg0: i32) -> (i32, i32) {
    %c0_i32 = arith.constant 0 : i32
    %c0_i32_0 = arith.constant 0 : i32
    %c0_i32_1 = arith.constant 0 : i32
    return %c0_i32, %c0_i32_0 : i32, i32
  }
  func.func @transform_6(%arg0: i32) -> (i32, i32, i32) {
    %c0_i32 = arith.constant 0 : i32
    %c0_i32_0 = arith.constant 0 : i32
    %c0_i32_1 = arith.constant 0 : i32
    %c0_i32_2 = arith.constant 0 : i32
    return %c0_i32, %c0_i32_0, %c0_i32_1 : i32, i32, i32
  }
  func.func @transform_7(%arg0: i32) -> (i32, i32) {
    %c0_i32 = arith.constant 0 : i32
    %c0_i32_0 = arith.constant 0 : i32
    %c0_i32_1 = arith.constant 0 : i32
    return %c0_i32, %c0_i32_0 : i32, i32
  }
  func.func @transform_8(%arg0: i32) -> (i32, i32) {
    %c0_i32 = arith.constant 0 : i32
    %c0_i32_0 = arith.constant 0 : i32
    %c0_i32_1 = arith.constant 0 : i32
    return %c0_i32, %c0_i32_0 : i32, i32
  }
  func.func @transform_9(%arg0: i32) -> (i32, i32) {
    %c0_i32 = arith.constant 0 : i32
    %c0_i32_0 = arith.constant 0 : i32
    %c0_i32_1 = arith.constant 0 : i32
    return %c0_i32, %c0_i32_0 : i32, i32
  }
  func.func @transform_10(%arg0: i32) -> (i32, i32) {
    %c0_i32 = arith.constant 0 : i32
    %c0_i32_0 = arith.constant 0 : i32
    %c0_i32_1 = arith.constant 0 : i32
    return %c0_i32, %c0_i32_0 : i32, i32
  }
  func.func @transform_11(%arg0: i32) -> (i32, i32) {
    %c0_i32 = arith.constant 0 : i32
    %c0_i32_0 = arith.constant 0 : i32
    %c0_i32_1 = arith.constant 0 : i32
    return %c0_i32, %c0_i32_0 : i32, i32
  }
  func.func @transform_12(%arg0: i32) -> (i32, i32) {
    %c0_i32 = arith.constant 0 : i32
    %c0_i32_0 = arith.constant 0 : i32
    %c0_i32_1 = arith.constant 0 : i32
    return %c0_i32, %c0_i32_0 : i32, i32
  }
  func.func @transform_13(%arg0: i32) -> (i32, i32) {
    %c0_i32 = arith.constant 0 : i32
    %c0_i32_0 = arith.constant 0 : i32
    %c0_i32_1 = arith.constant 0 : i32
    return %c0_i32, %c0_i32_0 : i32, i32
  }
  func.func @transform_14(%arg0: i32) -> (i32, i32, i32) {
    %c0_i32 = arith.constant 0 : i32
    %c0_i32_0 = arith.constant 0 : i32
    %c0_i32_1 = arith.constant 0 : i32
    %c0_i32_2 = arith.constant 0 : i32
    return %c0_i32, %c0_i32_0, %c0_i32_1 : i32, i32, i32
  }
  func.func @transform_15(%arg0: i32) -> (i32, i32) {
    %c0_i32 = arith.constant 0 : i32
    %c0_i32_0 = arith.constant 0 : i32
    %c0_i32_1 = arith.constant 0 : i32
    return %c0_i32, %c0_i32_0 : i32, i32
  }
  func.func @transform_16(%arg0: i32) -> (i32, i32) {
    %c0_i32 = arith.constant 0 : i32
    %c0_i32_0 = arith.constant 0 : i32
    %c0_i32_1 = arith.constant 0 : i32
    return %c0_i32, %c0_i32_0 : i32, i32
  }
  func.func @transform_17(%arg0: i32) -> (i32, i32) {
    %c0_i32 = arith.constant 0 : i32
    %c0_i32_0 = arith.constant 0 : i32
    %c0_i32_1 = arith.constant 0 : i32
    return %c0_i32, %c0_i32_0 : i32, i32
  }
  func.func @transform_18(%arg0: i32) -> (i32, i32) {
    %c0_i32 = arith.constant 0 : i32
    %c0_i32_0 = arith.constant 0 : i32
    %c0_i32_1 = arith.constant 0 : i32
    return %c0_i32, %c0_i32_0 : i32, i32
  }
  func.func @transform_19(%arg0: i32) -> (i32, i32) {
    %c0_i32 = arith.constant 0 : i32
    %c0_i32_0 = arith.constant 0 : i32
    %c0_i32_1 = arith.constant 0 : i32
    return %c0_i32, %c0_i32_0 : i32, i32
  }
  func.func @transform_20(%arg0: i32) -> (i32, i32) {
    %c0_i32 = arith.constant 0 : i32
    %c0_i32_0 = arith.constant 0 : i32
    %c0_i32_1 = arith.constant 0 : i32
    return %c0_i32, %c0_i32_0 : i32, i32
  }
  func.func @transform_21(%arg0: i32) -> (i32, i32) {
    %c0_i32 = arith.constant 0 : i32
    %c0_i32_0 = arith.constant 0 : i32
    %c0_i32_1 = arith.constant 0 : i32
    return %c0_i32, %c0_i32_0 : i32, i32
  }
  func.func @transform_22(%arg0: i32) -> (i32, i32) {
    %c0_i32 = arith.constant 0 : i32
    %c0_i32_0 = arith.constant 0 : i32
    %c0_i32_1 = arith.constant 0 : i32
    return %c0_i32, %c0_i32_0 : i32, i32
  }
  func.func @transform_23(%arg0: i32) -> (i32, i32) {
    %c0_i32 = arith.constant 0 : i32
    %c0_i32_0 = arith.constant 0 : i32
    %c0_i32_1 = arith.constant 0 : i32
    return %c0_i32, %c0_i32_0 : i32, i32
  }
  func.func @transform_24(%arg0: i32) -> (i32, i32) {
    %c0_i32 = arith.constant 0 : i32
    %c0_i32_0 = arith.constant 0 : i32
    %c0_i32_1 = arith.constant 0 : i32
    return %c0_i32, %c0_i32_0 : i32, i32
  }
  func.func @transform_25(%arg0: i32) -> (i32, i32) {
    %c0_i32 = arith.constant 0 : i32
    %c0_i32_0 = arith.constant 0 : i32
    %c0_i32_1 = arith.constant 0 : i32
    return %c0_i32, %c0_i32_0 : i32, i32
  }
  func.func @transform_26(%arg0: i32) -> (i32, i32) {
    %c0_i32 = arith.constant 0 : i32
    %c0_i32_0 = arith.constant 0 : i32
    %c0_i32_1 = arith.constant 0 : i32
    return %c0_i32, %c0_i32_0 : i32, i32
  }
  func.func @transform_27(%arg0: i32) -> (i32, i32) {
    %c0_i32 = arith.constant 0 : i32
    %c0_i32_0 = arith.constant 0 : i32
    %c0_i32_1 = arith.constant 0 : i32
    return %c0_i32, %c0_i32_0 : i32, i32
  }
  func.func @transform_28(%arg0: i32) -> (i32, i32) {
    %c0_i32 = arith.constant 0 : i32
    %c0_i32_0 = arith.constant 0 : i32
    %c0_i32_1 = arith.constant 0 : i32
    return %c0_i32, %c0_i32_0 : i32, i32
  }
  func.func @transform_29(%arg0: i32) -> (i32, i32) {
    %c0_i32 = arith.constant 0 : i32
    %c0_i32_0 = arith.constant 0 : i32
    %c0_i32_1 = arith.constant 0 : i32
    return %c0_i32, %c0_i32_0 : i32, i32
  }
  func.func @transform_30(%arg0: i32) -> (i32, i32) {
    %c0_i32 = arith.constant 0 : i32
    %c0_i32_0 = arith.constant 0 : i32
    %c0_i32_1 = arith.constant 0 : i32
    return %c0_i32, %c0_i32_0 : i32, i32
  }
  func.func @transform_31(%arg0: i32) -> (i32, i32) {
    %c0_i32 = arith.constant 0 : i32
    %c0_i32_0 = arith.constant 0 : i32
    %c0_i32_1 = arith.constant 0 : i32
    return %c0_i32, %c0_i32_0 : i32, i32
  }
  func.func @transform_32(%arg0: i32) -> (i32, i32) {
    %c0_i32 = arith.constant 0 : i32
    %c0_i32_0 = arith.constant 0 : i32
    %c0_i32_1 = arith.constant 0 : i32
    return %c0_i32, %c0_i32_0 : i32, i32
  }
  func.func @transform_33(%arg0: i32) -> (i32, i32) {
    %c0_i32 = arith.constant 0 : i32
    %c0_i32_0 = arith.constant 0 : i32
    %c0_i32_1 = arith.constant 0 : i32
    return %c0_i32, %c0_i32_0 : i32, i32
  }
  func.func @transform_34(%arg0: i32) -> (i32, i32) {
    %c0_i32 = arith.constant 0 : i32
    %c0_i32_0 = arith.constant 0 : i32
    %c0_i32_1 = arith.constant 0 : i32
    return %c0_i32, %c0_i32_0 : i32, i32
  }
  func.func @transform_35(%arg0: i32) -> (i32, i32) {
    %c0_i32 = arith.constant 0 : i32
    %c0_i32_0 = arith.constant 0 : i32
    %c0_i32_1 = arith.constant 0 : i32
    return %c0_i32, %c0_i32_0 : i32, i32
  }
  func.func @transform_36(%arg0: i32) -> (i32, i32) {
    %c0_i32 = arith.constant 0 : i32
    %c0_i32_0 = arith.constant 0 : i32
    %c0_i32_1 = arith.constant 0 : i32
    return %c0_i32, %c0_i32_0 : i32, i32
  }
  func.func @transform_37(%arg0: i32) -> (i32, i32) {
    %c0_i32 = arith.constant 0 : i32
    %c0_i32_0 = arith.constant 0 : i32
    %c0_i32_1 = arith.constant 0 : i32
    return %c0_i32, %c0_i32_0 : i32, i32
  }
  func.func @transform_38(%arg0: i32) -> (i32, i32, i32, i32) {
    %c0_i32 = arith.constant 0 : i32
    %c0_i32_0 = arith.constant 0 : i32
    %c0_i32_1 = arith.constant 0 : i32
    %c0_i32_2 = arith.constant 0 : i32
    return %arg0, %c0_i32, %c0_i32_0, %c0_i32_1 : i32, i32, i32, i32
  }
  func.func @transform_39(%arg0: i32) -> (i32, i32, i32) {
    %c0_i32 = arith.constant 0 : i32
    %c0_i32_0 = arith.constant 0 : i32
    %c0_i32_1 = arith.constant 0 : i32
    return %arg0, %c0_i32, %c0_i32_0 : i32, i32, i32
  }
}

</mosaic_0001>

<llo_original>
// kernel: backbone_forward.1
$region0: #{backbone_forward.1}
  #allocation0 [shape = 'u32[]', space=smem, size = 0x4, offset = 0x4, fixed_abs, tag = 'smem constant byte address 0x4 - core index']
  #allocation1 [shape = 'u32[144,128]{1,0:T(1,128)}', space=vmem, size = 0x12000, scoped, tag = 'internal scratch']
  #allocation2 [shape = 'f32[20,128]{1,0:T(8,128)}', space=vmem, size = 0x3000, scoped, tag = 'scratch operand']
  %s0 = inlined_call_operand.smem [shape: u32[40], index: -1, kind: input, shape index: {}]
  %s1 = sld [smem:[%s0]]
  %s2 = scalar_lea.smem %s0, 1
  %s3 = sld [smem:[%s2]]
  %s4 = scalar_lea.smem %s0, 2
  %s5 = sld [smem:[%s4]]
  %s6 = scalar_lea.smem %s0, 3
  %s7 = sld [smem:[%s6]]
  %s8 = scalar_lea.smem %s0, 4
  %s9 = sld [smem:[%s8]]
  %s10 = scalar_lea.smem %s0, 5
  %s11 = sld [smem:[%s10]]
  %s12 = scalar_lea.smem %s0, 6
  %s13 = sld [smem:[%s12]]
  %s14 = scalar_lea.smem %s0, 7
  %s15 = sld [smem:[%s14]]
  %s16 = scalar_lea.smem %s0, 8
  %s17 = sld [smem:[%s16]]
  %s18 = scalar_lea.smem %s0, 9
  %s19 = sld [smem:[%s18]]
  %s20 = scalar_lea.smem %s0, 10
  %s21 = sld [smem:[%s20]]
  %s22 = scalar_lea.smem %s0, 11
  %s23 = sld [smem:[%s22]]
  %s24 = scalar_lea.smem %s0, 12
  %s25 = sld [smem:[%s24]]
  %s26 = scalar_lea.smem %s0, 13
  %s27 = sld [smem:[%s26]]
  %s28 = scalar_lea.smem %s0, 14
  %s29 = sld [smem:[%s28]]
  %s30 = scalar_lea.smem %s0, 15
  %s31 = sld [smem:[%s30]]
  %s32 = scalar_lea.smem %s0, 16
  %s33 = sld [smem:[%s32]]
  %s34 = scalar_lea.smem %s0, 17
  %s35 = sld [smem:[%s34]]
  %s36 = scalar_lea.smem %s0, 18
  %s37 = sld [smem:[%s36]]
  %s38 = scalar_lea.smem %s0, 19
  %s39 = sld [smem:[%s38]]
  %s40 = scalar_lea.smem %s0, 20
  %s41 = sld [smem:[%s40]]
  %s42 = scalar_lea.smem %s0, 21
  %s43 = sld [smem:[%s42]]
  %s44 = scalar_lea.smem %s0, 22
  %s45 = sld [smem:[%s44]]
  %s46 = scalar_lea.smem %s0, 23
  %s47 = sld [smem:[%s46]]
  %s48 = scalar_lea.smem %s0, 24
  %s49 = sld [smem:[%s48]]
  %s50 = scalar_lea.smem %s0, 25
  %s51 = sld [smem:[%s50]]
  %s52 = scalar_lea.smem %s0, 26
  %s53 = sld [smem:[%s52]]
  %s54 = scalar_lea.smem %s0, 27
  %s55 = sld [smem:[%s54]]
  %s56 = scalar_lea.smem %s0, 28
  %s57 = sld [smem:[%s56]]
  %s58 = scalar_lea.smem %s0, 29
  %s59 = sld [smem:[%s58]]
  %s60 = scalar_lea.smem %s0, 30
  %s61 = sld [smem:[%s60]]
  %s62 = scalar_lea.smem %s0, 31
  %s63 = sld [smem:[%s62]]
  %s64 = scalar_lea.smem %s0, 32
  %s65 = sld [smem:[%s64]]
  %s66 = scalar_lea.smem %s0, 33
  %s67 = sld [smem:[%s66]]
  %s68 = scalar_lea.smem %s0, 34
  %s69 = sld [smem:[%s68]]
  %s70 = scalar_lea.smem %s0, 35
  %s71 = sld [smem:[%s70]]
  %s72 = scalar_lea.smem %s0, 36
  %s73 = sld [smem:[%s72]]
  %s74 = scalar_lea.smem %s0, 37
  %s75 = sld [smem:[%s74]]
  %s76 = scalar_lea.smem %s0, 38
  %s77 = sld [smem:[%s76]]
  %s78 = scalar_lea.smem %s0, 39
  %s79 = sld [smem:[%s78]]
  %80 = xla_tuple %s77, %s79
  %s81 = sld [smem:[#allocation0]]
  $region193: #{backbone_forward.1} parent=0
    _
  %s83 = ssub.s32 1, %s81
  %s84 = scalar_select 0, %s83, %s81
  loop: start=0, step=1, limit=4
  $region2: #{backbone_forward.1} parent=0 // loop_pre_header
    _
  $region3: #{backbone_forward.1} parent=0 // loop_header
    %s86 = sphi 0, %s90
    %p87 = scmp.ge.s32.totalorder %s86, 4
    %s96 = sphi 0, %s98
    %s99 = sphi 0, %s96
    %s100 = sphi 0, %s99
    %s116 = sphi 0, %s100
    %s122 = sphi 0, %s124
    %s125 = sphi 0, %s122
    %s126 = sphi 0, %s125
    %s142 = sphi 0, %s126
    %s148 = sphi 0, %s150
    %s151 = sphi 0, %s148
    %s152 = sphi 0, %s151
    %s168 = sphi 0, %s152
    %s172 = sphi 0, %s172
    %s174 = sphi 0, %s172
    %s175 = sphi 0, %s174
    %s189 = sphi 0, %s175
    %s193 = sphi 0, %s193
    %s195 = sphi 0, %s193
    %s196 = sphi 0, %s195
    %s210 = sphi 0, %s196
    %s214 = sphi 0, %s214
    %s216 = sphi 0, %s214
    %s217 = sphi 0, %s216
    %s231 = sphi 0, %s217
    %s235 = sphi 0, %s235
    %s237 = sphi 0, %s235
    %s238 = sphi 0, %s237
    %s252 = sphi 0, %s238
    %s256 = sphi 0, %s256
    %s258 = sphi 0, %s256
    %s259 = sphi 0, %s258
    %s273 = sphi 0, %s259
    %s277 = sphi 0, %s277
    %s279 = sphi 0, %s277
    %s280 = sphi 0, %s279
    %s294 = sphi 0, %s280
    %s298 = sphi 0, %s298
    %s300 = sphi 0, %s298
    %s301 = sphi 0, %s300
    %s315 = sphi 0, %s301
    %s319 = sphi 0, %s319
    %s321 = sphi 0, %s319
    %s322 = sphi 0, %s321
    %s336 = sphi 0, %s322
    %s340 = sphi 0, %s340
    %s342 = sphi 0, %s340
    %s343 = sphi 0, %s342
    %s357 = sphi 0, %s343
    %s361 = sphi 0, %s361
    %s363 = sphi 0, %s361
    %s364 = sphi 0, %s363
    %s378 = sphi 0, %s364
    %s382 = sphi 0, %s382
    %s384 = sphi 0, %s382
    %s385 = sphi 0, %s384
    %s399 = sphi 0, %s385
    %s403 = sphi 0, %s403
    %s405 = sphi 0, %s403
    %s406 = sphi 0, %s405
    %s420 = sphi 0, %s406
    %s424 = sphi 0, %s424
    %s426 = sphi 0, %s424
    %s427 = sphi 0, %s426
    %s441 = sphi 0, %s427
    %s445 = sphi 0, %s445
    %s447 = sphi 0, %s445
    %s448 = sphi 0, %s447
    %s462 = sphi 0, %s448
    %s466 = sphi 0, %s466
    %s468 = sphi 0, %s466
    %s469 = sphi 0, %s468
    %s483 = sphi 0, %s469
    %s487 = sphi 0, %s487
    %s489 = sphi 0, %s487
    %s490 = sphi 0, %s489
    %s504 = sphi 0, %s490
    %s508 = sphi 0, %s508
    %s510 = sphi 0, %s508
    %s511 = sphi 0, %s510
    %s525 = sphi 0, %s511
    %s529 = sphi 0, %s529
    %s531 = sphi 0, %s529
    %s532 = sphi 0, %s531
    %s546 = sphi 0, %s532
    %s550 = sphi 0, %s550
    %s552 = sphi 0, %s550
    %s553 = sphi 0, %s552
    %s567 = sphi 0, %s553
    %s571 = sphi 0, %s571
    %s573 = sphi 0, %s571
    %s574 = sphi 0, %s573
    %s588 = sphi 0, %s574
    %s592 = sphi 0, %s592
    %s594 = sphi 0, %s592
    %s595 = sphi 0, %s594
    %s609 = sphi 0, %s595
    %s613 = sphi 0, %s613
    %s615 = sphi 0, %s613
    %s616 = sphi 0, %s615
    %s630 = sphi 0, %s616
    %s634 = sphi 0, %s634
    %s636 = sphi 0, %s634
    %s637 = sphi 0, %s636
    %s651 = sphi 0, %s637
    %s655 = sphi 0, %s655
    %s657 = sphi 0, %s655
    %s658 = sphi 0, %s657
    %s672 = sphi 0, %s658
    %s676 = sphi 0, %s676
    %s678 = sphi 0, %s676
    %s679 = sphi 0, %s678
    %s693 = sphi 0, %s679
    %s697 = sphi 0, %s697
    %s699 = sphi 0, %s697
    %s700 = sphi 0, %s699
    %s714 = sphi 0, %s700
    %s718 = sphi 0, %s718
    %s720 = sphi 0, %s718
    %s721 = sphi 0, %s720
    %s735 = sphi 0, %s721
    %s739 = sphi 0, %s739
    %s741 = sphi 0, %s739
    %s742 = sphi 0, %s741
    %s756 = sphi 0, %s742
    %s760 = sphi 0, %s760
    %s762 = sphi 0, %s760
    %s763 = sphi 0, %s762
    %s777 = sphi 0, %s763
    %s781 = sphi 0, %s781
    %s783 = sphi 0, %s781
    %s784 = sphi 0, %s783
    %s798 = sphi 0, %s784
    %s802 = sphi 0, %s802
    %s804 = sphi 0, %s802
    %s805 = sphi 0, %s804
    %s819 = sphi 0, %s805
    %s823 = sphi 0, %s823
    %s825 = sphi 0, %s823
    %s826 = sphi 0, %s825
    %s840 = sphi 0, %s826
    %s844 = sphi 0, %s844
    %s846 = sphi 0, %s844
    %s847 = sphi 0, %s846
    %s861 = sphi 0, %s847
    %s865 = sphi 0, %s865
    %s867 = sphi 0, %s865
    %s868 = sphi 0, %s867
    %s882 = sphi 0, %s868
    %s886 = sphi 0, %s886
    %s888 = sphi 0, %s886
    %s889 = sphi 0, %s888
    %s903 = sphi 0, %s889
    %s909 = sphi 0, %s911
    %s912 = sphi 0, %s909
    %s913 = sphi 0, %s912
    %s929 = sphi 0, %s913
    %s935 = sphi 0, %s937
    %s938 = sphi 0, %s935
    %s939 = sphi 0, %s938
    %s955 = sphi 0, %s939
  $region4: #{backbone_forward.1} parent=0 // loop_header_branch
    %89 = sbr.rel (%p87) target = $region8
  $region5: #{backbone_forward.1} parent=0 // loop_body
    %s91 = ssub.s32 %s86, 1
    %s92 = ssub.s32 %s86, 2
    %s93 = sadd.s32 %s86, 1
    %s94 = ssub.s32 %s86, %s93
    %p95 = scmp.eq.s32.totalorder %s94, 0
    %s97 = sadd.s32 %s96, 1
    %s98 = scalar_select %p95, %s96, %s97
    %p101 = pneg %p95
    %p102 = scmp.eq.s32.totalorder %s86, 1
    %p103 = por %p101, %p102
    %p104 = scmp.ne.s32.totalorder %s96, %s99
    %p105 = scmp.eq.s32.totalorder %s86, 0
    %p106 = por %p104, %p105
    %p107 = scmp.ne.s32.totalorder %s96, %s99
    %p108 = scmp.eq.s32.totalorder %s91, 1
    %p109 = por %p107, %p108
    %p110 = scmp.ne.s32.totalorder %s99, %s100
    %p111 = scmp.eq.s32.totalorder %s91, 0
    %p112 = por %p110, %p111
    %p113 = scmp.ne.s32.totalorder %s99, %s100
    %p114 = scmp.eq.s32.totalorder %s92, 1
    %p115 = por %p113, %p114
    %p117 = scmp.ne.s32.totalorder %s100, %s116
    %p118 = scmp.eq.s32.totalorder %s92, 0
    %p119 = por %p117, %p118
    %s120 = ssub.s32 %s86, %s93
    %p121 = scmp.eq.s32.totalorder %s120, 0
    %s123 = sadd.s32 %s122, 1
    %s124 = scalar_select %p121, %s122, %s123
    %p127 = pneg %p121
    %p128 = scmp.eq.s32.totalorder %s86, 1
    %p129 = por %p127, %p128
    %p130 = scmp.ne.s32.totalorder %s122, %s125
    %p131 = scmp.eq.s32.totalorder %s86, 0
    %p132 = por %p130, %p131
    %p133 = scmp.ne.s32.totalorder %s122, %s125
    %p134 = scmp.eq.s32.totalorder %s91, 1
    %p135 = por %p133, %p134
    %p136 = scmp.ne.s32.totalorder %s125, %s126
    %p137 = scmp.eq.s32.totalorder %s91, 0
    %p138 = por %p136, %p137
    %p139 = scmp.ne.s32.totalorder %s125, %s126
    %p140 = scmp.eq.s32.totalorder %s92, 1
    %p141 = por %p139, %p140
    %p143 = scmp.ne.s32.totalorder %s126, %s142
    %p144 = scmp.eq.s32.totalorder %s92, 0
    %p145 = por %p143, %p144
    %s146 = ssub.s32 %s86, %s93
    %p147 = scmp.eq.s32.totalorder %s146, 0
    %s149 = sadd.s32 %s148, 1
    %s150 = scalar_select %p147, %s148, %s149
    %p153 = pneg %p147
    %p154 = scmp.eq.s32.totalorder %s86, 1
    %p155 = por %p153, %p154
    %p156 = scmp.ne.s32.totalorder %s148, %s151
    %p157 = scmp.eq.s32.totalorder %s86, 0
    %p158 = por %p156, %p157
    %p159 = scmp.ne.s32.totalorder %s148, %s151
    %p160 = scmp.eq.s32.totalorder %s91, 1
    %p161 = por %p159, %p160
    %p162 = scmp.ne.s32.totalorder %s151, %s152
    %p163 = scmp.eq.s32.totalorder %s91, 0
    %p164 = por %p162, %p163
    %p165 = scmp.ne.s32.totalorder %s151, %s152
    %p166 = scmp.eq.s32.totalorder %s92, 1
    %p167 = por %p165, %p166
    %p169 = scmp.ne.s32.totalorder %s152, %s168
    %p170 = scmp.eq.s32.totalorder %s92, 0
    %p171 = por %p169, %p170
    %s173 = sadd.s32 %s172, 1
    %p176 = scmp.eq.s32.totalorder %s86, 1
    %p177 = scmp.ne.s32.totalorder %s172, %s174
    %p178 = scmp.eq.s32.totalorder %s86, 0
    %p179 = por %p177, %p178
    %p180 = scmp.ne.s32.totalorder %s172, %s174
    %p181 = scmp.eq.s32.totalorder %s91, 1
    %p182 = por %p180, %p181
    %p183 = scmp.ne.s32.totalorder %s174, %s175
    %p184 = scmp.eq.s32.totalorder %s91, 0
    %p185 = por %p183, %p184
    %p186 = scmp.ne.s32.totalorder %s174, %s175
    %p187 = scmp.eq.s32.totalorder %s92, 1
    %p188 = por %p186, %p187
    %p190 = scmp.ne.s32.totalorder %s175, %s189
    %p191 = scmp.eq.s32.totalorder %s92, 0
    %p192 = por %p190, %p191
    %s194 = sadd.s32 %s193, 1
    %p197 = scmp.eq.s32.totalorder %s86, 1
    %p198 = scmp.ne.s32.totalorder %s193, %s195
    %p199 = scmp.eq.s32.totalorder %s86, 0
    %p200 = por %p198, %p199
    %p201 = scmp.ne.s32.totalorder %s193, %s195
    %p202 = scmp.eq.s32.totalorder %s91, 1
    %p203 = por %p201, %p202
    %p204 = scmp.ne.s32.totalorder %s195, %s196
    %p205 = scmp.eq.s32.totalorder %s91, 0
    %p206 = por %p204, %p205
    %p207 = scmp.ne.s32.totalorder %s195, %s196
    %p208 = scmp.eq.s32.totalorder %s92, 1
    %p209 = por %p207, %p208
    %p211 = scmp.ne.s32.totalorder %s196, %s210
    %p212 = scmp.eq.s32.totalorder %s92, 0
    %p213 = por %p211, %p212
    %s215 = sadd.s32 %s214, 1
    %p218 = scmp.eq.s32.totalorder %s86, 1
    %p219 = scmp.ne.s32.totalorder %s214, %s216
    %p220 = scmp.eq.s32.totalorder %s86, 0
    %p221 = por %p219, %p220
    %p222 = scmp.ne.s32.totalorder %s214, %s216
    %p223 = scmp.eq.s32.totalorder %s91, 1
    %p224 = por %p222, %p223
    %p225 = scmp.ne.s32.totalorder %s216, %s217
    %p226 = scmp.eq.s32.totalorder %s91, 0
    %p227 = por %p225, %p226
    %p228 = scmp.ne.s32.totalorder %s216, %s217
    %p229 = scmp.eq.s32.totalorder %s92, 1
    %p230 = por %p228, %p229
    %p232 = scmp.ne.s32.totalorder %s217, %s231
    %p233 = scmp.eq.s32.totalorder %s92, 0
    %p234 = por %p232, %p233
    %s236 = sadd.s32 %s235, 1
    %p239 = scmp.eq.s32.totalorder %s86, 1
    %p240 = scmp.ne.s32.totalorder %s235, %s237
    %p241 = scmp.eq.s32.totalorder %s86, 0
    %p242 = por %p240, %p241
    %p243 = scmp.ne.s32.totalorder %s235, %s237
    %p244 = scmp.eq.s32.totalorder %s91, 1
    %p245 = por %p243, %p244
    %p246 = scmp.ne.s32.totalorder %s237, %s238
    %p247 = scmp.eq.s32.totalorder %s91, 0
    %p248 = por %p246, %p247
    %p249 = scmp.ne.s32.totalorder %s237, %s238
    %p250 = scmp.eq.s32.totalorder %s92, 1
    %p251 = por %p249, %p250
    %p253 = scmp.ne.s32.totalorder %s238, %s252
    %p254 = scmp.eq.s32.totalorder %s92, 0
    %p255 = por %p253, %p254
    %s257 = sadd.s32 %s256, 1
    %p260 = scmp.eq.s32.totalorder %s86, 1
    %p261 = scmp.ne.s32.totalorder %s256, %s258
    %p262 = scmp.eq.s32.totalorder %s86, 0
    %p263 = por %p261, %p262
    %p264 = scmp.ne.s32.totalorder %s256, %s258
    %p265 = scmp.eq.s32.totalorder %s91, 1
    %p266 = por %p264, %p265
    %p267 = scmp.ne.s32.totalorder %s258, %s259
    %p268 = scmp.eq.s32.totalorder %s91, 0
    %p269 = por %p267, %p268
    %p270 = scmp.ne.s32.totalorder %s258, %s259
    %p271 = scmp.eq.s32.totalorder %s92, 1
    %p272 = por %p270, %p271
    %p274 = scmp.ne.s32.totalorder %s259, %s273
    %p275 = scmp.eq.s32.totalorder %s92, 0
    %p276 = por %p274, %p275
    %s278 = sadd.s32 %s277, 1
    %p281 = scmp.eq.s32.totalorder %s86, 1
    %p282 = scmp.ne.s32.totalorder %s277, %s279
    %p283 = scmp.eq.s32.totalorder %s86, 0
    %p284 = por %p282, %p283
    %p285 = scmp.ne.s32.totalorder %s277, %s279
    %p286 = scmp.eq.s32.totalorder %s91, 1
    %p287 = por %p285, %p286
    %p288 = scmp.ne.s32.totalorder %s279, %s280
    %p289 = scmp.eq.s32.totalorder %s91, 0
    %p290 = por %p288, %p289
    %p291 = scmp.ne.s32.totalorder %s279, %s280
    %p292 = scmp.eq.s32.totalorder %s92, 1
    %p293 = por %p291, %p292
    %p295 = scmp.ne.s32.totalorder %s280, %s294
    %p296 = scmp.eq.s32.totalorder %s92, 0
    %p297 = por %p295, %p296
    %s299 = sadd.s32 %s298, 1
    %p302 = scmp.eq.s32.totalorder %s86, 1
    %p303 = scmp.ne.s32.totalorder %s298, %s300
    %p304 = scmp.eq.s32.totalorder %s86, 0
    %p305 = por %p303, %p304
    %p306 = scmp.ne.s32.totalorder %s298, %s300
    %p307 = scmp.eq.s32.totalorder %s91, 1
    %p308 = por %p306, %p307
    %p309 = scmp.ne.s32.totalorder %s300, %s301
    %p310 = scmp.eq.s32.totalorder %s91, 0
    %p311 = por %p309, %p310
    %p312 = scmp.ne.s32.totalorder %s300, %s301
    %p313 = scmp.eq.s32.totalorder %s92, 1
    %p314 = por %p312, %p313
    %p316 = scmp.ne.s32.totalorder %s301, %s315
    %p317 = scmp.eq.s32.totalorder %s92, 0
    %p318 = por %p316, %p317
    %s320 = sadd.s32 %s319, 1
    %p323 = scmp.eq.s32.totalorder %s86, 1
    %p324 = scmp.ne.s32.totalorder %s319, %s321
    %p325 = scmp.eq.s32.totalorder %s86, 0
    %p326 = por %p324, %p325
    %p327 = scmp.ne.s32.totalorder %s319, %s321
    %p328 = scmp.eq.s32.totalorder %s91, 1
    %p329 = por %p327, %p328
    %p330 = scmp.ne.s32.totalorder %s321, %s322
    %p331 = scmp.eq.s32.totalorder %s91, 0
    %p332 = por %p330, %p331
    %p333 = scmp.ne.s32.totalorder %s321, %s322
    %p334 = scmp.eq.s32.totalorder %s92, 1
    %p335 = por %p333, %p334
    %p337 = scmp.ne.s32.totalorder %s322, %s336
    %p338 = scmp.eq.s32.totalorder %s92, 0
    %p339 = por %p337, %p338
    %s341 = sadd.s32 %s340, 1
    %p344 = scmp.eq.s32.totalorder %s86, 1
    %p345 = scmp.ne.s32.totalorder %s340, %s342
    %p346 = scmp.eq.s32.totalorder %s86, 0
    %p347 = por %p345, %p346
    %p348 = scmp.ne.s32.totalorder %s340, %s342
    %p349 = scmp.eq.s32.totalorder %s91, 1
    %p350 = por %p348, %p349
    %p351 = scmp.ne.s32.totalorder %s342, %s343
    %p352 = scmp.eq.s32.totalorder %s91, 0
    %p353 = por %p351, %p352
    %p354 = scmp.ne.s32.totalorder %s342, %s343
    %p355 = scmp.eq.s32.totalorder %s92, 1
    %p356 = por %p354, %p355
    %p358 = scmp.ne.s32.totalorder %s343, %s357
    %p359 = scmp.eq.s32.totalorder %s92, 0
    %p360 = por %p358, %p359
    %s362 = sadd.s32 %s361, 1
    %p365 = scmp.eq.s32.totalorder %s86, 1
    %p366 = scmp.ne.s32.totalorder %s361, %s363
    %p367 = scmp.eq.s32.totalorder %s86, 0
    %p368 = por %p366, %p367
    %p369 = scmp.ne.s32.totalorder %s361, %s363
    %p370 = scmp.eq.s32.totalorder %s91, 1
    %p371 = por %p369, %p370
    %p372 = scmp.ne.s32.totalorder %s363, %s364
    %p373 = scmp.eq.s32.totalorder %s91, 0
    %p374 = por %p372, %p373
    %p375 = scmp.ne.s32.totalorder %s363, %s364
    %p376 = scmp.eq.s32.totalorder %s92, 1
    %p377 = por %p375, %p376
    %p379 = scmp.ne.s32.totalorder %s364, %s378
    %p380 = scmp.eq.s32.totalorder %s92, 0
    %p381 = por %p379, %p380
    %s383 = sadd.s32 %s382, 1
    %p386 = scmp.eq.s32.totalorder %s86, 1
    %p387 = scmp.ne.s32.totalorder %s382, %s384
    %p388 = scmp.eq.s32.totalorder %s86, 0
    %p389 = por %p387, %p388
    %p390 = scmp.ne.s32.totalorder %s382, %s384
    %p391 = scmp.eq.s32.totalorder %s91, 1
    %p392 = por %p390, %p391
    %p393 = scmp.ne.s32.totalorder %s384, %s385
    %p394 = scmp.eq.s32.totalorder %s91, 0
    %p395 = por %p393, %p394
    %p396 = scmp.ne.s32.totalorder %s384, %s385
    %p397 = scmp.eq.s32.totalorder %s92, 1
    %p398 = por %p396, %p397
    %p400 = scmp.ne.s32.totalorder %s385, %s399
    %p401 = scmp.eq.s32.totalorder %s92, 0
    %p402 = por %p400, %p401
    %s404 = sadd.s32 %s403, 1
    %p407 = scmp.eq.s32.totalorder %s86, 1
    %p408 = scmp.ne.s32.totalorder %s403, %s405
    %p409 = scmp.eq.s32.totalorder %s86, 0
    %p410 = por %p408, %p409
    %p411 = scmp.ne.s32.totalorder %s403, %s405
    %p412 = scmp.eq.s32.totalorder %s91, 1
    %p413 = por %p411, %p412
    %p414 = scmp.ne.s32.totalorder %s405, %s406
    %p415 = scmp.eq.s32.totalorder %s91, 0
    %p416 = por %p414, %p415
    %p417 = scmp.ne.s32.totalorder %s405, %s406
    %p418 = scmp.eq.s32.totalorder %s92, 1
    %p419 = por %p417, %p418
    %p421 = scmp.ne.s32.totalorder %s406, %s420
    %p422 = scmp.eq.s32.totalorder %s92, 0
    %p423 = por %p421, %p422
    %s425 = sadd.s32 %s424, 1
    %p428 = scmp.eq.s32.totalorder %s86, 1
    %p429 = scmp.ne.s32.totalorder %s424, %s426
    %p430 = scmp.eq.s32.totalorder %s86, 0
    %p431 = por %p429, %p430
    %p432 = scmp.ne.s32.totalorder %s424, %s426
    %p433 = scmp.eq.s32.totalorder %s91, 1
    %p434 = por %p432, %p433
    %p435 = scmp.ne.s32.totalorder %s426, %s427
    %p436 = scmp.eq.s32.totalorder %s91, 0
    %p437 = por %p435, %p436
    %p438 = scmp.ne.s32.totalorder %s426, %s427
    %p439 = scmp.eq.s32.totalorder %s92, 1
    %p440 = por %p438, %p439
    %p442 = scmp.ne.s32.totalorder %s427, %s441
    %p443 = scmp.eq.s32.totalorder %s92, 0
    %p444 = por %p442, %p443
    %s446 = sadd.s32 %s445, 1
    %p449 = scmp.eq.s32.totalorder %s86, 1
    %p450 = scmp.ne.s32.totalorder %s445, %s447
    %p451 = scmp.eq.s32.totalorder %s86, 0
    %p452 = por %p450, %p451
    %p453 = scmp.ne.s32.totalorder %s445, %s447
    %p454 = scmp.eq.s32.totalorder %s91, 1
    %p455 = por %p453, %p454
    %p456 = scmp.ne.s32.totalorder %s447, %s448
    %p457 = scmp.eq.s32.totalorder %s91, 0
    %p458 = por %p456, %p457
    %p459 = scmp.ne.s32.totalorder %s447, %s448
    %p460 = scmp.eq.s32.totalorder %s92, 1
    %p461 = por %p459, %p460
    %p463 = scmp.ne.s32.totalorder %s448, %s462
    %p464 = scmp.eq.s32.totalorder %s92, 0
    %p465 = por %p463, %p464
    %s467 = sadd.s32 %s466, 1
    %p470 = scmp.eq.s32.totalorder %s86, 1
    %p471 = scmp.ne.s32.totalorder %s466, %s468
    %p472 = scmp.eq.s32.totalorder %s86, 0
    %p473 = por %p471, %p472
    %p474 = scmp.ne.s32.totalorder %s466, %s468
    %p475 = scmp.eq.s32.totalorder %s91, 1
    %p476 = por %p474, %p475
    %p477 = scmp.ne.s32.totalorder %s468, %s469
    %p478 = scmp.eq.s32.totalorder %s91, 0
    %p479 = por %p477, %p478
    %p480 = scmp.ne.s32.totalorder %s468, %s469
    %p481 = scmp.eq.s32.totalorder %s92, 1
    %p482 = por %p480, %p481
    %p484 = scmp.ne.s32.totalorder %s469, %s483
    %p485 = scmp.eq.s32.totalorder %s92, 0
    %p486 = por %p484, %p485
    %s488 = sadd.s32 %s487, 1
    %p491 = scmp.eq.s32.totalorder %s86, 1
    %p492 = scmp.ne.s32.totalorder %s487, %s489
    %p493 = scmp.eq.s32.totalorder %s86, 0
    %p494 = por %p492, %p493
    %p495 = scmp.ne.s32.totalorder %s487, %s489
    %p496 = scmp.eq.s32.totalorder %s91, 1
    %p497 = por %p495, %p496
    %p498 = scmp.ne.s32.totalorder %s489, %s490
    %p499 = scmp.eq.s32.totalorder %s91, 0
    %p500 = por %p498, %p499
    %p501 = scmp.ne.s32.totalorder %s489, %s490
    %p502 = scmp.eq.s32.totalorder %s92, 1
    %p503 = por %p501, %p502
    %p505 = scmp.ne.s32.totalorder %s490, %s504
    %p506 = scmp.eq.s32.totalorder %s92, 0
    %p507 = por %p505, %p506
    %s509 = sadd.s32 %s508, 1
    %p512 = scmp.eq.s32.totalorder %s86, 1
    %p513 = scmp.ne.s32.totalorder %s508, %s510
    %p514 = scmp.eq.s32.totalorder %s86, 0
    %p515 = por %p513, %p514
    %p516 = scmp.ne.s32.totalorder %s508, %s510
    %p517 = scmp.eq.s32.totalorder %s91, 1
    %p518 = por %p516, %p517
    %p519 = scmp.ne.s32.totalorder %s510, %s511
    %p520 = scmp.eq.s32.totalorder %s91, 0
    %p521 = por %p519, %p520
    %p522 = scmp.ne.s32.totalorder %s510, %s511
    %p523 = scmp.eq.s32.totalorder %s92, 1
    %p524 = por %p522, %p523
    %p526 = scmp.ne.s32.totalorder %s511, %s525
    %p527 = scmp.eq.s32.totalorder %s92, 0
    %p528 = por %p526, %p527
    %s530 = sadd.s32 %s529, 1
    %p533 = scmp.eq.s32.totalorder %s86, 1
    %p534 = scmp.ne.s32.totalorder %s529, %s531
    %p535 = scmp.eq.s32.totalorder %s86, 0
    %p536 = por %p534, %p535
    %p537 = scmp.ne.s32.totalorder %s529, %s531
    %p538 = scmp.eq.s32.totalorder %s91, 1
    %p539 = por %p537, %p538
    %p540 = scmp.ne.s32.totalorder %s531, %s532
    %p541 = scmp.eq.s32.totalorder %s91, 0
    %p542 = por %p540, %p541
    %p543 = scmp.ne.s32.totalorder %s531, %s532
    %p544 = scmp.eq.s32.totalorder %s92, 1
    %p545 = por %p543, %p544
    %p547 = scmp.ne.s32.totalorder %s532, %s546
    %p548 = scmp.eq.s32.totalorder %s92, 0
    %p549 = por %p547, %p548
    %s551 = sadd.s32 %s550, 1
    %p554 = scmp.eq.s32.totalorder %s86, 1
    %p555 = scmp.ne.s32.totalorder %s550, %s552
    %p556 = scmp.eq.s32.totalorder %s86, 0
    %p557 = por %p555, %p556
    %p558 = scmp.ne.s32.totalorder %s550, %s552
    %p559 = scmp.eq.s32.totalorder %s91, 1
    %p560 = por %p558, %p559
    %p561 = scmp.ne.s32.totalorder %s552, %s553
    %p562 = scmp.eq.s32.totalorder %s91, 0
    %p563 = por %p561, %p562
    %p564 = scmp.ne.s32.totalorder %s552, %s553
    %p565 = scmp.eq.s32.totalorder %s92, 1
    %p566 = por %p564, %p565
    %p568 = scmp.ne.s32.totalorder %s553, %s567
    %p569 = scmp.eq.s32.totalorder %s92, 0
    %p570 = por %p568, %p569
    %s572 = sadd.s32 %s571, 1
    %p575 = scmp.eq.s32.totalorder %s86, 1
    %p576 = scmp.ne.s32.totalorder %s571, %s573
    %p577 = scmp.eq.s32.totalorder %s86, 0
    %p578 = por %p576, %p577
    %p579 = scmp.ne.s32.totalorder %s571, %s573
    %p580 = scmp.eq.s32.totalorder %s91, 1
    %p581 = por %p579, %p580
    %p582 = scmp.ne.s32.totalorder %s573, %s574
    %p583 = scmp.eq.s32.totalorder %s91, 0
    %p584 = por %p582, %p583
    %p585 = scmp.ne.s32.totalorder %s573, %s574
    %p586 = scmp.eq.s32.totalorder %s92, 1
    %p587 = por %p585, %p586
    %p589 = scmp.ne.s32.totalorder %s574, %s588
    %p590 = scmp.eq.s32.totalorder %s92, 0
    %p591 = por %p589, %p590
    %s593 = sadd.s32 %s592, 1
    %p596 = scmp.eq.s32.totalorder %s86, 1
    %p597 = scmp.ne.s32.totalorder %s592, %s594
    %p598 = scmp.eq.s32.totalorder %s86, 0
    %p599 = por %p597, %p598
    %p600 = scmp.ne.s32.totalorder %s592, %s594
    %p601 = scmp.eq.s32.totalorder %s91, 1
    %p602 = por %p600, %p601
    %p603 = scmp.ne.s32.totalorder %s594, %s595
    %p604 = scmp.eq.s32.totalorder %s91, 0
    %p605 = por %p603, %p604
    %p606 = scmp.ne.s32.totalorder %s594, %s595
    %p607 = scmp.eq.s32.totalorder %s92, 1
    %p608 = por %p606, %p607
    %p610 = scmp.ne.s32.totalorder %s595, %s609
    %p611 = scmp.eq.s32.totalorder %s92, 0
    %p612 = por %p610, %p611
    %s614 = sadd.s32 %s613, 1
    %p617 = scmp.eq.s32.totalorder %s86, 1
    %p618 = scmp.ne.s32.totalorder %s613, %s615
    %p619 = scmp.eq.s32.totalorder %s86, 0
    %p620 = por %p618, %p619
    %p621 = scmp.ne.s32.totalorder %s613, %s615
    %p622 = scmp.eq.s32.totalorder %s91, 1
    %p623 = por %p621, %p622
    %p624 = scmp.ne.s32.totalorder %s615, %s616
    %p625 = scmp.eq.s32.totalorder %s91, 0
    %p626 = por %p624, %p625
    %p627 = scmp.ne.s32.totalorder %s615, %s616
    %p628 = scmp.eq.s32.totalorder %s92, 1
    %p629 = por %p627, %p628
    %p631 = scmp.ne.s32.totalorder %s616, %s630
    %p632 = scmp.eq.s32.totalorder %s92, 0
    %p633 = por %p631, %p632
    %s635 = sadd.s32 %s634, 1
    %p638 = scmp.eq.s32.totalorder %s86, 1
    %p639 = scmp.ne.s32.totalorder %s634, %s636
    %p640 = scmp.eq.s32.totalorder %s86, 0
    %p641 = por %p639, %p640
    %p642 = scmp.ne.s32.totalorder %s634, %s636
    %p643 = scmp.eq.s32.totalorder %s91, 1
    %p644 = por %p642, %p643
    %p645 = scmp.ne.s32.totalorder %s636, %s637
    %p646 = scmp.eq.s32.totalorder %s91, 0
    %p647 = por %p645, %p646
    %p648 = scmp.ne.s32.totalorder %s636, %s637
    %p649 = scmp.eq.s32.totalorder %s92, 1
    %p650 = por %p648, %p649
    %p652 = scmp.ne.s32.totalorder %s637, %s651
    %p653 = scmp.eq.s32.totalorder %s92, 0
    %p654 = por %p652, %p653
    %s656 = sadd.s32 %s655, 1
    %p659 = scmp.eq.s32.totalorder %s86, 1
    %p660 = scmp.ne.s32.totalorder %s655, %s657
    %p661 = scmp.eq.s32.totalorder %s86, 0
    %p662 = por %p660, %p661
    %p663 = scmp.ne.s32.totalorder %s655, %s657
    %p664 = scmp.eq.s32.totalorder %s91, 1
    %p665 = por %p663, %p664
    %p666 = scmp.ne.s32.totalorder %s657, %s658
    %p667 = scmp.eq.s32.totalorder %s91, 0
    %p668 = por %p666, %p667
    %p669 = scmp.ne.s32.totalorder %s657, %s658
    %p670 = scmp.eq.s32.totalorder %s92, 1
    %p671 = por %p669, %p670
    %p673 = scmp.ne.s32.totalorder %s658, %s672
    %p674 = scmp.eq.s32.totalorder %s92, 0
    %p675 = por %p673, %p674
    %s677 = sadd.s32 %s676, 1
    %p680 = scmp.eq.s32.totalorder %s86, 1
    %p681 = scmp.ne.s32.totalorder %s676, %s678
    %p682 = scmp.eq.s32.totalorder %s86, 0
    %p683 = por %p681, %p682
    %p684 = scmp.ne.s32.totalorder %s676, %s678
    %p685 = scmp.eq.s32.totalorder %s91, 1
    %p686 = por %p684, %p685
    %p687 = scmp.ne.s32.totalorder %s678, %s679
    %p688 = scmp.eq.s32.totalorder %s91, 0
    %p689 = por %p687, %p688
    %p690 = scmp.ne.s32.totalorder %s678, %s679
    %p691 = scmp.eq.s32.totalorder %s92, 1
    %p692 = por %p690, %p691
    %p694 = scmp.ne.s32.totalorder %s679, %s693
    %p695 = scmp.eq.s32.totalorder %s92, 0
    %p696 = por %p694, %p695
    %s698 = sadd.s32 %s697, 1
    %p701 = scmp.eq.s32.totalorder %s86, 1
    %p702 = scmp.ne.s32.totalorder %s697, %s699
    %p703 = scmp.eq.s32.totalorder %s86, 0
    %p704 = por %p702, %p703
    %p705 = scmp.ne.s32.totalorder %s697, %s699
    %p706 = scmp.eq.s32.totalorder %s91, 1
    %p707 = por %p705, %p706
    %p708 = scmp.ne.s32.totalorder %s699, %s700
    %p709 = scmp.eq.s32.totalorder %s91, 0
    %p710 = por %p708, %p709
    %p711 = scmp.ne.s32.totalorder %s699, %s700
    %p712 = scmp.eq.s32.totalorder %s92, 1
    %p713 = por %p711, %p712
    %p715 = scmp.ne.s32.totalorder %s700, %s714
    %p716 = scmp.eq.s32.totalorder %s92, 0
    %p717 = por %p715, %p716
    %s719 = sadd.s32 %s718, 1
    %p722 = scmp.eq.s32.totalorder %s86, 1
    %p723 = scmp.ne.s32.totalorder %s718, %s720
    %p724 = scmp.eq.s32.totalorder %s86, 0
    %p725 = por %p723, %p724
    %p726 = scmp.ne.s32.totalorder %s718, %s720
    %p727 = scmp.eq.s32.totalorder %s91, 1
    %p728 = por %p726, %p727
    %p729 = scmp.ne.s32.totalorder %s720, %s721
    %p730 = scmp.eq.s32.totalorder %s91, 0
    %p731 = por %p729, %p730
    %p732 = scmp.ne.s32.totalorder %s720, %s721
    %p733 = scmp.eq.s32.totalorder %s92, 1
    %p734 = por %p732, %p733
    %p736 = scmp.ne.s32.totalorder %s721, %s735
    %p737 = scmp.eq.s32.totalorder %s92, 0
    %p738 = por %p736, %p737
    %s740 = sadd.s32 %s739, 1
    %p743 = scmp.eq.s32.totalorder %s86, 1
    %p744 = scmp.ne.s32.totalorder %s739, %s741
    %p745 = scmp.eq.s32.totalorder %s86, 0
    %p746 = por %p744, %p745
    %p747 = scmp.ne.s32.totalorder %s739, %s741
    %p748 = scmp.eq.s32.totalorder %s91, 1
    %p749 = por %p747, %p748
    %p750 = scmp.ne.s32.totalorder %s741, %s742
    %p751 = scmp.eq.s32.totalorder %s91, 0
    %p752 = por %p750, %p751
    %p753 = scmp.ne.s32.totalorder %s741, %s742
    %p754 = scmp.eq.s32.totalorder %s92, 1
    %p755 = por %p753, %p754
    %p757 = scmp.ne.s32.totalorder %s742, %s756
    %p758 = scmp.eq.s32.totalorder %s92, 0
    %p759 = por %p757, %p758
    %s761 = sadd.s32 %s760, 1
    %p764 = scmp.eq.s32.totalorder %s86, 1
    %p765 = scmp.ne.s32.totalorder %s760, %s762
    %p766 = scmp.eq.s32.totalorder %s86, 0
    %p767 = por %p765, %p766
    %p768 = scmp.ne.s32.totalorder %s760, %s762
    %p769 = scmp.eq.s32.totalorder %s91, 1
    %p770 = por %p768, %p769
    %p771 = scmp.ne.s32.totalorder %s762, %s763
    %p772 = scmp.eq.s32.totalorder %s91, 0
    %p773 = por %p771, %p772
    %p774 = scmp.ne.s32.totalorder %s762, %s763
    %p775 = scmp.eq.s32.totalorder %s92, 1
    %p776 = por %p774, %p775
    %p778 = scmp.ne.s32.totalorder %s763, %s777
    %p779 = scmp.eq.s32.totalorder %s92, 0
    %p780 = por %p778, %p779
    %s782 = sadd.s32 %s781, 1
    %p785 = scmp.eq.s32.totalorder %s86, 1
    %p786 = scmp.ne.s32.totalorder %s781, %s783
    %p787 = scmp.eq.s32.totalorder %s86, 0
    %p788 = por %p786, %p787
    %p789 = scmp.ne.s32.totalorder %s781, %s783
    %p790 = scmp.eq.s32.totalorder %s91, 1
    %p791 = por %p789, %p790
    %p792 = scmp.ne.s32.totalorder %s783, %s784
    %p793 = scmp.eq.s32.totalorder %s91, 0
    %p794 = por %p792, %p793
    %p795 = scmp.ne.s32.totalorder %s783, %s784
    %p796 = scmp.eq.s32.totalorder %s92, 1
    %p797 = por %p795, %p796
    %p799 = scmp.ne.s32.totalorder %s784, %s798
    %p800 = scmp.eq.s32.totalorder %s92, 0
    %p801 = por %p799, %p800
    %s803 = sadd.s32 %s802, 1
    %p806 = scmp.eq.s32.totalorder %s86, 1
    %p807 = scmp.ne.s32.totalorder %s802, %s804
    %p808 = scmp.eq.s32.totalorder %s86, 0
    %p809 = por %p807, %p808
    %p810 = scmp.ne.s32.totalorder %s802, %s804
    %p811 = scmp.eq.s32.totalorder %s91, 1
    %p812 = por %p810, %p811
    %p813 = scmp.ne.s32.totalorder %s804, %s805
    %p814 = scmp.eq.s32.totalorder %s91, 0
    %p815 = por %p813, %p814
    %p816 = scmp.ne.s32.totalorder %s804, %s805
    %p817 = scmp.eq.s32.totalorder %s92, 1
    %p818 = por %p816, %p817
    %p820 = scmp.ne.s32.totalorder %s805, %s819
    %p821 = scmp.eq.s32.totalorder %s92, 0
    %p822 = por %p820, %p821
    %s824 = sadd.s32 %s823, 1
    %p827 = scmp.eq.s32.totalorder %s86, 1
    %p828 = scmp.ne.s32.totalorder %s823, %s825
    %p829 = scmp.eq.s32.totalorder %s86, 0
    %p830 = por %p828, %p829
    %p831 = scmp.ne.s32.totalorder %s823, %s825
    %p832 = scmp.eq.s32.totalorder %s91, 1
    %p833 = por %p831, %p832
    %p834 = scmp.ne.s32.totalorder %s825, %s826
    %p835 = scmp.eq.s32.totalorder %s91, 0
    %p836 = por %p834, %p835
    %p837 = scmp.ne.s32.totalorder %s825, %s826
    %p838 = scmp.eq.s32.totalorder %s92, 1
    %p839 = por %p837, %p838
    %p841 = scmp.ne.s32.totalorder %s826, %s840
    %p842 = scmp.eq.s32.totalorder %s92, 0
    %p843 = por %p841, %p842
    %s845 = sadd.s32 %s844, 1
    %p848 = scmp.eq.s32.totalorder %s86, 1
    %p849 = scmp.ne.s32.totalorder %s844, %s846
    %p850 = scmp.eq.s32.totalorder %s86, 0
    %p851 = por %p849, %p850
    %p852 = scmp.ne.s32.totalorder %s844, %s846
    %p853 = scmp.eq.s32.totalorder %s91, 1
    %p854 = por %p852, %p853
    %p855 = scmp.ne.s32.totalorder %s846, %s847
    %p856 = scmp.eq.s32.totalorder %s91, 0
    %p857 = por %p855, %p856
    %p858 = scmp.ne.s32.totalorder %s846, %s847
    %p859 = scmp.eq.s32.totalorder %s92, 1
    %p860 = por %p858, %p859
    %p862 = scmp.ne.s32.totalorder %s847, %s861
    %p863 = scmp.eq.s32.totalorder %s92, 0
    %p864 = por %p862, %p863
    %s866 = sadd.s32 %s865, 1
    %p869 = scmp.eq.s32.totalorder %s86, 1
    %p870 = scmp.ne.s32.totalorder %s865, %s867
    %p871 = scmp.eq.s32.totalorder %s86, 0
    %p872 = por %p870, %p871
    %p873 = scmp.ne.s32.totalorder %s865, %s867
    %p874 = scmp.eq.s32.totalorder %s91, 1
    %p875 = por %p873, %p874
    %p876 = scmp.ne.s32.totalorder %s867, %s868
    %p877 = scmp.eq.s32.totalorder %s91, 0
    %p878 = por %p876, %p877
    %p879 = scmp.ne.s32.totalorder %s867, %s868
    %p880 = scmp.eq.s32.totalorder %s92, 1
    %p881 = por %p879, %p880
    %p883 = scmp.ne.s32.totalorder %s868, %s882
    %p884 = scmp.eq.s32.totalorder %s92, 0
    %p885 = por %p883, %p884
    %s887 = sadd.s32 %s886, 1
    %p890 = scmp.eq.s32.totalorder %s86, 1
    %p891 = scmp.ne.s32.totalorder %s886, %s888
    %p892 = scmp.eq.s32.totalorder %s86, 0
    %p893 = por %p891, %p892
    %p894 = scmp.ne.s32.totalorder %s886, %s888
    %p895 = scmp.eq.s32.totalorder %s91, 1
    %p896 = por %p894, %p895
    %p897 = scmp.ne.s32.totalorder %s888, %s889
    %p898 = scmp.eq.s32.totalorder %s91, 0
    %p899 = por %p897, %p898
    %p900 = scmp.ne.s32.totalorder %s888, %s889
    %p901 = scmp.eq.s32.totalorder %s92, 1
    %p902 = por %p900, %p901
    %p904 = scmp.ne.s32.totalorder %s889, %s903
    %p905 = scmp.eq.s32.totalorder %s92, 0
    %p906 = por %p904, %p905
    %s907 = ssub.s32 %s86, %s93
    %p908 = scmp.eq.s32.totalorder %s907, 0
    %s910 = sadd.s32 %s909, 1
    %s911 = scalar_select %p908, %s909, %s910
    %p914 = pneg %p908
    %p915 = scmp.eq.s32.totalorder %s86, 1
    %p916 = por %p914, %p915
    %p917 = scmp.ne.s32.totalorder %s909, %s912
    %p918 = scmp.eq.s32.totalorder %s86, 0
    %p919 = por %p917, %p918
    %p920 = scmp.ne.s32.totalorder %s909, %s912
    %p921 = scmp.eq.s32.totalorder %s91, 1
    %p922 = por %p920, %p921
    %p923 = scmp.ne.s32.totalorder %s912, %s913
    %p924 = scmp.eq.s32.totalorder %s91, 0
    %p925 = por %p923, %p924
    %p926 = scmp.ne.s32.totalorder %s912, %s913
    %p927 = scmp.eq.s32.totalorder %s92, 1
    %p928 = por %p926, %p927
    %p930 = scmp.ne.s32.totalorder %s913, %s929
    %p931 = scmp.eq.s32.totalorder %s92, 0
    %p932 = por %p930, %p931
    %s933 = ssub.s32 %s86, %s93
    %p934 = scmp.eq.s32.totalorder %s933, 0
    %s936 = sadd.s32 %s935, 1
    %s937 = scalar_select %p934, %s935, %s936
    %p940 = pneg %p934
    %p941 = scmp.eq.s32.totalorder %s86, 1
    %p942 = por %p940, %p941
    %p943 = scmp.ne.s32.totalorder %s935, %s938
    %p944 = scmp.eq.s32.totalorder %s86, 0
    %p945 = por %p943, %p944
    %p946 = scmp.ne.s32.totalorder %s935, %s938
    %p947 = scmp.eq.s32.totalorder %s91, 1
    %p948 = por %p946, %p947
    %p949 = scmp.ne.s32.totalorder %s938, %s939
    %p950 = scmp.eq.s32.totalorder %s91, 0
    %p951 = por %p949, %p950
    %p952 = scmp.ne.s32.totalorder %s938, %s939
    %p953 = scmp.eq.s32.totalorder %s92, 1
    %p954 = por %p952, %p953
    %p956 = scmp.ne.s32.totalorder %s939, %s955
    %p957 = scmp.eq.s32.totalorder %s92, 0
    %p958 = por %p956, %p957
    %p959 = scmp.le.s32.totalorder 1, %s86
    %p960 = scmp.lt.s32.totalorder %s86, 3
    %p961 = pnand %p959, %p960
    %p962 = pneg %p961
    // Predicated region
    $region9: #{backbone_forward.1} parent=5 // pred_check
      _
    $region10: #{backbone_forward.1} parent=5 // pred_check_branch
      %964 = sbr.rel (%p961) target = $region12
    $region11: #{backbone_forward.1} parent=5 // pred_region
      %s965 = ssub.s32 %s86, 1
      // Predicated region
      $region13: #{backbone_forward.1} parent=11 // pred_check
        %p966 = pneg %p185
      $region14: #{backbone_forward.1} parent=11 // pred_check_branch
        %968 = sbr.rel (%p966) target = $region16
      $region15: #{backbone_forward.1} parent=11 // pred_region
        _
      $region16: #{backbone_forward.1} parent=11 // pred_fallthru
        _
      // Predicated region
      $region17: #{backbone_forward.1} parent=11 // pred_check
        %p969 = pneg %p206
      $region18: #{backbone_forward.1} parent=11 // pred_check_branch
        %971 = sbr.rel (%p969) target = $region20
      $region19: #{backbone_forward.1} parent=11 // pred_region
        _
      $region20: #{backbone_forward.1} parent=11 // pred_fallthru
        _
      // Predicated region
      $region21: #{backbone_forward.1} parent=11 // pred_check
        %p972 = pneg %p227
      $region22: #{backbone_forward.1} parent=11 // pred_check_branch
        %974 = sbr.rel (%p972) target = $region24
      $region23: #{backbone_forward.1} parent=11 // pred_region
        _
      $region24: #{backbone_forward.1} parent=11 // pred_fallthru
        _
      // Predicated region
      $region25: #{backbone_forward.1} parent=11 // pred_check
        %p975 = pneg %p248
      $region26: #{backbone_forward.1} parent=11 // pred_check_branch
        %977 = sbr.rel (%p975) target = $region28
      $region27: #{backbone_forward.1} parent=11 // pred_region
        _
      $region28: #{backbone_forward.1} parent=11 // pred_fallthru
        _
      // Predicated region
      $region29: #{backbone_forward.1} parent=11 // pred_check
        %p978 = pneg %p269
      $region30: #{backbone_forward.1} parent=11 // pred_check_branch
        %980 = sbr.rel (%p978) target = $region32
      $region31: #{backbone_forward.1} parent=11 // pred_region
        _
      $region32: #{backbone_forward.1} parent=11 // pred_fallthru
        _
      // Predicated region
      $region33: #{backbone_forward.1} parent=11 // pred_check
        %p981 = pneg %p290
      $region34: #{backbone_forward.1} parent=11 // pred_check_branch
        %983 = sbr.rel (%p981) target = $region36
      $region35: #{backbone_forward.1} parent=11 // pred_region
        _
      $region36: #{backbone_forward.1} parent=11 // pred_fallthru
        _
      // Predicated region
      $region37: #{backbone_forward.1} parent=11 // pred_check
        %p984 = pneg %p311
      $region38: #{backbone_forward.1} parent=11 // pred_check_branch
        %986 = sbr.rel (%p984) target = $region40
      $region39: #{backbone_forward.1} parent=11 // pred_region
        _
      $region40: #{backbone_forward.1} parent=11 // pred_fallthru
        _
      // Predicated region
      $region41: #{backbone_forward.1} parent=11 // pred_check
        %p987 = pneg %p332
      $region42: #{backbone_forward.1} parent=11 // pred_check_branch
        %989 = sbr.rel (%p987) target = $region44
      $region43: #{backbone_forward.1} parent=11 // pred_region
        _
      $region44: #{backbone_forward.1} parent=11 // pred_fallthru
        _
      // Predicated region
      $region45: #{backbone_forward.1} parent=11 // pred_check
        %p990 = pneg %p353
      $region46: #{backbone_forward.1} parent=11 // pred_check_branch
        %992 = sbr.rel (%p990) target = $region48
      $region47: #{backbone_forward.1} parent=11 // pred_region
        _
      $region48: #{backbone_forward.1} parent=11 // pred_fallthru
        _
      // Predicated region
      $region49: #{backbone_forward.1} parent=11 // pred_check
        %p993 = pneg %p374
      $region50: #{backbone_forward.1} parent=11 // pred_check_branch
        %995 = sbr.rel (%p993) target = $region52
      $region51: #{backbone_forward.1} parent=11 // pred_region
        _
      $region52: #{backbone_forward.1} parent=11 // pred_fallthru
        _
      // Predicated region
      $region53: #{backbone_forward.1} parent=11 // pred_check
        %p996 = pneg %p395
      $region54: #{backbone_forward.1} parent=11 // pred_check_branch
        %998 = sbr.rel (%p996) target = $region56
      $region55: #{backbone_forward.1} parent=11 // pred_region
        _
      $region56: #{backbone_forward.1} parent=11 // pred_fallthru
        _
      // Predicated region
      $region57: #{backbone_forward.1} parent=11 // pred_check
        %p999 = pneg %p416
      $region58: #{backbone_forward.1} parent=11 // pred_check_branch
        %1001 = sbr.rel (%p999) target = $region60
      $region59: #{backbone_forward.1} parent=11 // pred_region
        _
      $region60: #{backbone_forward.1} parent=11 // pred_fallthru
        _
      // Predicated region
      $region61: #{backbone_forward.1} parent=11 // pred_check
        %p1002 = pneg %p437
      $region62: #{backbone_forward.1} parent=11 // pred_check_branch
        %1004 = sbr.rel (%p1002) target = $region64
      $region63: #{backbone_forward.1} parent=11 // pred_region
        _
      $region64: #{backbone_forward.1} parent=11 // pred_fallthru
        _
      // Predicated region
      $region65: #{backbone_forward.1} parent=11 // pred_check
        %p1005 = pneg %p458
      $region66: #{backbone_forward.1} parent=11 // pred_check_branch
        %1007 = sbr.rel (%p1005) target = $region68
      $region67: #{backbone_forward.1} parent=11 // pred_region
        _
      $region68: #{backbone_forward.1} parent=11 // pred_fallthru
        _
      // Predicated region
      $region69: #{backbone_forward.1} parent=11 // pred_check
        %p1008 = pneg %p479
      $region70: #{backbone_forward.1} parent=11 // pred_check_branch
        %1010 = sbr.rel (%p1008) target = $region72
      $region71: #{backbone_forward.1} parent=11 // pred_region
        _
      $region72: #{backbone_forward.1} parent=11 // pred_fallthru
        _
      // Predicated region
      $region73: #{backbone_forward.1} parent=11 // pred_check
        %p1011 = pneg %p500
      $region74: #{backbone_forward.1} parent=11 // pred_check_branch
        %1013 = sbr.rel (%p1011) target = $region76
      $region75: #{backbone_forward.1} parent=11 // pred_region
        _
      $region76: #{backbone_forward.1} parent=11 // pred_fallthru
        _
      // Predicated region
      $region77: #{backbone_forward.1} parent=11 // pred_check
        %p1014 = pneg %p521
      $region78: #{backbone_forward.1} parent=11 // pred_check_branch
        %1016 = sbr.rel (%p1014) target = $region80
      $region79: #{backbone_forward.1} parent=11 // pred_region
        _
      $region80: #{backbone_forward.1} parent=11 // pred_fallthru
        _
      // Predicated region
      $region81: #{backbone_forward.1} parent=11 // pred_check
        %p1017 = pneg %p542
      $region82: #{backbone_forward.1} parent=11 // pred_check_branch
        %1019 = sbr.rel (%p1017) target = $region84
      $region83: #{backbone_forward.1} parent=11 // pred_region
        _
      $region84: #{backbone_forward.1} parent=11 // pred_fallthru
        _
      // Predicated region
      $region85: #{backbone_forward.1} parent=11 // pred_check
        %p1020 = pneg %p563
      $region86: #{backbone_forward.1} parent=11 // pred_check_branch
        %1022 = sbr.rel (%p1020) target = $region88
      $region87: #{backbone_forward.1} parent=11 // pred_region
        _
      $region88: #{backbone_forward.1} parent=11 // pred_fallthru
        _
      // Predicated region
      $region89: #{backbone_forward.1} parent=11 // pred_check
        %p1023 = pneg %p584
      $region90: #{backbone_forward.1} parent=11 // pred_check_branch
        %1025 = sbr.rel (%p1023) target = $region92
      $region91: #{backbone_forward.1} parent=11 // pred_region
        _
      $region92: #{backbone_forward.1} parent=11 // pred_fallthru
        _
      // Predicated region
      $region93: #{backbone_forward.1} parent=11 // pred_check
        %p1026 = pneg %p605
      $region94: #{backbone_forward.1} parent=11 // pred_check_branch
        %1028 = sbr.rel (%p1026) target = $region96
      $region95: #{backbone_forward.1} parent=11 // pred_region
        _
      $region96: #{backbone_forward.1} parent=11 // pred_fallthru
        _
      // Predicated region
      $region97: #{backbone_forward.1} parent=11 // pred_check
        %p1029 = pneg %p626
      $region98: #{backbone_forward.1} parent=11 // pred_check_branch
        %1031 = sbr.rel (%p1029) target = $region100
      $region99: #{backbone_forward.1} parent=11 // pred_region
        _
      $region100: #{backbone_forward.1} parent=11 // pred_fallthru
        _
      // Predicated region
      $region101: #{backbone_forward.1} parent=11 // pred_check
        %p1032 = pneg %p647
      $region102: #{backbone_forward.1} parent=11 // pred_check_branch
        %1034 = sbr.rel (%p1032) target = $region104
      $region103: #{backbone_forward.1} parent=11 // pred_region
        _
      $region104: #{backbone_forward.1} parent=11 // pred_fallthru
        _
      // Predicated region
      $region105: #{backbone_forward.1} parent=11 // pred_check
        %p1035 = pneg %p668
      $region106: #{backbone_forward.1} parent=11 // pred_check_branch
        %1037 = sbr.rel (%p1035) target = $region108
      $region107: #{backbone_forward.1} parent=11 // pred_region
        _
      $region108: #{backbone_forward.1} parent=11 // pred_fallthru
        _
      // Predicated region
      $region109: #{backbone_forward.1} parent=11 // pred_check
        %p1038 = pneg %p689
      $region110: #{backbone_forward.1} parent=11 // pred_check_branch
        %1040 = sbr.rel (%p1038) target = $region112
      $region111: #{backbone_forward.1} parent=11 // pred_region
        _
      $region112: #{backbone_forward.1} parent=11 // pred_fallthru
        _
      // Predicated region
      $region113: #{backbone_forward.1} parent=11 // pred_check
        %p1041 = pneg %p710
      $region114: #{backbone_forward.1} parent=11 // pred_check_branch
        %1043 = sbr.rel (%p1041) target = $region116
      $region115: #{backbone_forward.1} parent=11 // pred_region
        _
      $region116: #{backbone_forward.1} parent=11 // pred_fallthru
        _
      // Predicated region
      $region117: #{backbone_forward.1} parent=11 // pred_check
        %p1044 = pneg %p731
      $region118: #{backbone_forward.1} parent=11 // pred_check_branch
        %1046 = sbr.rel (%p1044) target = $region120
      $region119: #{backbone_forward.1} parent=11 // pred_region
        _
      $region120: #{backbone_forward.1} parent=11 // pred_fallthru
        _
      // Predicated region
      $region121: #{backbone_forward.1} parent=11 // pred_check
        %p1047 = pneg %p752
      $region122: #{backbone_forward.1} parent=11 // pred_check_branch
        %1049 = sbr.rel (%p1047) target = $region124
      $region123: #{backbone_forward.1} parent=11 // pred_region
        _
      $region124: #{backbone_forward.1} parent=11 // pred_fallthru
        _
      // Predicated region
      $region125: #{backbone_forward.1} parent=11 // pred_check
        %p1050 = pneg %p773
      $region126: #{backbone_forward.1} parent=11 // pred_check_branch
        %1052 = sbr.rel (%p1050) target = $region128
      $region127: #{backbone_forward.1} parent=11 // pred_region
        _
      $region128: #{backbone_forward.1} parent=11 // pred_fallthru
        _
      // Predicated region
      $region129: #{backbone_forward.1} parent=11 // pred_check
        %p1053 = pneg %p794
      $region130: #{backbone_forward.1} parent=11 // pred_check_branch
        %1055 = sbr.rel (%p1053) target = $region132
      $region131: #{backbone_forward.1} parent=11 // pred_region
        _
      $region132: #{backbone_forward.1} parent=11 // pred_fallthru
        _
      // Predicated region
      $region133: #{backbone_forward.1} parent=11 // pred_check
        %p1056 = pneg %p815
      $region134: #{backbone_forward.1} parent=11 // pred_check_branch
        %1058 = sbr.rel (%p1056) target = $region136
      $region135: #{backbone_forward.1} parent=11 // pred_region
        _
      $region136: #{backbone_forward.1} parent=11 // pred_fallthru
        _
      // Predicated region
      $region137: #{backbone_forward.1} parent=11 // pred_check
        %p1059 = pneg %p836
      $region138: #{backbone_forward.1} parent=11 // pred_check_branch
        %1061 = sbr.rel (%p1059) target = $region140
      $region139: #{backbone_forward.1} parent=11 // pred_region
        _
      $region140: #{backbone_forward.1} parent=11 // pred_fallthru
        _
      // Predicated region
      $region141: #{backbone_forward.1} parent=11 // pred_check
        %p1062 = pneg %p857
      $region142: #{backbone_forward.1} parent=11 // pred_check_branch
        %1064 = sbr.rel (%p1062) target = $region144
      $region143: #{backbone_forward.1} parent=11 // pred_region
        _
      $region144: #{backbone_forward.1} parent=11 // pred_fallthru
        _
      // Predicated region
      $region145: #{backbone_forward.1} parent=11 // pred_check
        %p1065 = pneg %p878
      $region146: #{backbone_forward.1} parent=11 // pred_check_branch
        %1067 = sbr.rel (%p1065) target = $region148
      $region147: #{backbone_forward.1} parent=11 // pred_region
        _
      $region148: #{backbone_forward.1} parent=11 // pred_fallthru
        _
      // Predicated region
      $region149: #{backbone_forward.1} parent=11 // pred_check
        %p1068 = pneg %p899
      $region150: #{backbone_forward.1} parent=11 // pred_check_branch
        %1070 = sbr.rel (%p1068) target = $region152
      $region151: #{backbone_forward.1} parent=11 // pred_region
        _
      $region152: #{backbone_forward.1} parent=11 // pred_fallthru
        _
    $region12: #{backbone_forward.1} parent=5 // pred_fallthru
      _
    %p1071 = scmp.lt.s32.totalorder %s86, 2
    // Predicated region
    $region153: #{backbone_forward.1} parent=5 // pred_check
      %p1072 = pneg %p1071
    $region154: #{backbone_forward.1} parent=5 // pred_check_branch
      %1074 = sbr.rel (%p1072) target = $region156
    $region155: #{backbone_forward.1} parent=5 // pred_region
      // Predicated region
      $region157: #{backbone_forward.1} parent=155 // pred_check
        %p1075 = pneg %p106
      $region158: #{backbone_forward.1} parent=155 // pred_check_branch
        %1077 = sbr.rel (%p1075) target = $region160
      $region159: #{backbone_forward.1} parent=155 // pred_region
        %p1078 = scmp.lt.s32.totalorder %s86, 1
        %s1079 = scalar_select %p1078, %s86, 1
        %s1080 = smul.addr %s1079, 8
        %s1081 = smul.addr %s1080, 8
        %s1082 = scalar_lea.vmem %s1, %s1081
      $region160: #{backbone_forward.1} parent=155 // pred_fallthru
        _
      // Predicated region
      $region161: #{backbone_forward.1} parent=155 // pred_check
        %p1083 = pneg %p132
      $region162: #{backbone_forward.1} parent=155 // pred_check_branch
        %1085 = sbr.rel (%p1083) target = $region164
      $region163: #{backbone_forward.1} parent=155 // pred_region
        %p1086 = scmp.lt.s32.totalorder %s86, 1
        %s1087 = scalar_select %p1086, %s86, 1
        %s1088 = scalar_lea.vmem %s3, %s1087
      $region164: #{backbone_forward.1} parent=155 // pred_fallthru
        _
      // Predicated region
      $region165: #{backbone_forward.1} parent=155 // pred_check
        %p1089 = pneg %p158
      $region166: #{backbone_forward.1} parent=155 // pred_check_branch
        %1091 = sbr.rel (%p1089) target = $region168
      $region167: #{backbone_forward.1} parent=155 // pred_region
        %p1092 = scmp.lt.s32.totalorder %s86, 1
        %s1093 = scalar_select %p1092, %s86, 1
        %s1094 = scalar_lea.vmem %s5, %s1093
      $region168: #{backbone_forward.1} parent=155 // pred_fallthru
        _
    $region156: #{backbone_forward.1} parent=5 // pred_fallthru
      _
    %p1095 = scmp.le.s32.totalorder 1, %s86
    %p1096 = scmp.lt.s32.totalorder %s86, 3
    %p1097 = pnand %p1095, %p1096
    %p1098 = pneg %p1097
    // Predicated region
    $region169: #{backbone_forward.1} parent=5 // pred_check
      _
    $region170: #{backbone_forward.1} parent=5 // pred_check_branch
      %1100 = sbr.rel (%p1097) target = $region172
    $region171: #{backbone_forward.1} parent=5 // pred_region
      %s1101 = ssub.s32 %s86, 1
      %p1102 = scmp.lt.s32.totalorder %s91, 1
      %s1103 = scalar_select %p1102, %s91, 1
      %s1104 = smul.addr %s1103, 8
      %s1105 = smul.addr %s1104, 8
      %s1106 = scalar_lea.vmem %s1, %s1105
      %p1107 = pneg %p112
      %p1108 = pneg %p109
      %p1109 = scmp.lt.s32.totalorder %s91, 1
      %s1110 = scalar_select %p1109, %s91, 1
      %s1111 = scalar_lea.vmem %s3, %s1110
      %p1112 = pneg %p138
      %p1113 = pneg %p135
      %p1114 = scmp.lt.s32.totalorder %s91, 1
      %s1115 = scalar_select %p1114, %s91, 1
      %s1116 = scalar_lea.vmem %s5, %s1115
      %p1117 = pneg %p164
      %p1118 = pneg %p161
      %p1119 = pneg %p185
      %p1120 = pneg %p182
      %p1121 = pneg %p206
      %p1122 = pneg %p203
      %p1123 = pneg %p227
      %p1124 = pneg %p224
      %p1125 = pneg %p248
      %p1126 = pneg %p245
      %p1127 = pneg %p269
      %p1128 = pneg %p266
      %p1129 = pneg %p290
      %p1130 = pneg %p287
      %p1131 = pneg %p311
      %p1132 = pneg %p308
      %p1133 = pneg %p332
      %p1134 = pneg %p329
      %p1135 = pneg %p353
      %p1136 = pneg %p350
      %p1137 = pneg %p374
      %p1138 = pneg %p371
      %p1139 = pneg %p395
      %p1140 = pneg %p392
      %p1141 = pneg %p416
      %p1142 = pneg %p413
      %p1143 = pneg %p437
      %p1144 = pneg %p434
      %p1145 = pneg %p458
      %p1146 = pneg %p455
      %p1147 = pneg %p479
      %p1148 = pneg %p476
      %p1149 = pneg %p500
      %p1150 = pneg %p497
      %p1151 = pneg %p521
      %p1152 = pneg %p518
      %p1153 = pneg %p542
      %p1154 = pneg %p539
      %p1155 = pneg %p563
      %p1156 = pneg %p560
      %p1157 = pneg %p584
      %p1158 = pneg %p581
      %p1159 = pneg %p605
      %p1160 = pneg %p602
      %p1161 = pneg %p626
      %p1162 = pneg %p623
      %p1163 = pneg %p647
      %p1164 = pneg %p644
      %p1165 = pneg %p668
      %p1166 = pneg %p665
      %p1167 = pneg %p689
      %p1168 = pneg %p686
      %p1169 = pneg %p710
      %p1170 = pneg %p707
      %p1171 = pneg %p731
      %p1172 = pneg %p728
      %p1173 = pneg %p752
      %p1174 = pneg %p749
      %p1175 = pneg %p773
      %p1176 = pneg %p770
      %p1177 = pneg %p794
      %p1178 = pneg %p791
      %p1179 = pneg %p815
      %p1180 = pneg %p812
      %p1181 = pneg %p836
      %p1182 = pneg %p833
      %p1183 = pneg %p857
      %p1184 = pneg %p854
      %p1185 = pneg %p878
      %p1186 = pneg %p875
      %p1187 = pneg %p899
      %p1188 = pneg %p896
      %p1189 = pneg %p925
      %p1190 = pneg %p922
      %p1191 = scmp.lt.s32.totalorder %s91, 1
      %s1192 = scalar_select %p1191, %s91, 1
      %s1193 = smul.addr %s1192, 24
      %s1194 = smul.addr %s1193, 8
      %s1195 = scalar_lea.vmem %s77, %s1194
      %p1196 = pneg %p951
      %p1197 = pneg %p948
      %p1198 = scmp.lt.s32.totalorder %s91, 1
      %s1199 = scalar_select %p1198, %s91, 1
      %s1200 = scalar_lea.vmem %s79, %s1199
      %p1201 = scmp.lt.s32.totalorder %s91, 1
      %s1202 = scalar_select %p1201, %s91, 1
      %s1203 = smul.addr %s1202, 8
      %s1204 = smul.addr %s1203, 8
      %s1205 = scalar_lea.vmem %s1, %s1204
      %p1206 = scmp.lt.s32.totalorder %s91, 1
      %s1207 = scalar_select %p1206, %s91, 1
      %s1208 = scalar_lea.vmem %s3, %s1207
      %p1209 = scmp.lt.s32.totalorder %s91, 1
      %s1210 = scalar_select %p1209, %s91, 1
      %s1211 = scalar_lea.vmem %s5, %s1210
      %p1212 = scmp.lt.s32.totalorder %s91, 1
      %s1213 = scalar_select %p1212, %s91, 1
      %s1214 = smul.addr %s1213, 24
      %s1215 = smul.addr %s1214, 8
      %s1216 = scalar_lea.vmem %s77, %s1215
      %p1217 = scmp.lt.s32.totalorder %s91, 1
      %s1218 = scalar_select %p1217, %s91, 1
      %s1219 = scalar_lea.vmem %s79, %s1218
      %v1221 = vld [vmem:[%s1205] sm:$0xff]
      %v1222 = vld [vmem:[%s1205 + $0x8] sm:$0xff]
      %v1223 = vld [vmem:[%s1205 + $0x10] sm:$0xff]
      %v1224 = vld [vmem:[%s1205 + $0x18] sm:$0xff]
      %v1225 = vld [vmem:[%s1205 + $0x20] sm:$0xff]
      %v1226 = vld [vmem:[%s1205 + $0x28] sm:$0xff]
      %v1227 = vld [vmem:[%s1205 + $0x30] sm:$0xff]
      %v1228 = vld [vmem:[%s1205 + $0x38] sm:$0xff]
      %v1229 = vld [vmem:[%s7] sm:$0xf]
      %v1230 = vld [vmem:[%s7 + $0x4] sm:$0xf]
      %v1231 = vld [vmem:[%s7 + $0x8] sm:$0xf]
      %v1232 = vld [vmem:[%s7 + $0xc] sm:$0x3]
      %v1233 = vpack.c.bf16 %v1222, %v1221
      %v1234 = vpack.c.bf16 %v1224, %v1223
      %v1235 = vpack.c.bf16 %v1226, %v1225
      %v1236 = vpack.c.bf16 %v1228, %v1227
      %v1237 = vld [vmem:[%s9] sm:$0x1]
      %v1239 = vlaneseq
      %v1240 = vshrl.u32 %v1239, 7
      %v1241 = vsub.s32 0, %v1240
      %v1242 = vrot.slane %v1237, %v1241
      %v1248 = vunpack.c.l.b16 %v1229
      %v1249 = vunpack.c.l.b16 %v1230
      %v1250 = vunpack.c.l.b16 %v1231
      %v1251 = vunpack.c.l.b16 %v1232
      %v1252 = vpack.c.b16 %v1249, %v1248
      %v1253 = vpack.c.b16 %v1251, %v1250
      %vm1255 = vcmask 220160
      %v1257 = vsel %vm1255, %v1233, 0
      %v1260 = vsel %vm1255, %v1234, 0
      %v1263 = vsel %vm1255, %v1235, 0
      %v1266 = vsel %vm1255, %v1236, 0
      %vm1268 = vcmask 1044480
      %vm1269 = vcmask 1045504
      %v1270 = vsel %vm1268, 4294967295, 65535
      %v1271 = vsel %vm1269, %v1270, 0
      %v1273 = vand.u32 %v1253, %v1271
      %1275 = vmatprep.subr.bf16.mxu0 0
      %1276 = vmatpush1.bf16.msra.mxu0 %v1252
      %1277 = vmatprep.subr.bf16.mxu0 0
      %1278 = vmatpush1.bf16.msra.mxu0 %v1273
      %1279 = vmatprep.subr.bf16.mxu0 0
      %1280 = vmatpush1.bf16.msra.mxu0 0
      %1281 = vmatprep.subr.bf16.mxu0 0
      %1282 = vmatpush1.bf16.msra.mxu0 0
      %1283 = vmatprep.subr.bf16.mxu0 0
      %1284 = vmatpush1.bf16.msra.mxu0 0
      %1285 = vmatprep.subr.bf16.mxu0 0
      %1286 = vmatpush1.bf16.msra.mxu0 0
      %1287 = vmatprep.subr.bf16.mxu0 0
      %1288 = vmatpush1.bf16.msra.mxu0 0
      %1289 = vmatprep.subr.bf16.mxu0 0
      %1290 = vmatpush1.bf16.msra.mxu0 0
      %1291 = vmatprep.subr.bf16.mxu0 0
      %1292 = vmatpush1.bf16.msra.mxu0 0
      %1293 = vmatprep.subr.bf16.mxu0 0
      %1294 = vmatpush1.bf16.msra.mxu0 0
      %1295 = vmatprep.subr.bf16.mxu0 0
      %1296 = vmatpush1.bf16.msra.mxu0 0
      %1297 = vmatprep.subr.bf16.mxu0 0
      %1298 = vmatpush1.bf16.msra.mxu0 0
      %1299 = vmatprep.subr.bf16.mxu0 0
      %1300 = vmatpush1.bf16.msra.mxu0 0
      %1301 = vmatprep.subr.bf16.mxu0 0
      %1302 = vmatpush1.bf16.msra.mxu0 0
      %1303 = vmatprep.subr.bf16.mxu0 0
      %1304 = vmatpush1.bf16.msra.mxu0 0
      %1305 = vmatprep.subr.bf16.mxu0 0
      %1306 = vmatpush1.bf16.msra.mxu0 0
      %1307 = vmatprep.mubr.bf16.mxu0 0
      %1308 = vmatmul.mubr.bf16.gmra.mrb[0].mxu0 %v1257
      %v1309 = vpop.f32.mrb[0].mxu0
      %v1310 = vadd.f32 %v1242, %v1309
      %v1311 = vpop.f32.mrb[0].mxu0
      %v1312 = vpop.f32.mrb[0].mxu0
      %v1313 = vadd.f32 %v1242, %v1312
      %v1314 = vpop.f32.mrb[0].mxu0
      %1315 = vmatprep.mubr.bf16.mxu0 0
      %1316 = vmatmul.mubr.bf16.gmra.mrb[0].mxu0 %v1260
      %v1317 = vpop.f32.mrb[0].mxu0
      %v1318 = vadd.f32 %v1242, %v1317
      %v1319 = vpop.f32.mrb[0].mxu0
      %v1320 = vpop.f32.mrb[0].mxu0
      %v1321 = vadd.f32 %v1242, %v1320
      %v1322 = vpop.f32.mrb[0].mxu0
      %1323 = vmatprep.mubr.bf16.mxu0 0
      %1324 = vmatmul.mubr.bf16.gmra.mrb[0].mxu0 %v1263
      %v1325 = vpop.f32.mrb[0].mxu0
      %v1326 = vadd.f32 %v1242, %v1325
      %v1327 = vpop.f32.mrb[0].mxu0
      %v1328 = vpop.f32.mrb[0].mxu0
      %v1329 = vadd.f32 %v1242, %v1328
      %v1330 = vpop.f32.mrb[0].mxu0
      %1331 = vmatprep.mubr.bf16.mxu0 0
      %1332 = vmatmul.mubr.bf16.gmra.mrb[0].mxu0 %v1266
      %v1333 = vpop.f32.mrb[0].mxu0
      %v1334 = vadd.f32 %v1242, %v1333
      %v1335 = vpop.f32.mrb[0].mxu0
      %v1336 = vpop.f32.mrb[0].mxu0
      %v1337 = vadd.f32 %v1242, %v1336
      %v1338 = vpop.f32.mrb[0].mxu0
      %1339 = vdwg.mxu0
      %v1340 = vmax.f32 %v1310, 0.0
      %v1341 = vmax.f32 %v1313, 0.0
      %v1342 = vmax.f32 %v1318, 0.0
      %v1343 = vmax.f32 %v1321, 0.0
      %v1344 = vmax.f32 %v1326, 0.0
      %v1345 = vmax.f32 %v1329, 0.0
      %v1346 = vmax.f32 %v1334, 0.0
      %v1347 = vmax.f32 %v1337, 0.0
      %v1348 = vld [vmem:[%s11] sm:$0xf]
      %v1349 = vld [vmem:[%s11 + $0x4] sm:$0xf]
      %v1350 = vld [vmem:[%s11 + $0x8] sm:$0xf]
      %v1351 = vld [vmem:[%s11 + $0xc] sm:$0xf]
      %v1352 = vld [vmem:[%s11 + $0x10] sm:$0xf]
      %v1353 = vld [vmem:[%s11 + $0x14] sm:$0xf]
      %v1354 = vld [vmem:[%s11 + $0x18] sm:$0xf]
      %v1355 = vld [vmem:[%s11 + $0x1c] sm:$0xf]
      %v1356 = vld [vmem:[%s11 + $0x20] sm:$0xf]
      %v1357 = vld [vmem:[%s11 + $0x24] sm:$0xf]
      %v1358 = vld [vmem:[%s11 + $0x28] sm:$0xf]
      %v1359 = vld [vmem:[%s11 + $0x2c] sm:$0xf]
      %v1360 = vld [vmem:[%s11 + $0x30] sm:$0xf]
      %v1361 = vld [vmem:[%s11 + $0x34] sm:$0xf]
      %v1362 = vld [vmem:[%s11 + $0x38] sm:$0xf]
      %v1363 = vld [vmem:[%s11 + $0x3c] sm:$0xf]
      %v1364 = vld [vmem:[%s11 + $0x40] sm:$0xf]
      %v1365 = vld [vmem:[%s11 + $0x44] sm:$0xf]
      %v1366 = vpack.c.bf16 %v1341, %v1340
      %v1367 = vpack.c.bf16 %v1343, %v1342
      %v1368 = vpack.c.bf16 %v1345, %v1344
      %v1369 = vpack.c.bf16 %v1347, %v1346
      %v1388 = vunpack.c.l.b16 %v1348
      %v1389 = vunpack.c.l.b16 %v1349
      %v1390 = vunpack.c.l.b16 %v1350
      %v1391 = vunpack.c.l.b16 %v1351
      %v1392 = vunpack.c.l.b16 %v1352
      %v1393 = vunpack.c.l.b16 %v1353
      %v1394 = vunpack.c.l.b16 %v1354
      %v1395 = vunpack.c.l.b16 %v1355
      %v1396 = vunpack.c.l.b16 %v1356
      %v1397 = vunpack.c.l.b16 %v1357
      %v1398 = vunpack.c.l.b16 %v1358
      %v1399 = vunpack.c.l.b16 %v1359
      %v1400 = vunpack.c.l.b16 %v1360
      %v1401 = vunpack.c.l.b16 %v1361
      %v1402 = vunpack.c.l.b16 %v1362
      %v1403 = vunpack.c.l.b16 %v1363
      %v1404 = vunpack.c.l.b16 %v1364
      %v1405 = vunpack.c.l.b16 %v1365
      %v1406 = vpack.c.b16 %v1389, %v1388
      %v1407 = vpack.c.b16 %v1391, %v1390
      %v1408 = vpack.c.b16 %v1393, %v1392
      %v1409 = vpack.c.b16 %v1395, %v1394
      %v1410 = vpack.c.b16 %v1397, %v1396
      %v1411 = vpack.c.b16 %v1399, %v1398
      %v1412 = vpack.c.b16 %v1401, %v1400
      %v1413 = vpack.c.b16 %v1403, %v1402
      %v1414 = vpack.c.b16 %v1405, %v1404
      %vm1415 = vcmask 523264
      %v1417 = vsel %vm1415, %v1406, 0
      %v1420 = vsel %vm1415, %v1407, 0
      %v1423 = vsel %vm1415, %v1408, 0
      %v1426 = vsel %vm1415, %v1409, 0
      %v1429 = vsel %vm1415, %v1410, 0
      %v1432 = vsel %vm1415, %v1411, 0
      %v1435 = vsel %vm1415, %v1412, 0
      %v1438 = vsel %vm1415, %v1413, 0
      %v1441 = vsel %vm1415, %v1414, 0
      %1443 = vmatprep.subr.bf16.mxu0 0
      %1444 = vmatpush1.bf16.msra.mxu0 %v1366
      %1445 = vmatprep.subr.bf16.mxu0 0
      %1446 = vmatpush1.bf16.msra.mxu0 %v1367
      %1447 = vmatprep.subr.bf16.mxu0 0
      %1448 = vmatpush1.bf16.msra.mxu0 %v1368
      %1449 = vmatprep.subr.bf16.mxu0 0
      %1450 = vmatpush1.bf16.msra.mxu0 %v1369
      %1451 = vmatprep.subr.bf16.mxu0 0
      %1452 = vmatpush1.bf16.msra.mxu0 0
      %1453 = vmatprep.subr.bf16.mxu0 0
      %1454 = vmatpush1.bf16.msra.mxu0 0
      %1455 = vmatprep.subr.bf16.mxu0 0
      %1456 = vmatpush1.bf16.msra.mxu0 0
      %1457 = vmatprep.subr.bf16.mxu0 0
      %1458 = vmatpush1.bf16.msra.mxu0 0
      %1459 = vmatprep.subr.bf16.mxu0 0
      %1460 = vmatpush1.bf16.msra.mxu0 0
      %1461 = vmatprep.subr.bf16.mxu0 0
      %1462 = vmatpush1.bf16.msra.mxu0 0
      %1463 = vmatprep.subr.bf16.mxu0 0
      %1464 = vmatpush1.bf16.msra.mxu0 0
      %1465 = vmatprep.subr.bf16.mxu0 0
      %1466 = vmatpush1.bf16.msra.mxu0 0
      %1467 = vmatprep.subr.bf16.mxu0 0
      %1468 = vmatpush1.bf16.msra.mxu0 0
      %1469 = vmatprep.subr.bf16.mxu0 0
      %1470 = vmatpush1.bf16.msra.mxu0 0
      %1471 = vmatprep.subr.bf16.mxu0 0
      %1472 = vmatpush1.bf16.msra.mxu0 0
      %1473 = vmatprep.subr.bf16.mxu0 0
      %1474 = vmatpush1.bf16.msra.mxu0 0
      %1475 = vmatprep.mubr.bf16.mxu0 0
      %1476 = vmatmul.mubr.bf16.gmra.mrb[0].mxu0 %v1417
      %v1477 = vpop.f32.mrb[0].mxu0
      %v1478 = vadd.f32 0.0, %v1477
      %v1479 = vpop.f32.mrb[0].mxu0
      %v1480 = vpop.f32.mrb[0].mxu0
      %v1481 = vadd.f32 0.0, %v1480
      %v1482 = vpop.f32.mrb[0].mxu0
      %1483 = vmatprep.mubr.bf16.mxu0 0
      %1484 = vmatmul.mubr.bf16.gmra.mrb[0].mxu0 %v1420
      %v1485 = vpop.f32.mrb[0].mxu0
      %v1486 = vadd.f32 0.0, %v1485
      %v1487 = vpop.f32.mrb[0].mxu0
      %v1488 = vpop.f32.mrb[0].mxu0
      %v1489 = vadd.f32 0.0, %v1488
      %v1490 = vpop.f32.mrb[0].mxu0
      %1491 = vmatprep.mubr.bf16.mxu0 0
      %1492 = vmatmul.mubr.bf16.gmra.mrb[0].mxu0 %v1423
      %v1493 = vpop.f32.mrb[0].mxu0
      %v1494 = vadd.f32 0.0, %v1493
      %v1495 = vpop.f32.mrb[0].mxu0
      %v1496 = vpop.f32.mrb[0].mxu0
      %v1497 = vadd.f32 0.0, %v1496
      %v1498 = vpop.f32.mrb[0].mxu0
      %1499 = vmatprep.mubr.bf16.mxu0 0
      %1500 = vmatmul.mubr.bf16.gmra.mrb[0].mxu0 %v1426
      %v1501 = vpop.f32.mrb[0].mxu0
      %v1502 = vadd.f32 0.0, %v1501
      %v1503 = vpop.f32.mrb[0].mxu0
      %v1504 = vpop.f32.mrb[0].mxu0
      %v1505 = vadd.f32 0.0, %v1504
      %v1506 = vpop.f32.mrb[0].mxu0
      %1507 = vmatprep.mubr.bf16.mxu0 0
      %1508 = vmatmul.mubr.bf16.gmra.mrb[0].mxu0 %v1429
      %v1509 = vpop.f32.mrb[0].mxu0
      %v1510 = vadd.f32 0.0, %v1509
      %v1511 = vpop.f32.mrb[0].mxu0
      %v1512 = vpop.f32.mrb[0].mxu0
      %v1513 = vadd.f32 0.0, %v1512
      %v1514 = vpop.f32.mrb[0].mxu0
      %1515 = vmatprep.mubr.bf16.mxu0 0
      %1516 = vmatmul.mubr.bf16.gmra.mrb[0].mxu0 %v1432
      %v1517 = vpop.f32.mrb[0].mxu0
      %v1518 = vadd.f32 0.0, %v1517
      %v1519 = vpop.f32.mrb[0].mxu0
      %v1520 = vpop.f32.mrb[0].mxu0
      %v1521 = vadd.f32 0.0, %v1520
      %v1522 = vpop.f32.mrb[0].mxu0
      %1523 = vmatprep.mubr.bf16.mxu0 0
      %1524 = vmatmul.mubr.bf16.gmra.mrb[0].mxu0 %v1435
      %v1525 = vpop.f32.mrb[0].mxu0
      %v1526 = vadd.f32 0.0, %v1525
      %v1527 = vpop.f32.mrb[0].mxu0
      %v1528 = vpop.f32.mrb[0].mxu0
      %v1529 = vadd.f32 0.0, %v1528
      %v1530 = vpop.f32.mrb[0].mxu0
      %1531 = vmatprep.mubr.bf16.mxu0 0
      %1532 = vmatmul.mubr.bf16.gmra.mrb[0].mxu0 %v1438
      %v1533 = vpop.f32.mrb[0].mxu0
      %v1534 = vadd.f32 0.0, %v1533
      %v1535 = vpop.f32.mrb[0].mxu0
      %v1536 = vpop.f32.mrb[0].mxu0
      %v1537 = vadd.f32 0.0, %v1536
      %v1538 = vpop.f32.mrb[0].mxu0
      %1539 = vmatprep.mubr.bf16.mxu0 0
      %1540 = vmatmul.mubr.bf16.gmra.mrb[0].mxu0 %v1441
      %v1541 = vpop.f32.mrb[0].mxu0
      %v1542 = vadd.f32 0.0, %v1541
      %v1543 = vpop.f32.mrb[0].mxu0
      %v1544 = vpop.f32.mrb[0].mxu0
      %v1545 = vadd.f32 0.0, %v1544
      %v1546 = vpop.f32.mrb[0].mxu0
      %1547 = vdwg.mxu0
      %v1548 = vpack.c.bf16 %v1481, %v1478
      %v1549 = vld [vmem:[%s13] sm:$0xf]
      %v1550 = vld [vmem:[%s13 + $0x4] sm:$0xf]
      %v1551 = vpack.c.bf16 %v1489, %v1486
      %s1552 = scalar_lea.vmem %s13, 8
      %v1553 = vld [vmem:[%s1552] sm:$0xf]
      %v1554 = vld [vmem:[%s1552 + $0x4] sm:$0xf]
      %v1557 = vunpack.c.l.b16 %v1553
      %v1558 = vunpack.c.l.b16 %v1554
      %v1559 = vpack.c.b16 %v1558, %v1557
      %vm1561 = vcmask 130048
      %v1563 = vsel %vm1561, %v1551, 0
      %1565 = vmatprep.subr.bf16.mxu0 0
      %1566 = vmatpush1.bf16.msra.mxu0 %v1559
      %1567 = vmatprep.subr.bf16.mxu0 0
      %1568 = vmatpush1.bf16.msra.mxu0 0
      %1569 = vmatprep.subr.bf16.mxu0 0
      %1570 = vmatpush1.bf16.msra.mxu0 0
      %1571 = vmatprep.subr.bf16.mxu0 0
      %1572 = vmatpush1.bf16.msra.mxu0 0
      %1573 = vmatprep.subr.bf16.mxu0 0
      %1574 = vmatpush1.bf16.msra.mxu0 0
      %1575 = vmatprep.subr.bf16.mxu0 0
      %1576 = vmatpush1.bf16.msra.mxu0 0
      %1577 = vmatprep.subr.bf16.mxu0 0
      %1578 = vmatpush1.bf16.msra.mxu0 0
      %1579 = vmatprep.subr.bf16.mxu0 0
      %1580 = vmatpush1.bf16.msra.mxu0 0
      %1581 = vmatprep.subr.bf16.mxu0 0
      %1582 = vmatpush1.bf16.msra.mxu0 0
      %1583 = vmatprep.subr.bf16.mxu0 0
      %1584 = vmatpush1.bf16.msra.mxu0 0
      %1585 = vmatprep.subr.bf16.mxu0 0
      %1586 = vmatpush1.bf16.msra.mxu0 0
      %1587 = vmatprep.subr.bf16.mxu0 0
      %1588 = vmatpush1.bf16.msra.mxu0 0
      %1589 = vmatprep.subr.bf16.mxu0 0
      %1590 = vmatpush1.bf16.msra.mxu0 0
      %1591 = vmatprep.subr.bf16.mxu0 0
      %1592 = vmatpush1.bf16.msra.mxu0 0
      %1593 = vmatprep.subr.bf16.mxu0 0
      %1594 = vmatpush1.bf16.msra.mxu0 0
      %1595 = vmatprep.subr.bf16.mxu0 0
      %1596 = vmatpush1.bf16.msra.mxu0 0
      %1597 = vmatprep.mubr.bf16.mxu0 0
      %1598 = vmatmul.mubr.bf16.gmra.mrb[0].mxu0 %v1563
      %v1599 = vpop.f32.mrb[0].mxu0
      %v1600 = vadd.f32 0.0, %v1599
      %v1601 = vpop.f32.mrb[0].mxu0
      %v1602 = vpop.f32.mrb[0].mxu0
      %v1603 = vadd.f32 0.0, %v1602
      %v1604 = vpop.f32.mrb[0].mxu0
      %1605 = vdwg.mxu0
      %v1608 = vunpack.c.l.b16 %v1549
      %v1609 = vunpack.c.l.b16 %v1550
      %v1610 = vpack.c.b16 %v1609, %v1608
      %v1613 = vsel %vm1561, %v1548, 0
      %1615 = vmatprep.subr.bf16.mxu0 0
      %1616 = vmatpush1.bf16.msra.mxu0 %v1610
      %1617 = vmatprep.subr.bf16.mxu0 0
      %1618 = vmatpush1.bf16.msra.mxu0 0
      %1619 = vmatprep.subr.bf16.mxu0 0
      %1620 = vmatpush1.bf16.msra.mxu0 0
      %1621 = vmatprep.subr.bf16.mxu0 0
      %1622 = vmatpush1.bf16.msra.mxu0 0
      %1623 = vmatprep.subr.bf16.mxu0 0
      %1624 = vmatpush1.bf16.msra.mxu0 0
      %1625 = vmatprep.subr.bf16.mxu0 0
      %1626 = vmatpush1.bf16.msra.mxu0 0
      %1627 = vmatprep.subr.bf16.mxu0 0
      %1628 = vmatpush1.bf16.msra.mxu0 0
      %1629 = vmatprep.subr.bf16.mxu0 0
      %1630 = vmatpush1.bf16.msra.mxu0 0
      %1631 = vmatprep.subr.bf16.mxu0 0
      %1632 = vmatpush1.bf16.msra.mxu0 0
      %1633 = vmatprep.subr.bf16.mxu0 0
      %1634 = vmatpush1.bf16.msra.mxu0 0
      %1635 = vmatprep.subr.bf16.mxu0 0
      %1636 = vmatpush1.bf16.msra.mxu0 0
      %1637 = vmatprep.subr.bf16.mxu0 0
      %1638 = vmatpush1.bf16.msra.mxu0 0
      %1639 = vmatprep.subr.bf16.mxu0 0
      %1640 = vmatpush1.bf16.msra.mxu0 0
      %1641 = vmatprep.subr.bf16.mxu0 0
      %1642 = vmatpush1.bf16.msra.mxu0 0
      %1643 = vmatprep.subr.bf16.mxu0 0
      %1644 = vmatpush1.bf16.msra.mxu0 0
      %1645 = vmatprep.subr.bf16.mxu0 0
      %1646 = vmatpush1.bf16.msra.mxu0 0
      %1647 = vmatprep.mubr.bf16.mxu0 0
      %1648 = vmatmul.mubr.bf16.gmra.mrb[0].mxu0 %v1613
      %v1649 = vpop.f32.mrb[0].mxu0
      %v1650 = vadd.f32 %v1600, %v1649
      %v1651 = vpop.f32.mrb[0].mxu0
      %v1652 = vpop.f32.mrb[0].mxu0
      %v1653 = vadd.f32 %v1603, %v1652
      %v1654 = vpop.f32.mrb[0].mxu0
      %1655 = vdwg.mxu0
      %v1656 = vpack.c.bf16 %v1497, %v1494
      %s1657 = scalar_lea.vmem %s13, 16
      %v1658 = vld [vmem:[%s1657] sm:$0xf]
      %v1659 = vld [vmem:[%s1657 + $0x4] sm:$0xf]
      %v1662 = vunpack.c.l.b16 %v1658
      %v1663 = vunpack.c.l.b16 %v1659
      %v1664 = vpack.c.b16 %v1663, %v1662
      %v1667 = vsel %vm1561, %v1656, 0
      %1669 = vmatprep.subr.bf16.mxu0 0
      %1670 = vmatpush1.bf16.msra.mxu0 %v1664
      %1671 = vmatprep.subr.bf16.mxu0 0
      %1672 = vmatpush1.bf16.msra.mxu0 0
      %1673 = vmatprep.subr.bf16.mxu0 0
      %1674 = vmatpush1.bf16.msra.mxu0 0
      %1675 = vmatprep.subr.bf16.mxu0 0
      %1676 = vmatpush1.bf16.msra.mxu0 0
      %1677 = vmatprep.subr.bf16.mxu0 0
      %1678 = vmatpush1.bf16.msra.mxu0 0
      %1679 = vmatprep.subr.bf16.mxu0 0
      %1680 = vmatpush1.bf16.msra.mxu0 0
      %1681 = vmatprep.subr.bf16.mxu0 0
      %1682 = vmatpush1.bf16.msra.mxu0 0
      %1683 = vmatprep.subr.bf16.mxu0 0
      %1684 = vmatpush1.bf16.msra.mxu0 0
      %1685 = vmatprep.subr.bf16.mxu0 0
      %1686 = vmatpush1.bf16.msra.mxu0 0
      %1687 = vmatprep.subr.bf16.mxu0 0
      %1688 = vmatpush1.bf16.msra.mxu0 0
      %1689 = vmatprep.subr.bf16.mxu0 0
      %1690 = vmatpush1.bf16.msra.mxu0 0
      %1691 = vmatprep.subr.bf16.mxu0 0
      %1692 = vmatpush1.bf16.msra.mxu0 0
      %1693 = vmatprep.subr.bf16.mxu0 0
      %1694 = vmatpush1.bf16.msra.mxu0 0
      %1695 = vmatprep.subr.bf16.mxu0 0
      %1696 = vmatpush1.bf16.msra.mxu0 0
      %1697 = vmatprep.subr.bf16.mxu0 0
      %1698 = vmatpush1.bf16.msra.mxu0 0
      %1699 = vmatprep.subr.bf16.mxu0 0
      %1700 = vmatpush1.bf16.msra.mxu0 0
      %1701 = vmatprep.mubr.bf16.mxu0 0
      %1702 = vmatmul.mubr.bf16.gmra.mrb[0].mxu0 %v1667
      %v1703 = vpop.f32.mrb[0].mxu0
      %v1704 = vadd.f32 0.0, %v1703
      %v1705 = vpop.f32.mrb[0].mxu0
      %v1706 = vpop.f32.mrb[0].mxu0
      %v1707 = vadd.f32 0.0, %v1706
      %v1708 = vpop.f32.mrb[0].mxu0
      %1709 = vdwg.mxu0
      %v1710 = vadd.f32 %v1650, %v1704
      %v1711 = vadd.f32 %v1653, %v1707
      %v1712 = vpack.c.bf16 %v1505, %v1502
      %s1713 = scalar_lea.vmem %s13, 24
      %v1714 = vld [vmem:[%s1713] sm:$0xf]
      %v1715 = vld [vmem:[%s1713 + $0x4] sm:$0xf]
      %v1718 = vunpack.c.l.b16 %v1714
      %v1719 = vunpack.c.l.b16 %v1715
      %v1720 = vpack.c.b16 %v1719, %v1718
      %v1723 = vsel %vm1561, %v1712, 0
      %1725 = vmatprep.subr.bf16.mxu0 0
      %1726 = vmatpush1.bf16.msra.mxu0 %v1720
      %1727 = vmatprep.subr.bf16.mxu0 0
      %1728 = vmatpush1.bf16.msra.mxu0 0
      %1729 = vmatprep.subr.bf16.mxu0 0
      %1730 = vmatpush1.bf16.msra.mxu0 0
      %1731 = vmatprep.subr.bf16.mxu0 0
      %1732 = vmatpush1.bf16.msra.mxu0 0
      %1733 = vmatprep.subr.bf16.mxu0 0
      %1734 = vmatpush1.bf16.msra.mxu0 0
      %1735 = vmatprep.subr.bf16.mxu0 0
      %1736 = vmatpush1.bf16.msra.mxu0 0
      %1737 = vmatprep.subr.bf16.mxu0 0
      %1738 = vmatpush1.bf16.msra.mxu0 0
      %1739 = vmatprep.subr.bf16.mxu0 0
      %1740 = vmatpush1.bf16.msra.mxu0 0
      %1741 = vmatprep.subr.bf16.mxu0 0
      %1742 = vmatpush1.bf16.msra.mxu0 0
      %1743 = vmatprep.subr.bf16.mxu0 0
      %1744 = vmatpush1.bf16.msra.mxu0 0
      %1745 = vmatprep.subr.bf16.mxu0 0
      %1746 = vmatpush1.bf16.msra.mxu0 0
      %1747 = vmatprep.subr.bf16.mxu0 0
      %1748 = vmatpush1.bf16.msra.mxu0 0
      %1749 = vmatprep.subr.bf16.mxu0 0
      %1750 = vmatpush1.bf16.msra.mxu0 0
      %1751 = vmatprep.subr.bf16.mxu0 0
      %1752 = vmatpush1.bf16.msra.mxu0 0
      %1753 = vmatprep.subr.bf16.mxu0 0
      %1754 = vmatpush1.bf16.msra.mxu0 0
      %1755 = vmatprep.subr.bf16.mxu0 0
      %1756 = vmatpush1.bf16.msra.mxu0 0
      %1757 = vmatprep.mubr.bf16.mxu0 0
      %1758 = vmatmul.mubr.bf16.gmra.mrb[0].mxu0 %v1723
      %v1759 = vpop.f32.mrb[0].mxu0
      %v1760 = vadd.f32 0.0, %v1759
      %v1761 = vpop.f32.mrb[0].mxu0
      %v1762 = vpop.f32.mrb[0].mxu0
      %v1763 = vadd.f32 0.0, %v1762
      %v1764 = vpop.f32.mrb[0].mxu0
      %1765 = vdwg.mxu0
      %v1766 = vadd.f32 %v1710, %v1760
      %v1767 = vadd.f32 %v1711, %v1763
      %v1768 = vpack.c.bf16 %v1513, %v1510
      %s1769 = scalar_lea.vmem %s13, 32
      %v1770 = vld [vmem:[%s1769] sm:$0xf]
      %v1771 = vld [vmem:[%s1769 + $0x4] sm:$0xf]
      %v1774 = vunpack.c.l.b16 %v1770
      %v1775 = vunpack.c.l.b16 %v1771
      %v1776 = vpack.c.b16 %v1775, %v1774
      %v1779 = vsel %vm1561, %v1768, 0
      %1781 = vmatprep.subr.bf16.mxu0 0
      %1782 = vmatpush1.bf16.msra.mxu0 %v1776
      %1783 = vmatprep.subr.bf16.mxu0 0
      %1784 = vmatpush1.bf16.msra.mxu0 0
      %1785 = vmatprep.subr.bf16.mxu0 0
      %1786 = vmatpush1.bf16.msra.mxu0 0
      %1787 = vmatprep.subr.bf16.mxu0 0
      %1788 = vmatpush1.bf16.msra.mxu0 0
      %1789 = vmatprep.subr.bf16.mxu0 0
      %1790 = vmatpush1.bf16.msra.mxu0 0
      %1791 = vmatprep.subr.bf16.mxu0 0
      %1792 = vmatpush1.bf16.msra.mxu0 0
      %1793 = vmatprep.subr.bf16.mxu0 0
      %1794 = vmatpush1.bf16.msra.mxu0 0
      %1795 = vmatprep.subr.bf16.mxu0 0
      %1796 = vmatpush1.bf16.msra.mxu0 0
      %1797 = vmatprep.subr.bf16.mxu0 0
      %1798 = vmatpush1.bf16.msra.mxu0 0
      %1799 = vmatprep.subr.bf16.mxu0 0
      %1800 = vmatpush1.bf16.msra.mxu0 0
      %1801 = vmatprep.subr.bf16.mxu0 0
      %1802 = vmatpush1.bf16.msra.mxu0 0
      %1803 = vmatprep.subr.bf16.mxu0 0
      %1804 = vmatpush1.bf16.msra.mxu0 0
      %1805 = vmatprep.subr.bf16.mxu0 0
      %1806 = vmatpush1.bf16.msra.mxu0 0
      %1807 = vmatprep.subr.bf16.mxu0 0
      %1808 = vmatpush1.bf16.msra.mxu0 0
      %1809 = vmatprep.subr.bf16.mxu0 0
      %1810 = vmatpush1.bf16.msra.mxu0 0
      %1811 = vmatprep.subr.bf16.mxu0 0
      %1812 = vmatpush1.bf16.msra.mxu0 0
      %1813 = vmatprep.mubr.bf16.mxu0 0
      %1814 = vmatmul.mubr.bf16.gmra.mrb[0].mxu0 %v1779
      %v1815 = vpop.f32.mrb[0].mxu0
      %v1816 = vadd.f32 0.0, %v1815
      %v1817 = vpop.f32.mrb[0].mxu0
      %v1818 = vpop.f32.mrb[0].mxu0
      %v1819 = vadd.f32 0.0, %v1818
      %v1820 = vpop.f32.mrb[0].mxu0
      %1821 = vdwg.mxu0
      %v1822 = vadd.f32 %v1766, %v1816
      %v1823 = vadd.f32 %v1767, %v1819
      %v1824 = vpack.c.bf16 %v1521, %v1518
      %s1825 = scalar_lea.vmem %s13, 40
      %v1826 = vld [vmem:[%s1825] sm:$0xf]
      %v1827 = vld [vmem:[%s1825 + $0x4] sm:$0xf]
      %v1830 = vunpack.c.l.b16 %v1826
      %v1831 = vunpack.c.l.b16 %v1827
      %v1832 = vpack.c.b16 %v1831, %v1830
      %v1835 = vsel %vm1561, %v1824, 0
      %1837 = vmatprep.subr.bf16.mxu0 0
      %1838 = vmatpush1.bf16.msra.mxu0 %v1832
      %1839 = vmatprep.subr.bf16.mxu0 0
      %1840 = vmatpush1.bf16.msra.mxu0 0
      %1841 = vmatprep.subr.bf16.mxu0 0
      %1842 = vmatpush1.bf16.msra.mxu0 0
      %1843 = vmatprep.subr.bf16.mxu0 0
      %1844 = vmatpush1.bf16.msra.mxu0 0
      %1845 = vmatprep.subr.bf16.mxu0 0
      %1846 = vmatpush1.bf16.msra.mxu0 0
      %1847 = vmatprep.subr.bf16.mxu0 0
      %1848 = vmatpush1.bf16.msra.mxu0 0
      %1849 = vmatprep.subr.bf16.mxu0 0
      %1850 = vmatpush1.bf16.msra.mxu0 0
      %1851 = vmatprep.subr.bf16.mxu0 0
      %1852 = vmatpush1.bf16.msra.mxu0 0
      %1853 = vmatprep.subr.bf16.mxu0 0
      %1854 = vmatpush1.bf16.msra.mxu0 0
      %1855 = vmatprep.subr.bf16.mxu0 0
      %1856 = vmatpush1.bf16.msra.mxu0 0
      %1857 = vmatprep.subr.bf16.mxu0 0
      %1858 = vmatpush1.bf16.msra.mxu0 0
      %1859 = vmatprep.subr.bf16.mxu0 0
      %1860 = vmatpush1.bf16.msra.mxu0 0
      %1861 = vmatprep.subr.bf16.mxu0 0
      %1862 = vmatpush1.bf16.msra.mxu0 0
      %1863 = vmatprep.subr.bf16.mxu0 0
      %1864 = vmatpush1.bf16.msra.mxu0 0
      %1865 = vmatprep.subr.bf16.mxu0 0
      %1866 = vmatpush1.bf16.msra.mxu0 0
      %1867 = vmatprep.subr.bf16.mxu0 0
      %1868 = vmatpush1.bf16.msra.mxu0 0
      %1869 = vmatprep.mubr.bf16.mxu0 0
      %1870 = vmatmul.mubr.bf16.gmra.mrb[0].mxu0 %v1835
      %v1871 = vpop.f32.mrb[0].mxu0
      %v1872 = vadd.f32 0.0, %v1871
      %v1873 = vpop.f32.mrb[0].mxu0
      %v1874 = vpop.f32.mrb[0].mxu0
      %v1875 = vadd.f32 0.0, %v1874
      %v1876 = vpop.f32.mrb[0].mxu0
      %1877 = vdwg.mxu0
      %v1878 = vadd.f32 %v1822, %v1872
      %v1879 = vadd.f32 %v1823, %v1875
      %v1880 = vpack.c.bf16 %v1529, %v1526
      %s1881 = scalar_lea.vmem %s13, 48
      %v1882 = vld [vmem:[%s1881] sm:$0xf]
      %v1883 = vld [vmem:[%s1881 + $0x4] sm:$0xf]
      %v1886 = vunpack.c.l.b16 %v1882
      %v1887 = vunpack.c.l.b16 %v1883
      %v1888 = vpack.c.b16 %v1887, %v1886
      %v1891 = vsel %vm1561, %v1880, 0
      %1893 = vmatprep.subr.bf16.mxu0 0
      %1894 = vmatpush1.bf16.msra.mxu0 %v1888
      %1895 = vmatprep.subr.bf16.mxu0 0
      %1896 = vmatpush1.bf16.msra.mxu0 0
      %1897 = vmatprep.subr.bf16.mxu0 0
      %1898 = vmatpush1.bf16.msra.mxu0 0
      %1899 = vmatprep.subr.bf16.mxu0 0
      %1900 = vmatpush1.bf16.msra.mxu0 0
      %1901 = vmatprep.subr.bf16.mxu0 0
      %1902 = vmatpush1.bf16.msra.mxu0 0
      %1903 = vmatprep.subr.bf16.mxu0 0
      %1904 = vmatpush1.bf16.msra.mxu0 0
      %1905 = vmatprep.subr.bf16.mxu0 0
      %1906 = vmatpush1.bf16.msra.mxu0 0
      %1907 = vmatprep.subr.bf16.mxu0 0
      %1908 = vmatpush1.bf16.msra.mxu0 0
      %1909 = vmatprep.subr.bf16.mxu0 0
      %1910 = vmatpush1.bf16.msra.mxu0 0
      %1911 = vmatprep.subr.bf16.mxu0 0
      %1912 = vmatpush1.bf16.msra.mxu0 0
      %1913 = vmatprep.subr.bf16.mxu0 0
      %1914 = vmatpush1.bf16.msra.mxu0 0
      %1915 = vmatprep.subr.bf16.mxu0 0
      %1916 = vmatpush1.bf16.msra.mxu0 0
      %1917 = vmatprep.subr.bf16.mxu0 0
      %1918 = vmatpush1.bf16.msra.mxu0 0
      %1919 = vmatprep.subr.bf16.mxu0 0
      %1920 = vmatpush1.bf16.msra.mxu0 0
      %1921 = vmatprep.subr.bf16.mxu0 0
      %1922 = vmatpush1.bf16.msra.mxu0 0
      %1923 = vmatprep.subr.bf16.mxu0 0
      %1924 = vmatpush1.bf16.msra.mxu0 0
      %1925 = vmatprep.mubr.bf16.mxu0 0
      %1926 = vmatmul.mubr.bf16.gmra.mrb[0].mxu0 %v1891
      %v1927 = vpop.f32.mrb[0].mxu0
      %v1928 = vadd.f32 0.0, %v1927
      %v1929 = vpop.f32.mrb[0].mxu0
      %v1930 = vpop.f32.mrb[0].mxu0
      %v1931 = vadd.f32 0.0, %v1930
      %v1932 = vpop.f32.mrb[0].mxu0
      %1933 = vdwg.mxu0
      %v1934 = vadd.f32 %v1878, %v1928
      %v1935 = vadd.f32 %v1879, %v1931
      %v1936 = vpack.c.bf16 %v1537, %v1534
      %s1937 = scalar_lea.vmem %s13, 56
      %v1938 = vld [vmem:[%s1937] sm:$0xf]
      %v1939 = vld [vmem:[%s1937 + $0x4] sm:$0xf]
      %v1942 = vunpack.c.l.b16 %v1938
      %v1943 = vunpack.c.l.b16 %v1939
      %v1944 = vpack.c.b16 %v1943, %v1942
      %v1947 = vsel %vm1561, %v1936, 0
      %1949 = vmatprep.subr.bf16.mxu0 0
      %1950 = vmatpush1.bf16.msra.mxu0 %v1944
      %1951 = vmatprep.subr.bf16.mxu0 0
      %1952 = vmatpush1.bf16.msra.mxu0 0
      %1953 = vmatprep.subr.bf16.mxu0 0
      %1954 = vmatpush1.bf16.msra.mxu0 0
      %1955 = vmatprep.subr.bf16.mxu0 0
      %1956 = vmatpush1.bf16.msra.mxu0 0
      %1957 = vmatprep.subr.bf16.mxu0 0
      %1958 = vmatpush1.bf16.msra.mxu0 0
      %1959 = vmatprep.subr.bf16.mxu0 0
      %1960 = vmatpush1.bf16.msra.mxu0 0
      %1961 = vmatprep.subr.bf16.mxu0 0
      %1962 = vmatpush1.bf16.msra.mxu0 0
      %1963 = vmatprep.subr.bf16.mxu0 0
      %1964 = vmatpush1.bf16.msra.mxu0 0
      %1965 = vmatprep.subr.bf16.mxu0 0
      %1966 = vmatpush1.bf16.msra.mxu0 0
      %1967 = vmatprep.subr.bf16.mxu0 0
      %1968 = vmatpush1.bf16.msra.mxu0 0
      %1969 = vmatprep.subr.bf16.mxu0 0
      %1970 = vmatpush1.bf16.msra.mxu0 0
      %1971 = vmatprep.subr.bf16.mxu0 0
      %1972 = vmatpush1.bf16.msra.mxu0 0
      %1973 = vmatprep.subr.bf16.mxu0 0
      %1974 = vmatpush1.bf16.msra.mxu0 0
      %1975 = vmatprep.subr.bf16.mxu0 0
      %1976 = vmatpush1.bf16.msra.mxu0 0
      %1977 = vmatprep.subr.bf16.mxu0 0
      %1978 = vmatpush1.bf16.msra.mxu0 0
      %1979 = vmatprep.subr.bf16.mxu0 0
      %1980 = vmatpush1.bf16.msra.mxu0 0
      %1981 = vmatprep.mubr.bf16.mxu0 0
      %1982 = vmatmul.mubr.bf16.gmra.mrb[0].mxu0 %v1947
      %v1983 = vpop.f32.mrb[0].mxu0
      %v1984 = vadd.f32 0.0, %v1983
      %v1985 = vpop.f32.mrb[0].mxu0
      %v1986 = vpop.f32.mrb[0].mxu0
      %v1987 = vadd.f32 0.0, %v1986
      %v1988 = vpop.f32.mrb[0].mxu0
      %1989 = vdwg.mxu0
      %v1990 = vadd.f32 %v1934, %v1984
      %v1991 = vadd.f32 %v1935, %v1987
      %v1992 = vpack.c.bf16 %v1545, %v1542
      %s1993 = scalar_lea.vmem %s13, 64
      %v1994 = vld [vmem:[%s1993] sm:$0xf]
      %v1995 = vld [vmem:[%s1993 + $0x4] sm:$0xf]
      %v1998 = vunpack.c.l.b16 %v1994
      %v1999 = vunpack.c.l.b16 %v1995
      %v2000 = vpack.c.b16 %v1999, %v1998
      %v2003 = vsel %vm1561, %v1992, 0
      %2005 = vmatprep.subr.bf16.mxu0 0
      %2006 = vmatpush1.bf16.msra.mxu0 %v2000
      %2007 = vmatprep.subr.bf16.mxu0 0
      %2008 = vmatpush1.bf16.msra.mxu0 0
      %2009 = vmatprep.subr.bf16.mxu0 0
      %2010 = vmatpush1.bf16.msra.mxu0 0
      %2011 = vmatprep.subr.bf16.mxu0 0
      %2012 = vmatpush1.bf16.msra.mxu0 0
      %2013 = vmatprep.subr.bf16.mxu0 0
      %2014 = vmatpush1.bf16.msra.mxu0 0
      %2015 = vmatprep.subr.bf16.mxu0 0
      %2016 = vmatpush1.bf16.msra.mxu0 0
      %2017 = vmatprep.subr.bf16.mxu0 0
      %2018 = vmatpush1.bf16.msra.mxu0 0
      %2019 = vmatprep.subr.bf16.mxu0 0
      %2020 = vmatpush1.bf16.msra.mxu0 0
      %2021 = vmatprep.subr.bf16.mxu0 0
      %2022 = vmatpush1.bf16.msra.mxu0 0
      %2023 = vmatprep.subr.bf16.mxu0 0
      %2024 = vmatpush1.bf16.msra.mxu0 0
      %2025 = vmatprep.subr.bf16.mxu0 0
      %2026 = vmatpush1.bf16.msra.mxu0 0
      %2027 = vmatprep.subr.bf16.mxu0 0
      %2028 = vmatpush1.bf16.msra.mxu0 0
      %2029 = vmatprep.subr.bf16.mxu0 0
      %2030 = vmatpush1.bf16.msra.mxu0 0
      %2031 = vmatprep.subr.bf16.mxu0 0
      %2032 = vmatpush1.bf16.msra.mxu0 0
      %2033 = vmatprep.subr.bf16.mxu0 0
      %2034 = vmatpush1.bf16.msra.mxu0 0
      %2035 = vmatprep.subr.bf16.mxu0 0
      %2036 = vmatpush1.bf16.msra.mxu0 0
      %2037 = vmatprep.mubr.bf16.mxu0 0
      %2038 = vmatmul.mubr.bf16.gmra.mrb[0].mxu0 %v2003
      %v2039 = vpop.f32.mrb[0].mxu0
      %v2040 = vadd.f32 0.0, %v2039
      %v2041 = vpop.f32.mrb[0].mxu0
      %v2042 = vpop.f32.mrb[0].mxu0
      %v2043 = vadd.f32 0.0, %v2042
      %v2044 = vpop.f32.mrb[0].mxu0
      %2045 = vdwg.mxu0
      %v2046 = vadd.f32 %v1990, %v2040
      %v2047 = vadd.f32 %v1991, %v2043
      %v2048 = vld [vmem:[%s15] sm:$0x1]
      %v2050 = vlaneseq
      %v2051 = vshrl.u32 %v2050, 7
      %v2052 = vsub.s32 0, %v2051
      %v2053 = vrot.slane %v2048, %v2052
      %v2055 = vadd.f32 %v2046, %v2053
      %v2056 = vadd.f32 %v2047, %v2053
      %v2057 = vmax.f32 %v2055, 0.0
      %v2058 = vmax.f32 %v2056, 0.0
      %v2059 = vld [vmem:[%s17] sm:$0xf]
      %v2060 = vld [vmem:[%s17 + $0x4] sm:$0xf]
      %v2061 = vld [vmem:[%s17 + $0x8] sm:$0xf]
      %v2062 = vld [vmem:[%s17 + $0xc] sm:$0xf]
      %v2063 = vld [vmem:[%s17 + $0x10] sm:$0xf]
      %v2064 = vld [vmem:[%s17 + $0x14] sm:$0xf]
      %v2065 = vld [vmem:[%s17 + $0x18] sm:$0xf]
      %v2066 = vld [vmem:[%s17 + $0x1c] sm:$0xf]
      %v2067 = vpack.c.bf16 %v2058, %v2057
      %v2068 = vld [vmem:[%s19] sm:$0x1]
      %v2070 = vlaneseq
      %v2071 = vshrl.u32 %v2070, 7
      %v2072 = vsub.s32 0, %v2071
      %v2073 = vrot.slane %v2068, %v2072
      %v2083 = vunpack.c.l.b16 %v2059
      %v2084 = vunpack.c.l.b16 %v2060
      %v2085 = vunpack.c.l.b16 %v2061
      %v2086 = vunpack.c.l.b16 %v2062
      %v2087 = vunpack.c.l.b16 %v2063
      %v2088 = vunpack.c.l.b16 %v2064
      %v2089 = vunpack.c.l.b16 %v2065
      %v2090 = vunpack.c.l.b16 %v2066
      %v2091 = vpack.c.b16 %v2084, %v2083
      %v2092 = vpack.c.b16 %v2086, %v2085
      %v2093 = vpack.c.b16 %v2088, %v2087
      %v2094 = vpack.c.b16 %v2090, %v2089
      %v2100 = vsel %vm1415, %v2067, 0
      %2102 = vmatprep.subr.bf16.mxu0 0
      %2103 = vmatpush1.bf16.msra.mxu0 %v2091
      %2104 = vmatprep.subr.bf16.mxu0 0
      %2105 = vmatpush1.bf16.msra.mxu0 %v2092
      %2106 = vmatprep.subr.bf16.mxu0 0
      %2107 = vmatpush1.bf16.msra.mxu0 %v2093
      %2108 = vmatprep.subr.bf16.mxu0 0
      %2109 = vmatpush1.bf16.msra.mxu0 %v2094
      %2110 = vmatprep.subr.bf16.mxu0 0
      %2111 = vmatpush1.bf16.msra.mxu0 0
      %2112 = vmatprep.subr.bf16.mxu0 0
      %2113 = vmatpush1.bf16.msra.mxu0 0
      %2114 = vmatprep.subr.bf16.mxu0 0
      %2115 = vmatpush1.bf16.msra.mxu0 0
      %2116 = vmatprep.subr.bf16.mxu0 0
      %2117 = vmatpush1.bf16.msra.mxu0 0
      %2118 = vmatprep.subr.bf16.mxu0 0
      %2119 = vmatpush1.bf16.msra.mxu0 0
      %2120 = vmatprep.subr.bf16.mxu0 0
      %2121 = vmatpush1.bf16.msra.mxu0 0
      %2122 = vmatprep.subr.bf16.mxu0 0
      %2123 = vmatpush1.bf16.msra.mxu0 0
      %2124 = vmatprep.subr.bf16.mxu0 0
      %2125 = vmatpush1.bf16.msra.mxu0 0
      %2126 = vmatprep.subr.bf16.mxu0 0
      %2127 = vmatpush1.bf16.msra.mxu0 0
      %2128 = vmatprep.subr.bf16.mxu0 0
      %2129 = vmatpush1.bf16.msra.mxu0 0
      %2130 = vmatprep.subr.bf16.mxu0 0
      %2131 = vmatpush1.bf16.msra.mxu0 0
      %2132 = vmatprep.subr.bf16.mxu0 0
      %2133 = vmatpush1.bf16.msra.mxu0 0
      %2134 = vmatprep.mubr.bf16.mxu0 0
      %2135 = vmatmul.mubr.bf16.gmra.mrb[0].mxu0 %v2100
      %v2136 = vpop.f32.mrb[0].mxu0
      %v2137 = vadd.f32 %v2073, %v2136
      %v2138 = vpop.f32.mrb[0].mxu0
      %v2139 = vpop.f32.mrb[0].mxu0
      %v2140 = vadd.f32 %v2073, %v2139
      %v2141 = vpop.f32.mrb[0].mxu0
      %2142 = vdwg.mxu0
      %v2143 = vmax.f32 %v2137, 0.0
      %v2144 = vmax.f32 %v2140, 0.0
      %v2145 = vld [vmem:[%s21] sm:$0xf]
      %v2146 = vld [vmem:[%s21 + $0x4] sm:$0xf]
      %v2147 = vld [vmem:[%s21 + $0x8] sm:$0xf]
      %v2148 = vld [vmem:[%s21 + $0xc] sm:$0xf]
      %v2149 = vld [vmem:[%s21 + $0x10] sm:$0xf]
      %v2150 = vld [vmem:[%s21 + $0x14] sm:$0xf]
      %v2151 = vld [vmem:[%s21 + $0x18] sm:$0xf]
      %v2152 = vld [vmem:[%s21 + $0x1c] sm:$0xf]
      %v2153 = vld [vmem:[%s21 + $0x20] sm:$0xf]
      %v2154 = vld [vmem:[%s21 + $0x24] sm:$0xf]
      %v2155 = vld [vmem:[%s21 + $0x28] sm:$0xf]
      %v2156 = vld [vmem:[%s21 + $0x2c] sm:$0xf]
      %v2157 = vld [vmem:[%s21 + $0x30] sm:$0xf]
      %v2158 = vld [vmem:[%s21 + $0x34] sm:$0xf]
      %v2159 = vld [vmem:[%s21 + $0x38] sm:$0xf]
      %v2160 = vld [vmem:[%s21 + $0x3c] sm:$0xf]
      %v2161 = vpack.c.bf16 %v2144, %v2143
      %v2162 = vld [vmem:[%s23] sm:$0xff]
      %v2163 = vld [vmem:[%s23 + $0x8] sm:$0xff]
      %v2180 = vunpack.c.l.b16 %v2145
      %v2181 = vunpack.c.l.b16 %v2146
      %v2182 = vunpack.c.l.b16 %v2147
      %v2183 = vunpack.c.l.b16 %v2148
      %v2184 = vunpack.c.l.b16 %v2149
      %v2185 = vunpack.c.l.b16 %v2150
      %v2186 = vunpack.c.l.b16 %v2151
      %v2187 = vunpack.c.l.b16 %v2152
      %v2188 = vunpack.c.l.b16 %v2153
      %v2189 = vunpack.c.l.b16 %v2154
      %v2190 = vunpack.c.l.b16 %v2155
      %v2191 = vunpack.c.l.b16 %v2156
      %v2192 = vunpack.c.l.b16 %v2157
      %v2193 = vunpack.c.l.b16 %v2158
      %v2194 = vunpack.c.l.b16 %v2159
      %v2195 = vunpack.c.l.b16 %v2160
      %v2196 = vpack.c.b16 %v2181, %v2180
      %v2197 = vpack.c.b16 %v2183, %v2182
      %v2198 = vpack.c.b16 %v2185, %v2184
      %v2199 = vpack.c.b16 %v2187, %v2186
      %v2200 = vpack.c.b16 %v2189, %v2188
      %v2201 = vpack.c.b16 %v2191, %v2190
      %v2202 = vpack.c.b16 %v2193, %v2192
      %v2203 = vpack.c.b16 %v2195, %v2194
      %2212 = vmatprep.subr.bf16.mxu0 0
      %2213 = vmatpush1.bf16.msra.mxu0 %v2196
      %2214 = vmatprep.subr.bf16.mxu0 0
      %2215 = vmatpush1.bf16.msra.mxu0 %v2197
      %2216 = vmatprep.subr.bf16.mxu0 0
      %2217 = vmatpush1.bf16.msra.mxu0 %v2198
      %2218 = vmatprep.subr.bf16.mxu0 0
      %2219 = vmatpush1.bf16.msra.mxu0 %v2199
      %2220 = vmatprep.subr.bf16.mxu0 0
      %2221 = vmatpush1.bf16.msra.mxu0 %v2200
      %2222 = vmatprep.subr.bf16.mxu0 0
      %2223 = vmatpush1.bf16.msra.mxu0 %v2201
      %2224 = vmatprep.subr.bf16.mxu0 0
      %2225 = vmatpush1.bf16.msra.mxu0 %v2202
      %2226 = vmatprep.subr.bf16.mxu0 0
      %2227 = vmatpush1.bf16.msra.mxu0 %v2203
      %2228 = vmatprep.subr.bf16.mxu0 0
      %2229 = vmatpush1.bf16.msra.mxu0 0
      %2230 = vmatprep.subr.bf16.mxu0 0
      %2231 = vmatpush1.bf16.msra.mxu0 0
      %2232 = vmatprep.subr.bf16.mxu0 0
      %2233 = vmatpush1.bf16.msra.mxu0 0
      %2234 = vmatprep.subr.bf16.mxu0 0
      %2235 = vmatpush1.bf16.msra.mxu0 0
      %2236 = vmatprep.subr.bf16.mxu0 0
      %2237 = vmatpush1.bf16.msra.mxu0 0
      %2238 = vmatprep.subr.bf16.mxu0 0
      %2239 = vmatpush1.bf16.msra.mxu0 0
      %2240 = vmatprep.subr.bf16.mxu0 0
      %2241 = vmatpush1.bf16.msra.mxu0 0
      %2242 = vmatprep.subr.bf16.mxu0 0
      %2243 = vmatpush1.bf16.msra.mxu0 0
      %2244 = vmatprep.mubr.bf16.mxu0 0
      %2245 = vmatmul.mubr.bf16.gmra.mrb[0].mxu0 %v2161
      %v2246 = vpop.f32.mrb[0].mxu0
      %v2247 = vadd.f32 %v2162, %v2246
      %v2248 = vpop.f32.mrb[0].mxu0
      %v2249 = vpop.f32.mrb[0].mxu0
      %v2250 = vadd.f32 %v2163, %v2249
      %v2251 = vpop.f32.mrb[0].mxu0
      %2252 = vdwg.mxu0
      %v2253 = vmax.f32 %v2247, 0.0
      %v2254 = vmax.f32 %v2250, 0.0
      %v2255 = vld [vmem:[%s25] sm:$0xf]
      %v2256 = vld [vmem:[%s25 + $0x4] sm:$0xf]
      %v2257 = vld [vmem:[%s25 + $0x8] sm:$0xf]
      %v2258 = vld [vmem:[%s25 + $0xc] sm:$0xf]
      %v2259 = vld [vmem:[%s25 + $0x10] sm:$0xf]
      %v2260 = vld [vmem:[%s25 + $0x14] sm:$0xf]
      %v2261 = vld [vmem:[%s25 + $0x18] sm:$0xf]
      %v2262 = vld [vmem:[%s25 + $0x1c] sm:$0xf]
      %v2263 = vld [vmem:[%s25 + $0x20] sm:$0xf]
      %v2264 = vld [vmem:[%s25 + $0x24] sm:$0xf]
      %v2265 = vld [vmem:[%s25 + $0x28] sm:$0xf]
      %v2266 = vld [vmem:[%s25 + $0x2c] sm:$0xf]
      %v2267 = vld [vmem:[%s25 + $0x30] sm:$0xf]
      %v2268 = vld [vmem:[%s25 + $0x34] sm:$0xf]
      %v2269 = vld [vmem:[%s25 + $0x38] sm:$0xf]
      %v2270 = vld [vmem:[%s25 + $0x3c] sm:$0xf]
      %v2271 = vpack.c.bf16 %v2254, %v2253
      %v2272 = vld [vmem:[%s27] sm:$0x1]
      %v2274 = vlaneseq
      %v2275 = vshrl.u32 %v2274, 7
      %v2276 = vsub.s32 0, %v2275
      %v2277 = vrot.slane %v2272, %v2276
      %v2295 = vunpack.c.l.b16 %v2255
      %v2296 = vunpack.c.l.b16 %v2256
      %v2297 = vunpack.c.l.b16 %v2257
      %v2298 = vunpack.c.l.b16 %v2258
      %v2299 = vunpack.c.l.b16 %v2259
      %v2300 = vunpack.c.l.b16 %v2260
      %v2301 = vunpack.c.l.b16 %v2261
      %v2302 = vunpack.c.l.b16 %v2262
      %v2303 = vunpack.c.l.b16 %v2263
      %v2304 = vunpack.c.l.b16 %v2264
      %v2305 = vunpack.c.l.b16 %v2265
      %v2306 = vunpack.c.l.b16 %v2266
      %v2307 = vunpack.c.l.b16 %v2267
      %v2308 = vunpack.c.l.b16 %v2268
      %v2309 = vunpack.c.l.b16 %v2269
      %v2310 = vunpack.c.l.b16 %v2270
      %v2311 = vpack.c.b16 %v2296, %v2295
      %v2312 = vpack.c.b16 %v2298, %v2297
      %v2313 = vpack.c.b16 %v2300, %v2299
      %v2314 = vpack.c.b16 %v2302, %v2301
      %v2315 = vpack.c.b16 %v2304, %v2303
      %v2316 = vpack.c.b16 %v2306, %v2305
      %v2317 = vpack.c.b16 %v2308, %v2307
      %v2318 = vpack.c.b16 %v2310, %v2309
      %2327 = vmatprep.subr.bf16.mxu0 0
      %2328 = vmatpush1.bf16.msra.mxu0 %v2311
      %2329 = vmatprep.subr.bf16.mxu0 0
      %2330 = vmatpush1.bf16.msra.mxu0 %v2312
      %2331 = vmatprep.subr.bf16.mxu0 0
      %2332 = vmatpush1.bf16.msra.mxu0 %v2313
      %2333 = vmatprep.subr.bf16.mxu0 0
      %2334 = vmatpush1.bf16.msra.mxu0 %v2314
      %2335 = vmatprep.subr.bf16.mxu0 0
      %2336 = vmatpush1.bf16.msra.mxu0 %v2315
      %2337 = vmatprep.subr.bf16.mxu0 0
      %2338 = vmatpush1.bf16.msra.mxu0 %v2316
      %2339 = vmatprep.subr.bf16.mxu0 0
      %2340 = vmatpush1.bf16.msra.mxu0 %v2317
      %2341 = vmatprep.subr.bf16.mxu0 0
      %2342 = vmatpush1.bf16.msra.mxu0 %v2318
      %2343 = vmatprep.subr.bf16.mxu0 0
      %2344 = vmatpush1.bf16.msra.mxu0 0
      %2345 = vmatprep.subr.bf16.mxu0 0
      %2346 = vmatpush1.bf16.msra.mxu0 0
      %2347 = vmatprep.subr.bf16.mxu0 0
      %2348 = vmatpush1.bf16.msra.mxu0 0
      %2349 = vmatprep.subr.bf16.mxu0 0
      %2350 = vmatpush1.bf16.msra.mxu0 0
      %2351 = vmatprep.subr.bf16.mxu0 0
      %2352 = vmatpush1.bf16.msra.mxu0 0
      %2353 = vmatprep.subr.bf16.mxu0 0
      %2354 = vmatpush1.bf16.msra.mxu0 0
      %2355 = vmatprep.subr.bf16.mxu0 0
      %2356 = vmatpush1.bf16.msra.mxu0 0
      %2357 = vmatprep.subr.bf16.mxu0 0
      %2358 = vmatpush1.bf16.msra.mxu0 0
      %2359 = vmatprep.mubr.bf16.mxu0 0
      %2360 = vmatmul.mubr.bf16.gmra.mrb[0].mxu0 %v2271
      %v2361 = vpop.f32.mrb[0].mxu0
      %v2362 = vadd.f32 %v2277, %v2361
      %v2363 = vpop.f32.mrb[0].mxu0
      %v2364 = vpop.f32.mrb[0].mxu0
      %v2365 = vadd.f32 %v2277, %v2364
      %v2366 = vpop.f32.mrb[0].mxu0
      %2367 = vdwg.mxu0
      %vm2368 = vcmp.gt.f32.partialorder %v2362, 0.0
      %vm2369 = vcmp.gt.f32.partialorder %v2365, 0.0
      %v2370 = vmin.f32 %v2362, 0.0
      %v2371 = vmin.f32 %v2365, 0.0
      %v2372 = vmul.f32 %v2370, 1.442695
      %v2373 = vpow.pop %v2372
      %v2374 = vmul.f32 %v2371, 1.442695
      %v2375 = vpow.pop %v2374
      %v2376 = vsub.f32 %v2373, 1.0
      %v2377 = vsub.f32 %v2375, 1.0
      %v2378 = vmul.f32 %v2376, 1.6732632
      %v2379 = vmul.f32 %v2377, 1.6732632
      %v2380 = vsel %vm2368, %v2362, %v2378
      %v2381 = vsel %vm2369, %v2365, %v2379
      %v2382 = vmul.f32 %v2380, 1.050701
      %v2383 = vmul.f32 %v2381, 1.050701
      %v2384 = vld [vmem:[%s31] sm:$0x1]
      %v2385 = vpack.c.bf16 %v2253, %v2253
      %v2386 = vld [vmem:[%s29] sm:$0xf]
      %v2387 = vld [vmem:[%s29 + $0x4] sm:$0xf]
      %v2388 = vld [vmem:[%s29 + $0x8] sm:$0xf]
      %v2389 = vld [vmem:[%s29 + $0xc] sm:$0xf]
      %v2390 = vld [vmem:[%s29 + $0x10] sm:$0xf]
      %v2391 = vld [vmem:[%s29 + $0x14] sm:$0xf]
      %v2392 = vld [vmem:[%s29 + $0x18] sm:$0xf]
      %v2393 = vld [vmem:[%s29 + $0x1c] sm:$0xf]
      %v2394 = vld [vmem:[%s29 + $0x20] sm:$0xf]
      %v2395 = vld [vmem:[%s29 + $0x24] sm:$0xf]
      %v2396 = vld [vmem:[%s29 + $0x28] sm:$0xf]
      %v2397 = vld [vmem:[%s29 + $0x2c] sm:$0xf]
      %v2398 = vld [vmem:[%s29 + $0x30] sm:$0xf]
      %v2399 = vld [vmem:[%s29 + $0x34] sm:$0xf]
      %v2400 = vld [vmem:[%s29 + $0x38] sm:$0xf]
      %v2401 = vld [vmem:[%s29 + $0x3c] sm:$0xf]
      %v2418 = vunpack.c.l.b16 %v2386
      %v2419 = vunpack.c.l.b16 %v2387
      %v2420 = vunpack.c.l.b16 %v2388
      %v2421 = vunpack.c.l.b16 %v2389
      %v2422 = vunpack.c.l.b16 %v2390
      %v2423 = vunpack.c.l.b16 %v2391
      %v2424 = vunpack.c.l.b16 %v2392
      %v2425 = vunpack.c.l.b16 %v2393
      %v2426 = vunpack.c.l.b16 %v2394
      %v2427 = vunpack.c.l.b16 %v2395
      %v2428 = vunpack.c.l.b16 %v2396
      %v2429 = vunpack.c.l.b16 %v2397
      %v2430 = vunpack.c.l.b16 %v2398
      %v2431 = vunpack.c.l.b16 %v2399
      %v2432 = vunpack.c.l.b16 %v2400
      %v2433 = vunpack.c.l.b16 %v2401
      %v2434 = vpack.c.b16 %v2419, %v2418
      %v2435 = vpack.c.b16 %v2421, %v2420
      %v2436 = vpack.c.b16 %v2423, %v2422
      %v2437 = vpack.c.b16 %v2425, %v2424
      %v2438 = vpack.c.b16 %v2427, %v2426
      %v2439 = vpack.c.b16 %v2429, %v2428
      %v2440 = vpack.c.b16 %v2431, %v2430
      %v2441 = vpack.c.b16 %v2433, %v2432
      %2450 = vmatprep.subr.bf16.mxu0 0
      %2451 = vmatpush1.bf16.msra.mxu0 %v2434
      %2452 = vmatprep.subr.bf16.mxu0 0
      %2453 = vmatpush1.bf16.msra.mxu0 %v2435
      %2454 = vmatprep.subr.bf16.mxu0 0
      %2455 = vmatpush1.bf16.msra.mxu0 %v2436
      %2456 = vmatprep.subr.bf16.mxu0 0
      %2457 = vmatpush1.bf16.msra.mxu0 %v2437
      %2458 = vmatprep.subr.bf16.mxu0 0
      %2459 = vmatpush1.bf16.msra.mxu0 %v2438
      %2460 = vmatprep.subr.bf16.mxu0 0
      %2461 = vmatpush1.bf16.msra.mxu0 %v2439
      %2462 = vmatprep.subr.bf16.mxu0 0
      %2463 = vmatpush1.bf16.msra.mxu0 %v2440
      %2464 = vmatprep.subr.bf16.mxu0 0
      %2465 = vmatpush1.bf16.msra.mxu0 %v2441
      %2466 = vmatprep.subr.bf16.mxu0 0
      %2467 = vmatpush1.bf16.msra.mxu0 0
      %2468 = vmatprep.subr.bf16.mxu0 0
      %2469 = vmatpush1.bf16.msra.mxu0 0
      %2470 = vmatprep.subr.bf16.mxu0 0
      %2471 = vmatpush1.bf16.msra.mxu0 0
      %2472 = vmatprep.subr.bf16.mxu0 0
      %2473 = vmatpush1.bf16.msra.mxu0 0
      %2474 = vmatprep.subr.bf16.mxu0 0
      %2475 = vmatpush1.bf16.msra.mxu0 0
      %2476 = vmatprep.subr.bf16.mxu0 0
      %2477 = vmatpush1.bf16.msra.mxu0 0
      %2478 = vmatprep.subr.bf16.mxu0 0
      %2479 = vmatpush1.bf16.msra.mxu0 0
      %2480 = vmatprep.subr.bf16.mxu0 0
      %2481 = vmatpush1.bf16.msra.mxu0 0
      %2482 = vmatprep.mubr.bf16.mxu0 0
      %2483 = vmatmul.mubr.bf16.gmra.mrb[0].mxu0 %v2385
      %v2484 = vpop.f32.mrb[0].mxu0
      %v2485 = vadd.f32 0.0, %v2484
      %v2486 = vpop.f32.mrb[0].mxu0
      %v2487 = vpop.f32.mrb[0].mxu0
      %v2488 = vpop.f32.mrb[0].mxu0
      %2489 = vdwg.mxu0
      %v2490 = vadd.f32 %v2384, %v2485
      %s2491 = scalar_lea.vmem %s29, 64
      %v2492 = vld [vmem:[%s2491] sm:$0xf]
      %v2493 = vld [vmem:[%s2491 + $0x4] sm:$0xf]
      %v2494 = vld [vmem:[%s2491 + $0x8] sm:$0xf]
      %v2495 = vld [vmem:[%s2491 + $0xc] sm:$0xf]
      %v2496 = vld [vmem:[%s2491 + $0x10] sm:$0xf]
      %v2497 = vld [vmem:[%s2491 + $0x14] sm:$0xf]
      %v2498 = vld [vmem:[%s2491 + $0x18] sm:$0xf]
      %v2499 = vld [vmem:[%s2491 + $0x1c] sm:$0xf]
      %v2500 = vld [vmem:[%s2491 + $0x20] sm:$0xf]
      %v2501 = vld [vmem:[%s2491 + $0x24] sm:$0xf]
      %v2502 = vld [vmem:[%s2491 + $0x28] sm:$0xf]
      %v2503 = vld [vmem:[%s2491 + $0x2c] sm:$0xf]
      %v2504 = vld [vmem:[%s2491 + $0x30] sm:$0xf]
      %v2505 = vld [vmem:[%s2491 + $0x34] sm:$0xf]
      %v2506 = vld [vmem:[%s2491 + $0x38] sm:$0xf]
      %v2507 = vld [vmem:[%s2491 + $0x3c] sm:$0xf]
      %v2509 = vshrl.u32 %v2385, 16
      %v2528 = vunpack.c.l.b16 %v2492
      %v2529 = vunpack.c.l.b16 %v2493
      %v2530 = vunpack.c.l.b16 %v2494
      %v2531 = vunpack.c.l.b16 %v2495
      %v2532 = vunpack.c.l.b16 %v2496
      %v2533 = vunpack.c.l.b16 %v2497
      %v2534 = vunpack.c.l.b16 %v2498
      %v2535 = vunpack.c.l.b16 %v2499
      %v2536 = vunpack.c.l.b16 %v2500
      %v2537 = vunpack.c.l.b16 %v2501
      %v2538 = vunpack.c.l.b16 %v2502
      %v2539 = vunpack.c.l.b16 %v2503
      %v2540 = vunpack.c.l.b16 %v2504
      %v2541 = vunpack.c.l.b16 %v2505
      %v2542 = vunpack.c.l.b16 %v2506
      %v2543 = vunpack.c.l.b16 %v2507
      %v2544 = vpack.c.b16 %v2529, %v2528
      %v2545 = vpack.c.b16 %v2531, %v2530
      %v2546 = vpack.c.b16 %v2533, %v2532
      %v2547 = vpack.c.b16 %v2535, %v2534
      %v2548 = vpack.c.b16 %v2537, %v2536
      %v2549 = vpack.c.b16 %v2539, %v2538
      %v2550 = vpack.c.b16 %v2541, %v2540
      %v2551 = vpack.c.b16 %v2543, %v2542
      %2560 = vmatprep.subr.bf16.mxu0 0
      %2561 = vmatpush1.bf16.msra.mxu0 %v2544
      %2562 = vmatprep.subr.bf16.mxu0 0
      %2563 = vmatpush1.bf16.msra.mxu0 %v2545
      %2564 = vmatprep.subr.bf16.mxu0 0
      %2565 = vmatpush1.bf16.msra.mxu0 %v2546
      %2566 = vmatprep.subr.bf16.mxu0 0
      %2567 = vmatpush1.bf16.msra.mxu0 %v2547
      %2568 = vmatprep.subr.bf16.mxu0 0
      %2569 = vmatpush1.bf16.msra.mxu0 %v2548
      %2570 = vmatprep.subr.bf16.mxu0 0
      %2571 = vmatpush1.bf16.msra.mxu0 %v2549
      %2572 = vmatprep.subr.bf16.mxu0 0
      %2573 = vmatpush1.bf16.msra.mxu0 %v2550
      %2574 = vmatprep.subr.bf16.mxu0 0
      %2575 = vmatpush1.bf16.msra.mxu0 %v2551
      %2576 = vmatprep.subr.bf16.mxu0 0
      %2577 = vmatpush1.bf16.msra.mxu0 0
      %2578 = vmatprep.subr.bf16.mxu0 0
      %2579 = vmatpush1.bf16.msra.mxu0 0
      %2580 = vmatprep.subr.bf16.mxu0 0
      %2581 = vmatpush1.bf16.msra.mxu0 0
      %2582 = vmatprep.subr.bf16.mxu0 0
      %2583 = vmatpush1.bf16.msra.mxu0 0
      %2584 = vmatprep.subr.bf16.mxu0 0
      %2585 = vmatpush1.bf16.msra.mxu0 0
      %2586 = vmatprep.subr.bf16.mxu0 0
      %2587 = vmatpush1.bf16.msra.mxu0 0
      %2588 = vmatprep.subr.bf16.mxu0 0
      %2589 = vmatpush1.bf16.msra.mxu0 0
      %2590 = vmatprep.subr.bf16.mxu0 0
      %2591 = vmatpush1.bf16.msra.mxu0 0
      %2592 = vmatprep.mubr.bf16.mxu0 0
      %2593 = vmatmul.mubr.bf16.gmra.mrb[0].mxu0 %v2509
      %v2594 = vpop.f32.mrb[0].mxu0
      %v2595 = vadd.f32 0.0, %v2594
      %v2596 = vpop.f32.mrb[0].mxu0
      %v2597 = vpop.f32.mrb[0].mxu0
      %v2598 = vpop.f32.mrb[0].mxu0
      %2599 = vdwg.mxu0
      %v2600 = vadd.f32 %v2490, %v2595
      %s2601 = scalar_lea.vmem %s29, 128
      %v2602 = vld [vmem:[%s2601] sm:$0xf]
      %v2603 = vld [vmem:[%s2601 + $0x4] sm:$0xf]
      %v2604 = vld [vmem:[%s2601 + $0x8] sm:$0xf]
      %v2605 = vld [vmem:[%s2601 + $0xc] sm:$0xf]
      %v2606 = vld [vmem:[%s2601 + $0x10] sm:$0xf]
      %v2607 = vld [vmem:[%s2601 + $0x14] sm:$0xf]
      %v2608 = vld [vmem:[%s2601 + $0x18] sm:$0xf]
      %v2609 = vld [vmem:[%s2601 + $0x1c] sm:$0xf]
      %v2610 = vld [vmem:[%s2601 + $0x20] sm:$0xf]
      %v2611 = vld [vmem:[%s2601 + $0x24] sm:$0xf]
      %v2612 = vld [vmem:[%s2601 + $0x28] sm:$0xf]
      %v2613 = vld [vmem:[%s2601 + $0x2c] sm:$0xf]
      %v2614 = vld [vmem:[%s2601 + $0x30] sm:$0xf]
      %v2615 = vld [vmem:[%s2601 + $0x34] sm:$0xf]
      %v2616 = vld [vmem:[%s2601 + $0x38] sm:$0xf]
      %v2617 = vld [vmem:[%s2601 + $0x3c] sm:$0xf]
      %v2619 = vrot.slane %v2385, 1
      %v2637 = vunpack.c.l.b16 %v2602
      %v2638 = vunpack.c.l.b16 %v2603
      %v2639 = vunpack.c.l.b16 %v2604
      %v2640 = vunpack.c.l.b16 %v2605
      %v2641 = vunpack.c.l.b16 %v2606
      %v2642 = vunpack.c.l.b16 %v2607
      %v2643 = vunpack.c.l.b16 %v2608
      %v2644 = vunpack.c.l.b16 %v2609
      %v2645 = vunpack.c.l.b16 %v2610
      %v2646 = vunpack.c.l.b16 %v2611
      %v2647 = vunpack.c.l.b16 %v2612
      %v2648 = vunpack.c.l.b16 %v2613
      %v2649 = vunpack.c.l.b16 %v2614
      %v2650 = vunpack.c.l.b16 %v2615
      %v2651 = vunpack.c.l.b16 %v2616
      %v2652 = vunpack.c.l.b16 %v2617
      %v2653 = vpack.c.b16 %v2638, %v2637
      %v2654 = vpack.c.b16 %v2640, %v2639
      %v2655 = vpack.c.b16 %v2642, %v2641
      %v2656 = vpack.c.b16 %v2644, %v2643
      %v2657 = vpack.c.b16 %v2646, %v2645
      %v2658 = vpack.c.b16 %v2648, %v2647
      %v2659 = vpack.c.b16 %v2650, %v2649
      %v2660 = vpack.c.b16 %v2652, %v2651
      %2669 = vmatprep.subr.bf16.mxu0 0
      %2670 = vmatpush1.bf16.msra.mxu0 %v2653
      %2671 = vmatprep.subr.bf16.mxu0 0
      %2672 = vmatpush1.bf16.msra.mxu0 %v2654
      %2673 = vmatprep.subr.bf16.mxu0 0
      %2674 = vmatpush1.bf16.msra.mxu0 %v2655
      %2675 = vmatprep.subr.bf16.mxu0 0
      %2676 = vmatpush1.bf16.msra.mxu0 %v2656
      %2677 = vmatprep.subr.bf16.mxu0 0
      %2678 = vmatpush1.bf16.msra.mxu0 %v2657
      %2679 = vmatprep.subr.bf16.mxu0 0
      %2680 = vmatpush1.bf16.msra.mxu0 %v2658
      %2681 = vmatprep.subr.bf16.mxu0 0
      %2682 = vmatpush1.bf16.msra.mxu0 %v2659
      %2683 = vmatprep.subr.bf16.mxu0 0
      %2684 = vmatpush1.bf16.msra.mxu0 %v2660
      %2685 = vmatprep.subr.bf16.mxu0 0
      %2686 = vmatpush1.bf16.msra.mxu0 0
      %2687 = vmatprep.subr.bf16.mxu0 0
      %2688 = vmatpush1.bf16.msra.mxu0 0
      %2689 = vmatprep.subr.bf16.mxu0 0
      %2690 = vmatpush1.bf16.msra.mxu0 0
      %2691 = vmatprep.subr.bf16.mxu0 0
      %2692 = vmatpush1.bf16.msra.mxu0 0
      %2693 = vmatprep.subr.bf16.mxu0 0
      %2694 = vmatpush1.bf16.msra.mxu0 0
      %2695 = vmatprep.subr.bf16.mxu0 0
      %2696 = vmatpush1.bf16.msra.mxu0 0
      %2697 = vmatprep.subr.bf16.mxu0 0
      %2698 = vmatpush1.bf16.msra.mxu0 0
      %2699 = vmatprep.subr.bf16.mxu0 0
      %2700 = vmatpush1.bf16.msra.mxu0 0
      %2701 = vmatprep.mubr.bf16.mxu0 0
      %2702 = vmatmul.mubr.bf16.gmra.mrb[0].mxu0 %v2619
      %v2703 = vpop.f32.mrb[0].mxu0
      %v2704 = vadd.f32 0.0, %v2703
      %v2705 = vpop.f32.mrb[0].mxu0
      %v2706 = vpop.f32.mrb[0].mxu0
      %v2707 = vpop.f32.mrb[0].mxu0
      %2708 = vdwg.mxu0
      %v2709 = vadd.f32 %v2600, %v2704
      %s2710 = scalar_lea.vmem %s29, 192
      %v2711 = vld [vmem:[%s2710] sm:$0xf]
      %v2712 = vld [vmem:[%s2710 + $0x4] sm:$0xf]
      %v2713 = vld [vmem:[%s2710 + $0x8] sm:$0xf]
      %v2714 = vld [vmem:[%s2710 + $0xc] sm:$0xf]
      %v2715 = vld [vmem:[%s2710 + $0x10] sm:$0xf]
      %v2716 = vld [vmem:[%s2710 + $0x14] sm:$0xf]
      %v2717 = vld [vmem:[%s2710 + $0x18] sm:$0xf]
      %v2718 = vld [vmem:[%s2710 + $0x1c] sm:$0xf]
      %v2719 = vld [vmem:[%s2710 + $0x20] sm:$0xf]
      %v2720 = vld [vmem:[%s2710 + $0x24] sm:$0xf]
      %v2721 = vld [vmem:[%s2710 + $0x28] sm:$0xf]
      %v2722 = vld [vmem:[%s2710 + $0x2c] sm:$0xf]
      %v2723 = vld [vmem:[%s2710 + $0x30] sm:$0xf]
      %v2724 = vld [vmem:[%s2710 + $0x34] sm:$0xf]
      %v2725 = vld [vmem:[%s2710 + $0x38] sm:$0xf]
      %v2726 = vld [vmem:[%s2710 + $0x3c] sm:$0xf]
      %v2727 = vrot.slane %v2509, 1
      %v2745 = vunpack.c.l.b16 %v2711
      %v2746 = vunpack.c.l.b16 %v2712
      %v2747 = vunpack.c.l.b16 %v2713
      %v2748 = vunpack.c.l.b16 %v2714
      %v2749 = vunpack.c.l.b16 %v2715
      %v2750 = vunpack.c.l.b16 %v2716
      %v2751 = vunpack.c.l.b16 %v2717
      %v2752 = vunpack.c.l.b16 %v2718
      %v2753 = vunpack.c.l.b16 %v2719
      %v2754 = vunpack.c.l.b16 %v2720
      %v2755 = vunpack.c.l.b16 %v2721
      %v2756 = vunpack.c.l.b16 %v2722
      %v2757 = vunpack.c.l.b16 %v2723
      %v2758 = vunpack.c.l.b16 %v2724
      %v2759 = vunpack.c.l.b16 %v2725
      %v2760 = vunpack.c.l.b16 %v2726
      %v2761 = vpack.c.b16 %v2746, %v2745
      %v2762 = vpack.c.b16 %v2748, %v2747
      %v2763 = vpack.c.b16 %v2750, %v2749
      %v2764 = vpack.c.b16 %v2752, %v2751
      %v2765 = vpack.c.b16 %v2754, %v2753
      %v2766 = vpack.c.b16 %v2756, %v2755
      %v2767 = vpack.c.b16 %v2758, %v2757
      %v2768 = vpack.c.b16 %v2760, %v2759
      %2777 = vmatprep.subr.bf16.mxu0 0
      %2778 = vmatpush1.bf16.msra.mxu0 %v2761
      %2779 = vmatprep.subr.bf16.mxu0 0
      %2780 = vmatpush1.bf16.msra.mxu0 %v2762
      %2781 = vmatprep.subr.bf16.mxu0 0
      %2782 = vmatpush1.bf16.msra.mxu0 %v2763
      %2783 = vmatprep.subr.bf16.mxu0 0
      %2784 = vmatpush1.bf16.msra.mxu0 %v2764
      %2785 = vmatprep.subr.bf16.mxu0 0
      %2786 = vmatpush1.bf16.msra.mxu0 %v2765
      %2787 = vmatprep.subr.bf16.mxu0 0
      %2788 = vmatpush1.bf16.msra.mxu0 %v2766
      %2789 = vmatprep.subr.bf16.mxu0 0
      %2790 = vmatpush1.bf16.msra.mxu0 %v2767
      %2791 = vmatprep.subr.bf16.mxu0 0
      %2792 = vmatpush1.bf16.msra.mxu0 %v2768
      %2793 = vmatprep.subr.bf16.mxu0 0
      %2794 = vmatpush1.bf16.msra.mxu0 0
      %2795 = vmatprep.subr.bf16.mxu0 0
      %2796 = vmatpush1.bf16.msra.mxu0 0
      %2797 = vmatprep.subr.bf16.mxu0 0
      %2798 = vmatpush1.bf16.msra.mxu0 0
      %2799 = vmatprep.subr.bf16.mxu0 0
      %2800 = vmatpush1.bf16.msra.mxu0 0
      %2801 = vmatprep.subr.bf16.mxu0 0
      %2802 = vmatpush1.bf16.msra.mxu0 0
      %2803 = vmatprep.subr.bf16.mxu0 0
      %2804 = vmatpush1.bf16.msra.mxu0 0
      %2805 = vmatprep.subr.bf16.mxu0 0
      %2806 = vmatpush1.bf16.msra.mxu0 0
      %2807 = vmatprep.subr.bf16.mxu0 0
      %2808 = vmatpush1.bf16.msra.mxu0 0
      %2809 = vmatprep.mubr.bf16.mxu0 0
      %2810 = vmatmul.mubr.bf16.gmra.mrb[0].mxu0 %v2727
      %v2811 = vpop.f32.mrb[0].mxu0
      %v2812 = vadd.f32 0.0, %v2811
      %v2813 = vpop.f32.mrb[0].mxu0
      %v2814 = vpop.f32.mrb[0].mxu0
      %v2815 = vpop.f32.mrb[0].mxu0
      %2816 = vdwg.mxu0
      %v2817 = vadd.f32 %v2709, %v2812
      %s2818 = scalar_lea.vmem %s29, 256
      %v2819 = vld [vmem:[%s2818] sm:$0xf]
      %v2820 = vld [vmem:[%s2818 + $0x4] sm:$0xf]
      %v2821 = vld [vmem:[%s2818 + $0x8] sm:$0xf]
      %v2822 = vld [vmem:[%s2818 + $0xc] sm:$0xf]
      %v2823 = vld [vmem:[%s2818 + $0x10] sm:$0xf]
      %v2824 = vld [vmem:[%s2818 + $0x14] sm:$0xf]
      %v2825 = vld [vmem:[%s2818 + $0x18] sm:$0xf]
      %v2826 = vld [vmem:[%s2818 + $0x1c] sm:$0xf]
      %v2827 = vld [vmem:[%s2818 + $0x20] sm:$0xf]
      %v2828 = vld [vmem:[%s2818 + $0x24] sm:$0xf]
      %v2829 = vld [vmem:[%s2818 + $0x28] sm:$0xf]
      %v2830 = vld [vmem:[%s2818 + $0x2c] sm:$0xf]
      %v2831 = vld [vmem:[%s2818 + $0x30] sm:$0xf]
      %v2832 = vld [vmem:[%s2818 + $0x34] sm:$0xf]
      %v2833 = vld [vmem:[%s2818 + $0x38] sm:$0xf]
      %v2834 = vld [vmem:[%s2818 + $0x3c] sm:$0xf]
      %v2835 = vrot.slane %v2385, 2
      %v2853 = vunpack.c.l.b16 %v2819
      %v2854 = vunpack.c.l.b16 %v2820
      %v2855 = vunpack.c.l.b16 %v2821
      %v2856 = vunpack.c.l.b16 %v2822
      %v2857 = vunpack.c.l.b16 %v2823
      %v2858 = vunpack.c.l.b16 %v2824
      %v2859 = vunpack.c.l.b16 %v2825
      %v2860 = vunpack.c.l.b16 %v2826
      %v2861 = vunpack.c.l.b16 %v2827
      %v2862 = vunpack.c.l.b16 %v2828
      %v2863 = vunpack.c.l.b16 %v2829
      %v2864 = vunpack.c.l.b16 %v2830
      %v2865 = vunpack.c.l.b16 %v2831
      %v2866 = vunpack.c.l.b16 %v2832
      %v2867 = vunpack.c.l.b16 %v2833
      %v2868 = vunpack.c.l.b16 %v2834
      %v2869 = vpack.c.b16 %v2854, %v2853
      %v2870 = vpack.c.b16 %v2856, %v2855
      %v2871 = vpack.c.b16 %v2858, %v2857
      %v2872 = vpack.c.b16 %v2860, %v2859
      %v2873 = vpack.c.b16 %v2862, %v2861
      %v2874 = vpack.c.b16 %v2864, %v2863
      %v2875 = vpack.c.b16 %v2866, %v2865
      %v2876 = vpack.c.b16 %v2868, %v2867
      %2885 = vmatprep.subr.bf16.mxu0 0
      %2886 = vmatpush1.bf16.msra.mxu0 %v2869
      %2887 = vmatprep.subr.bf16.mxu0 0
      %2888 = vmatpush1.bf16.msra.mxu0 %v2870
      %2889 = vmatprep.subr.bf16.mxu0 0
      %2890 = vmatpush1.bf16.msra.mxu0 %v2871
      %2891 = vmatprep.subr.bf16.mxu0 0
      %2892 = vmatpush1.bf16.msra.mxu0 %v2872
      %2893 = vmatprep.subr.bf16.mxu0 0
      %2894 = vmatpush1.bf16.msra.mxu0 %v2873
      %2895 = vmatprep.subr.bf16.mxu0 0
      %2896 = vmatpush1.bf16.msra.mxu0 %v2874
      %2897 = vmatprep.subr.bf16.mxu0 0
      %2898 = vmatpush1.bf16.msra.mxu0 %v2875
      %2899 = vmatprep.subr.bf16.mxu0 0
      %2900 = vmatpush1.bf16.msra.mxu0 %v2876
      %2901 = vmatprep.subr.bf16.mxu0 0
      %2902 = vmatpush1.bf16.msra.mxu0 0
      %2903 = vmatprep.subr.bf16.mxu0 0
      %2904 = vmatpush1.bf16.msra.mxu0 0
      %2905 = vmatprep.subr.bf16.mxu0 0
      %2906 = vmatpush1.bf16.msra.mxu0 0
      %2907 = vmatprep.subr.bf16.mxu0 0
      %2908 = vmatpush1.bf16.msra.mxu0 0
      %2909 = vmatprep.subr.bf16.mxu0 0
      %2910 = vmatpush1.bf16.msra.mxu0 0
      %2911 = vmatprep.subr.bf16.mxu0 0
      %2912 = vmatpush1.bf16.msra.mxu0 0
      %2913 = vmatprep.subr.bf16.mxu0 0
      %2914 = vmatpush1.bf16.msra.mxu0 0
      %2915 = vmatprep.subr.bf16.mxu0 0
      %2916 = vmatpush1.bf16.msra.mxu0 0
      %2917 = vmatprep.mubr.bf16.mxu0 0
      %2918 = vmatmul.mubr.bf16.gmra.mrb[0].mxu0 %v2835
      %v2919 = vpop.f32.mrb[0].mxu0
      %v2920 = vadd.f32 0.0, %v2919
      %v2921 = vpop.f32.mrb[0].mxu0
      %v2922 = vpop.f32.mrb[0].mxu0
      %v2923 = vpop.f32.mrb[0].mxu0
      %2924 = vdwg.mxu0
      %v2925 = vadd.f32 %v2817, %v2920
      %s2926 = scalar_lea.vmem %s29, 320
      %v2927 = vld [vmem:[%s2926] sm:$0xf]
      %v2928 = vld [vmem:[%s2926 + $0x4] sm:$0xf]
      %v2929 = vld [vmem:[%s2926 + $0x8] sm:$0xf]
      %v2930 = vld [vmem:[%s2926 + $0xc] sm:$0xf]
      %v2931 = vld [vmem:[%s2926 + $0x10] sm:$0xf]
      %v2932 = vld [vmem:[%s2926 + $0x14] sm:$0xf]
      %v2933 = vld [vmem:[%s2926 + $0x18] sm:$0xf]
      %v2934 = vld [vmem:[%s2926 + $0x1c] sm:$0xf]
      %v2935 = vld [vmem:[%s2926 + $0x20] sm:$0xf]
      %v2936 = vld [vmem:[%s2926 + $0x24] sm:$0xf]
      %v2937 = vld [vmem:[%s2926 + $0x28] sm:$0xf]
      %v2938 = vld [vmem:[%s2926 + $0x2c] sm:$0xf]
      %v2939 = vld [vmem:[%s2926 + $0x30] sm:$0xf]
      %v2940 = vld [vmem:[%s2926 + $0x34] sm:$0xf]
      %v2941 = vld [vmem:[%s2926 + $0x38] sm:$0xf]
      %v2942 = vld [vmem:[%s2926 + $0x3c] sm:$0xf]
      %v2943 = vrot.slane %v2509, 2
      %v2961 = vunpack.c.l.b16 %v2927
      %v2962 = vunpack.c.l.b16 %v2928
      %v2963 = vunpack.c.l.b16 %v2929
      %v2964 = vunpack.c.l.b16 %v2930
      %v2965 = vunpack.c.l.b16 %v2931
      %v2966 = vunpack.c.l.b16 %v2932
      %v2967 = vunpack.c.l.b16 %v2933
      %v2968 = vunpack.c.l.b16 %v2934
      %v2969 = vunpack.c.l.b16 %v2935
      %v2970 = vunpack.c.l.b16 %v2936
      %v2971 = vunpack.c.l.b16 %v2937
      %v2972 = vunpack.c.l.b16 %v2938
      %v2973 = vunpack.c.l.b16 %v2939
      %v2974 = vunpack.c.l.b16 %v2940
      %v2975 = vunpack.c.l.b16 %v2941
      %v2976 = vunpack.c.l.b16 %v2942
      %v2977 = vpack.c.b16 %v2962, %v2961
      %v2978 = vpack.c.b16 %v2964, %v2963
      %v2979 = vpack.c.b16 %v2966, %v2965
      %v2980 = vpack.c.b16 %v2968, %v2967
      %v2981 = vpack.c.b16 %v2970, %v2969
      %v2982 = vpack.c.b16 %v2972, %v2971
      %v2983 = vpack.c.b16 %v2974, %v2973
      %v2984 = vpack.c.b16 %v2976, %v2975
      %2993 = vmatprep.subr.bf16.mxu0 0
      %2994 = vmatpush1.bf16.msra.mxu0 %v2977
      %2995 = vmatprep.subr.bf16.mxu0 0
      %2996 = vmatpush1.bf16.msra.mxu0 %v2978
      %2997 = vmatprep.subr.bf16.mxu0 0
      %2998 = vmatpush1.bf16.msra.mxu0 %v2979
      %2999 = vmatprep.subr.bf16.mxu0 0
      %3000 = vmatpush1.bf16.msra.mxu0 %v2980
      %3001 = vmatprep.subr.bf16.mxu0 0
      %3002 = vmatpush1.bf16.msra.mxu0 %v2981
      %3003 = vmatprep.subr.bf16.mxu0 0
      %3004 = vmatpush1.bf16.msra.mxu0 %v2982
      %3005 = vmatprep.subr.bf16.mxu0 0
      %3006 = vmatpush1.bf16.msra.mxu0 %v2983
      %3007 = vmatprep.subr.bf16.mxu0 0
      %3008 = vmatpush1.bf16.msra.mxu0 %v2984
      %3009 = vmatprep.subr.bf16.mxu0 0
      %3010 = vmatpush1.bf16.msra.mxu0 0
      %3011 = vmatprep.subr.bf16.mxu0 0
      %3012 = vmatpush1.bf16.msra.mxu0 0
      %3013 = vmatprep.subr.bf16.mxu0 0
      %3014 = vmatpush1.bf16.msra.mxu0 0
      %3015 = vmatprep.subr.bf16.mxu0 0
      %3016 = vmatpush1.bf16.msra.mxu0 0
      %3017 = vmatprep.subr.bf16.mxu0 0
      %3018 = vmatpush1.bf16.msra.mxu0 0
      %3019 = vmatprep.subr.bf16.mxu0 0
      %3020 = vmatpush1.bf16.msra.mxu0 0
      %3021 = vmatprep.subr.bf16.mxu0 0
      %3022 = vmatpush1.bf16.msra.mxu0 0
      %3023 = vmatprep.subr.bf16.mxu0 0
      %3024 = vmatpush1.bf16.msra.mxu0 0
      %3025 = vmatprep.mubr.bf16.mxu0 0
      %3026 = vmatmul.mubr.bf16.gmra.mrb[0].mxu0 %v2943
      %v3027 = vpop.f32.mrb[0].mxu0
      %v3028 = vadd.f32 0.0, %v3027
      %v3029 = vpop.f32.mrb[0].mxu0
      %v3030 = vpop.f32.mrb[0].mxu0
      %v3031 = vpop.f32.mrb[0].mxu0
      %3032 = vdwg.mxu0
      %v3033 = vadd.f32 %v2925, %v3028
      %s3034 = scalar_lea.vmem %s29, 384
      %v3035 = vld [vmem:[%s3034] sm:$0xf]
      %v3036 = vld [vmem:[%s3034 + $0x4] sm:$0xf]
      %v3037 = vld [vmem:[%s3034 + $0x8] sm:$0xf]
      %v3038 = vld [vmem:[%s3034 + $0xc] sm:$0xf]
      %v3039 = vld [vmem:[%s3034 + $0x10] sm:$0xf]
      %v3040 = vld [vmem:[%s3034 + $0x14] sm:$0xf]
      %v3041 = vld [vmem:[%s3034 + $0x18] sm:$0xf]
      %v3042 = vld [vmem:[%s3034 + $0x1c] sm:$0xf]
      %v3043 = vld [vmem:[%s3034 + $0x20] sm:$0xf]
      %v3044 = vld [vmem:[%s3034 + $0x24] sm:$0xf]
      %v3045 = vld [vmem:[%s3034 + $0x28] sm:$0xf]
      %v3046 = vld [vmem:[%s3034 + $0x2c] sm:$0xf]
      %v3047 = vld [vmem:[%s3034 + $0x30] sm:$0xf]
      %v3048 = vld [vmem:[%s3034 + $0x34] sm:$0xf]
      %v3049 = vld [vmem:[%s3034 + $0x38] sm:$0xf]
      %v3050 = vld [vmem:[%s3034 + $0x3c] sm:$0xf]
      %v3051 = vrot.slane %v2385, 3
      %v3069 = vunpack.c.l.b16 %v3035
      %v3070 = vunpack.c.l.b16 %v3036
      %v3071 = vunpack.c.l.b16 %v3037
      %v3072 = vunpack.c.l.b16 %v3038
      %v3073 = vunpack.c.l.b16 %v3039
      %v3074 = vunpack.c.l.b16 %v3040
      %v3075 = vunpack.c.l.b16 %v3041
      %v3076 = vunpack.c.l.b16 %v3042
      %v3077 = vunpack.c.l.b16 %v3043
      %v3078 = vunpack.c.l.b16 %v3044
      %v3079 = vunpack.c.l.b16 %v3045
      %v3080 = vunpack.c.l.b16 %v3046
      %v3081 = vunpack.c.l.b16 %v3047
      %v3082 = vunpack.c.l.b16 %v3048
      %v3083 = vunpack.c.l.b16 %v3049
      %v3084 = vunpack.c.l.b16 %v3050
      %v3085 = vpack.c.b16 %v3070, %v3069
      %v3086 = vpack.c.b16 %v3072, %v3071
      %v3087 = vpack.c.b16 %v3074, %v3073
      %v3088 = vpack.c.b16 %v3076, %v3075
      %v3089 = vpack.c.b16 %v3078, %v3077
      %v3090 = vpack.c.b16 %v3080, %v3079
      %v3091 = vpack.c.b16 %v3082, %v3081
      %v3092 = vpack.c.b16 %v3084, %v3083
      %3101 = vmatprep.subr.bf16.mxu0 0
      %3102 = vmatpush1.bf16.msra.mxu0 %v3085
      %3103 = vmatprep.subr.bf16.mxu0 0
      %3104 = vmatpush1.bf16.msra.mxu0 %v3086
      %3105 = vmatprep.subr.bf16.mxu0 0
      %3106 = vmatpush1.bf16.msra.mxu0 %v3087
      %3107 = vmatprep.subr.bf16.mxu0 0
      %3108 = vmatpush1.bf16.msra.mxu0 %v3088
      %3109 = vmatprep.subr.bf16.mxu0 0
      %3110 = vmatpush1.bf16.msra.mxu0 %v3089
      %3111 = vmatprep.subr.bf16.mxu0 0
      %3112 = vmatpush1.bf16.msra.mxu0 %v3090
      %3113 = vmatprep.subr.bf16.mxu0 0
      %3114 = vmatpush1.bf16.msra.mxu0 %v3091
      %3115 = vmatprep.subr.bf16.mxu0 0
      %3116 = vmatpush1.bf16.msra.mxu0 %v3092
      %3117 = vmatprep.subr.bf16.mxu0 0
      %3118 = vmatpush1.bf16.msra.mxu0 0
      %3119 = vmatprep.subr.bf16.mxu0 0
      %3120 = vmatpush1.bf16.msra.mxu0 0
      %3121 = vmatprep.subr.bf16.mxu0 0
      %3122 = vmatpush1.bf16.msra.mxu0 0
      %3123 = vmatprep.subr.bf16.mxu0 0
      %3124 = vmatpush1.bf16.msra.mxu0 0
      %3125 = vmatprep.subr.bf16.mxu0 0
      %3126 = vmatpush1.bf16.msra.mxu0 0
      %3127 = vmatprep.subr.bf16.mxu0 0
      %3128 = vmatpush1.bf16.msra.mxu0 0
      %3129 = vmatprep.subr.bf16.mxu0 0
      %3130 = vmatpush1.bf16.msra.mxu0 0
      %3131 = vmatprep.subr.bf16.mxu0 0
      %3132 = vmatpush1.bf16.msra.mxu0 0
      %3133 = vmatprep.mubr.bf16.mxu0 0
      %3134 = vmatmul.mubr.bf16.gmra.mrb[0].mxu0 %v3051
      %v3135 = vpop.f32.mrb[0].mxu0
      %v3136 = vadd.f32 0.0, %v3135
      %v3137 = vpop.f32.mrb[0].mxu0
      %v3138 = vpop.f32.mrb[0].mxu0
      %v3139 = vpop.f32.mrb[0].mxu0
      %3140 = vdwg.mxu0
      %v3141 = vadd.f32 %v3033, %v3136
      %s3142 = scalar_lea.vmem %s29, 448
      %v3143 = vld [vmem:[%s3142] sm:$0xf]
      %v3144 = vld [vmem:[%s3142 + $0x4] sm:$0xf]
      %v3145 = vld [vmem:[%s3142 + $0x8] sm:$0xf]
      %v3146 = vld [vmem:[%s3142 + $0xc] sm:$0xf]
      %v3147 = vld [vmem:[%s3142 + $0x10] sm:$0xf]
      %v3148 = vld [vmem:[%s3142 + $0x14] sm:$0xf]
      %v3149 = vld [vmem:[%s3142 + $0x18] sm:$0xf]
      %v3150 = vld [vmem:[%s3142 + $0x1c] sm:$0xf]
      %v3151 = vld [vmem:[%s3142 + $0x20] sm:$0xf]
      %v3152 = vld [vmem:[%s3142 + $0x24] sm:$0xf]
      %v3153 = vld [vmem:[%s3142 + $0x28] sm:$0xf]
      %v3154 = vld [vmem:[%s3142 + $0x2c] sm:$0xf]
      %v3155 = vld [vmem:[%s3142 + $0x30] sm:$0xf]
      %v3156 = vld [vmem:[%s3142 + $0x34] sm:$0xf]
      %v3157 = vld [vmem:[%s3142 + $0x38] sm:$0xf]
      %v3158 = vld [vmem:[%s3142 + $0x3c] sm:$0xf]
      %v3159 = vrot.slane %v2509, 3
      %v3177 = vunpack.c.l.b16 %v3143
      %v3178 = vunpack.c.l.b16 %v3144
      %v3179 = vunpack.c.l.b16 %v3145
      %v3180 = vunpack.c.l.b16 %v3146
      %v3181 = vunpack.c.l.b16 %v3147
      %v3182 = vunpack.c.l.b16 %v3148
      %v3183 = vunpack.c.l.b16 %v3149
      %v3184 = vunpack.c.l.b16 %v3150
      %v3185 = vunpack.c.l.b16 %v3151
      %v3186 = vunpack.c.l.b16 %v3152
      %v3187 = vunpack.c.l.b16 %v3153
      %v3188 = vunpack.c.l.b16 %v3154
      %v3189 = vunpack.c.l.b16 %v3155
      %v3190 = vunpack.c.l.b16 %v3156
      %v3191 = vunpack.c.l.b16 %v3157
      %v3192 = vunpack.c.l.b16 %v3158
      %v3193 = vpack.c.b16 %v3178, %v3177
      %v3194 = vpack.c.b16 %v3180, %v3179
      %v3195 = vpack.c.b16 %v3182, %v3181
      %v3196 = vpack.c.b16 %v3184, %v3183
      %v3197 = vpack.c.b16 %v3186, %v3185
      %v3198 = vpack.c.b16 %v3188, %v3187
      %v3199 = vpack.c.b16 %v3190, %v3189
      %v3200 = vpack.c.b16 %v3192, %v3191
      %3209 = vmatprep.subr.bf16.mxu0 0
      %3210 = vmatpush1.bf16.msra.mxu0 %v3193
      %3211 = vmatprep.subr.bf16.mxu0 0
      %3212 = vmatpush1.bf16.msra.mxu0 %v3194
      %3213 = vmatprep.subr.bf16.mxu0 0
      %3214 = vmatpush1.bf16.msra.mxu0 %v3195
      %3215 = vmatprep.subr.bf16.mxu0 0
      %3216 = vmatpush1.bf16.msra.mxu0 %v3196
      %3217 = vmatprep.subr.bf16.mxu0 0
      %3218 = vmatpush1.bf16.msra.mxu0 %v3197
      %3219 = vmatprep.subr.bf16.mxu0 0
      %3220 = vmatpush1.bf16.msra.mxu0 %v3198
      %3221 = vmatprep.subr.bf16.mxu0 0
      %3222 = vmatpush1.bf16.msra.mxu0 %v3199
      %3223 = vmatprep.subr.bf16.mxu0 0
      %3224 = vmatpush1.bf16.msra.mxu0 %v3200
      %3225 = vmatprep.subr.bf16.mxu0 0
      %3226 = vmatpush1.bf16.msra.mxu0 0
      %3227 = vmatprep.subr.bf16.mxu0 0
      %3228 = vmatpush1.bf16.msra.mxu0 0
      %3229 = vmatprep.subr.bf16.mxu0 0
      %3230 = vmatpush1.bf16.msra.mxu0 0
      %3231 = vmatprep.subr.bf16.mxu0 0
      %3232 = vmatpush1.bf16.msra.mxu0 0
      %3233 = vmatprep.subr.bf16.mxu0 0
      %3234 = vmatpush1.bf16.msra.mxu0 0
      %3235 = vmatprep.subr.bf16.mxu0 0
      %3236 = vmatpush1.bf16.msra.mxu0 0
      %3237 = vmatprep.subr.bf16.mxu0 0
      %3238 = vmatpush1.bf16.msra.mxu0 0
      %3239 = vmatprep.subr.bf16.mxu0 0
      %3240 = vmatpush1.bf16.msra.mxu0 0
      %3241 = vmatprep.mubr.bf16.mxu0 0
      %3242 = vmatmul.mubr.bf16.gmra.mrb[0].mxu0 %v3159
      %v3243 = vpop.f32.mrb[0].mxu0
      %v3244 = vadd.f32 0.0, %v3243
      %v3245 = vpop.f32.mrb[0].mxu0
      %v3246 = vpop.f32.mrb[0].mxu0
      %v3247 = vpop.f32.mrb[0].mxu0
      %3248 = vdwg.mxu0
      %v3249 = vadd.f32 %v3141, %v3244
      %v3250 = vpack.c.bf16 %v2254, %v2254
      %s3251 = scalar_lea.vmem %s29, 512
      %v3252 = vld [vmem:[%s3251] sm:$0xf]
      %v3253 = vld [vmem:[%s3251 + $0x4] sm:$0xf]
      %v3254 = vld [vmem:[%s3251 + $0x8] sm:$0xf]
      %v3255 = vld [vmem:[%s3251 + $0xc] sm:$0xf]
      %v3256 = vld [vmem:[%s3251 + $0x10] sm:$0xf]
      %v3257 = vld [vmem:[%s3251 + $0x14] sm:$0xf]
      %v3258 = vld [vmem:[%s3251 + $0x18] sm:$0xf]
      %v3259 = vld [vmem:[%s3251 + $0x1c] sm:$0xf]
      %v3260 = vld [vmem:[%s3251 + $0x20] sm:$0xf]
      %v3261 = vld [vmem:[%s3251 + $0x24] sm:$0xf]
      %v3262 = vld [vmem:[%s3251 + $0x28] sm:$0xf]
      %v3263 = vld [vmem:[%s3251 + $0x2c] sm:$0xf]
      %v3264 = vld [vmem:[%s3251 + $0x30] sm:$0xf]
      %v3265 = vld [vmem:[%s3251 + $0x34] sm:$0xf]
      %v3266 = vld [vmem:[%s3251 + $0x38] sm:$0xf]
      %v3267 = vld [vmem:[%s3251 + $0x3c] sm:$0xf]
      %v3284 = vunpack.c.l.b16 %v3252
      %v3285 = vunpack.c.l.b16 %v3253
      %v3286 = vunpack.c.l.b16 %v3254
      %v3287 = vunpack.c.l.b16 %v3255
      %v3288 = vunpack.c.l.b16 %v3256
      %v3289 = vunpack.c.l.b16 %v3257
      %v3290 = vunpack.c.l.b16 %v3258
      %v3291 = vunpack.c.l.b16 %v3259
      %v3292 = vunpack.c.l.b16 %v3260
      %v3293 = vunpack.c.l.b16 %v3261
      %v3294 = vunpack.c.l.b16 %v3262
      %v3295 = vunpack.c.l.b16 %v3263
      %v3296 = vunpack.c.l.b16 %v3264
      %v3297 = vunpack.c.l.b16 %v3265
      %v3298 = vunpack.c.l.b16 %v3266
      %v3299 = vunpack.c.l.b16 %v3267
      %v3300 = vpack.c.b16 %v3285, %v3284
      %v3301 = vpack.c.b16 %v3287, %v3286
      %v3302 = vpack.c.b16 %v3289, %v3288
      %v3303 = vpack.c.b16 %v3291, %v3290
      %v3304 = vpack.c.b16 %v3293, %v3292
      %v3305 = vpack.c.b16 %v3295, %v3294
      %v3306 = vpack.c.b16 %v3297, %v3296
      %v3307 = vpack.c.b16 %v3299, %v3298
      %3316 = vmatprep.subr.bf16.mxu0 0
      %3317 = vmatpush1.bf16.msra.mxu0 %v3300
      %3318 = vmatprep.subr.bf16.mxu0 0
      %3319 = vmatpush1.bf16.msra.mxu0 %v3301
      %3320 = vmatprep.subr.bf16.mxu0 0
      %3321 = vmatpush1.bf16.msra.mxu0 %v3302
      %3322 = vmatprep.subr.bf16.mxu0 0
      %3323 = vmatpush1.bf16.msra.mxu0 %v3303
      %3324 = vmatprep.subr.bf16.mxu0 0
      %3325 = vmatpush1.bf16.msra.mxu0 %v3304
      %3326 = vmatprep.subr.bf16.mxu0 0
      %3327 = vmatpush1.bf16.msra.mxu0 %v3305
      %3328 = vmatprep.subr.bf16.mxu0 0
      %3329 = vmatpush1.bf16.msra.mxu0 %v3306
      %3330 = vmatprep.subr.bf16.mxu0 0
      %3331 = vmatpush1.bf16.msra.mxu0 %v3307
      %3332 = vmatprep.subr.bf16.mxu0 0
      %3333 = vmatpush1.bf16.msra.mxu0 0
      %3334 = vmatprep.subr.bf16.mxu0 0
      %3335 = vmatpush1.bf16.msra.mxu0 0
      %3336 = vmatprep.subr.bf16.mxu0 0
      %3337 = vmatpush1.bf16.msra.mxu0 0
      %3338 = vmatprep.subr.bf16.mxu0 0
      %3339 = vmatpush1.bf16.msra.mxu0 0
      %3340 = vmatprep.subr.bf16.mxu0 0
      %3341 = vmatpush1.bf16.msra.mxu0 0
      %3342 = vmatprep.subr.bf16.mxu0 0
      %3343 = vmatpush1.bf16.msra.mxu0 0
      %3344 = vmatprep.subr.bf16.mxu0 0
      %3345 = vmatpush1.bf16.msra.mxu0 0
      %3346 = vmatprep.subr.bf16.mxu0 0
      %3347 = vmatpush1.bf16.msra.mxu0 0
      %3348 = vmatprep.mubr.bf16.mxu0 0
      %3349 = vmatmul.mubr.bf16.gmra.mrb[0].mxu0 %v3250
      %v3350 = vpop.f32.mrb[0].mxu0
      %v3351 = vadd.f32 0.0, %v3350
      %v3352 = vpop.f32.mrb[0].mxu0
      %v3353 = vpop.f32.mrb[0].mxu0
      %v3354 = vpop.f32.mrb[0].mxu0
      %3355 = vdwg.mxu0
      %v3356 = vadd.f32 %v3249, %v3351
      %s3357 = scalar_lea.vmem %s29, 576
      %v3358 = vld [vmem:[%s3357] sm:$0xf]
      %v3359 = vld [vmem:[%s3357 + $0x4] sm:$0xf]
      %v3360 = vld [vmem:[%s3357 + $0x8] sm:$0xf]
      %v3361 = vld [vmem:[%s3357 + $0xc] sm:$0xf]
      %v3362 = vld [vmem:[%s3357 + $0x10] sm:$0xf]
      %v3363 = vld [vmem:[%s3357 + $0x14] sm:$0xf]
      %v3364 = vld [vmem:[%s3357 + $0x18] sm:$0xf]
      %v3365 = vld [vmem:[%s3357 + $0x1c] sm:$0xf]
      %v3366 = vld [vmem:[%s3357 + $0x20] sm:$0xf]
      %v3367 = vld [vmem:[%s3357 + $0x24] sm:$0xf]
      %v3368 = vld [vmem:[%s3357 + $0x28] sm:$0xf]
      %v3369 = vld [vmem:[%s3357 + $0x2c] sm:$0xf]
      %v3370 = vld [vmem:[%s3357 + $0x30] sm:$0xf]
      %v3371 = vld [vmem:[%s3357 + $0x34] sm:$0xf]
      %v3372 = vld [vmem:[%s3357 + $0x38] sm:$0xf]
      %v3373 = vld [vmem:[%s3357 + $0x3c] sm:$0xf]
      %v3375 = vshrl.u32 %v3250, 16
      %v3394 = vunpack.c.l.b16 %v3358
      %v3395 = vunpack.c.l.b16 %v3359
      %v3396 = vunpack.c.l.b16 %v3360
      %v3397 = vunpack.c.l.b16 %v3361
      %v3398 = vunpack.c.l.b16 %v3362
      %v3399 = vunpack.c.l.b16 %v3363
      %v3400 = vunpack.c.l.b16 %v3364
      %v3401 = vunpack.c.l.b16 %v3365
      %v3402 = vunpack.c.l.b16 %v3366
      %v3403 = vunpack.c.l.b16 %v3367
      %v3404 = vunpack.c.l.b16 %v3368
      %v3405 = vunpack.c.l.b16 %v3369
      %v3406 = vunpack.c.l.b16 %v3370
      %v3407 = vunpack.c.l.b16 %v3371
      %v3408 = vunpack.c.l.b16 %v3372
      %v3409 = vunpack.c.l.b16 %v3373
      %v3410 = vpack.c.b16 %v3395, %v3394
      %v3411 = vpack.c.b16 %v3397, %v3396
      %v3412 = vpack.c.b16 %v3399, %v3398
      %v3413 = vpack.c.b16 %v3401, %v3400
      %v3414 = vpack.c.b16 %v3403, %v3402
      %v3415 = vpack.c.b16 %v3405, %v3404
      %v3416 = vpack.c.b16 %v3407, %v3406
      %v3417 = vpack.c.b16 %v3409, %v3408
      %3426 = vmatprep.subr.bf16.mxu0 0
      %3427 = vmatpush1.bf16.msra.mxu0 %v3410
      %3428 = vmatprep.subr.bf16.mxu0 0
      %3429 = vmatpush1.bf16.msra.mxu0 %v3411
      %3430 = vmatprep.subr.bf16.mxu0 0
      %3431 = vmatpush1.bf16.msra.mxu0 %v3412
      %3432 = vmatprep.subr.bf16.mxu0 0
      %3433 = vmatpush1.bf16.msra.mxu0 %v3413
      %3434 = vmatprep.subr.bf16.mxu0 0
      %3435 = vmatpush1.bf16.msra.mxu0 %v3414
      %3436 = vmatprep.subr.bf16.mxu0 0
      %3437 = vmatpush1.bf16.msra.mxu0 %v3415
      %3438 = vmatprep.subr.bf16.mxu0 0
      %3439 = vmatpush1.bf16.msra.mxu0 %v3416
      %3440 = vmatprep.subr.bf16.mxu0 0
      %3441 = vmatpush1.bf16.msra.mxu0 %v3417
      %3442 = vmatprep.subr.bf16.mxu0 0
      %3443 = vmatpush1.bf16.msra.mxu0 0
      %3444 = vmatprep.subr.bf16.mxu0 0
      %3445 = vmatpush1.bf16.msra.mxu0 0
      %3446 = vmatprep.subr.bf16.mxu0 0
      %3447 = vmatpush1.bf16.msra.mxu0 0
      %3448 = vmatprep.subr.bf16.mxu0 0
      %3449 = vmatpush1.bf16.msra.mxu0 0
      %3450 = vmatprep.subr.bf16.mxu0 0
      %3451 = vmatpush1.bf16.msra.mxu0 0
      %3452 = vmatprep.subr.bf16.mxu0 0
      %3453 = vmatpush1.bf16.msra.mxu0 0
      %3454 = vmatprep.subr.bf16.mxu0 0
      %3455 = vmatpush1.bf16.msra.mxu0 0
      %3456 = vmatprep.subr.bf16.mxu0 0
      %3457 = vmatpush1.bf16.msra.mxu0 0
      %3458 = vmatprep.mubr.bf16.mxu0 0
      %3459 = vmatmul.mubr.bf16.gmra.mrb[0].mxu0 %v3375
      %v3460 = vpop.f32.mrb[0].mxu0
      %v3461 = vadd.f32 0.0, %v3460
      %v3462 = vpop.f32.mrb[0].mxu0
      %v3463 = vpop.f32.mrb[0].mxu0
      %v3464 = vpop.f32.mrb[0].mxu0
      %3465 = vdwg.mxu0
      %v3466 = vadd.f32 %v3356, %v3461
      %s3467 = scalar_lea.vmem %s29, 640
      %v3468 = vld [vmem:[%s3467] sm:$0xf]
      %v3469 = vld [vmem:[%s3467 + $0x4] sm:$0xf]
      %v3470 = vld [vmem:[%s3467 + $0x8] sm:$0xf]
      %v3471 = vld [vmem:[%s3467 + $0xc] sm:$0xf]
      %v3472 = vld [vmem:[%s3467 + $0x10] sm:$0xf]
      %v3473 = vld [vmem:[%s3467 + $0x14] sm:$0xf]
      %v3474 = vld [vmem:[%s3467 + $0x18] sm:$0xf]
      %v3475 = vld [vmem:[%s3467 + $0x1c] sm:$0xf]
      %v3476 = vld [vmem:[%s3467 + $0x20] sm:$0xf]
      %v3477 = vld [vmem:[%s3467 + $0x24] sm:$0xf]
      %v3478 = vld [vmem:[%s3467 + $0x28] sm:$0xf]
      %v3479 = vld [vmem:[%s3467 + $0x2c] sm:$0xf]
      %v3480 = vld [vmem:[%s3467 + $0x30] sm:$0xf]
      %v3481 = vld [vmem:[%s3467 + $0x34] sm:$0xf]
      %v3482 = vld [vmem:[%s3467 + $0x38] sm:$0xf]
      %v3483 = vld [vmem:[%s3467 + $0x3c] sm:$0xf]
      %v3485 = vrot.slane %v3250, 1
      %v3503 = vunpack.c.l.b16 %v3468
      %v3504 = vunpack.c.l.b16 %v3469
      %v3505 = vunpack.c.l.b16 %v3470
      %v3506 = vunpack.c.l.b16 %v3471
      %v3507 = vunpack.c.l.b16 %v3472
      %v3508 = vunpack.c.l.b16 %v3473
      %v3509 = vunpack.c.l.b16 %v3474
      %v3510 = vunpack.c.l.b16 %v3475
      %v3511 = vunpack.c.l.b16 %v3476
      %v3512 = vunpack.c.l.b16 %v3477
      %v3513 = vunpack.c.l.b16 %v3478
      %v3514 = vunpack.c.l.b16 %v3479
      %v3515 = vunpack.c.l.b16 %v3480
      %v3516 = vunpack.c.l.b16 %v3481
      %v3517 = vunpack.c.l.b16 %v3482
      %v3518 = vunpack.c.l.b16 %v3483
      %v3519 = vpack.c.b16 %v3504, %v3503
      %v3520 = vpack.c.b16 %v3506, %v3505
      %v3521 = vpack.c.b16 %v3508, %v3507
      %v3522 = vpack.c.b16 %v3510, %v3509
      %v3523 = vpack.c.b16 %v3512, %v3511
      %v3524 = vpack.c.b16 %v3514, %v3513
      %v3525 = vpack.c.b16 %v3516, %v3515
      %v3526 = vpack.c.b16 %v3518, %v3517
      %3535 = vmatprep.subr.bf16.mxu0 0
      %3536 = vmatpush1.bf16.msra.mxu0 %v3519
      %3537 = vmatprep.subr.bf16.mxu0 0
      %3538 = vmatpush1.bf16.msra.mxu0 %v3520
      %3539 = vmatprep.subr.bf16.mxu0 0
      %3540 = vmatpush1.bf16.msra.mxu0 %v3521
      %3541 = vmatprep.subr.bf16.mxu0 0
      %3542 = vmatpush1.bf16.msra.mxu0 %v3522
      %3543 = vmatprep.subr.bf16.mxu0 0
      %3544 = vmatpush1.bf16.msra.mxu0 %v3523
      %3545 = vmatprep.subr.bf16.mxu0 0
      %3546 = vmatpush1.bf16.msra.mxu0 %v3524
      %3547 = vmatprep.subr.bf16.mxu0 0
      %3548 = vmatpush1.bf16.msra.mxu0 %v3525
      %3549 = vmatprep.subr.bf16.mxu0 0
      %3550 = vmatpush1.bf16.msra.mxu0 %v3526
      %3551 = vmatprep.subr.bf16.mxu0 0
      %3552 = vmatpush1.bf16.msra.mxu0 0
      %3553 = vmatprep.subr.bf16.mxu0 0
      %3554 = vmatpush1.bf16.msra.mxu0 0
      %3555 = vmatprep.subr.bf16.mxu0 0
      %3556 = vmatpush1.bf16.msra.mxu0 0
      %3557 = vmatprep.subr.bf16.mxu0 0
      %3558 = vmatpush1.bf16.msra.mxu0 0
      %3559 = vmatprep.subr.bf16.mxu0 0
      %3560 = vmatpush1.bf16.msra.mxu0 0
      %3561 = vmatprep.subr.bf16.mxu0 0
      %3562 = vmatpush1.bf16.msra.mxu0 0
      %3563 = vmatprep.subr.bf16.mxu0 0
      %3564 = vmatpush1.bf16.msra.mxu0 0
      %3565 = vmatprep.subr.bf16.mxu0 0
      %3566 = vmatpush1.bf16.msra.mxu0 0
      %3567 = vmatprep.mubr.bf16.mxu0 0
      %3568 = vmatmul.mubr.bf16.gmra.mrb[0].mxu0 %v3485
      %v3569 = vpop.f32.mrb[0].mxu0
      %v3570 = vadd.f32 0.0, %v3569
      %v3571 = vpop.f32.mrb[0].mxu0
      %v3572 = vpop.f32.mrb[0].mxu0
      %v3573 = vpop.f32.mrb[0].mxu0
      %3574 = vdwg.mxu0
      %v3575 = vadd.f32 %v3466, %v3570
      %s3576 = scalar_lea.vmem %s29, 704
      %v3577 = vld [vmem:[%s3576] sm:$0xf]
      %v3578 = vld [vmem:[%s3576 + $0x4] sm:$0xf]
      %v3579 = vld [vmem:[%s3576 + $0x8] sm:$0xf]
      %v3580 = vld [vmem:[%s3576 + $0xc] sm:$0xf]
      %v3581 = vld [vmem:[%s3576 + $0x10] sm:$0xf]
      %v3582 = vld [vmem:[%s3576 + $0x14] sm:$0xf]
      %v3583 = vld [vmem:[%s3576 + $0x18] sm:$0xf]
      %v3584 = vld [vmem:[%s3576 + $0x1c] sm:$0xf]
      %v3585 = vld [vmem:[%s3576 + $0x20] sm:$0xf]
      %v3586 = vld [vmem:[%s3576 + $0x24] sm:$0xf]
      %v3587 = vld [vmem:[%s3576 + $0x28] sm:$0xf]
      %v3588 = vld [vmem:[%s3576 + $0x2c] sm:$0xf]
      %v3589 = vld [vmem:[%s3576 + $0x30] sm:$0xf]
      %v3590 = vld [vmem:[%s3576 + $0x34] sm:$0xf]
      %v3591 = vld [vmem:[%s3576 + $0x38] sm:$0xf]
      %v3592 = vld [vmem:[%s3576 + $0x3c] sm:$0xf]
      %v3593 = vrot.slane %v3375, 1
      %v3611 = vunpack.c.l.b16 %v3577
      %v3612 = vunpack.c.l.b16 %v3578
      %v3613 = vunpack.c.l.b16 %v3579
      %v3614 = vunpack.c.l.b16 %v3580
      %v3615 = vunpack.c.l.b16 %v3581
      %v3616 = vunpack.c.l.b16 %v3582
      %v3617 = vunpack.c.l.b16 %v3583
      %v3618 = vunpack.c.l.b16 %v3584
      %v3619 = vunpack.c.l.b16 %v3585
      %v3620 = vunpack.c.l.b16 %v3586
      %v3621 = vunpack.c.l.b16 %v3587
      %v3622 = vunpack.c.l.b16 %v3588
      %v3623 = vunpack.c.l.b16 %v3589
      %v3624 = vunpack.c.l.b16 %v3590
      %v3625 = vunpack.c.l.b16 %v3591
      %v3626 = vunpack.c.l.b16 %v3592
      %v3627 = vpack.c.b16 %v3612, %v3611
      %v3628 = vpack.c.b16 %v3614, %v3613
      %v3629 = vpack.c.b16 %v3616, %v3615
      %v3630 = vpack.c.b16 %v3618, %v3617
      %v3631 = vpack.c.b16 %v3620, %v3619
      %v3632 = vpack.c.b16 %v3622, %v3621
      %v3633 = vpack.c.b16 %v3624, %v3623
      %v3634 = vpack.c.b16 %v3626, %v3625
      %3643 = vmatprep.subr.bf16.mxu0 0
      %3644 = vmatpush1.bf16.msra.mxu0 %v3627
      %3645 = vmatprep.subr.bf16.mxu0 0
      %3646 = vmatpush1.bf16.msra.mxu0 %v3628
      %3647 = vmatprep.subr.bf16.mxu0 0
      %3648 = vmatpush1.bf16.msra.mxu0 %v3629
      %3649 = vmatprep.subr.bf16.mxu0 0
      %3650 = vmatpush1.bf16.msra.mxu0 %v3630
      %3651 = vmatprep.subr.bf16.mxu0 0
      %3652 = vmatpush1.bf16.msra.mxu0 %v3631
      %3653 = vmatprep.subr.bf16.mxu0 0
      %3654 = vmatpush1.bf16.msra.mxu0 %v3632
      %3655 = vmatprep.subr.bf16.mxu0 0
      %3656 = vmatpush1.bf16.msra.mxu0 %v3633
      %3657 = vmatprep.subr.bf16.mxu0 0
      %3658 = vmatpush1.bf16.msra.mxu0 %v3634
      %3659 = vmatprep.subr.bf16.mxu0 0
      %3660 = vmatpush1.bf16.msra.mxu0 0
      %3661 = vmatprep.subr.bf16.mxu0 0
      %3662 = vmatpush1.bf16.msra.mxu0 0
      %3663 = vmatprep.subr.bf16.mxu0 0
      %3664 = vmatpush1.bf16.msra.mxu0 0
      %3665 = vmatprep.subr.bf16.mxu0 0
      %3666 = vmatpush1.bf16.msra.mxu0 0
      %3667 = vmatprep.subr.bf16.mxu0 0
      %3668 = vmatpush1.bf16.msra.mxu0 0
      %3669 = vmatprep.subr.bf16.mxu0 0
      %3670 = vmatpush1.bf16.msra.mxu0 0
      %3671 = vmatprep.subr.bf16.mxu0 0
      %3672 = vmatpush1.bf16.msra.mxu0 0
      %3673 = vmatprep.subr.bf16.mxu0 0
      %3674 = vmatpush1.bf16.msra.mxu0 0
      %3675 = vmatprep.mubr.bf16.mxu0 0
      %3676 = vmatmul.mubr.bf16.gmra.mrb[0].mxu0 %v3593
      %v3677 = vpop.f32.mrb[0].mxu0
      %v3678 = vadd.f32 0.0, %v3677
      %v3679 = vpop.f32.mrb[0].mxu0
      %v3680 = vpop.f32.mrb[0].mxu0
      %v3681 = vpop.f32.mrb[0].mxu0
      %3682 = vdwg.mxu0
      %v3683 = vadd.f32 %v3575, %v3678
      %s3684 = scalar_lea.vmem %s29, 768
      %v3685 = vld [vmem:[%s3684] sm:$0xf]
      %v3686 = vld [vmem:[%s3684 + $0x4] sm:$0xf]
      %v3687 = vld [vmem:[%s3684 + $0x8] sm:$0xf]
      %v3688 = vld [vmem:[%s3684 + $0xc] sm:$0xf]
      %v3689 = vld [vmem:[%s3684 + $0x10] sm:$0xf]
      %v3690 = vld [vmem:[%s3684 + $0x14] sm:$0xf]
      %v3691 = vld [vmem:[%s3684 + $0x18] sm:$0xf]
      %v3692 = vld [vmem:[%s3684 + $0x1c] sm:$0xf]
      %v3693 = vld [vmem:[%s3684 + $0x20] sm:$0xf]
      %v3694 = vld [vmem:[%s3684 + $0x24] sm:$0xf]
      %v3695 = vld [vmem:[%s3684 + $0x28] sm:$0xf]
      %v3696 = vld [vmem:[%s3684 + $0x2c] sm:$0xf]
      %v3697 = vld [vmem:[%s3684 + $0x30] sm:$0xf]
      %v3698 = vld [vmem:[%s3684 + $0x34] sm:$0xf]
      %v3699 = vld [vmem:[%s3684 + $0x38] sm:$0xf]
      %v3700 = vld [vmem:[%s3684 + $0x3c] sm:$0xf]
      %v3701 = vrot.slane %v3250, 2
      %v3719 = vunpack.c.l.b16 %v3685
      %v3720 = vunpack.c.l.b16 %v3686
      %v3721 = vunpack.c.l.b16 %v3687
      %v3722 = vunpack.c.l.b16 %v3688
      %v3723 = vunpack.c.l.b16 %v3689
      %v3724 = vunpack.c.l.b16 %v3690
      %v3725 = vunpack.c.l.b16 %v3691
      %v3726 = vunpack.c.l.b16 %v3692
      %v3727 = vunpack.c.l.b16 %v3693
      %v3728 = vunpack.c.l.b16 %v3694
      %v3729 = vunpack.c.l.b16 %v3695
      %v3730 = vunpack.c.l.b16 %v3696
      %v3731 = vunpack.c.l.b16 %v3697
      %v3732 = vunpack.c.l.b16 %v3698
      %v3733 = vunpack.c.l.b16 %v3699
      %v3734 = vunpack.c.l.b16 %v3700
      %v3735 = vpack.c.b16 %v3720, %v3719
      %v3736 = vpack.c.b16 %v3722, %v3721
      %v3737 = vpack.c.b16 %v3724, %v3723
      %v3738 = vpack.c.b16 %v3726, %v3725
      %v3739 = vpack.c.b16 %v3728, %v3727
      %v3740 = vpack.c.b16 %v3730, %v3729
      %v3741 = vpack.c.b16 %v3732, %v3731
      %v3742 = vpack.c.b16 %v3734, %v3733
      %3751 = vmatprep.subr.bf16.mxu0 0
      %3752 = vmatpush1.bf16.msra.mxu0 %v3735
      %3753 = vmatprep.subr.bf16.mxu0 0
      %3754 = vmatpush1.bf16.msra.mxu0 %v3736
      %3755 = vmatprep.subr.bf16.mxu0 0
      %3756 = vmatpush1.bf16.msra.mxu0 %v3737
      %3757 = vmatprep.subr.bf16.mxu0 0
      %3758 = vmatpush1.bf16.msra.mxu0 %v3738
      %3759 = vmatprep.subr.bf16.mxu0 0
      %3760 = vmatpush1.bf16.msra.mxu0 %v3739
      %3761 = vmatprep.subr.bf16.mxu0 0
      %3762 = vmatpush1.bf16.msra.mxu0 %v3740
      %3763 = vmatprep.subr.bf16.mxu0 0
      %3764 = vmatpush1.bf16.msra.mxu0 %v3741
      %3765 = vmatprep.subr.bf16.mxu0 0
      %3766 = vmatpush1.bf16.msra.mxu0 %v3742
      %3767 = vmatprep.subr.bf16.mxu0 0
      %3768 = vmatpush1.bf16.msra.mxu0 0
      %3769 = vmatprep.subr.bf16.mxu0 0
      %3770 = vmatpush1.bf16.msra.mxu0 0
      %3771 = vmatprep.subr.bf16.mxu0 0
      %3772 = vmatpush1.bf16.msra.mxu0 0
      %3773 = vmatprep.subr.bf16.mxu0 0
      %3774 = vmatpush1.bf16.msra.mxu0 0
      %3775 = vmatprep.subr.bf16.mxu0 0
      %3776 = vmatpush1.bf16.msra.mxu0 0
      %3777 = vmatprep.subr.bf16.mxu0 0
      %3778 = vmatpush1.bf16.msra.mxu0 0
      %3779 = vmatprep.subr.bf16.mxu0 0
      %3780 = vmatpush1.bf16.msra.mxu0 0
      %3781 = vmatprep.subr.bf16.mxu0 0
      %3782 = vmatpush1.bf16.msra.mxu0 0
      %3783 = vmatprep.mubr.bf16.mxu0 0
      %3784 = vmatmul.mubr.bf16.gmra.mrb[0].mxu0 %v3701
      %v3785 = vpop.f32.mrb[0].mxu0
      %v3786 = vadd.f32 0.0, %v3785
      %v3787 = vpop.f32.mrb[0].mxu0
      %v3788 = vpop.f32.mrb[0].mxu0
      %v3789 = vpop.f32.mrb[0].mxu0
      %3790 = vdwg.mxu0
      %v3791 = vadd.f32 %v3683, %v3786
      %s3792 = scalar_lea.vmem %s29, 832
      %v3793 = vld [vmem:[%s3792] sm:$0xf]
      %v3794 = vld [vmem:[%s3792 + $0x4] sm:$0xf]
      %v3795 = vld [vmem:[%s3792 + $0x8] sm:$0xf]
      %v3796 = vld [vmem:[%s3792 + $0xc] sm:$0xf]
      %v3797 = vld [vmem:[%s3792 + $0x10] sm:$0xf]
      %v3798 = vld [vmem:[%s3792 + $0x14] sm:$0xf]
      %v3799 = vld [vmem:[%s3792 + $0x18] sm:$0xf]
      %v3800 = vld [vmem:[%s3792 + $0x1c] sm:$0xf]
      %v3801 = vld [vmem:[%s3792 + $0x20] sm:$0xf]
      %v3802 = vld [vmem:[%s3792 + $0x24] sm:$0xf]
      %v3803 = vld [vmem:[%s3792 + $0x28] sm:$0xf]
      %v3804 = vld [vmem:[%s3792 + $0x2c] sm:$0xf]
      %v3805 = vld [vmem:[%s3792 + $0x30] sm:$0xf]
      %v3806 = vld [vmem:[%s3792 + $0x34] sm:$0xf]
      %v3807 = vld [vmem:[%s3792 + $0x38] sm:$0xf]
      %v3808 = vld [vmem:[%s3792 + $0x3c] sm:$0xf]
      %v3809 = vrot.slane %v3375, 2
      %v3827 = vunpack.c.l.b16 %v3793
      %v3828 = vunpack.c.l.b16 %v3794
      %v3829 = vunpack.c.l.b16 %v3795
      %v3830 = vunpack.c.l.b16 %v3796
      %v3831 = vunpack.c.l.b16 %v3797
      %v3832 = vunpack.c.l.b16 %v3798
      %v3833 = vunpack.c.l.b16 %v3799
      %v3834 = vunpack.c.l.b16 %v3800
      %v3835 = vunpack.c.l.b16 %v3801
      %v3836 = vunpack.c.l.b16 %v3802
      %v3837 = vunpack.c.l.b16 %v3803
      %v3838 = vunpack.c.l.b16 %v3804
      %v3839 = vunpack.c.l.b16 %v3805
      %v3840 = vunpack.c.l.b16 %v3806
      %v3841 = vunpack.c.l.b16 %v3807
      %v3842 = vunpack.c.l.b16 %v3808
      %v3843 = vpack.c.b16 %v3828, %v3827
      %v3844 = vpack.c.b16 %v3830, %v3829
      %v3845 = vpack.c.b16 %v3832, %v3831
      %v3846 = vpack.c.b16 %v3834, %v3833
      %v3847 = vpack.c.b16 %v3836, %v3835
      %v3848 = vpack.c.b16 %v3838, %v3837
      %v3849 = vpack.c.b16 %v3840, %v3839
      %v3850 = vpack.c.b16 %v3842, %v3841
      %3859 = vmatprep.subr.bf16.mxu0 0
      %3860 = vmatpush1.bf16.msra.mxu0 %v3843
      %3861 = vmatprep.subr.bf16.mxu0 0
      %3862 = vmatpush1.bf16.msra.mxu0 %v3844
      %3863 = vmatprep.subr.bf16.mxu0 0
      %3864 = vmatpush1.bf16.msra.mxu0 %v3845
      %3865 = vmatprep.subr.bf16.mxu0 0
      %3866 = vmatpush1.bf16.msra.mxu0 %v3846
      %3867 = vmatprep.subr.bf16.mxu0 0
      %3868 = vmatpush1.bf16.msra.mxu0 %v3847
      %3869 = vmatprep.subr.bf16.mxu0 0
      %3870 = vmatpush1.bf16.msra.mxu0 %v3848
      %3871 = vmatprep.subr.bf16.mxu0 0
      %3872 = vmatpush1.bf16.msra.mxu0 %v3849
      %3873 = vmatprep.subr.bf16.mxu0 0
      %3874 = vmatpush1.bf16.msra.mxu0 %v3850
      %3875 = vmatprep.subr.bf16.mxu0 0
      %3876 = vmatpush1.bf16.msra.mxu0 0
      %3877 = vmatprep.subr.bf16.mxu0 0
      %3878 = vmatpush1.bf16.msra.mxu0 0
      %3879 = vmatprep.subr.bf16.mxu0 0
      %3880 = vmatpush1.bf16.msra.mxu0 0
      %3881 = vmatprep.subr.bf16.mxu0 0
      %3882 = vmatpush1.bf16.msra.mxu0 0
      %3883 = vmatprep.subr.bf16.mxu0 0
      %3884 = vmatpush1.bf16.msra.mxu0 0
      %3885 = vmatprep.subr.bf16.mxu0 0
      %3886 = vmatpush1.bf16.msra.mxu0 0
      %3887 = vmatprep.subr.bf16.mxu0 0
      %3888 = vmatpush1.bf16.msra.mxu0 0
      %3889 = vmatprep.subr.bf16.mxu0 0
      %3890 = vmatpush1.bf16.msra.mxu0 0
      %3891 = vmatprep.mubr.bf16.mxu0 0
      %3892 = vmatmul.mubr.bf16.gmra.mrb[0].mxu0 %v3809
      %v3893 = vpop.f32.mrb[0].mxu0
      %v3894 = vadd.f32 0.0, %v3893
      %v3895 = vpop.f32.mrb[0].mxu0
      %v3896 = vpop.f32.mrb[0].mxu0
      %v3897 = vpop.f32.mrb[0].mxu0
      %3898 = vdwg.mxu0
      %v3899 = vadd.f32 %v3791, %v3894
      %s3900 = scalar_lea.vmem %s29, 896
      %v3901 = vld [vmem:[%s3900] sm:$0xf]
      %v3902 = vld [vmem:[%s3900 + $0x4] sm:$0xf]
      %v3903 = vld [vmem:[%s3900 + $0x8] sm:$0xf]
      %v3904 = vld [vmem:[%s3900 + $0xc] sm:$0xf]
      %v3905 = vld [vmem:[%s3900 + $0x10] sm:$0xf]
      %v3906 = vld [vmem:[%s3900 + $0x14] sm:$0xf]
      %v3907 = vld [vmem:[%s3900 + $0x18] sm:$0xf]
      %v3908 = vld [vmem:[%s3900 + $0x1c] sm:$0xf]
      %v3909 = vld [vmem:[%s3900 + $0x20] sm:$0xf]
      %v3910 = vld [vmem:[%s3900 + $0x24] sm:$0xf]
      %v3911 = vld [vmem:[%s3900 + $0x28] sm:$0xf]
      %v3912 = vld [vmem:[%s3900 + $0x2c] sm:$0xf]
      %v3913 = vld [vmem:[%s3900 + $0x30] sm:$0xf]
      %v3914 = vld [vmem:[%s3900 + $0x34] sm:$0xf]
      %v3915 = vld [vmem:[%s3900 + $0x38] sm:$0xf]
      %v3916 = vld [vmem:[%s3900 + $0x3c] sm:$0xf]
      %v3917 = vrot.slane %v3250, 3
      %v3935 = vunpack.c.l.b16 %v3901
      %v3936 = vunpack.c.l.b16 %v3902
      %v3937 = vunpack.c.l.b16 %v3903
      %v3938 = vunpack.c.l.b16 %v3904
      %v3939 = vunpack.c.l.b16 %v3905
      %v3940 = vunpack.c.l.b16 %v3906
      %v3941 = vunpack.c.l.b16 %v3907
      %v3942 = vunpack.c.l.b16 %v3908
      %v3943 = vunpack.c.l.b16 %v3909
      %v3944 = vunpack.c.l.b16 %v3910
      %v3945 = vunpack.c.l.b16 %v3911
      %v3946 = vunpack.c.l.b16 %v3912
      %v3947 = vunpack.c.l.b16 %v3913
      %v3948 = vunpack.c.l.b16 %v3914
      %v3949 = vunpack.c.l.b16 %v3915
      %v3950 = vunpack.c.l.b16 %v3916
      %v3951 = vpack.c.b16 %v3936, %v3935
      %v3952 = vpack.c.b16 %v3938, %v3937
      %v3953 = vpack.c.b16 %v3940, %v3939
      %v3954 = vpack.c.b16 %v3942, %v3941
      %v3955 = vpack.c.b16 %v3944, %v3943
      %v3956 = vpack.c.b16 %v3946, %v3945
      %v3957 = vpack.c.b16 %v3948, %v3947
      %v3958 = vpack.c.b16 %v3950, %v3949
      %3967 = vmatprep.subr.bf16.mxu0 0
      %3968 = vmatpush1.bf16.msra.mxu0 %v3951
      %3969 = vmatprep.subr.bf16.mxu0 0
      %3970 = vmatpush1.bf16.msra.mxu0 %v3952
      %3971 = vmatprep.subr.bf16.mxu0 0
      %3972 = vmatpush1.bf16.msra.mxu0 %v3953
      %3973 = vmatprep.subr.bf16.mxu0 0
      %3974 = vmatpush1.bf16.msra.mxu0 %v3954
      %3975 = vmatprep.subr.bf16.mxu0 0
      %3976 = vmatpush1.bf16.msra.mxu0 %v3955
      %3977 = vmatprep.subr.bf16.mxu0 0
      %3978 = vmatpush1.bf16.msra.mxu0 %v3956
      %3979 = vmatprep.subr.bf16.mxu0 0
      %3980 = vmatpush1.bf16.msra.mxu0 %v3957
      %3981 = vmatprep.subr.bf16.mxu0 0
      %3982 = vmatpush1.bf16.msra.mxu0 %v3958
      %3983 = vmatprep.subr.bf16.mxu0 0
      %3984 = vmatpush1.bf16.msra.mxu0 0
      %3985 = vmatprep.subr.bf16.mxu0 0
      %3986 = vmatpush1.bf16.msra.mxu0 0
      %3987 = vmatprep.subr.bf16.mxu0 0
      %3988 = vmatpush1.bf16.msra.mxu0 0
      %3989 = vmatprep.subr.bf16.mxu0 0
      %3990 = vmatpush1.bf16.msra.mxu0 0
      %3991 = vmatprep.subr.bf16.mxu0 0
      %3992 = vmatpush1.bf16.msra.mxu0 0
      %3993 = vmatprep.subr.bf16.mxu0 0
      %3994 = vmatpush1.bf16.msra.mxu0 0
      %3995 = vmatprep.subr.bf16.mxu0 0
      %3996 = vmatpush1.bf16.msra.mxu0 0
      %3997 = vmatprep.subr.bf16.mxu0 0
      %3998 = vmatpush1.bf16.msra.mxu0 0
      %3999 = vmatprep.mubr.bf16.mxu0 0
      %4000 = vmatmul.mubr.bf16.gmra.mrb[0].mxu0 %v3917
      %v4001 = vpop.f32.mrb[0].mxu0
      %v4002 = vadd.f32 0.0, %v4001
      %v4003 = vpop.f32.mrb[0].mxu0
      %v4004 = vpop.f32.mrb[0].mxu0
      %v4005 = vpop.f32.mrb[0].mxu0
      %4006 = vdwg.mxu0
      %v4007 = vadd.f32 %v3899, %v4002
      %s4008 = scalar_lea.vmem %s29, 960
      %v4009 = vld [vmem:[%s4008] sm:$0xf]
      %v4010 = vld [vmem:[%s4008 + $0x4] sm:$0xf]
      %v4011 = vld [vmem:[%s4008 + $0x8] sm:$0xf]
      %v4012 = vld [vmem:[%s4008 + $0xc] sm:$0xf]
      %v4013 = vld [vmem:[%s4008 + $0x10] sm:$0xf]
      %v4014 = vld [vmem:[%s4008 + $0x14] sm:$0xf]
      %v4015 = vld [vmem:[%s4008 + $0x18] sm:$0xf]
      %v4016 = vld [vmem:[%s4008 + $0x1c] sm:$0xf]
      %v4017 = vld [vmem:[%s4008 + $0x20] sm:$0xf]
      %v4018 = vld [vmem:[%s4008 + $0x24] sm:$0xf]
      %v4019 = vld [vmem:[%s4008 + $0x28] sm:$0xf]
      %v4020 = vld [vmem:[%s4008 + $0x2c] sm:$0xf]
      %v4021 = vld [vmem:[%s4008 + $0x30] sm:$0xf]
      %v4022 = vld [vmem:[%s4008 + $0x34] sm:$0xf]
      %v4023 = vld [vmem:[%s4008 + $0x38] sm:$0xf]
      %v4024 = vld [vmem:[%s4008 + $0x3c] sm:$0xf]
      %v4025 = vrot.slane %v3375, 3
      %v4043 = vunpack.c.l.b16 %v4009
      %v4044 = vunpack.c.l.b16 %v4010
      %v4045 = vunpack.c.l.b16 %v4011
      %v4046 = vunpack.c.l.b16 %v4012
      %v4047 = vunpack.c.l.b16 %v4013
      %v4048 = vunpack.c.l.b16 %v4014
      %v4049 = vunpack.c.l.b16 %v4015
      %v4050 = vunpack.c.l.b16 %v4016
      %v4051 = vunpack.c.l.b16 %v4017
      %v4052 = vunpack.c.l.b16 %v4018
      %v4053 = vunpack.c.l.b16 %v4019
      %v4054 = vunpack.c.l.b16 %v4020
      %v4055 = vunpack.c.l.b16 %v4021
      %v4056 = vunpack.c.l.b16 %v4022
      %v4057 = vunpack.c.l.b16 %v4023
      %v4058 = vunpack.c.l.b16 %v4024
      %v4059 = vpack.c.b16 %v4044, %v4043
      %v4060 = vpack.c.b16 %v4046, %v4045
      %v4061 = vpack.c.b16 %v4048, %v4047
      %v4062 = vpack.c.b16 %v4050, %v4049
      %v4063 = vpack.c.b16 %v4052, %v4051
      %v4064 = vpack.c.b16 %v4054, %v4053
      %v4065 = vpack.c.b16 %v4056, %v4055
      %v4066 = vpack.c.b16 %v4058, %v4057
      %4075 = vmatprep.subr.bf16.mxu0 0
      %4076 = vmatpush1.bf16.msra.mxu0 %v4059
      %4077 = vmatprep.subr.bf16.mxu0 0
      %4078 = vmatpush1.bf16.msra.mxu0 %v4060
      %4079 = vmatprep.subr.bf16.mxu0 0
      %4080 = vmatpush1.bf16.msra.mxu0 %v4061
      %4081 = vmatprep.subr.bf16.mxu0 0
      %4082 = vmatpush1.bf16.msra.mxu0 %v4062
      %4083 = vmatprep.subr.bf16.mxu0 0
      %4084 = vmatpush1.bf16.msra.mxu0 %v4063
      %4085 = vmatprep.subr.bf16.mxu0 0
      %4086 = vmatpush1.bf16.msra.mxu0 %v4064
      %4087 = vmatprep.subr.bf16.mxu0 0
      %4088 = vmatpush1.bf16.msra.mxu0 %v4065
      %4089 = vmatprep.subr.bf16.mxu0 0
      %4090 = vmatpush1.bf16.msra.mxu0 %v4066
      %4091 = vmatprep.subr.bf16.mxu0 0
      %4092 = vmatpush1.bf16.msra.mxu0 0
      %4093 = vmatprep.subr.bf16.mxu0 0
      %4094 = vmatpush1.bf16.msra.mxu0 0
      %4095 = vmatprep.subr.bf16.mxu0 0
      %4096 = vmatpush1.bf16.msra.mxu0 0
      %4097 = vmatprep.subr.bf16.mxu0 0
      %4098 = vmatpush1.bf16.msra.mxu0 0
      %4099 = vmatprep.subr.bf16.mxu0 0
      %4100 = vmatpush1.bf16.msra.mxu0 0
      %4101 = vmatprep.subr.bf16.mxu0 0
      %4102 = vmatpush1.bf16.msra.mxu0 0
      %4103 = vmatprep.subr.bf16.mxu0 0
      %4104 = vmatpush1.bf16.msra.mxu0 0
      %4105 = vmatprep.subr.bf16.mxu0 0
      %4106 = vmatpush1.bf16.msra.mxu0 0
      %4107 = vmatprep.mubr.bf16.mxu0 0
      %4108 = vmatmul.mubr.bf16.gmra.mrb[0].mxu0 %v4025
      %v4109 = vpop.f32.mrb[0].mxu0
      %v4110 = vadd.f32 0.0, %v4109
      %v4111 = vpop.f32.mrb[0].mxu0
      %v4112 = vpop.f32.mrb[0].mxu0
      %v4113 = vpop.f32.mrb[0].mxu0
      %4114 = vdwg.mxu0
      %v4115 = vadd.f32 %v4007, %v4110
      %v4116 = vmax.f32 %v4115, 0.0
      %v4117 = vld [vmem:[%s33] sm:$0xff]
      %v4118 = vld [vmem:[%s33 + $0x8] sm:$0xff]
      %v4119 = vld [vmem:[%s33 + $0x10] sm:$0xff]
      %v4120 = vld [vmem:[%s33 + $0x18] sm:$0xff]
      %v4121 = vld [vmem:[%s33 + $0x20] sm:$0xff]
      %v4122 = vld [vmem:[%s33 + $0x28] sm:$0xff]
      %v4123 = vld [vmem:[%s33 + $0x30] sm:$0xff]
      %v4124 = vld [vmem:[%s33 + $0x38] sm:$0xff]
      %v4125 = vld [vmem:[%s33 + $0x40] sm:$0xff]
      %v4126 = vld [vmem:[%s33 + $0x48] sm:$0xff]
      %v4127 = vld [vmem:[%s33 + $0x50] sm:$0xff]
      %v4128 = vld [vmem:[%s33 + $0x58] sm:$0xff]
      %v4129 = vld [vmem:[%s33 + $0x60] sm:$0xff]
      %v4130 = vld [vmem:[%s33 + $0x68] sm:$0xff]
      %v4131 = vld [vmem:[%s33 + $0x70] sm:$0xff]
      %v4132 = vld [vmem:[%s33 + $0x78] sm:$0xff]
      %v4133 = vpack.c.bf16 %v4116, %v4116
      %v4134 = vld [vmem:[%s35] sm:$0x3]
      %v4151 = vunpack.c.l.b16 %v4117
      %v4152 = vunpack.c.h.b16 %v4117
      %v4153 = vunpack.c.l.b16 %v4118
      %v4154 = vunpack.c.h.b16 %v4118
      %v4155 = vunpack.c.l.b16 %v4119
      %v4156 = vunpack.c.h.b16 %v4119
      %v4157 = vunpack.c.l.b16 %v4120
      %v4158 = vunpack.c.h.b16 %v4120
      %v4159 = vunpack.c.l.b16 %v4121
      %v4160 = vunpack.c.h.b16 %v4121
      %v4161 = vunpack.c.l.b16 %v4122
      %v4162 = vunpack.c.h.b16 %v4122
      %v4163 = vunpack.c.l.b16 %v4123
      %v4164 = vunpack.c.h.b16 %v4123
      %v4165 = vunpack.c.l.b16 %v4124
      %v4166 = vunpack.c.h.b16 %v4124
      %v4167 = vunpack.c.l.b16 %v4125
      %v4168 = vunpack.c.h.b16 %v4125
      %v4169 = vunpack.c.l.b16 %v4126
      %v4170 = vunpack.c.h.b16 %v4126
      %v4171 = vunpack.c.l.b16 %v4127
      %v4172 = vunpack.c.h.b16 %v4127
      %v4173 = vunpack.c.l.b16 %v4128
      %v4174 = vunpack.c.h.b16 %v4128
      %v4175 = vunpack.c.l.b16 %v4129
      %v4176 = vunpack.c.h.b16 %v4129
      %v4177 = vunpack.c.l.b16 %v4130
      %v4178 = vunpack.c.h.b16 %v4130
      %v4179 = vunpack.c.l.b16 %v4131
      %v4180 = vunpack.c.h.b16 %v4131
      %v4181 = vunpack.c.l.b16 %v4132
      %v4182 = vunpack.c.h.b16 %v4132
      %v4183 = vpack.c.b16 %v4153, %v4151
      %v4184 = vpack.c.b16 %v4154, %v4152
      %v4185 = vpack.c.b16 %v4157, %v4155
      %v4186 = vpack.c.b16 %v4158, %v4156
      %v4187 = vpack.c.b16 %v4161, %v4159
      %v4188 = vpack.c.b16 %v4162, %v4160
      %v4189 = vpack.c.b16 %v4165, %v4163
      %v4190 = vpack.c.b16 %v4166, %v4164
      %v4191 = vpack.c.b16 %v4169, %v4167
      %v4192 = vpack.c.b16 %v4170, %v4168
      %v4193 = vpack.c.b16 %v4173, %v4171
      %v4194 = vpack.c.b16 %v4174, %v4172
      %v4195 = vpack.c.b16 %v4177, %v4175
      %v4196 = vpack.c.b16 %v4178, %v4176
      %v4197 = vpack.c.b16 %v4181, %v4179
      %v4198 = vpack.c.b16 %v4182, %v4180
      %v4216 = vlaneseq
      %v4217 = vshrl.u32 %v4216, 7
      %v4218 = vsub.s32 0, %v4217
      %v4219 = vrot.slane %v4134, %v4218
      %v4220 = vlaneseq
      %v4221 = vshrl.u32 %v4220, 7
      %v4222 = vsub.s32 1, %v4221
      %v4223 = vrot.slane %v4134, %v4222
      %4226 = vmatprep.subr.bf16.mxu0 %v4184
      %4227 = vmatpush1.bf16.msra.mxu0 %v4183
      %4228 = vmatprep.subr.bf16.mxu0 %v4186
      %4229 = vmatpush1.bf16.msra.mxu0 %v4185
      %4230 = vmatprep.subr.bf16.mxu0 %v4188
      %4231 = vmatpush1.bf16.msra.mxu0 %v4187
      %4232 = vmatprep.subr.bf16.mxu0 %v4190
      %4233 = vmatpush1.bf16.msra.mxu0 %v4189
      %4234 = vmatprep.subr.bf16.mxu0 %v4192
      %4235 = vmatpush1.bf16.msra.mxu0 %v4191
      %4236 = vmatprep.subr.bf16.mxu0 %v4194
      %4237 = vmatpush1.bf16.msra.mxu0 %v4193
      %4238 = vmatprep.subr.bf16.mxu0 %v4196
      %4239 = vmatpush1.bf16.msra.mxu0 %v4195
      %4240 = vmatprep.subr.bf16.mxu0 %v4198
      %4241 = vmatpush1.bf16.msra.mxu0 %v4197
      %4242 = vmatprep.subr.bf16.mxu0 0
      %4243 = vmatpush1.bf16.msra.mxu0 0
      %4244 = vmatprep.subr.bf16.mxu0 0
      %4245 = vmatpush1.bf16.msra.mxu0 0
      %4246 = vmatprep.subr.bf16.mxu0 0
      %4247 = vmatpush1.bf16.msra.mxu0 0
      %4248 = vmatprep.subr.bf16.mxu0 0
      %4249 = vmatpush1.bf16.msra.mxu0 0
      %4250 = vmatprep.subr.bf16.mxu0 0
      %4251 = vmatpush1.bf16.msra.mxu0 0
      %4252 = vmatprep.subr.bf16.mxu0 0
      %4253 = vmatpush1.bf16.msra.mxu0 0
      %4254 = vmatprep.subr.bf16.mxu0 0
      %4255 = vmatpush1.bf16.msra.mxu0 0
      %4256 = vmatprep.subr.bf16.mxu0 0
      %4257 = vmatpush1.bf16.msra.mxu0 0
      %4258 = vmatprep.mubr.bf16.mxu0 0
      %4259 = vmatmul.mubr.bf16.gmra.mrb[0].mxu0 %v4133
      %v4260 = vpop.f32.mrb[0].mxu0
      %v4261 = vadd.f32 %v4219, %v4260
      %v4262 = vpop.f32.mrb[0].mxu0
      %v4263 = vadd.f32 %v4223, %v4262
      %v4264 = vpop.f32.mrb[0].mxu0
      %v4265 = vpop.f32.mrb[0].mxu0
      %4266 = vdwg.mxu0
      %vm4267 = vcmp.gt.f32.partialorder %v4261, 0.0
      %vm4268 = vcmp.gt.f32.partialorder %v4263, 0.0
      %v4269 = vmin.f32 %v4261, 0.0
      %v4270 = vmin.f32 %v4263, 0.0
      %v4271 = vmul.f32 %v4269, 1.442695
      %v4272 = vpow.pop %v4271
      %v4273 = vmul.f32 %v4270, 1.442695
      %v4274 = vpow.pop %v4273
      %v4275 = vsub.f32 %v4272, 1.0
      %v4276 = vsub.f32 %v4274, 1.0
      %v4277 = vmul.f32 %v4275, 1.6732632
      %v4278 = vmul.f32 %v4276, 1.6732632
      %v4279 = vsel %vm4267, %v4261, %v4277
      %v4280 = vsel %vm4268, %v4263, %v4278
      %v4281 = vmul.f32 %v4279, 1.050701
      %v4282 = vmul.f32 %v4280, 1.050701
      %v4283 = vld [vmem:[%s37] sm:$0xf]
      %v4284 = vld [vmem:[%s37 + $0x4] sm:$0xf]
      %v4285 = vld [vmem:[%s37 + $0x8] sm:$0xf]
      %v4286 = vld [vmem:[%s37 + $0xc] sm:$0xf]
      %v4287 = vld [vmem:[%s37 + $0x10] sm:$0xf]
      %v4288 = vld [vmem:[%s37 + $0x14] sm:$0xf]
      %v4289 = vld [vmem:[%s37 + $0x18] sm:$0xf]
      %v4290 = vld [vmem:[%s37 + $0x1c] sm:$0xf]
      %v4291 = vld [vmem:[%s37 + $0x20] sm:$0xf]
      %v4292 = vld [vmem:[%s37 + $0x24] sm:$0xf]
      %v4293 = vld [vmem:[%s37 + $0x28] sm:$0xf]
      %v4294 = vld [vmem:[%s37 + $0x2c] sm:$0xf]
      %v4295 = vld [vmem:[%s37 + $0x30] sm:$0xf]
      %v4296 = vld [vmem:[%s37 + $0x34] sm:$0xf]
      %v4297 = vld [vmem:[%s37 + $0x38] sm:$0xf]
      %v4298 = vld [vmem:[%s37 + $0x3c] sm:$0xf]
      %v4299 = vld [vmem:[%s37 + $0x40] sm:$0xf]
      %v4300 = vld [vmem:[%s37 + $0x44] sm:$0xf]
      %v4301 = vld [vmem:[%s37 + $0x48] sm:$0xf]
      %v4302 = vld [vmem:[%s37 + $0x4c] sm:$0xf]
      %v4303 = vld [vmem:[%s37 + $0x50] sm:$0xf]
      %v4304 = vld [vmem:[%s37 + $0x54] sm:$0xf]
      %v4305 = vld [vmem:[%s37 + $0x58] sm:$0xf]
      %v4306 = vld [vmem:[%s37 + $0x5c] sm:$0xf]
      %v4307 = vpack.c.bf16 %v4281, %v4281
      %v4308 = vpack.c.bf16 %v4282, %v4282
      %v4309 = vld [vmem:[%s39] sm:$0x1]
      %v4334 = vunpack.c.l.b16 %v4283
      %v4335 = vunpack.c.l.b16 %v4284
      %v4336 = vunpack.c.l.b16 %v4285
      %v4337 = vunpack.c.l.b16 %v4286
      %v4338 = vunpack.c.l.b16 %v4287
      %v4339 = vunpack.c.l.b16 %v4288
      %v4340 = vunpack.c.l.b16 %v4289
      %v4341 = vunpack.c.l.b16 %v4290
      %v4342 = vunpack.c.l.b16 %v4291
      %v4343 = vunpack.c.l.b16 %v4292
      %v4344 = vunpack.c.l.b16 %v4293
      %v4345 = vunpack.c.l.b16 %v4294
      %v4346 = vunpack.c.l.b16 %v4295
      %v4347 = vunpack.c.l.b16 %v4296
      %v4348 = vunpack.c.l.b16 %v4297
      %v4349 = vunpack.c.l.b16 %v4298
      %v4350 = vunpack.c.l.b16 %v4299
      %v4351 = vunpack.c.l.b16 %v4300
      %v4352 = vunpack.c.l.b16 %v4301
      %v4353 = vunpack.c.l.b16 %v4302
      %v4354 = vunpack.c.l.b16 %v4303
      %v4355 = vunpack.c.l.b16 %v4304
      %v4356 = vunpack.c.l.b16 %v4305
      %v4357 = vunpack.c.l.b16 %v4306
      %v4358 = vpack.c.b16 %v4335, %v4334
      %v4359 = vpack.c.b16 %v4337, %v4336
      %v4360 = vpack.c.b16 %v4339, %v4338
      %v4361 = vpack.c.b16 %v4341, %v4340
      %v4362 = vpack.c.b16 %v4343, %v4342
      %v4363 = vpack.c.b16 %v4345, %v4344
      %v4364 = vpack.c.b16 %v4347, %v4346
      %v4365 = vpack.c.b16 %v4349, %v4348
      %v4366 = vpack.c.b16 %v4351, %v4350
      %v4367 = vpack.c.b16 %v4353, %v4352
      %v4368 = vpack.c.b16 %v4355, %v4354
      %v4369 = vpack.c.b16 %v4357, %v4356
      %v4383 = vsel %vm1415, %v4308, 0
      %4385 = vmatprep.subr.bf16.mxu0 0
      %4386 = vmatpush1.bf16.msra.mxu0 %v4358
      %4387 = vmatprep.subr.bf16.mxu0 0
      %4388 = vmatpush1.bf16.msra.mxu0 %v4359
      %4389 = vmatprep.subr.bf16.mxu0 0
      %4390 = vmatpush1.bf16.msra.mxu0 %v4360
      %4391 = vmatprep.subr.bf16.mxu0 0
      %4392 = vmatpush1.bf16.msra.mxu0 %v4361
      %4393 = vmatprep.subr.bf16.mxu0 0
      %4394 = vmatpush1.bf16.msra.mxu0 %v4362
      %4395 = vmatprep.subr.bf16.mxu0 0
      %4396 = vmatpush1.bf16.msra.mxu0 %v4363
      %4397 = vmatprep.subr.bf16.mxu0 0
      %4398 = vmatpush1.bf16.msra.mxu0 %v4364
      %4399 = vmatprep.subr.bf16.mxu0 0
      %4400 = vmatpush1.bf16.msra.mxu0 %v4365
      %4401 = vmatprep.subr.bf16.mxu0 0
      %4402 = vmatpush1.bf16.msra.mxu0 %v4366
      %4403 = vmatprep.subr.bf16.mxu0 0
      %4404 = vmatpush1.bf16.msra.mxu0 %v4367
      %4405 = vmatprep.subr.bf16.mxu0 0
      %4406 = vmatpush1.bf16.msra.mxu0 %v4368
      %4407 = vmatprep.subr.bf16.mxu0 0
      %4408 = vmatpush1.bf16.msra.mxu0 %v4369
      %4409 = vmatprep.subr.bf16.mxu0 0
      %4410 = vmatpush1.bf16.msra.mxu0 0
      %4411 = vmatprep.subr.bf16.mxu0 0
      %4412 = vmatpush1.bf16.msra.mxu0 0
      %4413 = vmatprep.subr.bf16.mxu0 0
      %4414 = vmatpush1.bf16.msra.mxu0 0
      %4415 = vmatprep.subr.bf16.mxu0 0
      %4416 = vmatpush1.bf16.msra.mxu0 0
      %4417 = vmatprep.mubr.bf16.mxu0 %v4383
      %4418 = vmatmul.mubr.bf16.gmra.mrb[0].mxu0 %v4307
      %v4419 = vpop.f32.mrb[0].mxu0
      %v4420 = vadd.f32 %v4309, %v4419
      %v4421 = vpop.f32.mrb[0].mxu0
      %v4422 = vpop.f32.mrb[0].mxu0
      %v4423 = vpop.f32.mrb[0].mxu0
      %4424 = vdwg.mxu0
      %v4425 = vld [vmem:[%s1208] sm:$0x1]
      %v4426 = vld [vmem:[%s41] sm:$0x7]
      %v4427 = vpack.c.bf16 %v4425, %v4425
      %v4428 = vld [vmem:[%s43] sm:$0x1]
      %vm4429 = vcmask 39936
      %v4431 = vsel %vm4429, %v4427, 0
      %vm4433 = vcmask 1041408
      %vm4434 = vcmask 1042432
      %v4435 = vsel %vm4433, 4294967295, 65535
      %v4436 = vsel %vm4434, %v4435, 0
      %v4438 = vand.u32 %v4426, %v4436
      %4440 = vmatprep.subr.bf16.mxu0 0
      %4441 = vmatpush1.bf16.msra.mxu0 %v4438
      %4442 = vmatprep.subr.bf16.mxu0 0
      %4443 = vmatpush1.bf16.msra.mxu0 0
      %4444 = vmatprep.subr.bf16.mxu0 0
      %4445 = vmatpush1.bf16.msra.mxu0 0
      %4446 = vmatprep.subr.bf16.mxu0 0
      %4447 = vmatpush1.bf16.msra.mxu0 0
      %4448 = vmatprep.subr.bf16.mxu0 0
      %4449 = vmatpush1.bf16.msra.mxu0 0
      %4450 = vmatprep.subr.bf16.mxu0 0
      %4451 = vmatpush1.bf16.msra.mxu0 0
      %4452 = vmatprep.subr.bf16.mxu0 0
      %4453 = vmatpush1.bf16.msra.mxu0 0
      %4454 = vmatprep.subr.bf16.mxu0 0
      %4455 = vmatpush1.bf16.msra.mxu0 0
      %4456 = vmatprep.subr.bf16.mxu0 0
      %4457 = vmatpush1.bf16.msra.mxu0 0
      %4458 = vmatprep.subr.bf16.mxu0 0
      %4459 = vmatpush1.bf16.msra.mxu0 0
      %4460 = vmatprep.subr.bf16.mxu0 0
      %4461 = vmatpush1.bf16.msra.mxu0 0
      %4462 = vmatprep.subr.bf16.mxu0 0
      %4463 = vmatpush1.bf16.msra.mxu0 0
      %4464 = vmatprep.subr.bf16.mxu0 0
      %4465 = vmatpush1.bf16.msra.mxu0 0
      %4466 = vmatprep.subr.bf16.mxu0 0
      %4467 = vmatpush1.bf16.msra.mxu0 0
      %4468 = vmatprep.subr.bf16.mxu0 0
      %4469 = vmatpush1.bf16.msra.mxu0 0
      %4470 = vmatprep.subr.bf16.mxu0 0
      %4471 = vmatpush1.bf16.msra.mxu0 0
      %4472 = vmatprep.mubr.bf16.mxu0 0
      %4473 = vmatmul.mubr.bf16.gmra.mrb[0].mxu0 %v4431
      %v4474 = vpop.f32.mrb[0].mxu0
      %v4475 = vadd.f32 %v4428, %v4474
      %v4476 = vpop.f32.mrb[0].mxu0
      %v4477 = vpop.f32.mrb[0].mxu0
      %v4478 = vpop.f32.mrb[0].mxu0
      %4479 = vdwg.mxu0
      %v4480 = vmax.f32 %v4475, 0.0
      %v4481 = vld [vmem:[%s1211] sm:$0x1]
      %v4482 = vld [vmem:[%s45] sm:$0xf]
      %v4483 = vpack.c.bf16 %v4481, %v4481
      %v4484 = vld [vmem:[%s47] sm:$0x1]
      %vm4485 = vcmask 64512
      %v4487 = vsel %vm4485, %v4483, 0
      %vm4489 = vcmask 1043456
      %v4491 = vsel %vm4489, %v4482, 0
      %4493 = vmatprep.subr.bf16.mxu0 0
      %4494 = vmatpush1.bf16.msra.mxu0 %v4491
      %4495 = vmatprep.subr.bf16.mxu0 0
      %4496 = vmatpush1.bf16.msra.mxu0 0
      %4497 = vmatprep.subr.bf16.mxu0 0
      %4498 = vmatpush1.bf16.msra.mxu0 0
      %4499 = vmatprep.subr.bf16.mxu0 0
      %4500 = vmatpush1.bf16.msra.mxu0 0
      %4501 = vmatprep.subr.bf16.mxu0 0
      %4502 = vmatpush1.bf16.msra.mxu0 0
      %4503 = vmatprep.subr.bf16.mxu0 0
      %4504 = vmatpush1.bf16.msra.mxu0 0
      %4505 = vmatprep.subr.bf16.mxu0 0
      %4506 = vmatpush1.bf16.msra.mxu0 0
      %4507 = vmatprep.subr.bf16.mxu0 0
      %4508 = vmatpush1.bf16.msra.mxu0 0
      %4509 = vmatprep.subr.bf16.mxu0 0
      %4510 = vmatpush1.bf16.msra.mxu0 0
      %4511 = vmatprep.subr.bf16.mxu0 0
      %4512 = vmatpush1.bf16.msra.mxu0 0
      %4513 = vmatprep.subr.bf16.mxu0 0
      %4514 = vmatpush1.bf16.msra.mxu0 0
      %4515 = vmatprep.subr.bf16.mxu0 0
      %4516 = vmatpush1.bf16.msra.mxu0 0
      %4517 = vmatprep.subr.bf16.mxu0 0
      %4518 = vmatpush1.bf16.msra.mxu0 0
      %4519 = vmatprep.subr.bf16.mxu0 0
      %4520 = vmatpush1.bf16.msra.mxu0 0
      %4521 = vmatprep.subr.bf16.mxu0 0
      %4522 = vmatpush1.bf16.msra.mxu0 0
      %4523 = vmatprep.subr.bf16.mxu0 0
      %4524 = vmatpush1.bf16.msra.mxu0 0
      %4525 = vmatprep.mubr.bf16.mxu0 0
      %4526 = vmatmul.mubr.bf16.gmra.mrb[0].mxu0 %v4487
      %v4527 = vpop.f32.mrb[0].mxu0
      %v4528 = vadd.f32 %v4484, %v4527
      %v4529 = vpop.f32.mrb[0].mxu0
      %v4530 = vpop.f32.mrb[0].mxu0
      %v4531 = vpop.f32.mrb[0].mxu0
      %4532 = vdwg.mxu0
      %v4533 = vmax.f32 %v4528, 0.0
      %v4534 = vld [vmem:[%s49] sm:$0xf]
      %v4535 = vld [vmem:[%s49 + $0x4] sm:$0xf]
      %v4536 = vld [vmem:[%s49 + $0x8] sm:$0xf]
      %v4537 = vld [vmem:[%s49 + $0xc] sm:$0xf]
      %v4538 = vld [vmem:[%s49 + $0x10] sm:$0xf]
      %v4539 = vld [vmem:[%s49 + $0x14] sm:$0xf]
      %v4540 = vld [vmem:[%s49 + $0x18] sm:$0xf]
      %v4541 = vld [vmem:[%s49 + $0x1c] sm:$0xf]
      %v4542 = vld [vmem:[%s49 + $0x20] sm:$0xf]
      %v4543 = vld [vmem:[%s49 + $0x24] sm:$0xf]
      %v4544 = vld [vmem:[%s49 + $0x28] sm:$0xf]
      %v4545 = vld [vmem:[%s49 + $0x2c] sm:$0xf]
      %v4546 = vld [vmem:[%s49 + $0x30] sm:$0xf]
      %v4547 = vld [vmem:[%s49 + $0x34] sm:$0xf]
      %v4548 = vld [vmem:[%s49 + $0x38] sm:$0xf]
      %v4549 = vld [vmem:[%s49 + $0x3c] sm:$0xf]
      %v4550 = vpack.c.bf16 %v4480, %v4480
      %v4551 = vld [vmem:[%s51] sm:$0x1]
      %v4568 = vunpack.c.l.b16 %v4534
      %v4569 = vunpack.c.l.b16 %v4535
      %v4570 = vunpack.c.l.b16 %v4536
      %v4571 = vunpack.c.l.b16 %v4537
      %v4572 = vunpack.c.l.b16 %v4538
      %v4573 = vunpack.c.l.b16 %v4539
      %v4574 = vunpack.c.l.b16 %v4540
      %v4575 = vunpack.c.l.b16 %v4541
      %v4576 = vunpack.c.l.b16 %v4542
      %v4577 = vunpack.c.l.b16 %v4543
      %v4578 = vunpack.c.l.b16 %v4544
      %v4579 = vunpack.c.l.b16 %v4545
      %v4580 = vunpack.c.l.b16 %v4546
      %v4581 = vunpack.c.l.b16 %v4547
      %v4582 = vunpack.c.l.b16 %v4548
      %v4583 = vunpack.c.l.b16 %v4549
      %v4584 = vpack.c.b16 %v4569, %v4568
      %v4585 = vpack.c.b16 %v4571, %v4570
      %v4586 = vpack.c.b16 %v4573, %v4572
      %v4587 = vpack.c.b16 %v4575, %v4574
      %v4588 = vpack.c.b16 %v4577, %v4576
      %v4589 = vpack.c.b16 %v4579, %v4578
      %v4590 = vpack.c.b16 %v4581, %v4580
      %v4591 = vpack.c.b16 %v4583, %v4582
      %4600 = vmatprep.subr.bf16.mxu0 0
      %4601 = vmatpush1.bf16.msra.mxu0 %v4584
      %4602 = vmatprep.subr.bf16.mxu0 0
      %4603 = vmatpush1.bf16.msra.mxu0 %v4585
      %4604 = vmatprep.subr.bf16.mxu0 0
      %4605 = vmatpush1.bf16.msra.mxu0 %v4586
      %4606 = vmatprep.subr.bf16.mxu0 0
      %4607 = vmatpush1.bf16.msra.mxu0 %v4587
      %4608 = vmatprep.subr.bf16.mxu0 0
      %4609 = vmatpush1.bf16.msra.mxu0 %v4588
      %4610 = vmatprep.subr.bf16.mxu0 0
      %4611 = vmatpush1.bf16.msra.mxu0 %v4589
      %4612 = vmatprep.subr.bf16.mxu0 0
      %4613 = vmatpush1.bf16.msra.mxu0 %v4590
      %4614 = vmatprep.subr.bf16.mxu0 0
      %4615 = vmatpush1.bf16.msra.mxu0 %v4591
      %4616 = vmatprep.subr.bf16.mxu0 0
      %4617 = vmatpush1.bf16.msra.mxu0 0
      %4618 = vmatprep.subr.bf16.mxu0 0
      %4619 = vmatpush1.bf16.msra.mxu0 0
      %4620 = vmatprep.subr.bf16.mxu0 0
      %4621 = vmatpush1.bf16.msra.mxu0 0
      %4622 = vmatprep.subr.bf16.mxu0 0
      %4623 = vmatpush1.bf16.msra.mxu0 0
      %4624 = vmatprep.subr.bf16.mxu0 0
      %4625 = vmatpush1.bf16.msra.mxu0 0
      %4626 = vmatprep.subr.bf16.mxu0 0
      %4627 = vmatpush1.bf16.msra.mxu0 0
      %4628 = vmatprep.subr.bf16.mxu0 0
      %4629 = vmatpush1.bf16.msra.mxu0 0
      %4630 = vmatprep.subr.bf16.mxu0 0
      %4631 = vmatpush1.bf16.msra.mxu0 0
      %4632 = vmatprep.mubr.bf16.mxu0 0
      %4633 = vmatmul.mubr.bf16.gmra.mrb[0].mxu0 %v4550
      %v4634 = vpop.f32.mrb[0].mxu0
      %v4635 = vadd.f32 %v4551, %v4634
      %v4636 = vpop.f32.mrb[0].mxu0
      %v4637 = vpop.f32.mrb[0].mxu0
      %v4638 = vpop.f32.mrb[0].mxu0
      %4639 = vdwg.mxu0
      %v4640 = vmax.f32 %v4635, 0.0
      %v4641 = vld [vmem:[%s53] sm:$0xf]
      %v4642 = vld [vmem:[%s53 + $0x4] sm:$0xf]
      %v4643 = vld [vmem:[%s53 + $0x8] sm:$0xf]
      %v4644 = vld [vmem:[%s53 + $0xc] sm:$0xf]
      %v4645 = vld [vmem:[%s53 + $0x10] sm:$0xf]
      %v4646 = vld [vmem:[%s53 + $0x14] sm:$0xf]
      %v4647 = vld [vmem:[%s53 + $0x18] sm:$0xf]
      %v4648 = vld [vmem:[%s53 + $0x1c] sm:$0xf]
      %v4649 = vld [vmem:[%s53 + $0x20] sm:$0xf]
      %v4650 = vld [vmem:[%s53 + $0x24] sm:$0xf]
      %v4651 = vld [vmem:[%s53 + $0x28] sm:$0xf]
      %v4652 = vld [vmem:[%s53 + $0x2c] sm:$0xf]
      %v4653 = vld [vmem:[%s53 + $0x30] sm:$0xf]
      %v4654 = vld [vmem:[%s53 + $0x34] sm:$0xf]
      %v4655 = vld [vmem:[%s53 + $0x38] sm:$0xf]
      %v4656 = vld [vmem:[%s53 + $0x3c] sm:$0xf]
      %v4657 = vld [vmem:[%s55] sm:$0x1]
      %v4674 = vunpack.c.l.b16 %v4641
      %v4675 = vunpack.c.l.b16 %v4642
      %v4676 = vunpack.c.l.b16 %v4643
      %v4677 = vunpack.c.l.b16 %v4644
      %v4678 = vunpack.c.l.b16 %v4645
      %v4679 = vunpack.c.l.b16 %v4646
      %v4680 = vunpack.c.l.b16 %v4647
      %v4681 = vunpack.c.l.b16 %v4648
      %v4682 = vunpack.c.l.b16 %v4649
      %v4683 = vunpack.c.l.b16 %v4650
      %v4684 = vunpack.c.l.b16 %v4651
      %v4685 = vunpack.c.l.b16 %v4652
      %v4686 = vunpack.c.l.b16 %v4653
      %v4687 = vunpack.c.l.b16 %v4654
      %v4688 = vunpack.c.l.b16 %v4655
      %v4689 = vunpack.c.l.b16 %v4656
      %v4690 = vpack.c.b16 %v4675, %v4674
      %v4691 = vpack.c.b16 %v4677, %v4676
      %v4692 = vpack.c.b16 %v4679, %v4678
      %v4693 = vpack.c.b16 %v4681, %v4680
      %v4694 = vpack.c.b16 %v4683, %v4682
      %v4695 = vpack.c.b16 %v4685, %v4684
      %v4696 = vpack.c.b16 %v4687, %v4686
      %v4697 = vpack.c.b16 %v4689, %v4688
      %4706 = vmatprep.subr.bf16.mxu0 0
      %4707 = vmatpush1.bf16.msra.mxu0 %v4690
      %4708 = vmatprep.subr.bf16.mxu0 0
      %4709 = vmatpush1.bf16.msra.mxu0 %v4691
      %4710 = vmatprep.subr.bf16.mxu0 0
      %4711 = vmatpush1.bf16.msra.mxu0 %v4692
      %4712 = vmatprep.subr.bf16.mxu0 0
      %4713 = vmatpush1.bf16.msra.mxu0 %v4693
      %4714 = vmatprep.subr.bf16.mxu0 0
      %4715 = vmatpush1.bf16.msra.mxu0 %v4694
      %4716 = vmatprep.subr.bf16.mxu0 0
      %4717 = vmatpush1.bf16.msra.mxu0 %v4695
      %4718 = vmatprep.subr.bf16.mxu0 0
      %4719 = vmatpush1.bf16.msra.mxu0 %v4696
      %4720 = vmatprep.subr.bf16.mxu0 0
      %4721 = vmatpush1.bf16.msra.mxu0 %v4697
      %4722 = vmatprep.subr.bf16.mxu0 0
      %4723 = vmatpush1.bf16.msra.mxu0 0
      %4724 = vmatprep.subr.bf16.mxu0 0
      %4725 = vmatpush1.bf16.msra.mxu0 0
      %4726 = vmatprep.subr.bf16.mxu0 0
      %4727 = vmatpush1.bf16.msra.mxu0 0
      %4728 = vmatprep.subr.bf16.mxu0 0
      %4729 = vmatpush1.bf16.msra.mxu0 0
      %4730 = vmatprep.subr.bf16.mxu0 0
      %4731 = vmatpush1.bf16.msra.mxu0 0
      %4732 = vmatprep.subr.bf16.mxu0 0
      %4733 = vmatpush1.bf16.msra.mxu0 0
      %4734 = vmatprep.subr.bf16.mxu0 0
      %4735 = vmatpush1.bf16.msra.mxu0 0
      %4736 = vmatprep.subr.bf16.mxu0 0
      %4737 = vmatpush1.bf16.msra.mxu0 0
      %4738 = vmatprep.mubr.bf16.mxu0 0
      %4739 = vmatmul.mubr.bf16.gmra.mrb[0].mxu0 %v4550
      %v4740 = vpop.f32.mrb[0].mxu0
      %v4741 = vadd.f32 %v4657, %v4740
      %v4742 = vpop.f32.mrb[0].mxu0
      %v4743 = vpop.f32.mrb[0].mxu0
      %v4744 = vpop.f32.mrb[0].mxu0
      %4745 = vdwg.mxu0
      %v4746 = vmax.f32 %v4741, 0.0
      %4747 = vst [vmem:[#allocation2] sm:$0x1] %v4480
      %4748 = vst [vmem:[#allocation2 + $0x1] sm:$0x1] %v4640
      %4749 = vst [vmem:[#allocation2 + $0x2] sm:$0x1] %v4746
      %4750 = vst [vmem:[#allocation2 + $0x3] sm:$0x1] %v4533
      %4751 = vst [vmem:[#allocation2 + $0x4] sm:$0xff] %v2382
      %4752 = vst [vmem:[#allocation2 + $0xc] sm:$0xff] %v2383
      %v4753 = vld [vmem:[#allocation2] sm:$0xff]
      %v4754 = vld [vmem:[#allocation2 + $0x8] sm:$0xff]
      %v4755 = vld [vmem:[#allocation2 + $0x10] sm:$0xf]
      %v4756 = vld [vmem:[%s57] sm:$0xff]
      %v4757 = vld [vmem:[%s57 + $0x8] sm:$0xf]
      %v4758 = vld [vmem:[%s57 + $0xc] sm:$0xff]
      %v4759 = vld [vmem:[%s57 + $0x14] sm:$0xf]
      %v4760 = vld [vmem:[%s57 + $0x18] sm:$0xff]
      %v4761 = vld [vmem:[%s57 + $0x20] sm:$0xf]
      %v4762 = vld [vmem:[%s57 + $0x24] sm:$0xff]
      %v4763 = vld [vmem:[%s57 + $0x2c] sm:$0xf]
      %v4764 = vld [vmem:[%s57 + $0x30] sm:$0xff]
      %v4765 = vld [vmem:[%s57 + $0x38] sm:$0xf]
      %v4766 = vld [vmem:[%s57 + $0x3c] sm:$0xff]
      %v4767 = vld [vmem:[%s57 + $0x44] sm:$0xf]
      %v4768 = vld [vmem:[%s57 + $0x48] sm:$0xff]
      %v4769 = vld [vmem:[%s57 + $0x50] sm:$0xf]
      %v4770 = vld [vmem:[%s57 + $0x54] sm:$0xff]
      %v4771 = vld [vmem:[%s57 + $0x5c] sm:$0xf]
      %v4772 = vld [vmem:[%s57 + $0x60] sm:$0xff]
      %v4773 = vld [vmem:[%s57 + $0x68] sm:$0xf]
      %v4774 = vld [vmem:[%s57 + $0x6c] sm:$0xff]
      %v4775 = vld [vmem:[%s57 + $0x74] sm:$0xf]
      %v4776 = vld [vmem:[%s57 + $0x78] sm:$0xff]
      %v4777 = vld [vmem:[%s57 + $0x80] sm:$0xf]
      %v4778 = vld [vmem:[%s57 + $0x84] sm:$0xff]
      %v4779 = vld [vmem:[%s57 + $0x8c] sm:$0xf]
      %v4780 = vld [vmem:[%s57 + $0x90] sm:$0xff]
      %v4781 = vld [vmem:[%s57 + $0x98] sm:$0xf]
      %v4782 = vld [vmem:[%s57 + $0x9c] sm:$0xff]
      %v4783 = vld [vmem:[%s57 + $0xa4] sm:$0xf]
      %v4784 = vld [vmem:[%s57 + $0xa8] sm:$0xff]
      %v4785 = vld [vmem:[%s57 + $0xb0] sm:$0xf]
      %v4786 = vld [vmem:[%s57 + $0xb4] sm:$0xff]
      %v4787 = vld [vmem:[%s57 + $0xbc] sm:$0xf]
      %v4788 = vpack.c.bf16 %v4754, %v4753
      %v4789 = vpack.c.bf16 %v4755, %v4755
      %v4790 = vld [vmem:[%s59] sm:$0x7]
      %v4792 = vlaneseq
      %v4793 = vshrl.u32 %v4792, 7
      %v4794 = vsub.s32 0, %v4793
      %v4795 = vrot.slane %v4790, %v4794
      %v4796 = vlaneseq
      %v4797 = vshrl.u32 %v4796, 7
      %v4798 = vsub.s32 1, %v4797
      %v4799 = vrot.slane %v4790, %v4798
      %v4800 = vlaneseq
      %v4801 = vshrl.u32 %v4800, 7
      %v4802 = vsub.s32 2, %v4801
      %v4803 = vrot.slane %v4790, %v4802
      %v4839 = vunpack.c.l.b16 %v4756
      %v4840 = vunpack.c.h.b16 %v4756
      %v4841 = vunpack.c.l.b16 %v4757
      %v4842 = vunpack.c.l.b16 %v4758
      %v4843 = vunpack.c.h.b16 %v4758
      %v4844 = vunpack.c.l.b16 %v4759
      %v4845 = vunpack.c.l.b16 %v4760
      %v4846 = vunpack.c.h.b16 %v4760
      %v4847 = vunpack.c.l.b16 %v4761
      %v4848 = vunpack.c.l.b16 %v4762
      %v4849 = vunpack.c.h.b16 %v4762
      %v4850 = vunpack.c.l.b16 %v4763
      %v4851 = vunpack.c.l.b16 %v4764
      %v4852 = vunpack.c.h.b16 %v4764
      %v4853 = vunpack.c.l.b16 %v4765
      %v4854 = vunpack.c.l.b16 %v4766
      %v4855 = vunpack.c.h.b16 %v4766
      %v4856 = vunpack.c.l.b16 %v4767
      %v4857 = vunpack.c.l.b16 %v4768
      %v4858 = vunpack.c.h.b16 %v4768
      %v4859 = vunpack.c.l.b16 %v4769
      %v4860 = vunpack.c.l.b16 %v4770
      %v4861 = vunpack.c.h.b16 %v4770
      %v4862 = vunpack.c.l.b16 %v4771
      %v4863 = vunpack.c.l.b16 %v4772
      %v4864 = vunpack.c.h.b16 %v4772
      %v4865 = vunpack.c.l.b16 %v4773
      %v4866 = vunpack.c.l.b16 %v4774
      %v4867 = vunpack.c.h.b16 %v4774
      %v4868 = vunpack.c.l.b16 %v4775
      %v4869 = vunpack.c.l.b16 %v4776
      %v4870 = vunpack.c.h.b16 %v4776
      %v4871 = vunpack.c.l.b16 %v4777
      %v4872 = vunpack.c.l.b16 %v4778
      %v4873 = vunpack.c.h.b16 %v4778
      %v4874 = vunpack.c.l.b16 %v4779
      %v4875 = vunpack.c.l.b16 %v4780
      %v4876 = vunpack.c.h.b16 %v4780
      %v4877 = vunpack.c.l.b16 %v4781
      %v4878 = vunpack.c.l.b16 %v4782
      %v4879 = vunpack.c.h.b16 %v4782
      %v4880 = vunpack.c.l.b16 %v4783
      %v4881 = vunpack.c.l.b16 %v4784
      %v4882 = vunpack.c.h.b16 %v4784
      %v4883 = vunpack.c.l.b16 %v4785
      %v4884 = vunpack.c.l.b16 %v4786
      %v4885 = vunpack.c.h.b16 %v4786
      %v4886 = vunpack.c.l.b16 %v4787
      %v4887 = vpack.c.b16 %v4842, %v4839
      %v4888 = vpack.c.b16 %v4843, %v4840
      %v4889 = vpack.c.b16 %v4844, %v4841
      %v4890 = vpack.c.b16 %v4848, %v4845
      %v4891 = vpack.c.b16 %v4849, %v4846
      %v4892 = vpack.c.b16 %v4850, %v4847
      %v4893 = vpack.c.b16 %v4854, %v4851
      %v4894 = vpack.c.b16 %v4855, %v4852
      %v4895 = vpack.c.b16 %v4856, %v4853
      %v4896 = vpack.c.b16 %v4860, %v4857
      %v4897 = vpack.c.b16 %v4861, %v4858
      %v4898 = vpack.c.b16 %v4862, %v4859
      %v4899 = vpack.c.b16 %v4866, %v4863
      %v4900 = vpack.c.b16 %v4867, %v4864
      %v4901 = vpack.c.b16 %v4868, %v4865
      %v4902 = vpack.c.b16 %v4872, %v4869
      %v4903 = vpack.c.b16 %v4873, %v4870
      %v4904 = vpack.c.b16 %v4874, %v4871
      %v4905 = vpack.c.b16 %v4878, %v4875
      %v4906 = vpack.c.b16 %v4879, %v4876
      %v4907 = vpack.c.b16 %v4880, %v4877
      %v4908 = vpack.c.b16 %v4884, %v4881
      %v4909 = vpack.c.b16 %v4885, %v4882
      %v4910 = vpack.c.b16 %v4886, %v4883
      %4935 = vmatprep.subr.bf16.mxu0 %v4888
      %4936 = vmatpush1.bf16.msra.mxu0 %v4887
      %4937 = vmatprep.subr.bf16.mxu0 %v4891
      %4938 = vmatpush1.bf16.msra.mxu0 %v4890
      %4939 = vmatprep.subr.bf16.mxu0 %v4894
      %4940 = vmatpush1.bf16.msra.mxu0 %v4893
      %4941 = vmatprep.subr.bf16.mxu0 %v4897
      %4942 = vmatpush1.bf16.msra.mxu0 %v4896
      %4943 = vmatprep.subr.bf16.mxu0 %v4900
      %4944 = vmatpush1.bf16.msra.mxu0 %v4899
      %4945 = vmatprep.subr.bf16.mxu0 %v4903
      %4946 = vmatpush1.bf16.msra.mxu0 %v4902
      %4947 = vmatprep.subr.bf16.mxu0 %v4906
      %4948 = vmatpush1.bf16.msra.mxu0 %v4905
      %4949 = vmatprep.subr.bf16.mxu0 %v4909
      %4950 = vmatpush1.bf16.msra.mxu0 %v4908
      %4951 = vmatprep.subr.bf16.mxu0 0
      %4952 = vmatpush1.bf16.msra.mxu0 0
      %4953 = vmatprep.subr.bf16.mxu0 0
      %4954 = vmatpush1.bf16.msra.mxu0 0
      %4955 = vmatprep.subr.bf16.mxu0 0
      %4956 = vmatpush1.bf16.msra.mxu0 0
      %4957 = vmatprep.subr.bf16.mxu0 0
      %4958 = vmatpush1.bf16.msra.mxu0 0
      %4959 = vmatprep.subr.bf16.mxu0 0
      %4960 = vmatpush1.bf16.msra.mxu0 0
      %4961 = vmatprep.subr.bf16.mxu0 0
      %4962 = vmatpush1.bf16.msra.mxu0 0
      %4963 = vmatprep.subr.bf16.mxu0 0
      %4964 = vmatpush1.bf16.msra.mxu0 0
      %4965 = vmatprep.subr.bf16.mxu0 0
      %4966 = vmatpush1.bf16.msra.mxu0 0
      %4967 = vmatprep.mubr.bf16.mxu0 0
      %4968 = vmatmul.mubr.bf16.gmra.mrb[0].mxu0 %v4788
      %v4969 = vpop.f32.mrb[0].mxu0
      %v4970 = vadd.f32 %v4795, %v4969
      %v4971 = vpop.f32.mrb[0].mxu0
      %v4972 = vadd.f32 %v4799, %v4971
      %v4973 = vpop.f32.mrb[0].mxu0
      %v4974 = vadd.f32 %v4795, %v4973
      %v4975 = vpop.f32.mrb[0].mxu0
      %v4976 = vadd.f32 %v4799, %v4975
      %4977 = vmatprep.mubr.bf16.mxu0 0
      %4978 = vmatmul.mubr.bf16.gmra.mrb[0].mxu0 %v4789
      %v4979 = vpop.f32.mrb[0].mxu0
      %v4980 = vadd.f32 %v4795, %v4979
      %v4981 = vpop.f32.mrb[0].mxu0
      %v4982 = vadd.f32 %v4799, %v4981
      %v4983 = vpop.f32.mrb[0].mxu0
      %v4984 = vpop.f32.mrb[0].mxu0
      %4985 = vdwg.mxu0
      %4986 = vmatprep.subr.bf16.mxu0 0
      %4987 = vmatpush1.bf16.msra.mxu0 %v4889
      %4988 = vmatprep.subr.bf16.mxu0 0
      %4989 = vmatpush1.bf16.msra.mxu0 %v4892
      %4990 = vmatprep.subr.bf16.mxu0 0
      %4991 = vmatpush1.bf16.msra.mxu0 %v4895
      %4992 = vmatprep.subr.bf16.mxu0 0
      %4993 = vmatpush1.bf16.msra.mxu0 %v4898
      %4994 = vmatprep.subr.bf16.mxu0 0
      %4995 = vmatpush1.bf16.msra.mxu0 %v4901
      %4996 = vmatprep.subr.bf16.mxu0 0
      %4997 = vmatpush1.bf16.msra.mxu0 %v4904
      %4998 = vmatprep.subr.bf16.mxu0 0
      %4999 = vmatpush1.bf16.msra.mxu0 %v4907
      %5000 = vmatprep.subr.bf16.mxu0 0
      %5001 = vmatpush1.bf16.msra.mxu0 %v4910
      %5002 = vmatprep.subr.bf16.mxu0 0
      %5003 = vmatpush1.bf16.msra.mxu0 0
      %5004 = vmatprep.subr.bf16.mxu0 0
      %5005 = vmatpush1.bf16.msra.mxu0 0
      %5006 = vmatprep.subr.bf16.mxu0 0
      %5007 = vmatpush1.bf16.msra.mxu0 0
      %5008 = vmatprep.subr.bf16.mxu0 0
      %5009 = vmatpush1.bf16.msra.mxu0 0
      %5010 = vmatprep.subr.bf16.mxu0 0
      %5011 = vmatpush1.bf16.msra.mxu0 0
      %5012 = vmatprep.subr.bf16.mxu0 0
      %5013 = vmatpush1.bf16.msra.mxu0 0
      %5014 = vmatprep.subr.bf16.mxu0 0
      %5015 = vmatpush1.bf16.msra.mxu0 0
      %5016 = vmatprep.subr.bf16.mxu0 0
      %5017 = vmatpush1.bf16.msra.mxu0 0
      %5018 = vmatprep.mubr.bf16.mxu0 0
      %5019 = vmatmul.mubr.bf16.gmra.mrb[0].mxu0 %v4788
      %v5020 = vpop.f32.mrb[0].mxu0
      %v5021 = vadd.f32 %v4803, %v5020
      %v5022 = vpop.f32.mrb[0].mxu0
      %v5023 = vpop.f32.mrb[0].mxu0
      %v5024 = vadd.f32 %v4803, %v5023
      %v5025 = vpop.f32.mrb[0].mxu0
      %5026 = vmatprep.mubr.bf16.mxu0 0
      %5027 = vmatmul.mubr.bf16.gmra.mrb[0].mxu0 %v4789
      %v5028 = vpop.f32.mrb[0].mxu0
      %v5029 = vadd.f32 %v4803, %v5028
      %v5030 = vpop.f32.mrb[0].mxu0
      %v5031 = vpop.f32.mrb[0].mxu0
      %v5032 = vpop.f32.mrb[0].mxu0
      %5033 = vdwg.mxu0
      %5037 = vrot.lane.b32.xlu0 %v4970, 112
      %v5038 = vpop.permute.xlu0 %5037
      %5039 = vrot.lane.b32.xlu0 %v4974, 112
      %v5040 = vpop.permute.xlu0 %5039
      %5041 = vrot.lane.b32.xlu0 %v4980, 112
      %v5042 = vpop.permute.xlu0 %5041
      %5043 = vrot.lane.b32.xlu0 %v4970, 96
      %v5044 = vpop.permute.xlu0 %5043
      %5045 = vrot.lane.b32.xlu0 %v4974, 96
      %v5046 = vpop.permute.xlu0 %5045
      %5047 = vrot.lane.b32.xlu0 %v4980, 96
      %v5048 = vpop.permute.xlu0 %5047
      %5049 = vrot.lane.b32.xlu0 %v4970, 80
      %v5050 = vpop.permute.xlu0 %5049
      %5051 = vrot.lane.b32.xlu0 %v4974, 80
      %v5052 = vpop.permute.xlu0 %5051
      %5053 = vrot.lane.b32.xlu0 %v4980, 80
      %v5054 = vpop.permute.xlu0 %5053
      %5055 = vrot.lane.b32.xlu0 %v4970, 64
      %v5056 = vpop.permute.xlu0 %5055
      %5057 = vrot.lane.b32.xlu0 %v4974, 64
      %v5058 = vpop.permute.xlu0 %5057
      %5059 = vrot.lane.b32.xlu0 %v4980, 64
      %v5060 = vpop.permute.xlu0 %5059
      %5061 = vrot.lane.b32.xlu0 %v4970, 48
      %v5062 = vpop.permute.xlu0 %5061
      %5063 = vrot.lane.b32.xlu0 %v4974, 48
      %v5064 = vpop.permute.xlu0 %5063
      %5065 = vrot.lane.b32.xlu0 %v4980, 48
      %v5066 = vpop.permute.xlu0 %5065
      %5067 = vrot.lane.b32.xlu0 %v4970, 32
      %v5068 = vpop.permute.xlu0 %5067
      %5069 = vrot.lane.b32.xlu0 %v4974, 32
      %v5070 = vpop.permute.xlu0 %5069
      %5071 = vrot.lane.b32.xlu0 %v4980, 32
      %v5072 = vpop.permute.xlu0 %5071
      %5073 = vrot.lane.b32.xlu0 %v4970, 16
      %v5074 = vpop.permute.xlu0 %5073
      %5075 = vrot.lane.b32.xlu0 %v4974, 16
      %v5076 = vpop.permute.xlu0 %5075
      %5077 = vrot.lane.b32.xlu0 %v4980, 16
      %v5078 = vpop.permute.xlu0 %5077
      %5082 = vrot.lane.b32.xlu0 %v4972, 112
      %v5083 = vpop.permute.xlu0 %5082
      %5084 = vrot.lane.b32.xlu0 %v4976, 112
      %v5085 = vpop.permute.xlu0 %5084
      %5086 = vrot.lane.b32.xlu0 %v4982, 112
      %v5087 = vpop.permute.xlu0 %5086
      %5088 = vrot.lane.b32.xlu0 %v4972, 96
      %v5089 = vpop.permute.xlu0 %5088
      %5090 = vrot.lane.b32.xlu0 %v4976, 96
      %v5091 = vpop.permute.xlu0 %5090
      %5092 = vrot.lane.b32.xlu0 %v4982, 96
      %v5093 = vpop.permute.xlu0 %5092
      %5094 = vrot.lane.b32.xlu0 %v4972, 80
      %v5095 = vpop.permute.xlu0 %5094
      %5096 = vrot.lane.b32.xlu0 %v4976, 80
      %v5097 = vpop.permute.xlu0 %5096
      %5098 = vrot.lane.b32.xlu0 %v4982, 80
      %v5099 = vpop.permute.xlu0 %5098
      %5100 = vrot.lane.b32.xlu0 %v4972, 64
      %v5101 = vpop.permute.xlu0 %5100
      %5102 = vrot.lane.b32.xlu0 %v4976, 64
      %v5103 = vpop.permute.xlu0 %5102
      %5104 = vrot.lane.b32.xlu0 %v4982, 64
      %v5105 = vpop.permute.xlu0 %5104
      %5106 = vrot.lane.b32.xlu0 %v4972, 48
      %v5107 = vpop.permute.xlu0 %5106
      %5108 = vrot.lane.b32.xlu0 %v4976, 48
      %v5109 = vpop.permute.xlu0 %5108
      %5110 = vrot.lane.b32.xlu0 %v4982, 48
      %v5111 = vpop.permute.xlu0 %5110
      %5112 = vrot.lane.b32.xlu0 %v4972, 32
      %v5113 = vpop.permute.xlu0 %5112
      %5114 = vrot.lane.b32.xlu0 %v4976, 32
      %v5115 = vpop.permute.xlu0 %5114
      %5116 = vrot.lane.b32.xlu0 %v4982, 32
      %v5117 = vpop.permute.xlu0 %5116
      %5118 = vrot.lane.b32.xlu0 %v4972, 16
      %v5119 = vpop.permute.xlu0 %5118
      %5120 = vrot.lane.b32.xlu0 %v4976, 16
      %v5121 = vpop.permute.xlu0 %5120
      %5122 = vrot.lane.b32.xlu0 %v4982, 16
      %v5123 = vpop.permute.xlu0 %5122
      %5127 = vrot.lane.b32.xlu0 %v5021, 112
      %v5128 = vpop.permute.xlu0 %5127
      %5129 = vrot.lane.b32.xlu0 %v5024, 112
      %v5130 = vpop.permute.xlu0 %5129
      %5131 = vrot.lane.b32.xlu0 %v5029, 112
      %v5132 = vpop.permute.xlu0 %5131
      %5135 = vrot.lane.b32.xlu0 %v5021, 96
      %v5136 = vpop.permute.xlu0 %5135
      %5137 = vrot.lane.b32.xlu0 %v5024, 96
      %v5138 = vpop.permute.xlu0 %5137
      %5139 = vrot.lane.b32.xlu0 %v5029, 96
      %v5140 = vpop.permute.xlu0 %5139
      %5143 = vrot.lane.b32.xlu0 %v5021, 80
      %v5144 = vpop.permute.xlu0 %5143
      %5145 = vrot.lane.b32.xlu0 %v5024, 80
      %v5146 = vpop.permute.xlu0 %5145
      %5147 = vrot.lane.b32.xlu0 %v5029, 80
      %v5148 = vpop.permute.xlu0 %5147
      %5151 = vrot.lane.b32.xlu0 %v5021, 64
      %v5152 = vpop.permute.xlu0 %5151
      %5153 = vrot.lane.b32.xlu0 %v5024, 64
      %v5154 = vpop.permute.xlu0 %5153
      %5155 = vrot.lane.b32.xlu0 %v5029, 64
      %v5156 = vpop.permute.xlu0 %5155
      %5159 = vrot.lane.b32.xlu0 %v5021, 48
      %v5160 = vpop.permute.xlu0 %5159
      %5161 = vrot.lane.b32.xlu0 %v5024, 48
      %v5162 = vpop.permute.xlu0 %5161
      %5163 = vrot.lane.b32.xlu0 %v5029, 48
      %v5164 = vpop.permute.xlu0 %5163
      %5167 = vrot.lane.b32.xlu0 %v5021, 32
      %v5168 = vpop.permute.xlu0 %5167
      %5169 = vrot.lane.b32.xlu0 %v5024, 32
      %v5170 = vpop.permute.xlu0 %5169
      %5171 = vrot.lane.b32.xlu0 %v5029, 32
      %v5172 = vpop.permute.xlu0 %5171
      %5175 = vrot.lane.b32.xlu0 %v5021, 16
      %v5176 = vpop.permute.xlu0 %5175
      %5177 = vrot.lane.b32.xlu0 %v5024, 16
      %v5178 = vpop.permute.xlu0 %5177
      %5179 = vrot.lane.b32.xlu0 %v5029, 16
      %v5180 = vpop.permute.xlu0 %5179
      %v5183 = vsel %vm1561, %v4970, 0
      %v5185 = vsel %vm1561, %v4974, 0
      %v5187 = vsel %vm1561, %v4980, 0
      %v5189 = vsel %vm1561, %v4972, 0
      %v5191 = vsel %vm1561, %v4976, 0
      %v5193 = vsel %vm1561, %v4982, 0
      %5195 = vmatprep.subr.mxu0 0.0
      %5196 = vmatpush1.xpose.msra.mxu0 %v5189
      %5197 = vmatprep.subr.mxu0 0.0
      %5198 = vmatpush1.xpose.msra.mxu0 %v5191
      %5199 = vmatprep.subr.mxu0 0.0
      %5200 = vmatpush1.xpose.msra.mxu0 %v5193
      %5201 = vmatprep.subr.mxu0 0.0
      %5202 = vmatpush1.xpose.msra.mxu0 0.0
      %5203 = vmatprep.subr.mxu0 0.0
      %5204 = vmatpush1.xpose.msra.mxu0 0.0
      %5205 = vmatprep.subr.mxu0 0.0
      %5206 = vmatpush1.xpose.msra.mxu0 0.0
      %5207 = vmatprep.subr.mxu0 0.0
      %5208 = vmatpush1.xpose.msra.mxu0 0.0
      %5209 = vmatprep.subr.mxu0 0.0
      %5210 = vmatpush1.xpose.msra.mxu0 0.0
      %5211 = vmatprep.subr.mxu0 0.0
      %5212 = vmatpush1.xpose.msra.mxu0 0.0
      %5213 = vmatprep.subr.mxu0 0.0
      %5214 = vmatpush1.xpose.msra.mxu0 0.0
      %5215 = vmatprep.subr.mxu0 0.0
      %5216 = vmatpush1.xpose.msra.mxu0 0.0
      %5217 = vmatprep.subr.mxu0 0.0
      %5218 = vmatpush1.xpose.msra.mxu0 0.0
      %5219 = vmatprep.subr.mxu0 0.0
      %5220 = vmatpush1.xpose.msra.mxu0 0.0
      %5221 = vmatprep.subr.mxu0 0.0
      %5222 = vmatpush1.xpose.msra.mxu0 0.0
      %5223 = vmatprep.subr.mxu0 0.0
      %5224 = vmatpush1.xpose.msra.mxu0 0.0
      %5225 = vmatprep.subr.mxu0 0.0
      %5226 = vmatpush1.xpose.msra.mxu0 0.0
      %5227 = vmatprep.subr.mxu0 0.0
      %5228 = vmatpush1.xpose.msra.mxu0 0.0
      %5229 = vmatprep.subr.mxu0 0.0
      %5230 = vmatpush1.xpose.msra.mxu0 0.0
      %5231 = vmatprep.subr.mxu0 0.0
      %5232 = vmatpush1.xpose.msra.mxu0 0.0
      %5233 = vmatprep.subr.mxu0 0.0
      %5234 = vmatpush1.xpose.msra.mxu0 0.0
      %5235 = vmatprep.subr.mxu0 0.0
      %5236 = vmatpush1.xpose.msra.mxu0 0.0
      %5237 = vmatprep.subr.mxu0 0.0
      %5238 = vmatpush1.xpose.msra.mxu0 0.0
      %5239 = vmatprep.subr.mxu0 0.0
      %5240 = vmatpush1.xpose.msra.mxu0 0.0
      %5241 = vmatprep.subr.mxu0 0.0
      %5242 = vmatpush1.xpose.msra.mxu0 0.0
      %5243 = vmatprep.subr.mxu0 0.0
      %5244 = vmatpush1.xpose.msra.mxu0 0.0
      %5245 = vmatprep.subr.mxu0 0.0
      %5246 = vmatpush1.xpose.msra.mxu0 0.0
      %5247 = vmatprep.subr.mxu0 0.0
      %5248 = vmatpush1.xpose.msra.mxu0 0.0
      %5249 = vmatprep.subr.mxu0 0.0
      %5250 = vmatpush1.xpose.msra.mxu0 0.0
      %5251 = vmatprep.subr.mxu0 0.0
      %5252 = vmatpush1.xpose.msra.mxu0 0.0
      %5253 = vmatprep.subr.mxu0 0.0
      %5254 = vmatpush1.xpose.msra.mxu0 0.0
      %5255 = vmatprep.subr.mxu0 0.0
      %5256 = vmatpush1.xpose.msra.mxu0 0.0
      %5257 = vmatprep.subr.mxu0 0.0
      %5258 = vmatpush1.xpose.msra.mxu0 0.0
      %5259 = vmatprep.mubr.f32.mxu0 0.0
      %5260 = vmatmul.mubr.f32.gmra.mrb[0].mxu0 %v5183
      %v5261 = vpop.f32.mrb[0].mxu0
      %v5262 = vadd.f32 0.0, %v5261
      %v5263 = vpop.f32.mrb[0].mxu0
      %5264 = vmatprep.mubr.f32.mxu0 0.0
      %5265 = vmatmul.mubr.f32.gmra.mrb[0].mxu0 %v5185
      %v5266 = vpop.f32.mrb[0].mxu0
      %v5267 = vadd.f32 0.0, %v5266
      %v5268 = vpop.f32.mrb[0].mxu0
      %5269 = vmatprep.mubr.f32.mxu0 0.0
      %5270 = vmatmul.mubr.f32.gmra.mrb[0].mxu0 %v5187
      %v5271 = vpop.f32.mrb[0].mxu0
      %v5272 = vadd.f32 0.0, %v5271
      %v5273 = vpop.f32.mrb[0].mxu0
      %5274 = vdwg.mxu0
      %v5275 = vsel %vm1561, %v5038, 0
      %v5277 = vsel %vm1561, %v5040, 0
      %v5279 = vsel %vm1561, %v5042, 0
      %v5281 = vsel %vm1561, %v5083, 0
      %v5283 = vsel %vm1561, %v5085, 0
      %v5285 = vsel %vm1561, %v5087, 0
      %5287 = vmatprep.subr.mxu0 0.0
      %5288 = vmatpush1.xpose.msra.mxu0 %v5281
      %5289 = vmatprep.subr.mxu0 0.0
      %5290 = vmatpush1.xpose.msra.mxu0 %v5283
      %5291 = vmatprep.subr.mxu0 0.0
      %5292 = vmatpush1.xpose.msra.mxu0 %v5285
      %5293 = vmatprep.subr.mxu0 0.0
      %5294 = vmatpush1.xpose.msra.mxu0 0.0
      %5295 = vmatprep.subr.mxu0 0.0
      %5296 = vmatpush1.xpose.msra.mxu0 0.0
      %5297 = vmatprep.subr.mxu0 0.0
      %5298 = vmatpush1.xpose.msra.mxu0 0.0
      %5299 = vmatprep.subr.mxu0 0.0
      %5300 = vmatpush1.xpose.msra.mxu0 0.0
      %5301 = vmatprep.subr.mxu0 0.0
      %5302 = vmatpush1.xpose.msra.mxu0 0.0
      %5303 = vmatprep.subr.mxu0 0.0
      %5304 = vmatpush1.xpose.msra.mxu0 0.0
      %5305 = vmatprep.subr.mxu0 0.0
      %5306 = vmatpush1.xpose.msra.mxu0 0.0
      %5307 = vmatprep.subr.mxu0 0.0
      %5308 = vmatpush1.xpose.msra.mxu0 0.0
      %5309 = vmatprep.subr.mxu0 0.0
      %5310 = vmatpush1.xpose.msra.mxu0 0.0
      %5311 = vmatprep.subr.mxu0 0.0
      %5312 = vmatpush1.xpose.msra.mxu0 0.0
      %5313 = vmatprep.subr.mxu0 0.0
      %5314 = vmatpush1.xpose.msra.mxu0 0.0
      %5315 = vmatprep.subr.mxu0 0.0
      %5316 = vmatpush1.xpose.msra.mxu0 0.0
      %5317 = vmatprep.subr.mxu0 0.0
      %5318 = vmatpush1.xpose.msra.mxu0 0.0
      %5319 = vmatprep.subr.mxu0 0.0
      %5320 = vmatpush1.xpose.msra.mxu0 0.0
      %5321 = vmatprep.subr.mxu0 0.0
      %5322 = vmatpush1.xpose.msra.mxu0 0.0
      %5323 = vmatprep.subr.mxu0 0.0
      %5324 = vmatpush1.xpose.msra.mxu0 0.0
      %5325 = vmatprep.subr.mxu0 0.0
      %5326 = vmatpush1.xpose.msra.mxu0 0.0
      %5327 = vmatprep.subr.mxu0 0.0
      %5328 = vmatpush1.xpose.msra.mxu0 0.0
      %5329 = vmatprep.subr.mxu0 0.0
      %5330 = vmatpush1.xpose.msra.mxu0 0.0
      %5331 = vmatprep.subr.mxu0 0.0
      %5332 = vmatpush1.xpose.msra.mxu0 0.0
      %5333 = vmatprep.subr.mxu0 0.0
      %5334 = vmatpush1.xpose.msra.mxu0 0.0
      %5335 = vmatprep.subr.mxu0 0.0
      %5336 = vmatpush1.xpose.msra.mxu0 0.0
      %5337 = vmatprep.subr.mxu0 0.0
      %5338 = vmatpush1.xpose.msra.mxu0 0.0
      %5339 = vmatprep.subr.mxu0 0.0
      %5340 = vmatpush1.xpose.msra.mxu0 0.0
      %5341 = vmatprep.subr.mxu0 0.0
      %5342 = vmatpush1.xpose.msra.mxu0 0.0
      %5343 = vmatprep.subr.mxu0 0.0
      %5344 = vmatpush1.xpose.msra.mxu0 0.0
      %5345 = vmatprep.subr.mxu0 0.0
      %5346 = vmatpush1.xpose.msra.mxu0 0.0
      %5347 = vmatprep.subr.mxu0 0.0
      %5348 = vmatpush1.xpose.msra.mxu0 0.0
      %5349 = vmatprep.subr.mxu0 0.0
      %5350 = vmatpush1.xpose.msra.mxu0 0.0
      %5351 = vmatprep.mubr.f32.mxu0 0.0
      %5352 = vmatmul.mubr.f32.gmra.mrb[0].mxu0 %v5275
      %v5353 = vpop.f32.mrb[0].mxu0
      %v5354 = vadd.f32 0.0, %v5353
      %v5355 = vpop.f32.mrb[0].mxu0
      %5356 = vmatprep.mubr.f32.mxu0 0.0
      %5357 = vmatmul.mubr.f32.gmra.mrb[0].mxu0 %v5277
      %v5358 = vpop.f32.mrb[0].mxu0
      %v5359 = vadd.f32 0.0, %v5358
      %v5360 = vpop.f32.mrb[0].mxu0
      %5361 = vmatprep.mubr.f32.mxu0 0.0
      %5362 = vmatmul.mubr.f32.gmra.mrb[0].mxu0 %v5279
      %v5363 = vpop.f32.mrb[0].mxu0
      %v5364 = vadd.f32 0.0, %v5363
      %v5365 = vpop.f32.mrb[0].mxu0
      %5366 = vdwg.mxu0
      %v5367 = vsel %vm1561, %v5044, 0
      %v5369 = vsel %vm1561, %v5046, 0
      %v5371 = vsel %vm1561, %v5048, 0
      %v5373 = vsel %vm1561, %v5089, 0
      %v5375 = vsel %vm1561, %v5091, 0
      %v5377 = vsel %vm1561, %v5093, 0
      %5379 = vmatprep.subr.mxu0 0.0
      %5380 = vmatpush1.xpose.msra.mxu0 %v5373
      %5381 = vmatprep.subr.mxu0 0.0
      %5382 = vmatpush1.xpose.msra.mxu0 %v5375
      %5383 = vmatprep.subr.mxu0 0.0
      %5384 = vmatpush1.xpose.msra.mxu0 %v5377
      %5385 = vmatprep.subr.mxu0 0.0
      %5386 = vmatpush1.xpose.msra.mxu0 0.0
      %5387 = vmatprep.subr.mxu0 0.0
      %5388 = vmatpush1.xpose.msra.mxu0 0.0
      %5389 = vmatprep.subr.mxu0 0.0
      %5390 = vmatpush1.xpose.msra.mxu0 0.0
      %5391 = vmatprep.subr.mxu0 0.0
      %5392 = vmatpush1.xpose.msra.mxu0 0.0
      %5393 = vmatprep.subr.mxu0 0.0
      %5394 = vmatpush1.xpose.msra.mxu0 0.0
      %5395 = vmatprep.subr.mxu0 0.0
      %5396 = vmatpush1.xpose.msra.mxu0 0.0
      %5397 = vmatprep.subr.mxu0 0.0
      %5398 = vmatpush1.xpose.msra.mxu0 0.0
      %5399 = vmatprep.subr.mxu0 0.0
      %5400 = vmatpush1.xpose.msra.mxu0 0.0
      %5401 = vmatprep.subr.mxu0 0.0
      %5402 = vmatpush1.xpose.msra.mxu0 0.0
      %5403 = vmatprep.subr.mxu0 0.0
      %5404 = vmatpush1.xpose.msra.mxu0 0.0
      %5405 = vmatprep.subr.mxu0 0.0
      %5406 = vmatpush1.xpose.msra.mxu0 0.0
      %5407 = vmatprep.subr.mxu0 0.0
      %5408 = vmatpush1.xpose.msra.mxu0 0.0
      %5409 = vmatprep.subr.mxu0 0.0
      %5410 = vmatpush1.xpose.msra.mxu0 0.0
      %5411 = vmatprep.subr.mxu0 0.0
      %5412 = vmatpush1.xpose.msra.mxu0 0.0
      %5413 = vmatprep.subr.mxu0 0.0
      %5414 = vmatpush1.xpose.msra.mxu0 0.0
      %5415 = vmatprep.subr.mxu0 0.0
      %5416 = vmatpush1.xpose.msra.mxu0 0.0
      %5417 = vmatprep.subr.mxu0 0.0
      %5418 = vmatpush1.xpose.msra.mxu0 0.0
      %5419 = vmatprep.subr.mxu0 0.0
      %5420 = vmatpush1.xpose.msra.mxu0 0.0
      %5421 = vmatprep.subr.mxu0 0.0
      %5422 = vmatpush1.xpose.msra.mxu0 0.0
      %5423 = vmatprep.subr.mxu0 0.0
      %5424 = vmatpush1.xpose.msra.mxu0 0.0
      %5425 = vmatprep.subr.mxu0 0.0
      %5426 = vmatpush1.xpose.msra.mxu0 0.0
      %5427 = vmatprep.subr.mxu0 0.0
      %5428 = vmatpush1.xpose.msra.mxu0 0.0
      %5429 = vmatprep.subr.mxu0 0.0
      %5430 = vmatpush1.xpose.msra.mxu0 0.0
      %5431 = vmatprep.subr.mxu0 0.0
      %5432 = vmatpush1.xpose.msra.mxu0 0.0
      %5433 = vmatprep.subr.mxu0 0.0
      %5434 = vmatpush1.xpose.msra.mxu0 0.0
      %5435 = vmatprep.subr.mxu0 0.0
      %5436 = vmatpush1.xpose.msra.mxu0 0.0
      %5437 = vmatprep.subr.mxu0 0.0
      %5438 = vmatpush1.xpose.msra.mxu0 0.0
      %5439 = vmatprep.subr.mxu0 0.0
      %5440 = vmatpush1.xpose.msra.mxu0 0.0
      %5441 = vmatprep.subr.mxu0 0.0
      %5442 = vmatpush1.xpose.msra.mxu0 0.0
      %5443 = vmatprep.mubr.f32.mxu0 0.0
      %5444 = vmatmul.mubr.f32.gmra.mrb[0].mxu0 %v5367
      %v5445 = vpop.f32.mrb[0].mxu0
      %v5446 = vadd.f32 0.0, %v5445
      %v5447 = vpop.f32.mrb[0].mxu0
      %5448 = vmatprep.mubr.f32.mxu0 0.0
      %5449 = vmatmul.mubr.f32.gmra.mrb[0].mxu0 %v5369
      %v5450 = vpop.f32.mrb[0].mxu0
      %v5451 = vadd.f32 0.0, %v5450
      %v5452 = vpop.f32.mrb[0].mxu0
      %5453 = vmatprep.mubr.f32.mxu0 0.0
      %5454 = vmatmul.mubr.f32.gmra.mrb[0].mxu0 %v5371
      %v5455 = vpop.f32.mrb[0].mxu0
      %v5456 = vadd.f32 0.0, %v5455
      %v5457 = vpop.f32.mrb[0].mxu0
      %5458 = vdwg.mxu0
      %v5459 = vsel %vm1561, %v5050, 0
      %v5461 = vsel %vm1561, %v5052, 0
      %v5463 = vsel %vm1561, %v5054, 0
      %v5465 = vsel %vm1561, %v5095, 0
      %v5467 = vsel %vm1561, %v5097, 0
      %v5469 = vsel %vm1561, %v5099, 0
      %5471 = vmatprep.subr.mxu0 0.0
      %5472 = vmatpush1.xpose.msra.mxu0 %v5465
      %5473 = vmatprep.subr.mxu0 0.0
      %5474 = vmatpush1.xpose.msra.mxu0 %v5467
      %5475 = vmatprep.subr.mxu0 0.0
      %5476 = vmatpush1.xpose.msra.mxu0 %v5469
      %5477 = vmatprep.subr.mxu0 0.0
      %5478 = vmatpush1.xpose.msra.mxu0 0.0
      %5479 = vmatprep.subr.mxu0 0.0
      %5480 = vmatpush1.xpose.msra.mxu0 0.0
      %5481 = vmatprep.subr.mxu0 0.0
      %5482 = vmatpush1.xpose.msra.mxu0 0.0
      %5483 = vmatprep.subr.mxu0 0.0
      %5484 = vmatpush1.xpose.msra.mxu0 0.0
      %5485 = vmatprep.subr.mxu0 0.0
      %5486 = vmatpush1.xpose.msra.mxu0 0.0
      %5487 = vmatprep.subr.mxu0 0.0
      %5488 = vmatpush1.xpose.msra.mxu0 0.0
      %5489 = vmatprep.subr.mxu0 0.0
      %5490 = vmatpush1.xpose.msra.mxu0 0.0
      %5491 = vmatprep.subr.mxu0 0.0
      %5492 = vmatpush1.xpose.msra.mxu0 0.0
      %5493 = vmatprep.subr.mxu0 0.0
      %5494 = vmatpush1.xpose.msra.mxu0 0.0
      %5495 = vmatprep.subr.mxu0 0.0
      %5496 = vmatpush1.xpose.msra.mxu0 0.0
      %5497 = vmatprep.subr.mxu0 0.0
      %5498 = vmatpush1.xpose.msra.mxu0 0.0
      %5499 = vmatprep.subr.mxu0 0.0
      %5500 = vmatpush1.xpose.msra.mxu0 0.0
      %5501 = vmatprep.subr.mxu0 0.0
      %5502 = vmatpush1.xpose.msra.mxu0 0.0
      %5503 = vmatprep.subr.mxu0 0.0
      %5504 = vmatpush1.xpose.msra.mxu0 0.0
      %5505 = vmatprep.subr.mxu0 0.0
      %5506 = vmatpush1.xpose.msra.mxu0 0.0
      %5507 = vmatprep.subr.mxu0 0.0
      %5508 = vmatpush1.xpose.msra.mxu0 0.0
      %5509 = vmatprep.subr.mxu0 0.0
      %5510 = vmatpush1.xpose.msra.mxu0 0.0
      %5511 = vmatprep.subr.mxu0 0.0
      %5512 = vmatpush1.xpose.msra.mxu0 0.0
      %5513 = vmatprep.subr.mxu0 0.0
      %5514 = vmatpush1.xpose.msra.mxu0 0.0
      %5515 = vmatprep.subr.mxu0 0.0
      %5516 = vmatpush1.xpose.msra.mxu0 0.0
      %5517 = vmatprep.subr.mxu0 0.0
      %5518 = vmatpush1.xpose.msra.mxu0 0.0
      %5519 = vmatprep.subr.mxu0 0.0
      %5520 = vmatpush1.xpose.msra.mxu0 0.0
      %5521 = vmatprep.subr.mxu0 0.0
      %5522 = vmatpush1.xpose.msra.mxu0 0.0
      %5523 = vmatprep.subr.mxu0 0.0
      %5524 = vmatpush1.xpose.msra.mxu0 0.0
      %5525 = vmatprep.subr.mxu0 0.0
      %5526 = vmatpush1.xpose.msra.mxu0 0.0
      %5527 = vmatprep.subr.mxu0 0.0
      %5528 = vmatpush1.xpose.msra.mxu0 0.0
      %5529 = vmatprep.subr.mxu0 0.0
      %5530 = vmatpush1.xpose.msra.mxu0 0.0
      %5531 = vmatprep.subr.mxu0 0.0
      %5532 = vmatpush1.xpose.msra.mxu0 0.0
      %5533 = vmatprep.subr.mxu0 0.0
      %5534 = vmatpush1.xpose.msra.mxu0 0.0
      %5535 = vmatprep.mubr.f32.mxu0 0.0
      %5536 = vmatmul.mubr.f32.gmra.mrb[0].mxu0 %v5459
      %v5537 = vpop.f32.mrb[0].mxu0
      %v5538 = vadd.f32 0.0, %v5537
      %v5539 = vpop.f32.mrb[0].mxu0
      %5540 = vmatprep.mubr.f32.mxu0 0.0
      %5541 = vmatmul.mubr.f32.gmra.mrb[0].mxu0 %v5461
      %v5542 = vpop.f32.mrb[0].mxu0
      %v5543 = vadd.f32 0.0, %v5542
      %v5544 = vpop.f32.mrb[0].mxu0
      %5545 = vmatprep.mubr.f32.mxu0 0.0
      %5546 = vmatmul.mubr.f32.gmra.mrb[0].mxu0 %v5463
      %v5547 = vpop.f32.mrb[0].mxu0
      %v5548 = vadd.f32 0.0, %v5547
      %v5549 = vpop.f32.mrb[0].mxu0
      %5550 = vdwg.mxu0
      %v5551 = vsel %vm1561, %v5056, 0
      %v5553 = vsel %vm1561, %v5058, 0
      %v5555 = vsel %vm1561, %v5060, 0
      %v5557 = vsel %vm1561, %v5101, 0
      %v5559 = vsel %vm1561, %v5103, 0
      %v5561 = vsel %vm1561, %v5105, 0
      %5563 = vmatprep.subr.mxu0 0.0
      %5564 = vmatpush1.xpose.msra.mxu0 %v5557
      %5565 = vmatprep.subr.mxu0 0.0
      %5566 = vmatpush1.xpose.msra.mxu0 %v5559
      %5567 = vmatprep.subr.mxu0 0.0
      %5568 = vmatpush1.xpose.msra.mxu0 %v5561
      %5569 = vmatprep.subr.mxu0 0.0
      %5570 = vmatpush1.xpose.msra.mxu0 0.0
      %5571 = vmatprep.subr.mxu0 0.0
      %5572 = vmatpush1.xpose.msra.mxu0 0.0
      %5573 = vmatprep.subr.mxu0 0.0
      %5574 = vmatpush1.xpose.msra.mxu0 0.0
      %5575 = vmatprep.subr.mxu0 0.0
      %5576 = vmatpush1.xpose.msra.mxu0 0.0
      %5577 = vmatprep.subr.mxu0 0.0
      %5578 = vmatpush1.xpose.msra.mxu0 0.0
      %5579 = vmatprep.subr.mxu0 0.0
      %5580 = vmatpush1.xpose.msra.mxu0 0.0
      %5581 = vmatprep.subr.mxu0 0.0
      %5582 = vmatpush1.xpose.msra.mxu0 0.0
      %5583 = vmatprep.subr.mxu0 0.0
      %5584 = vmatpush1.xpose.msra.mxu0 0.0
      %5585 = vmatprep.subr.mxu0 0.0
      %5586 = vmatpush1.xpose.msra.mxu0 0.0
      %5587 = vmatprep.subr.mxu0 0.0
      %5588 = vmatpush1.xpose.msra.mxu0 0.0
      %5589 = vmatprep.subr.mxu0 0.0
      %5590 = vmatpush1.xpose.msra.mxu0 0.0
      %5591 = vmatprep.subr.mxu0 0.0
      %5592 = vmatpush1.xpose.msra.mxu0 0.0
      %5593 = vmatprep.subr.mxu0 0.0
      %5594 = vmatpush1.xpose.msra.mxu0 0.0
      %5595 = vmatprep.subr.mxu0 0.0
      %5596 = vmatpush1.xpose.msra.mxu0 0.0
      %5597 = vmatprep.subr.mxu0 0.0
      %5598 = vmatpush1.xpose.msra.mxu0 0.0
      %5599 = vmatprep.subr.mxu0 0.0
      %5600 = vmatpush1.xpose.msra.mxu0 0.0
      %5601 = vmatprep.subr.mxu0 0.0
      %5602 = vmatpush1.xpose.msra.mxu0 0.0
      %5603 = vmatprep.subr.mxu0 0.0
      %5604 = vmatpush1.xpose.msra.mxu0 0.0
      %5605 = vmatprep.subr.mxu0 0.0
      %5606 = vmatpush1.xpose.msra.mxu0 0.0
      %5607 = vmatprep.subr.mxu0 0.0
      %5608 = vmatpush1.xpose.msra.mxu0 0.0
      %5609 = vmatprep.subr.mxu0 0.0
      %5610 = vmatpush1.xpose.msra.mxu0 0.0
      %5611 = vmatprep.subr.mxu0 0.0
      %5612 = vmatpush1.xpose.msra.mxu0 0.0
      %5613 = vmatprep.subr.mxu0 0.0
      %5614 = vmatpush1.xpose.msra.mxu0 0.0
      %5615 = vmatprep.subr.mxu0 0.0
      %5616 = vmatpush1.xpose.msra.mxu0 0.0
      %5617 = vmatprep.subr.mxu0 0.0
      %5618 = vmatpush1.xpose.msra.mxu0 0.0
      %5619 = vmatprep.subr.mxu0 0.0
      %5620 = vmatpush1.xpose.msra.mxu0 0.0
      %5621 = vmatprep.subr.mxu0 0.0
      %5622 = vmatpush1.xpose.msra.mxu0 0.0
      %5623 = vmatprep.subr.mxu0 0.0
      %5624 = vmatpush1.xpose.msra.mxu0 0.0
      %5625 = vmatprep.subr.mxu0 0.0
      %5626 = vmatpush1.xpose.msra.mxu0 0.0
      %5627 = vmatprep.mubr.f32.mxu0 0.0
      %5628 = vmatmul.mubr.f32.gmra.mrb[0].mxu0 %v5551
      %v5629 = vpop.f32.mrb[0].mxu0
      %v5630 = vadd.f32 0.0, %v5629
      %v5631 = vpop.f32.mrb[0].mxu0
      %5632 = vmatprep.mubr.f32.mxu0 0.0
      %5633 = vmatmul.mubr.f32.gmra.mrb[0].mxu0 %v5553
      %v5634 = vpop.f32.mrb[0].mxu0
      %v5635 = vadd.f32 0.0, %v5634
      %v5636 = vpop.f32.mrb[0].mxu0
      %5637 = vmatprep.mubr.f32.mxu0 0.0
      %5638 = vmatmul.mubr.f32.gmra.mrb[0].mxu0 %v5555
      %v5639 = vpop.f32.mrb[0].mxu0
      %v5640 = vadd.f32 0.0, %v5639
      %v5641 = vpop.f32.mrb[0].mxu0
      %5642 = vdwg.mxu0
      %v5643 = vsel %vm1561, %v5062, 0
      %v5645 = vsel %vm1561, %v5064, 0
      %v5647 = vsel %vm1561, %v5066, 0
      %v5649 = vsel %vm1561, %v5107, 0
      %v5651 = vsel %vm1561, %v5109, 0
      %v5653 = vsel %vm1561, %v5111, 0
      %5655 = vmatprep.subr.mxu0 0.0
      %5656 = vmatpush1.xpose.msra.mxu0 %v5649
      %5657 = vmatprep.subr.mxu0 0.0
      %5658 = vmatpush1.xpose.msra.mxu0 %v5651
      %5659 = vmatprep.subr.mxu0 0.0
      %5660 = vmatpush1.xpose.msra.mxu0 %v5653
      %5661 = vmatprep.subr.mxu0 0.0
      %5662 = vmatpush1.xpose.msra.mxu0 0.0
      %5663 = vmatprep.subr.mxu0 0.0
      %5664 = vmatpush1.xpose.msra.mxu0 0.0
      %5665 = vmatprep.subr.mxu0 0.0
      %5666 = vmatpush1.xpose.msra.mxu0 0.0
      %5667 = vmatprep.subr.mxu0 0.0
      %5668 = vmatpush1.xpose.msra.mxu0 0.0
      %5669 = vmatprep.subr.mxu0 0.0
      %5670 = vmatpush1.xpose.msra.mxu0 0.0
      %5671 = vmatprep.subr.mxu0 0.0
      %5672 = vmatpush1.xpose.msra.mxu0 0.0
      %5673 = vmatprep.subr.mxu0 0.0
      %5674 = vmatpush1.xpose.msra.mxu0 0.0
      %5675 = vmatprep.subr.mxu0 0.0
      %5676 = vmatpush1.xpose.msra.mxu0 0.0
      %5677 = vmatprep.subr.mxu0 0.0
      %5678 = vmatpush1.xpose.msra.mxu0 0.0
      %5679 = vmatprep.subr.mxu0 0.0
      %5680 = vmatpush1.xpose.msra.mxu0 0.0
      %5681 = vmatprep.subr.mxu0 0.0
      %5682 = vmatpush1.xpose.msra.mxu0 0.0
      %5683 = vmatprep.subr.mxu0 0.0
      %5684 = vmatpush1.xpose.msra.mxu0 0.0
      %5685 = vmatprep.subr.mxu0 0.0
      %5686 = vmatpush1.xpose.msra.mxu0 0.0
      %5687 = vmatprep.subr.mxu0 0.0
      %5688 = vmatpush1.xpose.msra.mxu0 0.0
      %5689 = vmatprep.subr.mxu0 0.0
      %5690 = vmatpush1.xpose.msra.mxu0 0.0
      %5691 = vmatprep.subr.mxu0 0.0
      %5692 = vmatpush1.xpose.msra.mxu0 0.0
      %5693 = vmatprep.subr.mxu0 0.0
      %5694 = vmatpush1.xpose.msra.mxu0 0.0
      %5695 = vmatprep.subr.mxu0 0.0
      %5696 = vmatpush1.xpose.msra.mxu0 0.0
      %5697 = vmatprep.subr.mxu0 0.0
      %5698 = vmatpush1.xpose.msra.mxu0 0.0
      %5699 = vmatprep.subr.mxu0 0.0
      %5700 = vmatpush1.xpose.msra.mxu0 0.0
      %5701 = vmatprep.subr.mxu0 0.0
      %5702 = vmatpush1.xpose.msra.mxu0 0.0
      %5703 = vmatprep.subr.mxu0 0.0
      %5704 = vmatpush1.xpose.msra.mxu0 0.0
      %5705 = vmatprep.subr.mxu0 0.0
      %5706 = vmatpush1.xpose.msra.mxu0 0.0
      %5707 = vmatprep.subr.mxu0 0.0
      %5708 = vmatpush1.xpose.msra.mxu0 0.0
      %5709 = vmatprep.subr.mxu0 0.0
      %5710 = vmatpush1.xpose.msra.mxu0 0.0
      %5711 = vmatprep.subr.mxu0 0.0
      %5712 = vmatpush1.xpose.msra.mxu0 0.0
      %5713 = vmatprep.subr.mxu0 0.0
      %5714 = vmatpush1.xpose.msra.mxu0 0.0
      %5715 = vmatprep.subr.mxu0 0.0
      %5716 = vmatpush1.xpose.msra.mxu0 0.0
      %5717 = vmatprep.subr.mxu0 0.0
      %5718 = vmatpush1.xpose.msra.mxu0 0.0
      %5719 = vmatprep.mubr.f32.mxu0 0.0
      %5720 = vmatmul.mubr.f32.gmra.mrb[0].mxu0 %v5643
      %v5721 = vpop.f32.mrb[0].mxu0
      %v5722 = vadd.f32 0.0, %v5721
      %v5723 = vpop.f32.mrb[0].mxu0
      %5724 = vmatprep.mubr.f32.mxu0 0.0
      %5725 = vmatmul.mubr.f32.gmra.mrb[0].mxu0 %v5645
      %v5726 = vpop.f32.mrb[0].mxu0
      %v5727 = vadd.f32 0.0, %v5726
      %v5728 = vpop.f32.mrb[0].mxu0
      %5729 = vmatprep.mubr.f32.mxu0 0.0
      %5730 = vmatmul.mubr.f32.gmra.mrb[0].mxu0 %v5647
      %v5731 = vpop.f32.mrb[0].mxu0
      %v5732 = vadd.f32 0.0, %v5731
      %v5733 = vpop.f32.mrb[0].mxu0
      %5734 = vdwg.mxu0
      %v5735 = vsel %vm1561, %v5068, 0
      %v5737 = vsel %vm1561, %v5070, 0
      %v5739 = vsel %vm1561, %v5072, 0
      %v5741 = vsel %vm1561, %v5113, 0
      %v5743 = vsel %vm1561, %v5115, 0
      %v5745 = vsel %vm1561, %v5117, 0
      %5747 = vmatprep.subr.mxu0 0.0
      %5748 = vmatpush1.xpose.msra.mxu0 %v5741
      %5749 = vmatprep.subr.mxu0 0.0
      %5750 = vmatpush1.xpose.msra.mxu0 %v5743
      %5751 = vmatprep.subr.mxu0 0.0
      %5752 = vmatpush1.xpose.msra.mxu0 %v5745
      %5753 = vmatprep.subr.mxu0 0.0
      %5754 = vmatpush1.xpose.msra.mxu0 0.0
      %5755 = vmatprep.subr.mxu0 0.0
      %5756 = vmatpush1.xpose.msra.mxu0 0.0
      %5757 = vmatprep.subr.mxu0 0.0
      %5758 = vmatpush1.xpose.msra.mxu0 0.0
      %5759 = vmatprep.subr.mxu0 0.0
      %5760 = vmatpush1.xpose.msra.mxu0 0.0
      %5761 = vmatprep.subr.mxu0 0.0
      %5762 = vmatpush1.xpose.msra.mxu0 0.0
      %5763 = vmatprep.subr.mxu0 0.0
      %5764 = vmatpush1.xpose.msra.mxu0 0.0
      %5765 = vmatprep.subr.mxu0 0.0
      %5766 = vmatpush1.xpose.msra.mxu0 0.0
      %5767 = vmatprep.subr.mxu0 0.0
      %5768 = vmatpush1.xpose.msra.mxu0 0.0
      %5769 = vmatprep.subr.mxu0 0.0
      %5770 = vmatpush1.xpose.msra.mxu0 0.0
      %5771 = vmatprep.subr.mxu0 0.0
      %5772 = vmatpush1.xpose.msra.mxu0 0.0
      %5773 = vmatprep.subr.mxu0 0.0
      %5774 = vmatpush1.xpose.msra.mxu0 0.0
      %5775 = vmatprep.subr.mxu0 0.0
      %5776 = vmatpush1.xpose.msra.mxu0 0.0
      %5777 = vmatprep.subr.mxu0 0.0
      %5778 = vmatpush1.xpose.msra.mxu0 0.0
      %5779 = vmatprep.subr.mxu0 0.0
      %5780 = vmatpush1.xpose.msra.mxu0 0.0
      %5781 = vmatprep.subr.mxu0 0.0
      %5782 = vmatpush1.xpose.msra.mxu0 0.0
      %5783 = vmatprep.subr.mxu0 0.0
      %5784 = vmatpush1.xpose.msra.mxu0 0.0
      %5785 = vmatprep.subr.mxu0 0.0
      %5786 = vmatpush1.xpose.msra.mxu0 0.0
      %5787 = vmatprep.subr.mxu0 0.0
      %5788 = vmatpush1.xpose.msra.mxu0 0.0
      %5789 = vmatprep.subr.mxu0 0.0
      %5790 = vmatpush1.xpose.msra.mxu0 0.0
      %5791 = vmatprep.subr.mxu0 0.0
      %5792 = vmatpush1.xpose.msra.mxu0 0.0
      %5793 = vmatprep.subr.mxu0 0.0
      %5794 = vmatpush1.xpose.msra.mxu0 0.0
      %5795 = vmatprep.subr.mxu0 0.0
      %5796 = vmatpush1.xpose.msra.mxu0 0.0
      %5797 = vmatprep.subr.mxu0 0.0
      %5798 = vmatpush1.xpose.msra.mxu0 0.0
      %5799 = vmatprep.subr.mxu0 0.0
      %5800 = vmatpush1.xpose.msra.mxu0 0.0
      %5801 = vmatprep.subr.mxu0 0.0
      %5802 = vmatpush1.xpose.msra.mxu0 0.0
      %5803 = vmatprep.subr.mxu0 0.0
      %5804 = vmatpush1.xpose.msra.mxu0 0.0
      %5805 = vmatprep.subr.mxu0 0.0
      %5806 = vmatpush1.xpose.msra.mxu0 0.0
      %5807 = vmatprep.subr.mxu0 0.0
      %5808 = vmatpush1.xpose.msra.mxu0 0.0
      %5809 = vmatprep.subr.mxu0 0.0
      %5810 = vmatpush1.xpose.msra.mxu0 0.0
      %5811 = vmatprep.mubr.f32.mxu0 0.0
      %5812 = vmatmul.mubr.f32.gmra.mrb[0].mxu0 %v5735
      %v5813 = vpop.f32.mrb[0].mxu0
      %v5814 = vadd.f32 0.0, %v5813
      %v5815 = vpop.f32.mrb[0].mxu0
      %5816 = vmatprep.mubr.f32.mxu0 0.0
      %5817 = vmatmul.mubr.f32.gmra.mrb[0].mxu0 %v5737
      %v5818 = vpop.f32.mrb[0].mxu0
      %v5819 = vadd.f32 0.0, %v5818
      %v5820 = vpop.f32.mrb[0].mxu0
      %5821 = vmatprep.mubr.f32.mxu0 0.0
      %5822 = vmatmul.mubr.f32.gmra.mrb[0].mxu0 %v5739
      %v5823 = vpop.f32.mrb[0].mxu0
      %v5824 = vadd.f32 0.0, %v5823
      %v5825 = vpop.f32.mrb[0].mxu0
      %5826 = vdwg.mxu0
      %v5827 = vsel %vm1561, %v5074, 0
      %v5829 = vsel %vm1561, %v5076, 0
      %v5831 = vsel %vm1561, %v5078, 0
      %v5833 = vsel %vm1561, %v5119, 0
      %v5835 = vsel %vm1561, %v5121, 0
      %v5837 = vsel %vm1561, %v5123, 0
      %5839 = vmatprep.subr.mxu0 0.0
      %5840 = vmatpush1.xpose.msra.mxu0 %v5833
      %5841 = vmatprep.subr.mxu0 0.0
      %5842 = vmatpush1.xpose.msra.mxu0 %v5835
      %5843 = vmatprep.subr.mxu0 0.0
      %5844 = vmatpush1.xpose.msra.mxu0 %v5837
      %5845 = vmatprep.subr.mxu0 0.0
      %5846 = vmatpush1.xpose.msra.mxu0 0.0
      %5847 = vmatprep.subr.mxu0 0.0
      %5848 = vmatpush1.xpose.msra.mxu0 0.0
      %5849 = vmatprep.subr.mxu0 0.0
      %5850 = vmatpush1.xpose.msra.mxu0 0.0
      %5851 = vmatprep.subr.mxu0 0.0
      %5852 = vmatpush1.xpose.msra.mxu0 0.0
      %5853 = vmatprep.subr.mxu0 0.0
      %5854 = vmatpush1.xpose.msra.mxu0 0.0
      %5855 = vmatprep.subr.mxu0 0.0
      %5856 = vmatpush1.xpose.msra.mxu0 0.0
      %5857 = vmatprep.subr.mxu0 0.0
      %5858 = vmatpush1.xpose.msra.mxu0 0.0
      %5859 = vmatprep.subr.mxu0 0.0
      %5860 = vmatpush1.xpose.msra.mxu0 0.0
      %5861 = vmatprep.subr.mxu0 0.0
      %5862 = vmatpush1.xpose.msra.mxu0 0.0
      %5863 = vmatprep.subr.mxu0 0.0
      %5864 = vmatpush1.xpose.msra.mxu0 0.0
      %5865 = vmatprep.subr.mxu0 0.0
      %5866 = vmatpush1.xpose.msra.mxu0 0.0
      %5867 = vmatprep.subr.mxu0 0.0
      %5868 = vmatpush1.xpose.msra.mxu0 0.0
      %5869 = vmatprep.subr.mxu0 0.0
      %5870 = vmatpush1.xpose.msra.mxu0 0.0
      %5871 = vmatprep.subr.mxu0 0.0
      %5872 = vmatpush1.xpose.msra.mxu0 0.0
      %5873 = vmatprep.subr.mxu0 0.0
      %5874 = vmatpush1.xpose.msra.mxu0 0.0
      %5875 = vmatprep.subr.mxu0 0.0
      %5876 = vmatpush1.xpose.msra.mxu0 0.0
      %5877 = vmatprep.subr.mxu0 0.0
      %5878 = vmatpush1.xpose.msra.mxu0 0.0
      %5879 = vmatprep.subr.mxu0 0.0
      %5880 = vmatpush1.xpose.msra.mxu0 0.0
      %5881 = vmatprep.subr.mxu0 0.0
      %5882 = vmatpush1.xpose.msra.mxu0 0.0
      %5883 = vmatprep.subr.mxu0 0.0
      %5884 = vmatpush1.xpose.msra.mxu0 0.0
      %5885 = vmatprep.subr.mxu0 0.0
      %5886 = vmatpush1.xpose.msra.mxu0 0.0
      %5887 = vmatprep.subr.mxu0 0.0
      %5888 = vmatpush1.xpose.msra.mxu0 0.0
      %5889 = vmatprep.subr.mxu0 0.0
      %5890 = vmatpush1.xpose.msra.mxu0 0.0
      %5891 = vmatprep.subr.mxu0 0.0
      %5892 = vmatpush1.xpose.msra.mxu0 0.0
      %5893 = vmatprep.subr.mxu0 0.0
      %5894 = vmatpush1.xpose.msra.mxu0 0.0
      %5895 = vmatprep.subr.mxu0 0.0
      %5896 = vmatpush1.xpose.msra.mxu0 0.0
      %5897 = vmatprep.subr.mxu0 0.0
      %5898 = vmatpush1.xpose.msra.mxu0 0.0
      %5899 = vmatprep.subr.mxu0 0.0
      %5900 = vmatpush1.xpose.msra.mxu0 0.0
      %5901 = vmatprep.subr.mxu0 0.0
      %5902 = vmatpush1.xpose.msra.mxu0 0.0
      %5903 = vmatprep.mubr.f32.mxu0 0.0
      %5904 = vmatmul.mubr.f32.gmra.mrb[0].mxu0 %v5827
      %v5905 = vpop.f32.mrb[0].mxu0
      %v5906 = vadd.f32 0.0, %v5905
      %v5907 = vpop.f32.mrb[0].mxu0
      %5908 = vmatprep.mubr.f32.mxu0 0.0
      %5909 = vmatmul.mubr.f32.gmra.mrb[0].mxu0 %v5829
      %v5910 = vpop.f32.mrb[0].mxu0
      %v5911 = vadd.f32 0.0, %v5910
      %v5912 = vpop.f32.mrb[0].mxu0
      %5913 = vmatprep.mubr.f32.mxu0 0.0
      %5914 = vmatmul.mubr.f32.gmra.mrb[0].mxu0 %v5831
      %v5915 = vpop.f32.mrb[0].mxu0
      %v5916 = vadd.f32 0.0, %v5915
      %v5917 = vpop.f32.mrb[0].mxu0
      %5918 = vdwg.mxu0
      %vm5919 = vcmask 162816
      %v5920 = vsel %vm5919, %v5262, -inf
      %5921 = vmax.xlane.f32.xlu0 %v5920
      %v5922 = vpop.xlane.xlu0 %5921
      %v5923 = vsel %vm5919, %v5267, -inf
      %5924 = vmax.xlane.f32.xlu0 %v5923
      %v5925 = vpop.xlane.xlu0 %5924
      %vm5926 = vcmask 158720
      %v5927 = vsel %vm5926, %v5272, -inf
      %5928 = vmax.xlane.f32.xlu0 %v5927
      %v5929 = vpop.xlane.xlu0 %5928
      %v5930 = vsel %vm5919, %v5354, -inf
      %5931 = vmax.xlane.f32.xlu0 %v5930
      %v5932 = vpop.xlane.xlu0 %5931
      %v5933 = vsel %vm5919, %v5359, -inf
      %5934 = vmax.xlane.f32.xlu0 %v5933
      %v5935 = vpop.xlane.xlu0 %5934
      %v5936 = vsel %vm5926, %v5364, -inf
      %5937 = vmax.xlane.f32.xlu0 %v5936
      %v5938 = vpop.xlane.xlu0 %5937
      %v5939 = vsel %vm5919, %v5446, -inf
      %5940 = vmax.xlane.f32.xlu0 %v5939
      %v5941 = vpop.xlane.xlu0 %5940
      %v5942 = vsel %vm5919, %v5451, -inf
      %5943 = vmax.xlane.f32.xlu0 %v5942
      %v5944 = vpop.xlane.xlu0 %5943
      %v5945 = vsel %vm5926, %v5456, -inf
      %5946 = vmax.xlane.f32.xlu0 %v5945
      %v5947 = vpop.xlane.xlu0 %5946
      %v5948 = vsel %vm5919, %v5538, -inf
      %5949 = vmax.xlane.f32.xlu0 %v5948
      %v5950 = vpop.xlane.xlu0 %5949
      %v5951 = vsel %vm5919, %v5543, -inf
      %5952 = vmax.xlane.f32.xlu0 %v5951
      %v5953 = vpop.xlane.xlu0 %5952
      %v5954 = vsel %vm5926, %v5548, -inf
      %5955 = vmax.xlane.f32.xlu0 %v5954
      %v5956 = vpop.xlane.xlu0 %5955
      %v5957 = vsel %vm5919, %v5630, -inf
      %5958 = vmax.xlane.f32.xlu0 %v5957
      %v5959 = vpop.xlane.xlu0 %5958
      %v5960 = vsel %vm5919, %v5635, -inf
      %5961 = vmax.xlane.f32.xlu0 %v5960
      %v5962 = vpop.xlane.xlu0 %5961
      %v5963 = vsel %vm5926, %v5640, -inf
      %5964 = vmax.xlane.f32.xlu0 %v5963
      %v5965 = vpop.xlane.xlu0 %5964
      %v5966 = vsel %vm5919, %v5722, -inf
      %5967 = vmax.xlane.f32.xlu0 %v5966
      %v5968 = vpop.xlane.xlu0 %5967
      %v5969 = vsel %vm5919, %v5727, -inf
      %5970 = vmax.xlane.f32.xlu0 %v5969
      %v5971 = vpop.xlane.xlu0 %5970
      %v5972 = vsel %vm5926, %v5732, -inf
      %5973 = vmax.xlane.f32.xlu0 %v5972
      %v5974 = vpop.xlane.xlu0 %5973
      %v5975 = vsel %vm5919, %v5814, -inf
      %5976 = vmax.xlane.f32.xlu0 %v5975
      %v5977 = vpop.xlane.xlu0 %5976
      %v5978 = vsel %vm5919, %v5819, -inf
      %5979 = vmax.xlane.f32.xlu0 %v5978
      %v5980 = vpop.xlane.xlu0 %5979
      %v5981 = vsel %vm5926, %v5824, -inf
      %5982 = vmax.xlane.f32.xlu0 %v5981
      %v5983 = vpop.xlane.xlu0 %5982
      %v5984 = vsel %vm5919, %v5906, -inf
      %5985 = vmax.xlane.f32.xlu0 %v5984
      %v5986 = vpop.xlane.xlu0 %5985
      %v5987 = vsel %vm5919, %v5911, -inf
      %5988 = vmax.xlane.f32.xlu0 %v5987
      %v5989 = vpop.xlane.xlu0 %5988
      %v5990 = vsel %vm5926, %v5916, -inf
      %5991 = vmax.xlane.f32.xlu0 %v5990
      %v5992 = vpop.xlane.xlu0 %5991
      %v5993 = vsub.f32 %v5262, %v5922
      %v5994 = vsub.f32 %v5267, %v5925
      %v5995 = vsub.f32 %v5272, %v5929
      %v5996 = vsub.f32 %v5354, %v5932
      %v5997 = vsub.f32 %v5359, %v5935
      %v5998 = vsub.f32 %v5364, %v5938
      %v5999 = vsub.f32 %v5446, %v5941
      %v6000 = vsub.f32 %v5451, %v5944
      %v6001 = vsub.f32 %v5456, %v5947
      %v6002 = vsub.f32 %v5538, %v5950
      %v6003 = vsub.f32 %v5543, %v5953
      %v6004 = vsub.f32 %v5548, %v5956
      %v6005 = vsub.f32 %v5630, %v5959
      %v6006 = vsub.f32 %v5635, %v5962
      %v6007 = vsub.f32 %v5640, %v5965
      %v6008 = vsub.f32 %v5722, %v5968
      %v6009 = vsub.f32 %v5727, %v5971
      %v6010 = vsub.f32 %v5732, %v5974
      %v6011 = vsub.f32 %v5814, %v5977
      %v6012 = vsub.f32 %v5819, %v5980
      %v6013 = vsub.f32 %v5824, %v5983
      %v6014 = vsub.f32 %v5906, %v5986
      %v6015 = vsub.f32 %v5911, %v5989
      %v6016 = vsub.f32 %v5916, %v5992
      %v6017 = vmul.f32 %v5993, 1.442695
      %v6018 = vpow.pop %v6017
      %v6019 = vmul.f32 %v5994, 1.442695
      %v6020 = vpow.pop %v6019
      %v6021 = vmul.f32 %v5995, 1.442695
      %v6022 = vpow.pop %v6021
      %v6023 = vmul.f32 %v5996, 1.442695
      %v6024 = vpow.pop %v6023
      %v6025 = vmul.f32 %v5997, 1.442695
      %v6026 = vpow.pop %v6025
      %v6027 = vmul.f32 %v5998, 1.442695
      %v6028 = vpow.pop %v6027
      %v6029 = vmul.f32 %v5999, 1.442695
      %v6030 = vpow.pop %v6029
      %v6031 = vmul.f32 %v6000, 1.442695
      %v6032 = vpow.pop %v6031
      %v6033 = vmul.f32 %v6001, 1.442695
      %v6034 = vpow.pop %v6033
      %v6035 = vmul.f32 %v6002, 1.442695
      %v6036 = vpow.pop %v6035
      %v6037 = vmul.f32 %v6003, 1.442695
      %v6038 = vpow.pop %v6037
      %v6039 = vmul.f32 %v6004, 1.442695
      %v6040 = vpow.pop %v6039
      %v6041 = vmul.f32 %v6005, 1.442695
      %v6042 = vpow.pop %v6041
      %v6043 = vmul.f32 %v6006, 1.442695
      %v6044 = vpow.pop %v6043
      %v6045 = vmul.f32 %v6007, 1.442695
      %v6046 = vpow.pop %v6045
      %v6047 = vmul.f32 %v6008, 1.442695
      %v6048 = vpow.pop %v6047
      %v6049 = vmul.f32 %v6009, 1.442695
      %v6050 = vpow.pop %v6049
      %v6051 = vmul.f32 %v6010, 1.442695
      %v6052 = vpow.pop %v6051
      %v6053 = vmul.f32 %v6011, 1.442695
      %v6054 = vpow.pop %v6053
      %v6055 = vmul.f32 %v6012, 1.442695
      %v6056 = vpow.pop %v6055
      %v6057 = vmul.f32 %v6013, 1.442695
      %v6058 = vpow.pop %v6057
      %v6059 = vmul.f32 %v6014, 1.442695
      %v6060 = vpow.pop %v6059
      %v6061 = vmul.f32 %v6015, 1.442695
      %v6062 = vpow.pop %v6061
      %v6063 = vmul.f32 %v6016, 1.442695
      %v6064 = vpow.pop %v6063
      %v6065 = vsel %vm5919, %v6018, 0.0
      %6066 = vadd.xlane.f32.xlu0 %v6065
      %v6067 = vpop.xlane.xlu0 %6066
      %v6068 = vsel %vm5919, %v6020, 0.0
      %6069 = vadd.xlane.f32.xlu0 %v6068
      %v6070 = vpop.xlane.xlu0 %6069
      %v6071 = vsel %vm5926, %v6022, 0.0
      %6072 = vadd.xlane.f32.xlu0 %v6071
      %v6073 = vpop.xlane.xlu0 %6072
      %v6074 = vsel %vm5919, %v6024, 0.0
      %6075 = vadd.xlane.f32.xlu0 %v6074
      %v6076 = vpop.xlane.xlu0 %6075
      %v6077 = vsel %vm5919, %v6026, 0.0
      %6078 = vadd.xlane.f32.xlu0 %v6077
      %v6079 = vpop.xlane.xlu0 %6078
      %v6080 = vsel %vm5926, %v6028, 0.0
      %6081 = vadd.xlane.f32.xlu0 %v6080
      %v6082 = vpop.xlane.xlu0 %6081
      %v6083 = vsel %vm5919, %v6030, 0.0
      %6084 = vadd.xlane.f32.xlu0 %v6083
      %v6085 = vpop.xlane.xlu0 %6084
      %v6086 = vsel %vm5919, %v6032, 0.0
      %6087 = vadd.xlane.f32.xlu0 %v6086
      %v6088 = vpop.xlane.xlu0 %6087
      %v6089 = vsel %vm5926, %v6034, 0.0
      %6090 = vadd.xlane.f32.xlu0 %v6089
      %v6091 = vpop.xlane.xlu0 %6090
      %v6092 = vsel %vm5919, %v6036, 0.0
      %6093 = vadd.xlane.f32.xlu0 %v6092
      %v6094 = vpop.xlane.xlu0 %6093
      %v6095 = vsel %vm5919, %v6038, 0.0
      %6096 = vadd.xlane.f32.xlu0 %v6095
      %v6097 = vpop.xlane.xlu0 %6096
      %v6098 = vsel %vm5926, %v6040, 0.0
      %6099 = vadd.xlane.f32.xlu0 %v6098
      %v6100 = vpop.xlane.xlu0 %6099
      %v6101 = vsel %vm5919, %v6042, 0.0
      %6102 = vadd.xlane.f32.xlu0 %v6101
      %v6103 = vpop.xlane.xlu0 %6102
      %v6104 = vsel %vm5919, %v6044, 0.0
      %6105 = vadd.xlane.f32.xlu0 %v6104
      %v6106 = vpop.xlane.xlu0 %6105
      %v6107 = vsel %vm5926, %v6046, 0.0
      %6108 = vadd.xlane.f32.xlu0 %v6107
      %v6109 = vpop.xlane.xlu0 %6108
      %v6110 = vsel %vm5919, %v6048, 0.0
      %6111 = vadd.xlane.f32.xlu0 %v6110
      %v6112 = vpop.xlane.xlu0 %6111
      %v6113 = vsel %vm5919, %v6050, 0.0
      %6114 = vadd.xlane.f32.xlu0 %v6113
      %v6115 = vpop.xlane.xlu0 %6114
      %v6116 = vsel %vm5926, %v6052, 0.0
      %6117 = vadd.xlane.f32.xlu0 %v6116
      %v6118 = vpop.xlane.xlu0 %6117
      %v6119 = vsel %vm5919, %v6054, 0.0
      %6120 = vadd.xlane.f32.xlu0 %v6119
      %v6121 = vpop.xlane.xlu0 %6120
      %v6122 = vsel %vm5919, %v6056, 0.0
      %6123 = vadd.xlane.f32.xlu0 %v6122
      %v6124 = vpop.xlane.xlu0 %6123
      %v6125 = vsel %vm5926, %v6058, 0.0
      %6126 = vadd.xlane.f32.xlu0 %v6125
      %v6127 = vpop.xlane.xlu0 %6126
      %v6128 = vsel %vm5919, %v6060, 0.0
      %6129 = vadd.xlane.f32.xlu0 %v6128
      %v6130 = vpop.xlane.xlu0 %6129
      %v6131 = vsel %vm5919, %v6062, 0.0
      %6132 = vadd.xlane.f32.xlu0 %v6131
      %v6133 = vpop.xlane.xlu0 %6132
      %v6134 = vsel %vm5926, %v6064, 0.0
      %6135 = vadd.xlane.f32.xlu0 %v6134
      %v6136 = vpop.xlane.xlu0 %6135
      %v6137 = vrcp.pop %v6067
      %v6138 = vmul.f32 %v6018, %v6137
      %v6139 = vrcp.pop %v6070
      %v6140 = vmul.f32 %v6020, %v6139
      %v6141 = vrcp.pop %v6073
      %v6142 = vmul.f32 %v6022, %v6141
      %v6143 = vrcp.pop %v6076
      %v6144 = vmul.f32 %v6024, %v6143
      %v6145 = vrcp.pop %v6079
      %v6146 = vmul.f32 %v6026, %v6145
      %v6147 = vrcp.pop %v6082
      %v6148 = vmul.f32 %v6028, %v6147
      %v6149 = vrcp.pop %v6085
      %v6150 = vmul.f32 %v6030, %v6149
      %v6151 = vrcp.pop %v6088
      %v6152 = vmul.f32 %v6032, %v6151
      %v6153 = vrcp.pop %v6091
      %v6154 = vmul.f32 %v6034, %v6153
      %v6155 = vrcp.pop %v6094
      %v6156 = vmul.f32 %v6036, %v6155
      %v6157 = vrcp.pop %v6097
      %v6158 = vmul.f32 %v6038, %v6157
      %v6159 = vrcp.pop %v6100
      %v6160 = vmul.f32 %v6040, %v6159
      %v6161 = vrcp.pop %v6103
      %v6162 = vmul.f32 %v6042, %v6161
      %v6163 = vrcp.pop %v6106
      %v6164 = vmul.f32 %v6044, %v6163
      %v6165 = vrcp.pop %v6109
      %v6166 = vmul.f32 %v6046, %v6165
      %v6167 = vrcp.pop %v6112
      %v6168 = vmul.f32 %v6048, %v6167
      %v6169 = vrcp.pop %v6115
      %v6170 = vmul.f32 %v6050, %v6169
      %v6171 = vrcp.pop %v6118
      %v6172 = vmul.f32 %v6052, %v6171
      %v6173 = vrcp.pop %v6121
      %v6174 = vmul.f32 %v6054, %v6173
      %v6175 = vrcp.pop %v6124
      %v6176 = vmul.f32 %v6056, %v6175
      %v6177 = vrcp.pop %v6127
      %v6178 = vmul.f32 %v6058, %v6177
      %v6179 = vrcp.pop %v6130
      %v6180 = vmul.f32 %v6060, %v6179
      %v6181 = vrcp.pop %v6133
      %v6182 = vmul.f32 %v6062, %v6181
      %v6183 = vrcp.pop %v6136
      %v6184 = vmul.f32 %v6064, %v6183
      %6185 = vst.msk [vmem:[%s1216] sm:$0xff] %vm5919, %v6138
      %6186 = vst.msk [vmem:[%s1216 + $0x8] sm:$0xff] %vm5919, %v6140
      %6187 = vst.msk [vmem:[%s1216 + $0x10] sm:$0xf] %vm5926, %v6142
      %6188 = vst.msk [vmem:[%s1216 + $0x18] sm:$0xff] %vm5919, %v6144
      %6189 = vst.msk [vmem:[%s1216 + $0x20] sm:$0xff] %vm5919, %v6146
      %6190 = vst.msk [vmem:[%s1216 + $0x28] sm:$0xf] %vm5926, %v6148
      %6191 = vst.msk [vmem:[%s1216 + $0x30] sm:$0xff] %vm5919, %v6150
      %6192 = vst.msk [vmem:[%s1216 + $0x38] sm:$0xff] %vm5919, %v6152
      %6193 = vst.msk [vmem:[%s1216 + $0x40] sm:$0xf] %vm5926, %v6154
      %6194 = vst.msk [vmem:[%s1216 + $0x48] sm:$0xff] %vm5919, %v6156
      %6195 = vst.msk [vmem:[%s1216 + $0x50] sm:$0xff] %vm5919, %v6158
      %6196 = vst.msk [vmem:[%s1216 + $0x58] sm:$0xf] %vm5926, %v6160
      %6197 = vst.msk [vmem:[%s1216 + $0x60] sm:$0xff] %vm5919, %v6162
      %6198 = vst.msk [vmem:[%s1216 + $0x68] sm:$0xff] %vm5919, %v6164
      %6199 = vst.msk [vmem:[%s1216 + $0x70] sm:$0xf] %vm5926, %v6166
      %6200 = vst.msk [vmem:[%s1216 + $0x78] sm:$0xff] %vm5919, %v6168
      %6201 = vst.msk [vmem:[%s1216 + $0x80] sm:$0xff] %vm5919, %v6170
      %6202 = vst.msk [vmem:[%s1216 + $0x88] sm:$0xf] %vm5926, %v6172
      %6203 = vst.msk [vmem:[%s1216 + $0x90] sm:$0xff] %vm5919, %v6174
      %6204 = vst.msk [vmem:[%s1216 + $0x98] sm:$0xff] %vm5919, %v6176
      %6205 = vst.msk [vmem:[%s1216 + $0xa0] sm:$0xf] %vm5926, %v6178
      %6206 = vst.msk [vmem:[%s1216 + $0xa8] sm:$0xff] %vm5919, %v6180
      %6207 = vst.msk [vmem:[%s1216 + $0xb0] sm:$0xff] %vm5919, %v6182
      %6208 = vst.msk [vmem:[%s1216 + $0xb8] sm:$0xf] %vm5926, %v6184
      %v6210 = vsel %vm5919, %v6138, 0
      %v6213 = vsel %vm5919, %v6140, 0
      %v6216 = vsel %vm5919, %v6142, 0
      %v6218 = vsel %vm4489, %v5029, 0
      %6220 = vmatprep.subr.mxu0 0.0
      %6221 = vmatpush1.msra.mxu0 %v5021
      %6222 = vmatprep.subr.mxu0 0.0
      %6223 = vmatpush1.msra.mxu0 %v5024
      %6224 = vmatprep.subr.mxu0 0.0
      %6225 = vmatpush1.msra.mxu0 %v6218
      %6226 = vmatprep.subr.mxu0 0.0
      %6227 = vmatpush1.msra.mxu0 0.0
      %6228 = vmatprep.subr.mxu0 0.0
      %6229 = vmatpush1.msra.mxu0 0.0
      %6230 = vmatprep.subr.mxu0 0.0
      %6231 = vmatpush1.msra.mxu0 0.0
      %6232 = vmatprep.subr.mxu0 0.0
      %6233 = vmatpush1.msra.mxu0 0.0
      %6234 = vmatprep.subr.mxu0 0.0
      %6235 = vmatpush1.msra.mxu0 0.0
      %6236 = vmatprep.subr.mxu0 0.0
      %6237 = vmatpush1.msra.mxu0 0.0
      %6238 = vmatprep.subr.mxu0 0.0
      %6239 = vmatpush1.msra.mxu0 0.0
      %6240 = vmatprep.subr.mxu0 0.0
      %6241 = vmatpush1.msra.mxu0 0.0
      %6242 = vmatprep.subr.mxu0 0.0
      %6243 = vmatpush1.msra.mxu0 0.0
      %6244 = vmatprep.subr.mxu0 0.0
      %6245 = vmatpush1.msra.mxu0 0.0
      %6246 = vmatprep.subr.mxu0 0.0
      %6247 = vmatpush1.msra.mxu0 0.0
      %6248 = vmatprep.subr.mxu0 0.0
      %6249 = vmatpush1.msra.mxu0 0.0
      %6250 = vmatprep.subr.mxu0 0.0
      %6251 = vmatpush1.msra.mxu0 0.0
      %6252 = vmatprep.subr.mxu0 0.0
      %6253 = vmatpush1.msra.mxu0 0.0
      %6254 = vmatprep.subr.mxu0 0.0
      %6255 = vmatpush1.msra.mxu0 0.0
      %6256 = vmatprep.subr.mxu0 0.0
      %6257 = vmatpush1.msra.mxu0 0.0
      %6258 = vmatprep.subr.mxu0 0.0
      %6259 = vmatpush1.msra.mxu0 0.0
      %6260 = vmatprep.subr.mxu0 0.0
      %6261 = vmatpush1.msra.mxu0 0.0
      %6262 = vmatprep.subr.mxu0 0.0
      %6263 = vmatpush1.msra.mxu0 0.0
      %6264 = vmatprep.subr.mxu0 0.0
      %6265 = vmatpush1.msra.mxu0 0.0
      %6266 = vmatprep.subr.mxu0 0.0
      %6267 = vmatpush1.msra.mxu0 0.0
      %6268 = vmatprep.subr.mxu0 0.0
      %6269 = vmatpush1.msra.mxu0 0.0
      %6270 = vmatprep.subr.mxu0 0.0
      %6271 = vmatpush1.msra.mxu0 0.0
      %6272 = vmatprep.subr.mxu0 0.0
      %6273 = vmatpush1.msra.mxu0 0.0
      %6274 = vmatprep.subr.mxu0 0.0
      %6275 = vmatpush1.msra.mxu0 0.0
      %6276 = vmatprep.subr.mxu0 0.0
      %6277 = vmatpush1.msra.mxu0 0.0
      %6278 = vmatprep.subr.mxu0 0.0
      %6279 = vmatpush1.msra.mxu0 0.0
      %6280 = vmatprep.subr.mxu0 0.0
      %6281 = vmatpush1.msra.mxu0 0.0
      %6282 = vmatprep.subr.mxu0 0.0
      %6283 = vmatpush1.msra.mxu0 0.0
      %6284 = vmatprep.mubr.f32.mxu0 0.0
      %6285 = vmatmul.mubr.f32.gmra.mrb[0].mxu0 %v6210
      %v6286 = vpop.f32.mrb[0].mxu0
      %v6287 = vadd.f32 0.0, %v6286
      %v6288 = vpop.f32.mrb[0].mxu0
      %6289 = vmatprep.mubr.f32.mxu0 0.0
      %6290 = vmatmul.mubr.f32.gmra.mrb[0].mxu0 %v6213
      %v6291 = vpop.f32.mrb[0].mxu0
      %v6292 = vadd.f32 0.0, %v6291
      %v6293 = vpop.f32.mrb[0].mxu0
      %6294 = vmatprep.mubr.f32.mxu0 0.0
      %6295 = vmatmul.mubr.f32.gmra.mrb[0].mxu0 %v6216
      %v6296 = vpop.f32.mrb[0].mxu0
      %v6297 = vadd.f32 0.0, %v6296
      %v6298 = vpop.f32.mrb[0].mxu0
      %6299 = vdwg.mxu0
      %v6301 = vsel %vm5919, %v6144, 0
      %v6304 = vsel %vm5919, %v6146, 0
      %v6307 = vsel %vm5919, %v6148, 0
      %v6309 = vsel %vm4489, %v5132, 0
      %6311 = vmatprep.subr.mxu0 0.0
      %6312 = vmatpush1.msra.mxu0 %v5128
      %6313 = vmatprep.subr.mxu0 0.0
      %6314 = vmatpush1.msra.mxu0 %v5130
      %6315 = vmatprep.subr.mxu0 0.0
      %6316 = vmatpush1.msra.mxu0 %v6309
      %6317 = vmatprep.subr.mxu0 0.0
      %6318 = vmatpush1.msra.mxu0 0.0
      %6319 = vmatprep.subr.mxu0 0.0
      %6320 = vmatpush1.msra.mxu0 0.0
      %6321 = vmatprep.subr.mxu0 0.0
      %6322 = vmatpush1.msra.mxu0 0.0
      %6323 = vmatprep.subr.mxu0 0.0
      %6324 = vmatpush1.msra.mxu0 0.0
      %6325 = vmatprep.subr.mxu0 0.0
      %6326 = vmatpush1.msra.mxu0 0.0
      %6327 = vmatprep.subr.mxu0 0.0
      %6328 = vmatpush1.msra.mxu0 0.0
      %6329 = vmatprep.subr.mxu0 0.0
      %6330 = vmatpush1.msra.mxu0 0.0
      %6331 = vmatprep.subr.mxu0 0.0
      %6332 = vmatpush1.msra.mxu0 0.0
      %6333 = vmatprep.subr.mxu0 0.0
      %6334 = vmatpush1.msra.mxu0 0.0
      %6335 = vmatprep.subr.mxu0 0.0
      %6336 = vmatpush1.msra.mxu0 0.0
      %6337 = vmatprep.subr.mxu0 0.0
      %6338 = vmatpush1.msra.mxu0 0.0
      %6339 = vmatprep.subr.mxu0 0.0
      %6340 = vmatpush1.msra.mxu0 0.0
      %6341 = vmatprep.subr.mxu0 0.0
      %6342 = vmatpush1.msra.mxu0 0.0
      %6343 = vmatprep.subr.mxu0 0.0
      %6344 = vmatpush1.msra.mxu0 0.0
      %6345 = vmatprep.subr.mxu0 0.0
      %6346 = vmatpush1.msra.mxu0 0.0
      %6347 = vmatprep.subr.mxu0 0.0
      %6348 = vmatpush1.msra.mxu0 0.0
      %6349 = vmatprep.subr.mxu0 0.0
      %6350 = vmatpush1.msra.mxu0 0.0
      %6351 = vmatprep.subr.mxu0 0.0
      %6352 = vmatpush1.msra.mxu0 0.0
      %6353 = vmatprep.subr.mxu0 0.0
      %6354 = vmatpush1.msra.mxu0 0.0
      %6355 = vmatprep.subr.mxu0 0.0
      %6356 = vmatpush1.msra.mxu0 0.0
      %6357 = vmatprep.subr.mxu0 0.0
      %6358 = vmatpush1.msra.mxu0 0.0
      %6359 = vmatprep.subr.mxu0 0.0
      %6360 = vmatpush1.msra.mxu0 0.0
      %6361 = vmatprep.subr.mxu0 0.0
      %6362 = vmatpush1.msra.mxu0 0.0
      %6363 = vmatprep.subr.mxu0 0.0
      %6364 = vmatpush1.msra.mxu0 0.0
      %6365 = vmatprep.subr.mxu0 0.0
      %6366 = vmatpush1.msra.mxu0 0.0
      %6367 = vmatprep.subr.mxu0 0.0
      %6368 = vmatpush1.msra.mxu0 0.0
      %6369 = vmatprep.subr.mxu0 0.0
      %6370 = vmatpush1.msra.mxu0 0.0
      %6371 = vmatprep.subr.mxu0 0.0
      %6372 = vmatpush1.msra.mxu0 0.0
      %6373 = vmatprep.subr.mxu0 0.0
      %6374 = vmatpush1.msra.mxu0 0.0
      %6375 = vmatprep.mubr.f32.mxu0 0.0
      %6376 = vmatmul.mubr.f32.gmra.mrb[0].mxu0 %v6301
      %v6377 = vpop.f32.mrb[0].mxu0
      %v6378 = vadd.f32 0.0, %v6377
      %v6379 = vpop.f32.mrb[0].mxu0
      %6380 = vmatprep.mubr.f32.mxu0 0.0
      %6381 = vmatmul.mubr.f32.gmra.mrb[0].mxu0 %v6304
      %v6382 = vpop.f32.mrb[0].mxu0
      %v6383 = vadd.f32 0.0, %v6382
      %v6384 = vpop.f32.mrb[0].mxu0
      %6385 = vmatprep.mubr.f32.mxu0 0.0
      %6386 = vmatmul.mubr.f32.gmra.mrb[0].mxu0 %v6307
      %v6387 = vpop.f32.mrb[0].mxu0
      %v6388 = vadd.f32 0.0, %v6387
      %v6389 = vpop.f32.mrb[0].mxu0
      %6390 = vdwg.mxu0
      %v6392 = vsel %vm5919, %v6150, 0
      %v6395 = vsel %vm5919, %v6152, 0
      %v6398 = vsel %vm5919, %v6154, 0
      %v6400 = vsel %vm4489, %v5140, 0
      %6402 = vmatprep.subr.mxu0 0.0
      %6403 = vmatpush1.msra.mxu0 %v5136
      %6404 = vmatprep.subr.mxu0 0.0
      %6405 = vmatpush1.msra.mxu0 %v5138
      %6406 = vmatprep.subr.mxu0 0.0
      %6407 = vmatpush1.msra.mxu0 %v6400
      %6408 = vmatprep.subr.mxu0 0.0
      %6409 = vmatpush1.msra.mxu0 0.0
      %6410 = vmatprep.subr.mxu0 0.0
      %6411 = vmatpush1.msra.mxu0 0.0
      %6412 = vmatprep.subr.mxu0 0.0
      %6413 = vmatpush1.msra.mxu0 0.0
      %6414 = vmatprep.subr.mxu0 0.0
      %6415 = vmatpush1.msra.mxu0 0.0
      %6416 = vmatprep.subr.mxu0 0.0
      %6417 = vmatpush1.msra.mxu0 0.0
      %6418 = vmatprep.subr.mxu0 0.0
      %6419 = vmatpush1.msra.mxu0 0.0
      %6420 = vmatprep.subr.mxu0 0.0
      %6421 = vmatpush1.msra.mxu0 0.0
      %6422 = vmatprep.subr.mxu0 0.0
      %6423 = vmatpush1.msra.mxu0 0.0
      %6424 = vmatprep.subr.mxu0 0.0
      %6425 = vmatpush1.msra.mxu0 0.0
      %6426 = vmatprep.subr.mxu0 0.0
      %6427 = vmatpush1.msra.mxu0 0.0
      %6428 = vmatprep.subr.mxu0 0.0
      %6429 = vmatpush1.msra.mxu0 0.0
      %6430 = vmatprep.subr.mxu0 0.0
      %6431 = vmatpush1.msra.mxu0 0.0
      %6432 = vmatprep.subr.mxu0 0.0
      %6433 = vmatpush1.msra.mxu0 0.0
      %6434 = vmatprep.subr.mxu0 0.0
      %6435 = vmatpush1.msra.mxu0 0.0
      %6436 = vmatprep.subr.mxu0 0.0
      %6437 = vmatpush1.msra.mxu0 0.0
      %6438 = vmatprep.subr.mxu0 0.0
      %6439 = vmatpush1.msra.mxu0 0.0
      %6440 = vmatprep.subr.mxu0 0.0
      %6441 = vmatpush1.msra.mxu0 0.0
      %6442 = vmatprep.subr.mxu0 0.0
      %6443 = vmatpush1.msra.mxu0 0.0
      %6444 = vmatprep.subr.mxu0 0.0
      %6445 = vmatpush1.msra.mxu0 0.0
      %6446 = vmatprep.subr.mxu0 0.0
      %6447 = vmatpush1.msra.mxu0 0.0
      %6448 = vmatprep.subr.mxu0 0.0
      %6449 = vmatpush1.msra.mxu0 0.0
      %6450 = vmatprep.subr.mxu0 0.0
      %6451 = vmatpush1.msra.mxu0 0.0
      %6452 = vmatprep.subr.mxu0 0.0
      %6453 = vmatpush1.msra.mxu0 0.0
      %6454 = vmatprep.subr.mxu0 0.0
      %6455 = vmatpush1.msra.mxu0 0.0
      %6456 = vmatprep.subr.mxu0 0.0
      %6457 = vmatpush1.msra.mxu0 0.0
      %6458 = vmatprep.subr.mxu0 0.0
      %6459 = vmatpush1.msra.mxu0 0.0
      %6460 = vmatprep.subr.mxu0 0.0
      %6461 = vmatpush1.msra.mxu0 0.0
      %6462 = vmatprep.subr.mxu0 0.0
      %6463 = vmatpush1.msra.mxu0 0.0
      %6464 = vmatprep.subr.mxu0 0.0
      %6465 = vmatpush1.msra.mxu0 0.0
      %6466 = vmatprep.mubr.f32.mxu0 0.0
      %6467 = vmatmul.mubr.f32.gmra.mrb[0].mxu0 %v6392
      %v6468 = vpop.f32.mrb[0].mxu0
      %v6469 = vadd.f32 0.0, %v6468
      %v6470 = vpop.f32.mrb[0].mxu0
      %6471 = vmatprep.mubr.f32.mxu0 0.0
      %6472 = vmatmul.mubr.f32.gmra.mrb[0].mxu0 %v6395
      %v6473 = vpop.f32.mrb[0].mxu0
      %v6474 = vadd.f32 0.0, %v6473
      %v6475 = vpop.f32.mrb[0].mxu0
      %6476 = vmatprep.mubr.f32.mxu0 0.0
      %6477 = vmatmul.mubr.f32.gmra.mrb[0].mxu0 %v6398
      %v6478 = vpop.f32.mrb[0].mxu0
      %v6479 = vadd.f32 0.0, %v6478
      %v6480 = vpop.f32.mrb[0].mxu0
      %6481 = vdwg.mxu0
      %v6483 = vsel %vm5919, %v6156, 0
      %v6486 = vsel %vm5919, %v6158, 0
      %v6489 = vsel %vm5919, %v6160, 0
      %v6491 = vsel %vm4489, %v5148, 0
      %6493 = vmatprep.subr.mxu0 0.0
      %6494 = vmatpush1.msra.mxu0 %v5144
      %6495 = vmatprep.subr.mxu0 0.0
      %6496 = vmatpush1.msra.mxu0 %v5146
      %6497 = vmatprep.subr.mxu0 0.0
      %6498 = vmatpush1.msra.mxu0 %v6491
      %6499 = vmatprep.subr.mxu0 0.0
      %6500 = vmatpush1.msra.mxu0 0.0
      %6501 = vmatprep.subr.mxu0 0.0
      %6502 = vmatpush1.msra.mxu0 0.0
      %6503 = vmatprep.subr.mxu0 0.0
      %6504 = vmatpush1.msra.mxu0 0.0
      %6505 = vmatprep.subr.mxu0 0.0
      %6506 = vmatpush1.msra.mxu0 0.0
      %6507 = vmatprep.subr.mxu0 0.0
      %6508 = vmatpush1.msra.mxu0 0.0
      %6509 = vmatprep.subr.mxu0 0.0
      %6510 = vmatpush1.msra.mxu0 0.0
      %6511 = vmatprep.subr.mxu0 0.0
      %6512 = vmatpush1.msra.mxu0 0.0
      %6513 = vmatprep.subr.mxu0 0.0
      %6514 = vmatpush1.msra.mxu0 0.0
      %6515 = vmatprep.subr.mxu0 0.0
      %6516 = vmatpush1.msra.mxu0 0.0
      %6517 = vmatprep.subr.mxu0 0.0
      %6518 = vmatpush1.msra.mxu0 0.0
      %6519 = vmatprep.subr.mxu0 0.0
      %6520 = vmatpush1.msra.mxu0 0.0
      %6521 = vmatprep.subr.mxu0 0.0
      %6522 = vmatpush1.msra.mxu0 0.0
      %6523 = vmatprep.subr.mxu0 0.0
      %6524 = vmatpush1.msra.mxu0 0.0
      %6525 = vmatprep.subr.mxu0 0.0
      %6526 = vmatpush1.msra.mxu0 0.0
      %6527 = vmatprep.subr.mxu0 0.0
      %6528 = vmatpush1.msra.mxu0 0.0
      %6529 = vmatprep.subr.mxu0 0.0
      %6530 = vmatpush1.msra.mxu0 0.0
      %6531 = vmatprep.subr.mxu0 0.0
      %6532 = vmatpush1.msra.mxu0 0.0
      %6533 = vmatprep.subr.mxu0 0.0
      %6534 = vmatpush1.msra.mxu0 0.0
      %6535 = vmatprep.subr.mxu0 0.0
      %6536 = vmatpush1.msra.mxu0 0.0
      %6537 = vmatprep.subr.mxu0 0.0
      %6538 = vmatpush1.msra.mxu0 0.0
      %6539 = vmatprep.subr.mxu0 0.0
      %6540 = vmatpush1.msra.mxu0 0.0
      %6541 = vmatprep.subr.mxu0 0.0
      %6542 = vmatpush1.msra.mxu0 0.0
      %6543 = vmatprep.subr.mxu0 0.0
      %6544 = vmatpush1.msra.mxu0 0.0
      %6545 = vmatprep.subr.mxu0 0.0
      %6546 = vmatpush1.msra.mxu0 0.0
      %6547 = vmatprep.subr.mxu0 0.0
      %6548 = vmatpush1.msra.mxu0 0.0
      %6549 = vmatprep.subr.mxu0 0.0
      %6550 = vmatpush1.msra.mxu0 0.0
      %6551 = vmatprep.subr.mxu0 0.0
      %6552 = vmatpush1.msra.mxu0 0.0
      %6553 = vmatprep.subr.mxu0 0.0
      %6554 = vmatpush1.msra.mxu0 0.0
      %6555 = vmatprep.subr.mxu0 0.0
      %6556 = vmatpush1.msra.mxu0 0.0
      %6557 = vmatprep.mubr.f32.mxu0 0.0
      %6558 = vmatmul.mubr.f32.gmra.mrb[0].mxu0 %v6483
      %v6559 = vpop.f32.mrb[0].mxu0
      %v6560 = vadd.f32 0.0, %v6559
      %v6561 = vpop.f32.mrb[0].mxu0
      %6562 = vmatprep.mubr.f32.mxu0 0.0
      %6563 = vmatmul.mubr.f32.gmra.mrb[0].mxu0 %v6486
      %v6564 = vpop.f32.mrb[0].mxu0
      %v6565 = vadd.f32 0.0, %v6564
      %v6566 = vpop.f32.mrb[0].mxu0
      %6567 = vmatprep.mubr.f32.mxu0 0.0
      %6568 = vmatmul.mubr.f32.gmra.mrb[0].mxu0 %v6489
      %v6569 = vpop.f32.mrb[0].mxu0
      %v6570 = vadd.f32 0.0, %v6569
      %v6571 = vpop.f32.mrb[0].mxu0
      %6572 = vdwg.mxu0
      %v6574 = vsel %vm5919, %v6162, 0
      %v6577 = vsel %vm5919, %v6164, 0
      %v6580 = vsel %vm5919, %v6166, 0
      %v6582 = vsel %vm4489, %v5156, 0
      %6584 = vmatprep.subr.mxu0 0.0
      %6585 = vmatpush1.msra.mxu0 %v5152
      %6586 = vmatprep.subr.mxu0 0.0
      %6587 = vmatpush1.msra.mxu0 %v5154
      %6588 = vmatprep.subr.mxu0 0.0
      %6589 = vmatpush1.msra.mxu0 %v6582
      %6590 = vmatprep.subr.mxu0 0.0
      %6591 = vmatpush1.msra.mxu0 0.0
      %6592 = vmatprep.subr.mxu0 0.0
      %6593 = vmatpush1.msra.mxu0 0.0
      %6594 = vmatprep.subr.mxu0 0.0
      %6595 = vmatpush1.msra.mxu0 0.0
      %6596 = vmatprep.subr.mxu0 0.0
      %6597 = vmatpush1.msra.mxu0 0.0
      %6598 = vmatprep.subr.mxu0 0.0
      %6599 = vmatpush1.msra.mxu0 0.0
      %6600 = vmatprep.subr.mxu0 0.0
      %6601 = vmatpush1.msra.mxu0 0.0
      %6602 = vmatprep.subr.mxu0 0.0
      %6603 = vmatpush1.msra.mxu0 0.0
      %6604 = vmatprep.subr.mxu0 0.0
      %6605 = vmatpush1.msra.mxu0 0.0
      %6606 = vmatprep.subr.mxu0 0.0
      %6607 = vmatpush1.msra.mxu0 0.0
      %6608 = vmatprep.subr.mxu0 0.0
      %6609 = vmatpush1.msra.mxu0 0.0
      %6610 = vmatprep.subr.mxu0 0.0
      %6611 = vmatpush1.msra.mxu0 0.0
      %6612 = vmatprep.subr.mxu0 0.0
      %6613 = vmatpush1.msra.mxu0 0.0
      %6614 = vmatprep.subr.mxu0 0.0
      %6615 = vmatpush1.msra.mxu0 0.0
      %6616 = vmatprep.subr.mxu0 0.0
      %6617 = vmatpush1.msra.mxu0 0.0
      %6618 = vmatprep.subr.mxu0 0.0
      %6619 = vmatpush1.msra.mxu0 0.0
      %6620 = vmatprep.subr.mxu0 0.0
      %6621 = vmatpush1.msra.mxu0 0.0
      %6622 = vmatprep.subr.mxu0 0.0
      %6623 = vmatpush1.msra.mxu0 0.0
      %6624 = vmatprep.subr.mxu0 0.0
      %6625 = vmatpush1.msra.mxu0 0.0
      %6626 = vmatprep.subr.mxu0 0.0
      %6627 = vmatpush1.msra.mxu0 0.0
      %6628 = vmatprep.subr.mxu0 0.0
      %6629 = vmatpush1.msra.mxu0 0.0
      %6630 = vmatprep.subr.mxu0 0.0
      %6631 = vmatpush1.msra.mxu0 0.0
      %6632 = vmatprep.subr.mxu0 0.0
      %6633 = vmatpush1.msra.mxu0 0.0
      %6634 = vmatprep.subr.mxu0 0.0
      %6635 = vmatpush1.msra.mxu0 0.0
      %6636 = vmatprep.subr.mxu0 0.0
      %6637 = vmatpush1.msra.mxu0 0.0
      %6638 = vmatprep.subr.mxu0 0.0
      %6639 = vmatpush1.msra.mxu0 0.0
      %6640 = vmatprep.subr.mxu0 0.0
      %6641 = vmatpush1.msra.mxu0 0.0
      %6642 = vmatprep.subr.mxu0 0.0
      %6643 = vmatpush1.msra.mxu0 0.0
      %6644 = vmatprep.subr.mxu0 0.0
      %6645 = vmatpush1.msra.mxu0 0.0
      %6646 = vmatprep.subr.mxu0 0.0
      %6647 = vmatpush1.msra.mxu0 0.0
      %6648 = vmatprep.mubr.f32.mxu0 0.0
      %6649 = vmatmul.mubr.f32.gmra.mrb[0].mxu0 %v6574
      %v6650 = vpop.f32.mrb[0].mxu0
      %v6651 = vadd.f32 0.0, %v6650
      %v6652 = vpop.f32.mrb[0].mxu0
      %6653 = vmatprep.mubr.f32.mxu0 0.0
      %6654 = vmatmul.mubr.f32.gmra.mrb[0].mxu0 %v6577
      %v6655 = vpop.f32.mrb[0].mxu0
      %v6656 = vadd.f32 0.0, %v6655
      %v6657 = vpop.f32.mrb[0].mxu0
      %6658 = vmatprep.mubr.f32.mxu0 0.0
      %6659 = vmatmul.mubr.f32.gmra.mrb[0].mxu0 %v6580
      %v6660 = vpop.f32.mrb[0].mxu0
      %v6661 = vadd.f32 0.0, %v6660
      %v6662 = vpop.f32.mrb[0].mxu0
      %6663 = vdwg.mxu0
      %v6665 = vsel %vm5919, %v6168, 0
      %v6668 = vsel %vm5919, %v6170, 0
      %v6671 = vsel %vm5919, %v6172, 0
      %v6673 = vsel %vm4489, %v5164, 0
      %6675 = vmatprep.subr.mxu0 0.0
      %6676 = vmatpush1.msra.mxu0 %v5160
      %6677 = vmatprep.subr.mxu0 0.0
      %6678 = vmatpush1.msra.mxu0 %v5162
      %6679 = vmatprep.subr.mxu0 0.0
      %6680 = vmatpush1.msra.mxu0 %v6673
      %6681 = vmatprep.subr.mxu0 0.0
      %6682 = vmatpush1.msra.mxu0 0.0
      %6683 = vmatprep.subr.mxu0 0.0
      %6684 = vmatpush1.msra.mxu0 0.0
      %6685 = vmatprep.subr.mxu0 0.0
      %6686 = vmatpush1.msra.mxu0 0.0
      %6687 = vmatprep.subr.mxu0 0.0
      %6688 = vmatpush1.msra.mxu0 0.0
      %6689 = vmatprep.subr.mxu0 0.0
      %6690 = vmatpush1.msra.mxu0 0.0
      %6691 = vmatprep.subr.mxu0 0.0
      %6692 = vmatpush1.msra.mxu0 0.0
      %6693 = vmatprep.subr.mxu0 0.0
      %6694 = vmatpush1.msra.mxu0 0.0
      %6695 = vmatprep.subr.mxu0 0.0
      %6696 = vmatpush1.msra.mxu0 0.0
      %6697 = vmatprep.subr.mxu0 0.0
      %6698 = vmatpush1.msra.mxu0 0.0
      %6699 = vmatprep.subr.mxu0 0.0
      %6700 = vmatpush1.msra.mxu0 0.0
      %6701 = vmatprep.subr.mxu0 0.0
      %6702 = vmatpush1.msra.mxu0 0.0
      %6703 = vmatprep.subr.mxu0 0.0
      %6704 = vmatpush1.msra.mxu0 0.0
      %6705 = vmatprep.subr.mxu0 0.0
      %6706 = vmatpush1.msra.mxu0 0.0
      %6707 = vmatprep.subr.mxu0 0.0
      %6708 = vmatpush1.msra.mxu0 0.0
      %6709 = vmatprep.subr.mxu0 0.0
      %6710 = vmatpush1.msra.mxu0 0.0
      %6711 = vmatprep.subr.mxu0 0.0
      %6712 = vmatpush1.msra.mxu0 0.0
      %6713 = vmatprep.subr.mxu0 0.0
      %6714 = vmatpush1.msra.mxu0 0.0
      %6715 = vmatprep.subr.mxu0 0.0
      %6716 = vmatpush1.msra.mxu0 0.0
      %6717 = vmatprep.subr.mxu0 0.0
      %6718 = vmatpush1.msra.mxu0 0.0
      %6719 = vmatprep.subr.mxu0 0.0
      %6720 = vmatpush1.msra.mxu0 0.0
      %6721 = vmatprep.subr.mxu0 0.0
      %6722 = vmatpush1.msra.mxu0 0.0
      %6723 = vmatprep.subr.mxu0 0.0
      %6724 = vmatpush1.msra.mxu0 0.0
      %6725 = vmatprep.subr.mxu0 0.0
      %6726 = vmatpush1.msra.mxu0 0.0
      %6727 = vmatprep.subr.mxu0 0.0
      %6728 = vmatpush1.msra.mxu0 0.0
      %6729 = vmatprep.subr.mxu0 0.0
      %6730 = vmatpush1.msra.mxu0 0.0
      %6731 = vmatprep.subr.mxu0 0.0
      %6732 = vmatpush1.msra.mxu0 0.0
      %6733 = vmatprep.subr.mxu0 0.0
      %6734 = vmatpush1.msra.mxu0 0.0
      %6735 = vmatprep.subr.mxu0 0.0
      %6736 = vmatpush1.msra.mxu0 0.0
      %6737 = vmatprep.subr.mxu0 0.0
      %6738 = vmatpush1.msra.mxu0 0.0
      %6739 = vmatprep.mubr.f32.mxu0 0.0
      %6740 = vmatmul.mubr.f32.gmra.mrb[0].mxu0 %v6665
      %v6741 = vpop.f32.mrb[0].mxu0
      %v6742 = vadd.f32 0.0, %v6741
      %v6743 = vpop.f32.mrb[0].mxu0
      %6744 = vmatprep.mubr.f32.mxu0 0.0
      %6745 = vmatmul.mubr.f32.gmra.mrb[0].mxu0 %v6668
      %v6746 = vpop.f32.mrb[0].mxu0
      %v6747 = vadd.f32 0.0, %v6746
      %v6748 = vpop.f32.mrb[0].mxu0
      %6749 = vmatprep.mubr.f32.mxu0 0.0
      %6750 = vmatmul.mubr.f32.gmra.mrb[0].mxu0 %v6671
      %v6751 = vpop.f32.mrb[0].mxu0
      %v6752 = vadd.f32 0.0, %v6751
      %v6753 = vpop.f32.mrb[0].mxu0
      %6754 = vdwg.mxu0
      %v6756 = vsel %vm5919, %v6174, 0
      %v6759 = vsel %vm5919, %v6176, 0
      %v6762 = vsel %vm5919, %v6178, 0
      %v6764 = vsel %vm4489, %v5172, 0
      %6766 = vmatprep.subr.mxu0 0.0
      %6767 = vmatpush1.msra.mxu0 %v5168
      %6768 = vmatprep.subr.mxu0 0.0
      %6769 = vmatpush1.msra.mxu0 %v5170
      %6770 = vmatprep.subr.mxu0 0.0
      %6771 = vmatpush1.msra.mxu0 %v6764
      %6772 = vmatprep.subr.mxu0 0.0
      %6773 = vmatpush1.msra.mxu0 0.0
      %6774 = vmatprep.subr.mxu0 0.0
      %6775 = vmatpush1.msra.mxu0 0.0
      %6776 = vmatprep.subr.mxu0 0.0
      %6777 = vmatpush1.msra.mxu0 0.0
      %6778 = vmatprep.subr.mxu0 0.0
      %6779 = vmatpush1.msra.mxu0 0.0
      %6780 = vmatprep.subr.mxu0 0.0
      %6781 = vmatpush1.msra.mxu0 0.0
      %6782 = vmatprep.subr.mxu0 0.0
      %6783 = vmatpush1.msra.mxu0 0.0
      %6784 = vmatprep.subr.mxu0 0.0
      %6785 = vmatpush1.msra.mxu0 0.0
      %6786 = vmatprep.subr.mxu0 0.0
      %6787 = vmatpush1.msra.mxu0 0.0
      %6788 = vmatprep.subr.mxu0 0.0
      %6789 = vmatpush1.msra.mxu0 0.0
      %6790 = vmatprep.subr.mxu0 0.0
      %6791 = vmatpush1.msra.mxu0 0.0
      %6792 = vmatprep.subr.mxu0 0.0
      %6793 = vmatpush1.msra.mxu0 0.0
      %6794 = vmatprep.subr.mxu0 0.0
      %6795 = vmatpush1.msra.mxu0 0.0
      %6796 = vmatprep.subr.mxu0 0.0
      %6797 = vmatpush1.msra.mxu0 0.0
      %6798 = vmatprep.subr.mxu0 0.0
      %6799 = vmatpush1.msra.mxu0 0.0
      %6800 = vmatprep.subr.mxu0 0.0
      %6801 = vmatpush1.msra.mxu0 0.0
      %6802 = vmatprep.subr.mxu0 0.0
      %6803 = vmatpush1.msra.mxu0 0.0
      %6804 = vmatprep.subr.mxu0 0.0
      %6805 = vmatpush1.msra.mxu0 0.0
      %6806 = vmatprep.subr.mxu0 0.0
      %6807 = vmatpush1.msra.mxu0 0.0
      %6808 = vmatprep.subr.mxu0 0.0
      %6809 = vmatpush1.msra.mxu0 0.0
      %6810 = vmatprep.subr.mxu0 0.0
      %6811 = vmatpush1.msra.mxu0 0.0
      %6812 = vmatprep.subr.mxu0 0.0
      %6813 = vmatpush1.msra.mxu0 0.0
      %6814 = vmatprep.subr.mxu0 0.0
      %6815 = vmatpush1.msra.mxu0 0.0
      %6816 = vmatprep.subr.mxu0 0.0
      %6817 = vmatpush1.msra.mxu0 0.0
      %6818 = vmatprep.subr.mxu0 0.0
      %6819 = vmatpush1.msra.mxu0 0.0
      %6820 = vmatprep.subr.mxu0 0.0
      %6821 = vmatpush1.msra.mxu0 0.0
      %6822 = vmatprep.subr.mxu0 0.0
      %6823 = vmatpush1.msra.mxu0 0.0
      %6824 = vmatprep.subr.mxu0 0.0
      %6825 = vmatpush1.msra.mxu0 0.0
      %6826 = vmatprep.subr.mxu0 0.0
      %6827 = vmatpush1.msra.mxu0 0.0
      %6828 = vmatprep.subr.mxu0 0.0
      %6829 = vmatpush1.msra.mxu0 0.0
      %6830 = vmatprep.mubr.f32.mxu0 0.0
      %6831 = vmatmul.mubr.f32.gmra.mrb[0].mxu0 %v6756
      %v6832 = vpop.f32.mrb[0].mxu0
      %v6833 = vadd.f32 0.0, %v6832
      %v6834 = vpop.f32.mrb[0].mxu0
      %6835 = vmatprep.mubr.f32.mxu0 0.0
      %6836 = vmatmul.mubr.f32.gmra.mrb[0].mxu0 %v6759
      %v6837 = vpop.f32.mrb[0].mxu0
      %v6838 = vadd.f32 0.0, %v6837
      %v6839 = vpop.f32.mrb[0].mxu0
      %6840 = vmatprep.mubr.f32.mxu0 0.0
      %6841 = vmatmul.mubr.f32.gmra.mrb[0].mxu0 %v6762
      %v6842 = vpop.f32.mrb[0].mxu0
      %v6843 = vadd.f32 0.0, %v6842
      %v6844 = vpop.f32.mrb[0].mxu0
      %6845 = vdwg.mxu0
      %v6847 = vsel %vm5919, %v6180, 0
      %v6850 = vsel %vm5919, %v6182, 0
      %v6853 = vsel %vm5919, %v6184, 0
      %v6855 = vsel %vm4489, %v5180, 0
      %6857 = vmatprep.subr.mxu0 0.0
      %6858 = vmatpush1.msra.mxu0 %v5176
      %6859 = vmatprep.subr.mxu0 0.0
      %6860 = vmatpush1.msra.mxu0 %v5178
      %6861 = vmatprep.subr.mxu0 0.0
      %6862 = vmatpush1.msra.mxu0 %v6855
      %6863 = vmatprep.subr.mxu0 0.0
      %6864 = vmatpush1.msra.mxu0 0.0
      %6865 = vmatprep.subr.mxu0 0.0
      %6866 = vmatpush1.msra.mxu0 0.0
      %6867 = vmatprep.subr.mxu0 0.0
      %6868 = vmatpush1.msra.mxu0 0.0
      %6869 = vmatprep.subr.mxu0 0.0
      %6870 = vmatpush1.msra.mxu0 0.0
      %6871 = vmatprep.subr.mxu0 0.0
      %6872 = vmatpush1.msra.mxu0 0.0
      %6873 = vmatprep.subr.mxu0 0.0
      %6874 = vmatpush1.msra.mxu0 0.0
      %6875 = vmatprep.subr.mxu0 0.0
      %6876 = vmatpush1.msra.mxu0 0.0
      %6877 = vmatprep.subr.mxu0 0.0
      %6878 = vmatpush1.msra.mxu0 0.0
      %6879 = vmatprep.subr.mxu0 0.0
      %6880 = vmatpush1.msra.mxu0 0.0
      %6881 = vmatprep.subr.mxu0 0.0
      %6882 = vmatpush1.msra.mxu0 0.0
      %6883 = vmatprep.subr.mxu0 0.0
      %6884 = vmatpush1.msra.mxu0 0.0
      %6885 = vmatprep.subr.mxu0 0.0
      %6886 = vmatpush1.msra.mxu0 0.0
      %6887 = vmatprep.subr.mxu0 0.0
      %6888 = vmatpush1.msra.mxu0 0.0
      %6889 = vmatprep.subr.mxu0 0.0
      %6890 = vmatpush1.msra.mxu0 0.0
      %6891 = vmatprep.subr.mxu0 0.0
      %6892 = vmatpush1.msra.mxu0 0.0
      %6893 = vmatprep.subr.mxu0 0.0
      %6894 = vmatpush1.msra.mxu0 0.0
      %6895 = vmatprep.subr.mxu0 0.0
      %6896 = vmatpush1.msra.mxu0 0.0
      %6897 = vmatprep.subr.mxu0 0.0
      %6898 = vmatpush1.msra.mxu0 0.0
      %6899 = vmatprep.subr.mxu0 0.0
      %6900 = vmatpush1.msra.mxu0 0.0
      %6901 = vmatprep.subr.mxu0 0.0
      %6902 = vmatpush1.msra.mxu0 0.0
      %6903 = vmatprep.subr.mxu0 0.0
      %6904 = vmatpush1.msra.mxu0 0.0
      %6905 = vmatprep.subr.mxu0 0.0
      %6906 = vmatpush1.msra.mxu0 0.0
      %6907 = vmatprep.subr.mxu0 0.0
      %6908 = vmatpush1.msra.mxu0 0.0
      %6909 = vmatprep.subr.mxu0 0.0
      %6910 = vmatpush1.msra.mxu0 0.0
      %6911 = vmatprep.subr.mxu0 0.0
      %6912 = vmatpush1.msra.mxu0 0.0
      %6913 = vmatprep.subr.mxu0 0.0
      %6914 = vmatpush1.msra.mxu0 0.0
      %6915 = vmatprep.subr.mxu0 0.0
      %6916 = vmatpush1.msra.mxu0 0.0
      %6917 = vmatprep.subr.mxu0 0.0
      %6918 = vmatpush1.msra.mxu0 0.0
      %6919 = vmatprep.subr.mxu0 0.0
      %6920 = vmatpush1.msra.mxu0 0.0
      %6921 = vmatprep.mubr.f32.mxu0 0.0
      %6922 = vmatmul.mubr.f32.gmra.mrb[0].mxu0 %v6847
      %v6923 = vpop.f32.mrb[0].mxu0
      %v6924 = vadd.f32 0.0, %v6923
      %v6925 = vpop.f32.mrb[0].mxu0
      %6926 = vmatprep.mubr.f32.mxu0 0.0
      %6927 = vmatmul.mubr.f32.gmra.mrb[0].mxu0 %v6850
      %v6928 = vpop.f32.mrb[0].mxu0
      %v6929 = vadd.f32 0.0, %v6928
      %v6930 = vpop.f32.mrb[0].mxu0
      %6931 = vmatprep.mubr.f32.mxu0 0.0
      %6932 = vmatmul.mubr.f32.gmra.mrb[0].mxu0 %v6853
      %v6933 = vpop.f32.mrb[0].mxu0
      %v6934 = vadd.f32 0.0, %v6933
      %v6935 = vpop.f32.mrb[0].mxu0
      %6936 = vdwg.mxu0
      %6940 = vrot.lane.b32.xlu0 %v6378, 16
      %v6941 = vpop.permute.xlu0 %6940
      %6942 = vrot.lane.b32.xlu0 %v6383, 16
      %v6943 = vpop.permute.xlu0 %6942
      %6944 = vrot.lane.b32.xlu0 %v6388, 16
      %v6945 = vpop.permute.xlu0 %6944
      %6952 = vrot.lane.b32.xlu0 %v6469, 32
      %v6953 = vpop.permute.xlu0 %6952
      %6954 = vrot.lane.b32.xlu0 %v6474, 32
      %v6955 = vpop.permute.xlu0 %6954
      %6956 = vrot.lane.b32.xlu0 %v6479, 32
      %v6957 = vpop.permute.xlu0 %6956
      %6964 = vrot.lane.b32.xlu0 %v6560, 48
      %v6965 = vpop.permute.xlu0 %6964
      %6966 = vrot.lane.b32.xlu0 %v6565, 48
      %v6967 = vpop.permute.xlu0 %6966
      %6968 = vrot.lane.b32.xlu0 %v6570, 48
      %v6969 = vpop.permute.xlu0 %6968
      %6976 = vrot.lane.b32.xlu0 %v6651, 64
      %v6977 = vpop.permute.xlu0 %6976
      %6978 = vrot.lane.b32.xlu0 %v6656, 64
      %v6979 = vpop.permute.xlu0 %6978
      %6980 = vrot.lane.b32.xlu0 %v6661, 64
      %v6981 = vpop.permute.xlu0 %6980
      %6988 = vrot.lane.b32.xlu0 %v6742, 80
      %v6989 = vpop.permute.xlu0 %6988
      %6990 = vrot.lane.b32.xlu0 %v6747, 80
      %v6991 = vpop.permute.xlu0 %6990
      %6992 = vrot.lane.b32.xlu0 %v6752, 80
      %v6993 = vpop.permute.xlu0 %6992
      %7000 = vrot.lane.b32.xlu0 %v6833, 96
      %v7001 = vpop.permute.xlu0 %7000
      %7002 = vrot.lane.b32.xlu0 %v6838, 96
      %v7003 = vpop.permute.xlu0 %7002
      %7004 = vrot.lane.b32.xlu0 %v6843, 96
      %v7005 = vpop.permute.xlu0 %7004
      %7012 = vrot.lane.b32.xlu0 %v6924, 112
      %v7013 = vpop.permute.xlu0 %7012
      %7014 = vrot.lane.b32.xlu0 %v6929, 112
      %v7015 = vpop.permute.xlu0 %7014
      %7016 = vrot.lane.b32.xlu0 %v6934, 112
      %v7017 = vpop.permute.xlu0 %7016
      %v7021 = vsel %vm1561, %v6287, %v6941
      %v7022 = vsel %vm1561, %v6292, %v6943
      %v7023 = vsel %vm1561, %v6297, %v6945
      %vm7024 = vcmask 261120
      %v7025 = vsel %vm7024, %v7021, %v6953
      %v7026 = vsel %vm7024, %v7022, %v6955
      %v7027 = vsel %vm7024, %v7023, %v6957
      %vm7028 = vcmask 392192
      %v7029 = vsel %vm7028, %v7025, %v6965
      %v7030 = vsel %vm7028, %v7026, %v6967
      %v7031 = vsel %vm7028, %v7027, %v6969
      %v7032 = vsel %vm1415, %v7029, %v6977
      %v7033 = vsel %vm1415, %v7030, %v6979
      %v7034 = vsel %vm1415, %v7031, %v6981
      %vm7035 = vcmask 654336
      %v7036 = vsel %vm7035, %v7032, %v6989
      %v7037 = vsel %vm7035, %v7033, %v6991
      %v7038 = vsel %vm7035, %v7034, %v6993
      %vm7039 = vcmask 785408
      %v7040 = vsel %vm7039, %v7036, %v7001
      %v7041 = vsel %vm7039, %v7037, %v7003
      %v7042 = vsel %vm7039, %v7038, %v7005
      %vm7043 = vcmask 916480
      %v7044 = vsel %vm7043, %v7040, %v7013
      %v7045 = vsel %vm7043, %v7041, %v7015
      %v7046 = vsel %vm7043, %v7042, %v7017
      %v7047 = vld [vmem:[%s61] sm:$0xf]
      %v7048 = vld [vmem:[%s61 + $0x4] sm:$0xf]
      %v7049 = vld [vmem:[%s61 + $0x8] sm:$0xf]
      %v7050 = vld [vmem:[%s61 + $0xc] sm:$0xf]
      %v7051 = vld [vmem:[%s61 + $0x10] sm:$0xf]
      %v7052 = vld [vmem:[%s61 + $0x14] sm:$0xf]
      %v7053 = vld [vmem:[%s61 + $0x18] sm:$0xf]
      %v7054 = vld [vmem:[%s61 + $0x1c] sm:$0xf]
      %v7055 = vld [vmem:[%s61 + $0x20] sm:$0xf]
      %v7056 = vld [vmem:[%s61 + $0x24] sm:$0xf]
      %v7057 = vld [vmem:[%s61 + $0x28] sm:$0xf]
      %v7058 = vld [vmem:[%s61 + $0x2c] sm:$0xf]
      %v7059 = vld [vmem:[%s61 + $0x30] sm:$0xf]
      %v7060 = vld [vmem:[%s61 + $0x34] sm:$0xf]
      %v7061 = vld [vmem:[%s61 + $0x38] sm:$0xf]
      %v7062 = vld [vmem:[%s61 + $0x3c] sm:$0xf]
      %v7063 = vpack.c.bf16 %v7045, %v7044
      %v7064 = vpack.c.bf16 %v7046, %v7046
      %v7065 = vld [vmem:[%s63] sm:$0x1]
      %v7067 = vlaneseq
      %v7068 = vshrl.u32 %v7067, 7
      %v7069 = vsub.s32 0, %v7068
      %v7070 = vrot.slane %v7065, %v7069
      %v7088 = vunpack.c.l.b16 %v7047
      %v7089 = vunpack.c.l.b16 %v7048
      %v7090 = vunpack.c.l.b16 %v7049
      %v7091 = vunpack.c.l.b16 %v7050
      %v7092 = vunpack.c.l.b16 %v7051
      %v7093 = vunpack.c.l.b16 %v7052
      %v7094 = vunpack.c.l.b16 %v7053
      %v7095 = vunpack.c.l.b16 %v7054
      %v7096 = vunpack.c.l.b16 %v7055
      %v7097 = vunpack.c.l.b16 %v7056
      %v7098 = vunpack.c.l.b16 %v7057
      %v7099 = vunpack.c.l.b16 %v7058
      %v7100 = vunpack.c.l.b16 %v7059
      %v7101 = vunpack.c.l.b16 %v7060
      %v7102 = vunpack.c.l.b16 %v7061
      %v7103 = vunpack.c.l.b16 %v7062
      %v7104 = vpack.c.b16 %v7089, %v7088
      %v7105 = vpack.c.b16 %v7091, %v7090
      %v7106 = vpack.c.b16 %v7093, %v7092
      %v7107 = vpack.c.b16 %v7095, %v7094
      %v7108 = vpack.c.b16 %v7097, %v7096
      %v7109 = vpack.c.b16 %v7099, %v7098
      %v7110 = vpack.c.b16 %v7101, %v7100
      %v7111 = vpack.c.b16 %v7103, %v7102
      %7120 = vmatprep.subr.bf16.mxu0 0
      %7121 = vmatpush1.bf16.msra.mxu0 %v7104
      %7122 = vmatprep.subr.bf16.mxu0 0
      %7123 = vmatpush1.bf16.msra.mxu0 %v7105
      %7124 = vmatprep.subr.bf16.mxu0 0
      %7125 = vmatpush1.bf16.msra.mxu0 %v7106
      %7126 = vmatprep.subr.bf16.mxu0 0
      %7127 = vmatpush1.bf16.msra.mxu0 %v7107
      %7128 = vmatprep.subr.bf16.mxu0 0
      %7129 = vmatpush1.bf16.msra.mxu0 %v7108
      %7130 = vmatprep.subr.bf16.mxu0 0
      %7131 = vmatpush1.bf16.msra.mxu0 %v7109
      %7132 = vmatprep.subr.bf16.mxu0 0
      %7133 = vmatpush1.bf16.msra.mxu0 %v7110
      %7134 = vmatprep.subr.bf16.mxu0 0
      %7135 = vmatpush1.bf16.msra.mxu0 %v7111
      %7136 = vmatprep.subr.bf16.mxu0 0
      %7137 = vmatpush1.bf16.msra.mxu0 0
      %7138 = vmatprep.subr.bf16.mxu0 0
      %7139 = vmatpush1.bf16.msra.mxu0 0
      %7140 = vmatprep.subr.bf16.mxu0 0
      %7141 = vmatpush1.bf16.msra.mxu0 0
      %7142 = vmatprep.subr.bf16.mxu0 0
      %7143 = vmatpush1.bf16.msra.mxu0 0
      %7144 = vmatprep.subr.bf16.mxu0 0
      %7145 = vmatpush1.bf16.msra.mxu0 0
      %7146 = vmatprep.subr.bf16.mxu0 0
      %7147 = vmatpush1.bf16.msra.mxu0 0
      %7148 = vmatprep.subr.bf16.mxu0 0
      %7149 = vmatpush1.bf16.msra.mxu0 0
      %7150 = vmatprep.subr.bf16.mxu0 0
      %7151 = vmatpush1.bf16.msra.mxu0 0
      %7152 = vmatprep.mubr.bf16.mxu0 0
      %7153 = vmatmul.mubr.bf16.gmra.mrb[0].mxu0 %v7063
      %v7154 = vpop.f32.mrb[0].mxu0
      %v7155 = vadd.f32 %v7070, %v7154
      %v7156 = vpop.f32.mrb[0].mxu0
      %v7157 = vpop.f32.mrb[0].mxu0
      %v7158 = vpop.f32.mrb[0].mxu0
      %7159 = vmatprep.mubr.bf16.mxu0 0
      %7160 = vmatmul.mubr.bf16.gmra.mrb[0].mxu0 %v7064
      %v7161 = vpop.f32.mrb[0].mxu0
      %v7162 = vpop.f32.mrb[0].mxu0
      %v7163 = vpop.f32.mrb[0].mxu0
      %v7164 = vpop.f32.mrb[0].mxu0
      %7165 = vdwg.mxu0
      %v7166 = vld [vmem:[%s65] sm:$0xf]
      %v7167 = vld [vmem:[%s65 + $0x4] sm:$0xf]
      %v7168 = vld [vmem:[%s65 + $0x8] sm:$0xf]
      %v7169 = vld [vmem:[%s65 + $0xc] sm:$0xf]
      %v7170 = vld [vmem:[%s65 + $0x10] sm:$0xf]
      %v7171 = vld [vmem:[%s65 + $0x14] sm:$0xf]
      %v7172 = vld [vmem:[%s65 + $0x18] sm:$0xf]
      %v7173 = vld [vmem:[%s65 + $0x1c] sm:$0xf]
      %v7174 = vld [vmem:[%s65 + $0x20] sm:$0xf]
      %v7175 = vld [vmem:[%s65 + $0x24] sm:$0xf]
      %v7176 = vld [vmem:[%s65 + $0x28] sm:$0xf]
      %v7177 = vld [vmem:[%s65 + $0x2c] sm:$0xf]
      %v7178 = vld [vmem:[%s65 + $0x30] sm:$0xf]
      %v7179 = vld [vmem:[%s65 + $0x34] sm:$0xf]
      %v7180 = vld [vmem:[%s65 + $0x38] sm:$0xf]
      %v7181 = vld [vmem:[%s65 + $0x3c] sm:$0xf]
      %v7182 = vpack.c.bf16 %v7155, %v7155
      %v7183 = vld [vmem:[%s67] sm:$0x1]
      %v7200 = vunpack.c.l.b16 %v7166
      %v7201 = vunpack.c.l.b16 %v7167
      %v7202 = vunpack.c.l.b16 %v7168
      %v7203 = vunpack.c.l.b16 %v7169
      %v7204 = vunpack.c.l.b16 %v7170
      %v7205 = vunpack.c.l.b16 %v7171
      %v7206 = vunpack.c.l.b16 %v7172
      %v7207 = vunpack.c.l.b16 %v7173
      %v7208 = vunpack.c.l.b16 %v7174
      %v7209 = vunpack.c.l.b16 %v7175
      %v7210 = vunpack.c.l.b16 %v7176
      %v7211 = vunpack.c.l.b16 %v7177
      %v7212 = vunpack.c.l.b16 %v7178
      %v7213 = vunpack.c.l.b16 %v7179
      %v7214 = vunpack.c.l.b16 %v7180
      %v7215 = vunpack.c.l.b16 %v7181
      %v7216 = vpack.c.b16 %v7201, %v7200
      %v7217 = vpack.c.b16 %v7203, %v7202
      %v7218 = vpack.c.b16 %v7205, %v7204
      %v7219 = vpack.c.b16 %v7207, %v7206
      %v7220 = vpack.c.b16 %v7209, %v7208
      %v7221 = vpack.c.b16 %v7211, %v7210
      %v7222 = vpack.c.b16 %v7213, %v7212
      %v7223 = vpack.c.b16 %v7215, %v7214
      %7232 = vmatprep.subr.bf16.mxu0 0
      %7233 = vmatpush1.bf16.msra.mxu0 %v7216
      %7234 = vmatprep.subr.bf16.mxu0 0
      %7235 = vmatpush1.bf16.msra.mxu0 %v7217
      %7236 = vmatprep.subr.bf16.mxu0 0
      %7237 = vmatpush1.bf16.msra.mxu0 %v7218
      %7238 = vmatprep.subr.bf16.mxu0 0
      %7239 = vmatpush1.bf16.msra.mxu0 %v7219
      %7240 = vmatprep.subr.bf16.mxu0 0
      %7241 = vmatpush1.bf16.msra.mxu0 %v7220
      %7242 = vmatprep.subr.bf16.mxu0 0
      %7243 = vmatpush1.bf16.msra.mxu0 %v7221
      %7244 = vmatprep.subr.bf16.mxu0 0
      %7245 = vmatpush1.bf16.msra.mxu0 %v7222
      %7246 = vmatprep.subr.bf16.mxu0 0
      %7247 = vmatpush1.bf16.msra.mxu0 %v7223
      %7248 = vmatprep.subr.bf16.mxu0 0
      %7249 = vmatpush1.bf16.msra.mxu0 0
      %7250 = vmatprep.subr.bf16.mxu0 0
      %7251 = vmatpush1.bf16.msra.mxu0 0
      %7252 = vmatprep.subr.bf16.mxu0 0
      %7253 = vmatpush1.bf16.msra.mxu0 0
      %7254 = vmatprep.subr.bf16.mxu0 0
      %7255 = vmatpush1.bf16.msra.mxu0 0
      %7256 = vmatprep.subr.bf16.mxu0 0
      %7257 = vmatpush1.bf16.msra.mxu0 0
      %7258 = vmatprep.subr.bf16.mxu0 0
      %7259 = vmatpush1.bf16.msra.mxu0 0
      %7260 = vmatprep.subr.bf16.mxu0 0
      %7261 = vmatpush1.bf16.msra.mxu0 0
      %7262 = vmatprep.subr.bf16.mxu0 0
      %7263 = vmatpush1.bf16.msra.mxu0 0
      %7264 = vmatprep.mubr.bf16.mxu0 0
      %7265 = vmatmul.mubr.bf16.gmra.mrb[0].mxu0 %v7182
      %v7266 = vpop.f32.mrb[0].mxu0
      %v7267 = vadd.f32 %v7183, %v7266
      %v7268 = vpop.f32.mrb[0].mxu0
      %v7269 = vpop.f32.mrb[0].mxu0
      %v7270 = vpop.f32.mrb[0].mxu0
      %7271 = vdwg.mxu0
      %vm7272 = vcmp.gt.f32.partialorder %v7267, 0.0
      %v7273 = vmin.f32 %v7267, 0.0
      %v7274 = vmul.f32 %v7273, 1.442695
      %v7275 = vpow.pop %v7274
      %v7276 = vsub.f32 %v7275, 1.0
      %v7277 = vmul.f32 %v7276, 1.6732632
      %v7278 = vsel %vm7272, %v7267, %v7277
      %v7279 = vmul.f32 %v7278, 1.050701
      %v7280 = vld [vmem:[%s69] sm:$0xf]
      %v7281 = vld [vmem:[%s69 + $0x4] sm:$0xf]
      %v7282 = vld [vmem:[%s69 + $0x8] sm:$0xf]
      %v7283 = vld [vmem:[%s69 + $0xc] sm:$0xf]
      %v7284 = vld [vmem:[%s69 + $0x10] sm:$0xf]
      %v7285 = vld [vmem:[%s69 + $0x14] sm:$0xf]
      %v7286 = vld [vmem:[%s69 + $0x18] sm:$0xf]
      %v7287 = vld [vmem:[%s69 + $0x1c] sm:$0xf]
      %v7288 = vld [vmem:[%s69 + $0x20] sm:$0xf]
      %v7289 = vld [vmem:[%s69 + $0x24] sm:$0xf]
      %v7290 = vld [vmem:[%s69 + $0x28] sm:$0xf]
      %v7291 = vld [vmem:[%s69 + $0x2c] sm:$0xf]
      %v7292 = vld [vmem:[%s69 + $0x30] sm:$0xf]
      %v7293 = vld [vmem:[%s69 + $0x34] sm:$0xf]
      %v7294 = vld [vmem:[%s69 + $0x38] sm:$0xf]
      %v7295 = vld [vmem:[%s69 + $0x3c] sm:$0xf]
      %v7296 = vpack.c.bf16 %v7279, %v7279
      %v7297 = vld [vmem:[%s71] sm:$0x1]
      %v7314 = vunpack.c.l.b16 %v7280
      %v7315 = vunpack.c.l.b16 %v7281
      %v7316 = vunpack.c.l.b16 %v7282
      %v7317 = vunpack.c.l.b16 %v7283
      %v7318 = vunpack.c.l.b16 %v7284
      %v7319 = vunpack.c.l.b16 %v7285
      %v7320 = vunpack.c.l.b16 %v7286
      %v7321 = vunpack.c.l.b16 %v7287
      %v7322 = vunpack.c.l.b16 %v7288
      %v7323 = vunpack.c.l.b16 %v7289
      %v7324 = vunpack.c.l.b16 %v7290
      %v7325 = vunpack.c.l.b16 %v7291
      %v7326 = vunpack.c.l.b16 %v7292
      %v7327 = vunpack.c.l.b16 %v7293
      %v7328 = vunpack.c.l.b16 %v7294
      %v7329 = vunpack.c.l.b16 %v7295
      %v7330 = vpack.c.b16 %v7315, %v7314
      %v7331 = vpack.c.b16 %v7317, %v7316
      %v7332 = vpack.c.b16 %v7319, %v7318
      %v7333 = vpack.c.b16 %v7321, %v7320
      %v7334 = vpack.c.b16 %v7323, %v7322
      %v7335 = vpack.c.b16 %v7325, %v7324
      %v7336 = vpack.c.b16 %v7327, %v7326
      %v7337 = vpack.c.b16 %v7329, %v7328
      %7346 = vmatprep.subr.bf16.mxu0 0
      %7347 = vmatpush1.bf16.msra.mxu0 %v7330
      %7348 = vmatprep.subr.bf16.mxu0 0
      %7349 = vmatpush1.bf16.msra.mxu0 %v7331
      %7350 = vmatprep.subr.bf16.mxu0 0
      %7351 = vmatpush1.bf16.msra.mxu0 %v7332
      %7352 = vmatprep.subr.bf16.mxu0 0
      %7353 = vmatpush1.bf16.msra.mxu0 %v7333
      %7354 = vmatprep.subr.bf16.mxu0 0
      %7355 = vmatpush1.bf16.msra.mxu0 %v7334
      %7356 = vmatprep.subr.bf16.mxu0 0
      %7357 = vmatpush1.bf16.msra.mxu0 %v7335
      %7358 = vmatprep.subr.bf16.mxu0 0
      %7359 = vmatpush1.bf16.msra.mxu0 %v7336
      %7360 = vmatprep.subr.bf16.mxu0 0
      %7361 = vmatpush1.bf16.msra.mxu0 %v7337
      %7362 = vmatprep.subr.bf16.mxu0 0
      %7363 = vmatpush1.bf16.msra.mxu0 0
      %7364 = vmatprep.subr.bf16.mxu0 0
      %7365 = vmatpush1.bf16.msra.mxu0 0
      %7366 = vmatprep.subr.bf16.mxu0 0
      %7367 = vmatpush1.bf16.msra.mxu0 0
      %7368 = vmatprep.subr.bf16.mxu0 0
      %7369 = vmatpush1.bf16.msra.mxu0 0
      %7370 = vmatprep.subr.bf16.mxu0 0
      %7371 = vmatpush1.bf16.msra.mxu0 0
      %7372 = vmatprep.subr.bf16.mxu0 0
      %7373 = vmatpush1.bf16.msra.mxu0 0
      %7374 = vmatprep.subr.bf16.mxu0 0
      %7375 = vmatpush1.bf16.msra.mxu0 0
      %7376 = vmatprep.subr.bf16.mxu0 0
      %7377 = vmatpush1.bf16.msra.mxu0 0
      %7378 = vmatprep.mubr.bf16.mxu0 0
      %7379 = vmatmul.mubr.bf16.gmra.mrb[0].mxu0 %v7296
      %v7380 = vpop.f32.mrb[0].mxu0
      %v7381 = vadd.f32 %v7297, %v7380
      %v7382 = vpop.f32.mrb[0].mxu0
      %v7383 = vpop.f32.mrb[0].mxu0
      %v7384 = vpop.f32.mrb[0].mxu0
      %7385 = vdwg.mxu0
      %v7386 = vld [vmem:[%s73] sm:$0xf]
      %v7387 = vld [vmem:[%s73 + $0x4] sm:$0xf]
      %v7388 = vld [vmem:[%s73 + $0x8] sm:$0xf]
      %v7389 = vld [vmem:[%s73 + $0xc] sm:$0xf]
      %v7390 = vld [vmem:[%s73 + $0x10] sm:$0xf]
      %v7391 = vld [vmem:[%s73 + $0x14] sm:$0xf]
      %v7392 = vld [vmem:[%s73 + $0x18] sm:$0xf]
      %v7393 = vld [vmem:[%s73 + $0x1c] sm:$0xf]
      %v7394 = vld [vmem:[%s73 + $0x20] sm:$0xf]
      %v7395 = vld [vmem:[%s73 + $0x24] sm:$0xf]
      %v7396 = vld [vmem:[%s73 + $0x28] sm:$0xf]
      %v7397 = vld [vmem:[%s73 + $0x2c] sm:$0xf]
      %v7398 = vld [vmem:[%s73 + $0x30] sm:$0xf]
      %v7399 = vld [vmem:[%s73 + $0x34] sm:$0xf]
      %v7400 = vld [vmem:[%s73 + $0x38] sm:$0xf]
      %v7401 = vld [vmem:[%s73 + $0x3c] sm:$0xf]
      %v7402 = vld [vmem:[%s75] sm:$0x1]
      %v7404 = vshrl.u32 %v7182, 16
      %v7423 = vunpack.c.l.b16 %v7386
      %v7424 = vunpack.c.l.b16 %v7387
      %v7425 = vunpack.c.l.b16 %v7388
      %v7426 = vunpack.c.l.b16 %v7389
      %v7427 = vunpack.c.l.b16 %v7390
      %v7428 = vunpack.c.l.b16 %v7391
      %v7429 = vunpack.c.l.b16 %v7392
      %v7430 = vunpack.c.l.b16 %v7393
      %v7431 = vunpack.c.l.b16 %v7394
      %v7432 = vunpack.c.l.b16 %v7395
      %v7433 = vunpack.c.l.b16 %v7396
      %v7434 = vunpack.c.l.b16 %v7397
      %v7435 = vunpack.c.l.b16 %v7398
      %v7436 = vunpack.c.l.b16 %v7399
      %v7437 = vunpack.c.l.b16 %v7400
      %v7438 = vunpack.c.l.b16 %v7401
      %v7439 = vpack.c.b16 %v7424, %v7423
      %v7440 = vpack.c.b16 %v7426, %v7425
      %v7441 = vpack.c.b16 %v7428, %v7427
      %v7442 = vpack.c.b16 %v7430, %v7429
      %v7443 = vpack.c.b16 %v7432, %v7431
      %v7444 = vpack.c.b16 %v7434, %v7433
      %v7445 = vpack.c.b16 %v7436, %v7435
      %v7446 = vpack.c.b16 %v7438, %v7437
      %7455 = vmatprep.subr.bf16.mxu0 0
      %7456 = vmatpush1.bf16.msra.mxu0 %v7439
      %7457 = vmatprep.subr.bf16.mxu0 0
      %7458 = vmatpush1.bf16.msra.mxu0 %v7440
      %7459 = vmatprep.subr.bf16.mxu0 0
      %7460 = vmatpush1.bf16.msra.mxu0 %v7441
      %7461 = vmatprep.subr.bf16.mxu0 0
      %7462 = vmatpush1.bf16.msra.mxu0 %v7442
      %7463 = vmatprep.subr.bf16.mxu0 0
      %7464 = vmatpush1.bf16.msra.mxu0 %v7443
      %7465 = vmatprep.subr.bf16.mxu0 0
      %7466 = vmatpush1.bf16.msra.mxu0 %v7444
      %7467 = vmatprep.subr.bf16.mxu0 0
      %7468 = vmatpush1.bf16.msra.mxu0 %v7445
      %7469 = vmatprep.subr.bf16.mxu0 0
      %7470 = vmatpush1.bf16.msra.mxu0 %v7446
      %7471 = vmatprep.subr.bf16.mxu0 0
      %7472 = vmatpush1.bf16.msra.mxu0 0
      %7473 = vmatprep.subr.bf16.mxu0 0
      %7474 = vmatpush1.bf16.msra.mxu0 0
      %7475 = vmatprep.subr.bf16.mxu0 0
      %7476 = vmatpush1.bf16.msra.mxu0 0
      %7477 = vmatprep.subr.bf16.mxu0 0
      %7478 = vmatpush1.bf16.msra.mxu0 0
      %7479 = vmatprep.subr.bf16.mxu0 0
      %7480 = vmatpush1.bf16.msra.mxu0 0
      %7481 = vmatprep.subr.bf16.mxu0 0
      %7482 = vmatpush1.bf16.msra.mxu0 0
      %7483 = vmatprep.subr.bf16.mxu0 0
      %7484 = vmatpush1.bf16.msra.mxu0 0
      %7485 = vmatprep.subr.bf16.mxu0 0
      %7486 = vmatpush1.bf16.msra.mxu0 0
      %7487 = vmatprep.mubr.bf16.mxu0 0
      %7488 = vmatmul.mubr.bf16.gmra.mrb[0].mxu0 %v7404
      %v7489 = vpop.f32.mrb[0].mxu0
      %v7490 = vadd.f32 %v7402, %v7489
      %v7491 = vpop.f32.mrb[0].mxu0
      %v7492 = vpop.f32.mrb[0].mxu0
      %v7493 = vpop.f32.mrb[0].mxu0
      %7494 = vdwg.mxu0
      %7496 = vrot.lane.b32.xlu0 %v7381, 16
      %v7497 = vpop.permute.xlu0 %7496
      %7500 = vrot.lane.b32.xlu0 %v7490, 18
      %v7501 = vpop.permute.xlu0 %7500
      %v7503 = vsel %vm1561, %v4420, %v7497
      %vm7504 = vcmask 146432
      %v7505 = vsel %vm7504, %v7503, %v7501
      %vm7506 = vcmask 204800
      %7507 = vst.msk [vmem:[%s1219] sm:$0x1] %vm7506, %v7505
      %p7508 = scmp.lt.s32.totalorder %s91, 1
      %s7509 = scalar_select %p7508, %s91, 1
      %s7510 = smul.addr %s7509, 24
      %s7511 = smul.addr %s7510, 8
      %s7512 = scalar_lea.vmem %s77, %s7511
      %p7513 = scmp.lt.s32.totalorder %s91, 1
      %s7514 = scalar_select %p7513, %s91, 1
      %s7515 = scalar_lea.vmem %s79, %s7514
      // Predicated region
      $region173: #{backbone_forward.1} parent=171 // pred_check
        %p7516 = pneg %p922
      $region174: #{backbone_forward.1} parent=171 // pred_check_branch
        %7518 = sbr.rel (%p7516) target = $region176
      $region175: #{backbone_forward.1} parent=171 // pred_region
        _
      $region176: #{backbone_forward.1} parent=171 // pred_fallthru
        _
      // Predicated region
      $region177: #{backbone_forward.1} parent=171 // pred_check
        %p7519 = pneg %p948
      $region178: #{backbone_forward.1} parent=171 // pred_check_branch
        %7521 = sbr.rel (%p7519) target = $region180
      $region179: #{backbone_forward.1} parent=171 // pred_region
        _
      $region180: #{backbone_forward.1} parent=171 // pred_fallthru
        _
    $region172: #{backbone_forward.1} parent=5 // pred_fallthru
      _
    %p7522 = scmp.le.s32.totalorder 2, %s86
    // Predicated region
    $region181: #{backbone_forward.1} parent=5 // pred_check
      %p7523 = pneg %p7522
    $region182: #{backbone_forward.1} parent=5 // pred_check_branch
      %7525 = sbr.rel (%p7523) target = $region184
    $region183: #{backbone_forward.1} parent=5 // pred_region
      %s7526 = ssub.s32 %s86, 2
      // Predicated region
      $region185: #{backbone_forward.1} parent=183 // pred_check
        %p7527 = pneg %p928
      $region186: #{backbone_forward.1} parent=183 // pred_check_branch
        %7529 = sbr.rel (%p7527) target = $region188
      $region187: #{backbone_forward.1} parent=183 // pred_region
        %p7530 = scmp.lt.s32.totalorder %s92, 1
        %s7531 = scalar_select %p7530, %s92, 1
        %s7532 = smul.addr %s7531, 24
        %s7533 = smul.addr %s7532, 8
        %s7534 = scalar_lea.vmem %s77, %s7533
      $region188: #{backbone_forward.1} parent=183 // pred_fallthru
        _
      // Predicated region
      $region189: #{backbone_forward.1} parent=183 // pred_check
        %p7535 = pneg %p954
      $region190: #{backbone_forward.1} parent=183 // pred_check_branch
        %7537 = sbr.rel (%p7535) target = $region192
      $region191: #{backbone_forward.1} parent=183 // pred_region
        %p7538 = scmp.lt.s32.totalorder %s92, 1
        %s7539 = scalar_select %p7538, %s92, 1
        %s7540 = scalar_lea.vmem %s79, %s7539
      $region192: #{backbone_forward.1} parent=183 // pred_fallthru
        _
    $region184: #{backbone_forward.1} parent=5 // pred_fallthru
      _
  $region6: #{backbone_forward.1} parent=0 // loop_footer
    %s90 = sadd.s32 1, %s86
  $region7: #{backbone_forward.1} parent=0 // loop_footer_branch
    %85 = sbr.rel target = $region3
  $region8: #{backbone_forward.1} parent=0 // loop_exit
    _

</llo_original>
